<compile_context>
chip_gen: v5e
topology: v5e:2x2
jax: 0.10.0
libtpu: 0.0.40
codegen_flags: <defaults>
</compile_context>

<pallas_src>
import numpy as np
import jax
import jax.numpy as jnp
from jax.experimental import pallas as pl
from jax.experimental.pallas import tpu as pltpu


# ----------------------------- Pallas kernels ------------------------------ #

def conv_block_kernel(p_ref, w_ref, b_ref, scale_ref, shift_ref, o_ref):
    # p_ref:  (4, tm, K) bf16 im2col patches, one slab per 2x2-pool corner;
    #         slab rows are pool-output positions in (batch, i, j) order.
    # w_ref:  (K, Cout) bf16 folded conv weights (zero rows where K is padded).
    # b_ref / scale_ref / shift_ref: (1, Cout) f32.
    # o_ref:  (tm, Cout) bf16 pooled output.
    _, tm, k = p_ref.shape
    # Single MXU dot for all 4 pool corners.
    p = p_ref[...].reshape(4 * tm, k)
    y = jnp.dot(p, w_ref[...], preferred_element_type=jnp.float32)
    y = jnp.maximum(y + b_ref[...], 0.0)                    # bias + ReLU
    y = y * scale_ref[...] + shift_ref[...]                 # BatchNorm2d (eval, folded)
    # 2x2 max-pool: elementwise max over the 4 sublane-aligned corner slices.
    out = jnp.maximum(jnp.maximum(y[:tm], y[tm:2 * tm]),
                      jnp.maximum(y[2 * tm:3 * tm], y[3 * tm:]))
    o_ref[...] = out.astype(o_ref.dtype)


def conv3_mlp_kernel(p_ref, wc_ref, bc_ref, sc_ref, sh_ref,
                     w1_ref, b1_ref, w2_ref, b2_ref, o_ref):
    # Fused: Conv3 block -> Flatten -> Linear(2048,512) -> ReLU -> Dropout(eval)
    #        -> Linear(512, latent).
    # p_ref:  (4, M3, K) bf16 corner patches, M3 = B*4*4.
    # wc_ref: (K, 128) bf16; bc/sc/sh: (1, 128) f32.
    # w1_ref: (16, 128, 512) bf16 fc1 weight, NCHW-flatten order folded in,
    #         one (C, Hd) block per spatial position.
    # w2_ref: (512, latent) bf16; b1/b2: (1, .) f32.   o_ref: (B, latent) f32.
    _, m3, k = p_ref.shape
    cout = wc_ref.shape[-1]
    n_pos, _, hd = w1_ref.shape

    # Conv -> bias -> ReLU -> BN at all 4 pool corners in one MXU dot.
    p = p_ref[...].reshape(4 * m3, k)
    y = jnp.dot(p, wc_ref[...], preferred_element_type=jnp.float32)
    y = jnp.maximum(y + bc_ref[...], 0.0) * sc_ref[...] + sh_ref[...]
    pooled = jnp.maximum(jnp.maximum(y[:m3], y[m3:2 * m3]),
                         jnp.maximum(y[2 * m3:3 * m3], y[3 * m3:]))   # (M3, 128) f32

    # Flatten (PyTorch NCHW order folded into w1p) + fc1: contract each of the
    # 16 spatial positions with its own (C, Hd) weight block, avoiding an
    # in-kernel sublane->lane relayout of the activations.
    bsz = m3 // n_pos
    feat = pooled.reshape(bsz, n_pos, cout)                 # aligned split, free
    h = jnp.zeros((bsz, hd), jnp.float32)
    for pos in range(n_pos):
        xp = feat[:, pos, :].astype(jnp.bfloat16)           # (B, 128)
        h = h + jnp.dot(xp, w1_ref[pos], preferred_element_type=jnp.float32)
    h = jnp.maximum(h + b1_ref[...], 0.0)                   # ReLU
    # Dropout(0.5): eval-mode identity.
    # TODO(synk): train-mode dropout (random mask) not implemented.
    o_ref[...] = jnp.dot(h.astype(w2_ref.dtype), w2_ref[...],
                         preferred_element_type=jnp.float32) + b2_ref[...]


# ------------------------------- JAX glue ---------------------------------- #

def corner_patches(x_nhwc):
    """(B, H, W, C) bf16 -> (4, B*(H/2)*(W/2), K) bf16 pool-corner im2col patches.

    Slab c in {0..3} holds the 3x3/pad-1 patches for conv-output positions
    (2i+a, 2j+b) with (a, b) = divmod(c, 2), i.e. the 4 corners of every 2x2
    max-pool window, all in row order (batch, i, j).  K = 9*C, zero-padded up
    to 128 when 9*C < 128 (layer 0) for dense DMA rows / lanes.
    """
    B, H, W, C = x_nhwc.shape
    Ph, Pw = H // 2, W // 2
    k = 9 * C
    kp = max(k, 128)
    xp = jnp.pad(x_nhwc, ((0, 0), (1, 1), (1, 1), (0, 0)))
    slabs = []
    for a in range(2):
        for b in range(2):
            taps = []
            for kh in range(3):
                for kw in range(3):
                    h0, w0 = a + kh, b + kw
                    taps.append(xp[:, h0:h0 + H - 1:2, w0:w0 + W - 1:2, :])
            if kp > k:
                taps.append(jnp.zeros((B, Ph, Pw, kp - k), x_nhwc.dtype))
            slabs.append(jnp.concatenate(taps, axis=-1).reshape(B * Ph * Pw, kp))
    return jnp.stack(slabs, axis=0)


def _pick_m_tile(m):
    # Prefer >= 2 blocks (v7x megacore) with a bounded per-step tile
    # (batch-safe VMEM usage); otherwise keep everything in one step.
    for t in (512, 256, 128):
        if m % t == 0 and m // t >= 2:
            return t
    return m


def conv_block(patches, wm, bc, scale, shift):
    """Conv2d(3x3,s1,p1) -> ReLU -> BatchNorm2d(eval) -> MaxPool2d(2,2)."""
    _, m, kp = patches.shape
    cout = wm.shape[-1]
    tm = _pick_m_tile(m)
    return pl.pallas_call(
        conv_block_kernel,
        out_shape=jax.ShapeDtypeStruct((m, cout), jnp.bfloat16),
        grid_spec=pltpu.PrefetchScalarGridSpec(
            num_scalar_prefetch=0,
            grid=(m // tm,),
            in_specs=[
                pl.BlockSpec((4, tm, kp), lambda i: (0, i, 0)),
                pl.BlockSpec((kp, cout), lambda i: (0, 0)),    # grid-invariant
                pl.BlockSpec((1, cout), lambda i: (0, 0)),
                pl.BlockSpec((1, cout), lambda i: (0, 0)),
                pl.BlockSpec((1, cout), lambda i: (0, 0)),
            ],
            out_specs=pl.BlockSpec((tm, cout), lambda i: (i, 0)),
        ),
        compiler_params=pltpu.CompilerParams(
            dimension_semantics=("parallel",),
            vmem_limit_bytes=32 * 1024 * 1024,
        ),
    )(patches, wm, bc, scale, shift)


def conv3_mlp(patches, wm, bc, scale, shift, w1p, b1, w2, b2):
    """Fused conv block 3 + Flatten + Linear/ReLU/Dropout(eval) + Linear."""
    _, m3, kp = patches.shape
    cout = wm.shape[-1]
    n_pos, _, hd = w1p.shape
    latent = w2.shape[-1]
    bsz = m3 // n_pos
    return pl.pallas_call(
        conv3_mlp_kernel,
        out_shape=jax.ShapeDtypeStruct((bsz, latent), jnp.float32),
        grid_spec=pltpu.PrefetchScalarGridSpec(
            num_scalar_prefetch=0,
            grid=(1,),
            in_specs=[
                pl.BlockSpec((4, m3, kp), lambda i: (0, 0, 0)),
                pl.BlockSpec((kp, cout), lambda i: (0, 0)),
                pl.BlockSpec((1, cout), lambda i: (0, 0)),
                pl.BlockSpec((1, cout), lambda i: (0, 0)),
                pl.BlockSpec((1, cout), lambda i: (0, 0)),
                pl.BlockSpec((n_pos, cout, hd), lambda i: (0, 0, 0)),
                pl.BlockSpec((1, hd), lambda i: (0, 0)),
                pl.BlockSpec((hd, latent), lambda i: (0, 0)),
                pl.BlockSpec((1, latent), lambda i: (0, 0)),
            ],
            out_specs=pl.BlockSpec((bsz, latent), lambda i: (0, 0)),
        ),
        compiler_params=pltpu.CompilerParams(
            dimension_semantics=("arbitrary",),
            vmem_limit_bytes=32 * 1024 * 1024,
        ),
    )(patches, wm, bc, scale, shift, w1p, b1, w2, b2)


# ---------------------- one-time parameter preparation --------------------- #

def prepare_params(params):
    """Hoisted out of the per-call forward: conv im2col weight fold + bf16
    casts, layer-0 K zero-pad, bias/BN reshapes, fc1 NCHW-flatten permutation."""
    prep = {}
    for i in range(3):
        w = params[f"w{i}"]                               # (3, 3, Cin, Cout) HWIO
        kh, kw, cin, cout = w.shape
        k = kh * kw * cin
        kp = max(k, 128)
        wm = w.reshape(k, cout)
        if kp > k:
            wm = jnp.pad(wm, ((0, kp - k), (0, 0)))       # matches padded patches
        prep[f"wm{i}"] = wm.astype(jnp.bfloat16)
        prep[f"bc{i}"] = params[f"b{i}"].reshape(1, cout)
        prep[f"scale{i}"] = params[f"scale{i}"].reshape(1, cout)
        prep[f"shift{i}"] = params[f"shift{i}"].reshape(1, cout)
    cout3 = params["w2"].shape[-1]                        # 128
    d_in, hd = params["w_fc1"].shape                      # (2048, 512)
    n_pos = d_in // cout3                                 # 16 spatial positions
    # PyTorch Flatten is NCHW (channel-major); our conv-3 output rows are
    # (i, j)-major with channels in lanes, so fold the permutation into fc1:
    # w1p[p, c, :] = w_fc1[c * n_pos + p, :].
    prep["w1p"] = (params["w_fc1"].reshape(cout3, n_pos, hd)
                   .transpose(1, 0, 2).astype(jnp.bfloat16))
    prep["b_fc1"] = params["b_fc1"].reshape(1, hd)
    prep["w_fc2"] = params["w_fc2"].astype(jnp.bfloat16)
    prep["b_fc2"] = params["b_fc2"].reshape(1, -1)
    return prep


# ------------------------- deterministic parameters ------------------------ #

def init_params(key, latent_dim):
    ks = jax.random.split(key, 8)
    params = {}
    eps = 1e-5
    chans = [(3, 32), (32, 64), (64, 128)]
    for i, (cin, cout) in enumerate(chans):
        params[f"w{i}"] = (jax.random.normal(ks[i], (3, 3, cin, cout), jnp.float32)
                           * np.sqrt(2.0 / (9 * cin)))
        params[f"b{i}"] = 0.01 * jnp.arange(cout, dtype=jnp.float32) / cout
        # BatchNorm2d eval-mode parameters & running stats (folded).
        gamma = 1.0 + 0.01 * jnp.arange(cout, dtype=jnp.float32)
        beta = 0.005 * jnp.arange(cout, dtype=jnp.float32)
        r_mean = 0.001 * jnp.arange(cout, dtype=jnp.float32)
        r_var = 1.0 + 0.002 * jnp.arange(cout, dtype=jnp.float32)
        bn_scale = gamma / jnp.sqrt(r_var + eps)
        params[f"scale{i}"] = bn_scale
        params[f"shift{i}"] = beta - r_mean * bn_scale
    d_in, d_hid = 128 * 4 * 4, 512
    params["w_fc1"] = jax.random.normal(ks[4], (d_in, d_hid), jnp.float32) * np.sqrt(1.0 / d_in)
    params["b_fc1"] = 0.01 * jnp.arange(d_hid, dtype=jnp.float32) / d_hid
    params["w_fc2"] = jax.random.normal(ks[5], (d_hid, latent_dim), jnp.float32) * np.sqrt(1.0 / d_hid)
    params["b_fc2"] = 0.01 * jnp.arange(latent_dim, dtype=jnp.float32) / latent_dim
    return params


# ------------------------------ forward passes ------------------------------ #

def encoder_cifar_forward(prep, x_nchw):
    """Forward pass. Input x is NCHW (PyTorch convention), float32."""
    x = jnp.transpose(x_nchw, (0, 2, 3, 1)).astype(jnp.bfloat16)   # NCHW -> NHWC
    bsz = x.shape[0]
    for i in range(2):                                   # conv blocks 1 and 2
        ph, pw = x.shape[1] // 2, x.shape[2] // 2
        y = conv_block(corner_patches(x), prep[f"wm{i}"], prep[f"bc{i}"],
                       prep[f"scale{i}"], prep[f"shift{i}"])
        x = y.reshape(bsz, ph, pw, y.shape[-1])
    # Conv block 3 + Flatten + Linear/ReLU/Dropout(eval) + Linear, one call.
    return conv3_mlp(corner_patches(x), prep["wm2"], prep["bc2"], prep["scale2"],
                     prep["shift2"], prep["w1p"], prep["b_fc1"],
                     prep["w_fc2"], prep["b_fc2"])


def reference_forward(params, x_nchw):
    """Pure-JAX f32 reference (matches the PyTorch module in eval mode)."""
    x = jnp.transpose(x_nchw, (0, 2, 3, 1))
    for i in range(3):
        y = jax.lax.conv_general_dilated(
            x, params[f"w{i}"], window_strides=(1, 1), padding="SAME",
            dimension_numbers=("NHWC", "HWIO", "NHWC"))
        y = y + params[f"b{i}"]
        y = jnp.maximum(y, 0.0)
        y = y * params[f"scale{i}"] + params[f"shift{i}"]
        x = jax.lax.reduce_window(y, -jnp.inf, jax.lax.max,
                                  (1, 2, 2, 1), (1, 2, 2, 1), "VALID")
    B = x.shape[0]
    feat = jnp.transpose(x, (0, 3, 1, 2)).reshape(B, -1)   # PyTorch NCHW Flatten
    h = jnp.maximum(feat @ params["w_fc1"] + params["b_fc1"], 0.0)
    return h @ params["w_fc2"] + params["b_fc2"]


if __name__ == "__main__":
    latent_dim = 64
    key = jax.random.PRNGKey(0)
    kx, kp = jax.random.split(key)
    # CIFAR-sized input: the Linear(128*4*4, ...) layer pins spatial size to 32.
    x = jax.random.normal(kx, (2, 3, 32, 32), jnp.float32)
    params = init_params(kp, latent_dim)
    prep = prepare_params(params)            # one-time weight prep (hoisted)

    out = jax.block_until_ready(jax.jit(encoder_cifar_forward)(prep, x))
    assert out.shape == (2, latent_dim), out.shape
    assert bool(jnp.all(jnp.isfinite(out)))

    # Tolerance check vs. f32 reference (bf16 matmul inputs, f32 accumulation).
    ref = jax.block_until_ready(jax.jit(reference_forward)(params, x))
    err = float(jnp.max(jnp.abs(out - ref)))
    ref_scale = float(jnp.max(jnp.abs(ref)))
    assert err <= 0.08 * ref_scale + 1e-3, (err, ref_scale)

    print("KERNEL_OK")
</pallas_src>

<mosaic_0001>
module attributes {stable_mosaic.version = 11 : i64} {
  func.func @conv_block_kernel(%arg0: i32, %arg1: memref<4x256x128xbf16, #tpu.memory_space<vmem>>, %arg2: memref<128x32xbf16, #tpu.memory_space<vmem>>, %arg3: memref<1x32xf32, #tpu.memory_space<vmem>>, %arg4: memref<1x32xf32, #tpu.memory_space<vmem>>, %arg5: memref<1x32xf32, #tpu.memory_space<vmem>>, %arg6: memref<256x32xbf16, #tpu.memory_space<vmem>>) attributes {dimension_semantics = [#tpu.dimension_semantics<parallel>], iteration_bounds = array<i64: 2>, scalar_prefetch = 0 : i64, scratch_operands = 0 : i64, tpu.core_type = #tpu.core_type<tc>, window_params = [{transform_indices = @transform_0, window_bounds = array<i64: 4, 256, 128>}, {pipeline_mode = #tpu.pipeline_mode<synchronous>, transform_indices = @transform_1, window_bounds = array<i64: 128, 32>}, {pipeline_mode = #tpu.pipeline_mode<synchronous>, transform_indices = @transform_2, window_bounds = array<i64: 1, 32>}, {pipeline_mode = #tpu.pipeline_mode<synchronous>, transform_indices = @transform_3, window_bounds = array<i64: 1, 32>}, {pipeline_mode = #tpu.pipeline_mode<synchronous>, transform_indices = @transform_4, window_bounds = array<i64: 1, 32>}, {transform_indices = @transform_5, window_bounds = array<i64: 256, 32>}]} {
    %c0 = arith.constant 0 : index
    %c0_0 = arith.constant 0 : index
    %c0_1 = arith.constant 0 : index
    %0 = vector.load %arg1[%c0, %c0_0, %c0_1] : memref<4x256x128xbf16, #tpu.memory_space<vmem>>, vector<4x256x128xbf16>
    %1 = vector.shape_cast %0 : vector<4x256x128xbf16> to vector<1024x128xbf16>
    %c0_2 = arith.constant 0 : index
    %c0_3 = arith.constant 0 : index
    %2 = vector.load %arg2[%c0_2, %c0_3] : memref<128x32xbf16, #tpu.memory_space<vmem>>, vector<128x32xbf16>
    %cst = arith.constant dense<0.000000e+00> : vector<1024x32xf32>
    %3 = tpu.matmul %1, %2, %cst {dimension_numbers = #tpu.dot_dimension_numbers<[1], [0], [0], [1], [0, 0, 1, 1], [], []>} : vector<1024x128xbf16>, vector<128x32xbf16>, vector<1024x32xf32> -> vector<1024x32xf32>
    %c0_4 = arith.constant 0 : index
    %c0_5 = arith.constant 0 : index
    %4 = vector.load %arg3[%c0_4, %c0_5] : memref<1x32xf32, #tpu.memory_space<vmem>>, vector<1x32xf32>
    %5 = vector.broadcast %4 : vector<1x32xf32> to vector<1024x32xf32>
    %6 = arith.addf %3, %5 : vector<1024x32xf32>
    %cst_6 = arith.constant 0.000000e+00 : f32
    %7 = vector.broadcast %cst_6 : f32 to vector<1024x32xf32>
    %8 = arith.maximumf %6, %7 : vector<1024x32xf32>
    %c0_7 = arith.constant 0 : index
    %c0_8 = arith.constant 0 : index
    %9 = vector.load %arg4[%c0_7, %c0_8] : memref<1x32xf32, #tpu.memory_space<vmem>>, vector<1x32xf32>
    %10 = vector.broadcast %9 : vector<1x32xf32> to vector<1024x32xf32>
    %11 = arith.mulf %8, %10 : vector<1024x32xf32>
    %c0_9 = arith.constant 0 : index
    %c0_10 = arith.constant 0 : index
    %12 = vector.load %arg5[%c0_9, %c0_10] : memref<1x32xf32, #tpu.memory_space<vmem>>, vector<1x32xf32>
    %13 = vector.broadcast %12 : vector<1x32xf32> to vector<1024x32xf32>
    %14 = arith.addf %11, %13 : vector<1024x32xf32>
    %15 = vector.extract_strided_slice %14 {offsets = [0, 0], sizes = [256, 32], strides = [1, 1]} : vector<1024x32xf32> to vector<256x32xf32>
    %16 = vector.extract_strided_slice %14 {offsets = [256, 0], sizes = [256, 32], strides = [1, 1]} : vector<1024x32xf32> to vector<256x32xf32>
    %17 = arith.maximumf %15, %16 : vector<256x32xf32>
    %18 = vector.extract_strided_slice %14 {offsets = [512, 0], sizes = [256, 32], strides = [1, 1]} : vector<1024x32xf32> to vector<256x32xf32>
    %19 = vector.extract_strided_slice %14 {offsets = [768, 0], sizes = [256, 32], strides = [1, 1]} : vector<1024x32xf32> to vector<256x32xf32>
    %20 = arith.maximumf %18, %19 : vector<256x32xf32>
    %21 = arith.maximumf %17, %20 : vector<256x32xf32>
    %22 = arith.truncf %21 : vector<256x32xf32> to vector<256x32xbf16>
    %c0_11 = arith.constant 0 : index
    %c0_12 = arith.constant 0 : index
    %23 = vector.load %arg6[%c0_11, %c0_12] : memref<256x32xbf16, #tpu.memory_space<vmem>>, vector<256x32xbf16>
    tpu.vector_store %arg6[%c0_11, %c0_12], %22 {strides = array<i32>} : memref<256x32xbf16, #tpu.memory_space<vmem>>, vector<256x32xbf16>,
    return
  }
  func.func @transform_0(%arg0: i32) -> (i32, i32, i32) {
    %c0_i32 = arith.constant 0 : i32
    %c0_i32_0 = arith.constant 0 : i32
    %c0_i32_1 = arith.constant 0 : i32
    return %c0_i32, %arg0, %c0_i32_0 : i32, i32, i32
  }
  func.func @transform_1(%arg0: i32) -> (i32, i32) {
    %c0_i32 = arith.constant 0 : i32
    %c0_i32_0 = arith.constant 0 : i32
    %c0_i32_1 = arith.constant 0 : i32
    return %c0_i32, %c0_i32_0 : i32, i32
  }
  func.func @transform_2(%arg0: i32) -> (i32, i32) {
    %c0_i32 = arith.constant 0 : i32
    %c0_i32_0 = arith.constant 0 : i32
    %c0_i32_1 = arith.constant 0 : i32
    return %c0_i32, %c0_i32_0 : i32, i32
  }
  func.func @transform_3(%arg0: i32) -> (i32, i32) {
    %c0_i32 = arith.constant 0 : i32
    %c0_i32_0 = arith.constant 0 : i32
    %c0_i32_1 = arith.constant 0 : i32
    return %c0_i32, %c0_i32_0 : i32, i32
  }
  func.func @transform_4(%arg0: i32) -> (i32, i32) {
    %c0_i32 = arith.constant 0 : i32
    %c0_i32_0 = arith.constant 0 : i32
    %c0_i32_1 = arith.constant 0 : i32
    return %c0_i32, %c0_i32_0 : i32, i32
  }
  func.func @transform_5(%arg0: i32) -> (i32, i32) {
    %c0_i32 = arith.constant 0 : i32
    %c0_i32_0 = arith.constant 0 : i32
    return %arg0, %c0_i32 : i32, i32
  }
}

module attributes {stable_mosaic.version = 11 : i64} {
  func.func @conv_block_kernel(%arg0: i32, %arg1: memref<4x128x288xbf16, #tpu.memory_space<vmem>>, %arg2: memref<288x64xbf16, #tpu.memory_space<vmem>>, %arg3: memref<1x64xf32, #tpu.memory_space<vmem>>, %arg4: memref<1x64xf32, #tpu.memory_space<vmem>>, %arg5: memref<1x64xf32, #tpu.memory_space<vmem>>, %arg6: memref<128x64xbf16, #tpu.memory_space<vmem>>) attributes {dimension_semantics = [#tpu.dimension_semantics<parallel>], iteration_bounds = array<i64: 1>, scalar_prefetch = 0 : i64, scratch_operands = 0 : i64, tpu.core_type = #tpu.core_type<tc>, window_params = [{transform_indices = @transform_0, window_bounds = array<i64: 4, 128, 288>}, {pipeline_mode = #tpu.pipeline_mode<synchronous>, transform_indices = @transform_1, window_bounds = array<i64: 288, 64>}, {pipeline_mode = #tpu.pipeline_mode<synchronous>, transform_indices = @transform_2, window_bounds = array<i64: 1, 64>}, {pipeline_mode = #tpu.pipeline_mode<synchronous>, transform_indices = @transform_3, window_bounds = array<i64: 1, 64>}, {pipeline_mode = #tpu.pipeline_mode<synchronous>, transform_indices = @transform_4, window_bounds = array<i64: 1, 64>}, {transform_indices = @transform_5, window_bounds = array<i64: 128, 64>}]} {
    %c0 = arith.constant 0 : index
    %c0_0 = arith.constant 0 : index
    %c0_1 = arith.constant 0 : index
    %0 = vector.load %arg1[%c0, %c0_0, %c0_1] : memref<4x128x288xbf16, #tpu.memory_space<vmem>>, vector<4x128x288xbf16>
    %1 = vector.shape_cast %0 : vector<4x128x288xbf16> to vector<512x288xbf16>
    %c0_2 = arith.constant 0 : index
    %c0_3 = arith.constant 0 : index
    %2 = vector.load %arg2[%c0_2, %c0_3] : memref<288x64xbf16, #tpu.memory_space<vmem>>, vector<288x64xbf16>
    %cst = arith.constant dense<0.000000e+00> : vector<512x64xf32>
    %3 = tpu.matmul %1, %2, %cst {dimension_numbers = #tpu.dot_dimension_numbers<[1], [0], [0], [1], [0, 0, 1, 1], [], []>} : vector<512x288xbf16>, vector<288x64xbf16>, vector<512x64xf32> -> vector<512x64xf32>
    %c0_4 = arith.constant 0 : index
    %c0_5 = arith.constant 0 : index
    %4 = vector.load %arg3[%c0_4, %c0_5] : memref<1x64xf32, #tpu.memory_space<vmem>>, vector<1x64xf32>
    %5 = vector.broadcast %4 : vector<1x64xf32> to vector<512x64xf32>
    %6 = arith.addf %3, %5 : vector<512x64xf32>
    %cst_6 = arith.constant 0.000000e+00 : f32
    %7 = vector.broadcast %cst_6 : f32 to vector<512x64xf32>
    %8 = arith.maximumf %6, %7 : vector<512x64xf32>
    %c0_7 = arith.constant 0 : index
    %c0_8 = arith.constant 0 : index
    %9 = vector.load %arg4[%c0_7, %c0_8] : memref<1x64xf32, #tpu.memory_space<vmem>>, vector<1x64xf32>
    %10 = vector.broadcast %9 : vector<1x64xf32> to vector<512x64xf32>
    %11 = arith.mulf %8, %10 : vector<512x64xf32>
    %c0_9 = arith.constant 0 : index
    %c0_10 = arith.constant 0 : index
    %12 = vector.load %arg5[%c0_9, %c0_10] : memref<1x64xf32, #tpu.memory_space<vmem>>, vector<1x64xf32>
    %13 = vector.broadcast %12 : vector<1x64xf32> to vector<512x64xf32>
    %14 = arith.addf %11, %13 : vector<512x64xf32>
    %15 = vector.extract_strided_slice %14 {offsets = [0, 0], sizes = [128, 64], strides = [1, 1]} : vector<512x64xf32> to vector<128x64xf32>
    %16 = vector.extract_strided_slice %14 {offsets = [128, 0], sizes = [128, 64], strides = [1, 1]} : vector<512x64xf32> to vector<128x64xf32>
    %17 = arith.maximumf %15, %16 : vector<128x64xf32>
    %18 = vector.extract_strided_slice %14 {offsets = [256, 0], sizes = [128, 64], strides = [1, 1]} : vector<512x64xf32> to vector<128x64xf32>
    %19 = vector.extract_strided_slice %14 {offsets = [384, 0], sizes = [128, 64], strides = [1, 1]} : vector<512x64xf32> to vector<128x64xf32>
    %20 = arith.maximumf %18, %19 : vector<128x64xf32>
    %21 = arith.maximumf %17, %20 : vector<128x64xf32>
    %22 = arith.truncf %21 : vector<128x64xf32> to vector<128x64xbf16>
    %c0_11 = arith.constant 0 : index
    %c0_12 = arith.constant 0 : index
    %23 = vector.load %arg6[%c0_11, %c0_12] : memref<128x64xbf16, #tpu.memory_space<vmem>>, vector<128x64xbf16>
    tpu.vector_store %arg6[%c0_11, %c0_12], %22 {strides = array<i32>} : memref<128x64xbf16, #tpu.memory_space<vmem>>, vector<128x64xbf16>,
    return
  }
  func.func @transform_0(%arg0: i32) -> (i32, i32, i32) {
    %c0_i32 = arith.constant 0 : i32
    %c0_i32_0 = arith.constant 0 : i32
    %c0_i32_1 = arith.constant 0 : i32
    return %c0_i32, %arg0, %c0_i32_0 : i32, i32, i32
  }
  func.func @transform_1(%arg0: i32) -> (i32, i32) {
    %c0_i32 = arith.constant 0 : i32
    %c0_i32_0 = arith.constant 0 : i32
    %c0_i32_1 = arith.constant 0 : i32
    return %c0_i32, %c0_i32_0 : i32, i32
  }
  func.func @transform_2(%arg0: i32) -> (i32, i32) {
    %c0_i32 = arith.constant 0 : i32
    %c0_i32_0 = arith.constant 0 : i32
    %c0_i32_1 = arith.constant 0 : i32
    return %c0_i32, %c0_i32_0 : i32, i32
  }
  func.func @transform_3(%arg0: i32) -> (i32, i32) {
    %c0_i32 = arith.constant 0 : i32
    %c0_i32_0 = arith.constant 0 : i32
    %c0_i32_1 = arith.constant 0 : i32
    return %c0_i32, %c0_i32_0 : i32, i32
  }
  func.func @transform_4(%arg0: i32) -> (i32, i32) {
    %c0_i32 = arith.constant 0 : i32
    %c0_i32_0 = arith.constant 0 : i32
    %c0_i32_1 = arith.constant 0 : i32
    return %c0_i32, %c0_i32_0 : i32, i32
  }
  func.func @transform_5(%arg0: i32) -> (i32, i32) {
    %c0_i32 = arith.constant 0 : i32
    %c0_i32_0 = arith.constant 0 : i32
    return %arg0, %c0_i32 : i32, i32
  }
}

module attributes {stable_mosaic.version = 11 : i64} {
  func.func @conv3_mlp_kernel(%arg0: i32, %arg1: memref<4x32x576xbf16, #tpu.memory_space<vmem>>, %arg2: memref<576x128xbf16, #tpu.memory_space<vmem>>, %arg3: memref<1x128xf32, #tpu.memory_space<vmem>>, %arg4: memref<1x128xf32, #tpu.memory_space<vmem>>, %arg5: memref<1x128xf32, #tpu.memory_space<vmem>>, %arg6: memref<16x128x512xbf16, #tpu.memory_space<vmem>>, %arg7: memref<1x512xf32, #tpu.memory_space<vmem>>, %arg8: memref<512x64xbf16, #tpu.memory_space<vmem>>, %arg9: memref<1x64xf32, #tpu.memory_space<vmem>>, %arg10: memref<2x64xf32, #tpu.memory_space<vmem>>) attributes {dimension_semantics = [#tpu.dimension_semantics<arbitrary>], iteration_bounds = array<i64: 1>, scalar_prefetch = 0 : i64, scratch_operands = 0 : i64, tpu.core_type = #tpu.core_type<tc>, window_params = [{pipeline_mode = #tpu.pipeline_mode<synchronous>, transform_indices = @transform_0, window_bounds = array<i64: 4, 32, 576>}, {pipeline_mode = #tpu.pipeline_mode<synchronous>, transform_indices = @transform_1, window_bounds = array<i64: 576, 128>}, {pipeline_mode = #tpu.pipeline_mode<synchronous>, transform_indices = @transform_2, window_bounds = array<i64: 1, 128>}, {pipeline_mode = #tpu.pipeline_mode<synchronous>, transform_indices = @transform_3, window_bounds = array<i64: 1, 128>}, {pipeline_mode = #tpu.pipeline_mode<synchronous>, transform_indices = @transform_4, window_bounds = array<i64: 1, 128>}, {pipeline_mode = #tpu.pipeline_mode<synchronous>, transform_indices = @transform_5, window_bounds = array<i64: 16, 128, 512>}, {pipeline_mode = #tpu.pipeline_mode<synchronous>, transform_indices = @transform_6, window_bounds = array<i64: 1, 512>}, {pipeline_mode = #tpu.pipeline_mode<synchronous>, transform_indices = @transform_7, window_bounds = array<i64: 512, 64>}, {pipeline_mode = #tpu.pipeline_mode<synchronous>, transform_indices = @transform_8, window_bounds = array<i64: 1, 64>}, {pipeline_mode = #tpu.pipeline_mode<synchronous>, transform_indices = @transform_9, window_bounds = array<i64: 2, 64>}]} {
    %c0 = arith.constant 0 : index
    %c0_0 = arith.constant 0 : index
    %c0_1 = arith.constant 0 : index
    %0 = vector.load %arg1[%c0, %c0_0, %c0_1] : memref<4x32x576xbf16, #tpu.memory_space<vmem>>, vector<4x32x576xbf16>
    %1 = vector.shape_cast %0 : vector<4x32x576xbf16> to vector<128x576xbf16>
    %c0_2 = arith.constant 0 : index
    %c0_3 = arith.constant 0 : index
    %2 = vector.load %arg2[%c0_2, %c0_3] : memref<576x128xbf16, #tpu.memory_space<vmem>>, vector<576x128xbf16>
    %cst = arith.constant dense<0.000000e+00> : vector<128x128xf32>
    %3 = tpu.matmul %1, %2, %cst {dimension_numbers = #tpu.dot_dimension_numbers<[1], [0], [0], [1], [0, 0, 1, 1], [], []>} : vector<128x576xbf16>, vector<576x128xbf16>, vector<128x128xf32> -> vector<128x128xf32>
    %c0_4 = arith.constant 0 : index
    %c0_5 = arith.constant 0 : index
    %4 = vector.load %arg3[%c0_4, %c0_5] : memref<1x128xf32, #tpu.memory_space<vmem>>, vector<1x128xf32>
    %5 = vector.broadcast %4 : vector<1x128xf32> to vector<128x128xf32>
    %6 = arith.addf %3, %5 : vector<128x128xf32>
    %cst_6 = arith.constant 0.000000e+00 : f32
    %7 = vector.broadcast %cst_6 : f32 to vector<128x128xf32>
    %8 = arith.maximumf %6, %7 : vector<128x128xf32>
    %c0_7 = arith.constant 0 : index
    %c0_8 = arith.constant 0 : index
    %9 = vector.load %arg4[%c0_7, %c0_8] : memref<1x128xf32, #tpu.memory_space<vmem>>, vector<1x128xf32>
    %10 = vector.broadcast %9 : vector<1x128xf32> to vector<128x128xf32>
    %11 = arith.mulf %8, %10 : vector<128x128xf32>
    %c0_9 = arith.constant 0 : index
    %c0_10 = arith.constant 0 : index
    %12 = vector.load %arg5[%c0_9, %c0_10] : memref<1x128xf32, #tpu.memory_space<vmem>>, vector<1x128xf32>
    %13 = vector.broadcast %12 : vector<1x128xf32> to vector<128x128xf32>
    %14 = arith.addf %11, %13 : vector<128x128xf32>
    %15 = vector.extract_strided_slice %14 {offsets = [0, 0], sizes = [32, 128], strides = [1, 1]} : vector<128x128xf32> to vector<32x128xf32>
    %16 = vector.extract_strided_slice %14 {offsets = [32, 0], sizes = [32, 128], strides = [1, 1]} : vector<128x128xf32> to vector<32x128xf32>
    %17 = arith.maximumf %15, %16 : vector<32x128xf32>
    %18 = vector.extract_strided_slice %14 {offsets = [64, 0], sizes = [32, 128], strides = [1, 1]} : vector<128x128xf32> to vector<32x128xf32>
    %19 = vector.extract_strided_slice %14 {offsets = [96, 0], sizes = [32, 128], strides = [1, 1]} : vector<128x128xf32> to vector<32x128xf32>
    %20 = arith.maximumf %18, %19 : vector<32x128xf32>
    %21 = arith.maximumf %17, %20 : vector<32x128xf32>
    %22 = vector.shape_cast %21 : vector<32x128xf32> to vector<2x16x128xf32>
    %cst_11 = arith.constant 0.000000e+00 : f32
    %23 = vector.broadcast %cst_11 : f32 to vector<2x512xf32>
    %24 = vector.extract_strided_slice %22 {offsets = [0, 0, 0], sizes = [2, 1, 128], strides = [1, 1, 1]} : vector<2x16x128xf32> to vector<2x1x128xf32>
    %25 = vector.shape_cast %24 : vector<2x1x128xf32> to vector<2x128xf32>
    %26 = arith.truncf %25 : vector<2x128xf32> to vector<2x128xbf16>
    %c0_12 = arith.constant 0 : index
    %c0_13 = arith.constant 0 : index
    %c0_14 = arith.constant 0 : index
    %27 = vector.load %arg6[%c0_12, %c0_13, %c0_14] : memref<16x128x512xbf16, #tpu.memory_space<vmem>>, vector<1x128x512xbf16>
    %28 = vector.shape_cast %27 : vector<1x128x512xbf16> to vector<128x512xbf16>
    %cst_15 = arith.constant dense<0.000000e+00> : vector<2x512xf32>
    %29 = tpu.matmul %26, %28, %cst_15 {dimension_numbers = #tpu.dot_dimension_numbers<[1], [0], [0], [1], [0, 0, 1, 1], [], []>} : vector<2x128xbf16>, vector<128x512xbf16>, vector<2x512xf32> -> vector<2x512xf32>
    %30 = arith.addf %23, %29 : vector<2x512xf32>
    %31 = vector.extract_strided_slice %22 {offsets = [0, 1, 0], sizes = [2, 1, 128], strides = [1, 1, 1]} : vector<2x16x128xf32> to vector<2x1x128xf32>
    %32 = vector.shape_cast %31 : vector<2x1x128xf32> to vector<2x128xf32>
    %33 = arith.truncf %32 : vector<2x128xf32> to vector<2x128xbf16>
    %c1 = arith.constant 1 : index
    %c0_16 = arith.constant 0 : index
    %c0_17 = arith.constant 0 : index
    %34 = vector.load %arg6[%c1, %c0_16, %c0_17] : memref<16x128x512xbf16, #tpu.memory_space<vmem>>, vector<1x128x512xbf16>
    %35 = vector.shape_cast %34 : vector<1x128x512xbf16> to vector<128x512xbf16>
    %cst_18 = arith.constant dense<0.000000e+00> : vector<2x512xf32>
    %36 = tpu.matmul %33, %35, %cst_18 {dimension_numbers = #tpu.dot_dimension_numbers<[1], [0], [0], [1], [0, 0, 1, 1], [], []>} : vector<2x128xbf16>, vector<128x512xbf16>, vector<2x512xf32> -> vector<2x512xf32>
    %37 = arith.addf %30, %36 : vector<2x512xf32>
    %38 = vector.extract_strided_slice %22 {offsets = [0, 2, 0], sizes = [2, 1, 128], strides = [1, 1, 1]} : vector<2x16x128xf32> to vector<2x1x128xf32>
    %39 = vector.shape_cast %38 : vector<2x1x128xf32> to vector<2x128xf32>
    %40 = arith.truncf %39 : vector<2x128xf32> to vector<2x128xbf16>
    %c2 = arith.constant 2 : index
    %c0_19 = arith.constant 0 : index
    %c0_20 = arith.constant 0 : index
    %41 = vector.load %arg6[%c2, %c0_19, %c0_20] : memref<16x128x512xbf16, #tpu.memory_space<vmem>>, vector<1x128x512xbf16>
    %42 = vector.shape_cast %41 : vector<1x128x512xbf16> to vector<128x512xbf16>
    %cst_21 = arith.constant dense<0.000000e+00> : vector<2x512xf32>
    %43 = tpu.matmul %40, %42, %cst_21 {dimension_numbers = #tpu.dot_dimension_numbers<[1], [0], [0], [1], [0, 0, 1, 1], [], []>} : vector<2x128xbf16>, vector<128x512xbf16>, vector<2x512xf32> -> vector<2x512xf32>
    %44 = arith.addf %37, %43 : vector<2x512xf32>
    %45 = vector.extract_strided_slice %22 {offsets = [0, 3, 0], sizes = [2, 1, 128], strides = [1, 1, 1]} : vector<2x16x128xf32> to vector<2x1x128xf32>
    %46 = vector.shape_cast %45 : vector<2x1x128xf32> to vector<2x128xf32>
    %47 = arith.truncf %46 : vector<2x128xf32> to vector<2x128xbf16>
    %c3 = arith.constant 3 : index
    %c0_22 = arith.constant 0 : index
    %c0_23 = arith.constant 0 : index
    %48 = vector.load %arg6[%c3, %c0_22, %c0_23] : memref<16x128x512xbf16, #tpu.memory_space<vmem>>, vector<1x128x512xbf16>
    %49 = vector.shape_cast %48 : vector<1x128x512xbf16> to vector<128x512xbf16>
    %cst_24 = arith.constant dense<0.000000e+00> : vector<2x512xf32>
    %50 = tpu.matmul %47, %49, %cst_24 {dimension_numbers = #tpu.dot_dimension_numbers<[1], [0], [0], [1], [0, 0, 1, 1], [], []>} : vector<2x128xbf16>, vector<128x512xbf16>, vector<2x512xf32> -> vector<2x512xf32>
    %51 = arith.addf %44, %50 : vector<2x512xf32>
    %52 = vector.extract_strided_slice %22 {offsets = [0, 4, 0], sizes = [2, 1, 128], strides = [1, 1, 1]} : vector<2x16x128xf32> to vector<2x1x128xf32>
    %53 = vector.shape_cast %52 : vector<2x1x128xf32> to vector<2x128xf32>
    %54 = arith.truncf %53 : vector<2x128xf32> to vector<2x128xbf16>
    %c4 = arith.constant 4 : index
    %c0_25 = arith.constant 0 : index
    %c0_26 = arith.constant 0 : index
    %55 = vector.load %arg6[%c4, %c0_25, %c0_26] : memref<16x128x512xbf16, #tpu.memory_space<vmem>>, vector<1x128x512xbf16>
    %56 = vector.shape_cast %55 : vector<1x128x512xbf16> to vector<128x512xbf16>
    %cst_27 = arith.constant dense<0.000000e+00> : vector<2x512xf32>
    %57 = tpu.matmul %54, %56, %cst_27 {dimension_numbers = #tpu.dot_dimension_numbers<[1], [0], [0], [1], [0, 0, 1, 1], [], []>} : vector<2x128xbf16>, vector<128x512xbf16>, vector<2x512xf32> -> vector<2x512xf32>
    %58 = arith.addf %51, %57 : vector<2x512xf32>
    %59 = vector.extract_strided_slice %22 {offsets = [0, 5, 0], sizes = [2, 1, 128], strides = [1, 1, 1]} : vector<2x16x128xf32> to vector<2x1x128xf32>
    %60 = vector.shape_cast %59 : vector<2x1x128xf32> to vector<2x128xf32>
    %61 = arith.truncf %60 : vector<2x128xf32> to vector<2x128xbf16>
    %c5 = arith.constant 5 : index
    %c0_28 = arith.constant 0 : index
    %c0_29 = arith.constant 0 : index
    %62 = vector.load %arg6[%c5, %c0_28, %c0_29] : memref<16x128x512xbf16, #tpu.memory_space<vmem>>, vector<1x128x512xbf16>
    %63 = vector.shape_cast %62 : vector<1x128x512xbf16> to vector<128x512xbf16>
    %cst_30 = arith.constant dense<0.000000e+00> : vector<2x512xf32>
    %64 = tpu.matmul %61, %63, %cst_30 {dimension_numbers = #tpu.dot_dimension_numbers<[1], [0], [0], [1], [0, 0, 1, 1], [], []>} : vector<2x128xbf16>, vector<128x512xbf16>, vector<2x512xf32> -> vector<2x512xf32>
    %65 = arith.addf %58, %64 : vector<2x512xf32>
    %66 = vector.extract_strided_slice %22 {offsets = [0, 6, 0], sizes = [2, 1, 128], strides = [1, 1, 1]} : vector<2x16x128xf32> to vector<2x1x128xf32>
    %67 = vector.shape_cast %66 : vector<2x1x128xf32> to vector<2x128xf32>
    %68 = arith.truncf %67 : vector<2x128xf32> to vector<2x128xbf16>
    %c6 = arith.constant 6 : index
    %c0_31 = arith.constant 0 : index
    %c0_32 = arith.constant 0 : index
    %69 = vector.load %arg6[%c6, %c0_31, %c0_32] : memref<16x128x512xbf16, #tpu.memory_space<vmem>>, vector<1x128x512xbf16>
    %70 = vector.shape_cast %69 : vector<1x128x512xbf16> to vector<128x512xbf16>
    %cst_33 = arith.constant dense<0.000000e+00> : vector<2x512xf32>
    %71 = tpu.matmul %68, %70, %cst_33 {dimension_numbers = #tpu.dot_dimension_numbers<[1], [0], [0], [1], [0, 0, 1, 1], [], []>} : vector<2x128xbf16>, vector<128x512xbf16>, vector<2x512xf32> -> vector<2x512xf32>
    %72 = arith.addf %65, %71 : vector<2x512xf32>
    %73 = vector.extract_strided_slice %22 {offsets = [0, 7, 0], sizes = [2, 1, 128], strides = [1, 1, 1]} : vector<2x16x128xf32> to vector<2x1x128xf32>
    %74 = vector.shape_cast %73 : vector<2x1x128xf32> to vector<2x128xf32>
    %75 = arith.truncf %74 : vector<2x128xf32> to vector<2x128xbf16>
    %c7 = arith.constant 7 : index
    %c0_34 = arith.constant 0 : index
    %c0_35 = arith.constant 0 : index
    %76 = vector.load %arg6[%c7, %c0_34, %c0_35] : memref<16x128x512xbf16, #tpu.memory_space<vmem>>, vector<1x128x512xbf16>
    %77 = vector.shape_cast %76 : vector<1x128x512xbf16> to vector<128x512xbf16>
    %cst_36 = arith.constant dense<0.000000e+00> : vector<2x512xf32>
    %78 = tpu.matmul %75, %77, %cst_36 {dimension_numbers = #tpu.dot_dimension_numbers<[1], [0], [0], [1], [0, 0, 1, 1], [], []>} : vector<2x128xbf16>, vector<128x512xbf16>, vector<2x512xf32> -> vector<2x512xf32>
    %79 = arith.addf %72, %78 : vector<2x512xf32>
    %80 = vector.extract_strided_slice %22 {offsets = [0, 8, 0], sizes = [2, 1, 128], strides = [1, 1, 1]} : vector<2x16x128xf32> to vector<2x1x128xf32>
    %81 = vector.shape_cast %80 : vector<2x1x128xf32> to vector<2x128xf32>
    %82 = arith.truncf %81 : vector<2x128xf32> to vector<2x128xbf16>
    %c8 = arith.constant 8 : index
    %c0_37 = arith.constant 0 : index
    %c0_38 = arith.constant 0 : index
    %83 = vector.load %arg6[%c8, %c0_37, %c0_38] : memref<16x128x512xbf16, #tpu.memory_space<vmem>>, vector<1x128x512xbf16>
    %84 = vector.shape_cast %83 : vector<1x128x512xbf16> to vector<128x512xbf16>
    %cst_39 = arith.constant dense<0.000000e+00> : vector<2x512xf32>
    %85 = tpu.matmul %82, %84, %cst_39 {dimension_numbers = #tpu.dot_dimension_numbers<[1], [0], [0], [1], [0, 0, 1, 1], [], []>} : vector<2x128xbf16>, vector<128x512xbf16>, vector<2x512xf32> -> vector<2x512xf32>
    %86 = arith.addf %79, %85 : vector<2x512xf32>
    %87 = vector.extract_strided_slice %22 {offsets = [0, 9, 0], sizes = [2, 1, 128], strides = [1, 1, 1]} : vector<2x16x128xf32> to vector<2x1x128xf32>
    %88 = vector.shape_cast %87 : vector<2x1x128xf32> to vector<2x128xf32>
    %89 = arith.truncf %88 : vector<2x128xf32> to vector<2x128xbf16>
    %c9 = arith.constant 9 : index
    %c0_40 = arith.constant 0 : index
    %c0_41 = arith.constant 0 : index
    %90 = vector.load %arg6[%c9, %c0_40, %c0_41] : memref<16x128x512xbf16, #tpu.memory_space<vmem>>, vector<1x128x512xbf16>
    %91 = vector.shape_cast %90 : vector<1x128x512xbf16> to vector<128x512xbf16>
    %cst_42 = arith.constant dense<0.000000e+00> : vector<2x512xf32>
    %92 = tpu.matmul %89, %91, %cst_42 {dimension_numbers = #tpu.dot_dimension_numbers<[1], [0], [0], [1], [0, 0, 1, 1], [], []>} : vector<2x128xbf16>, vector<128x512xbf16>, vector<2x512xf32> -> vector<2x512xf32>
    %93 = arith.addf %86, %92 : vector<2x512xf32>
    %94 = vector.extract_strided_slice %22 {offsets = [0, 10, 0], sizes = [2, 1, 128], strides = [1, 1, 1]} : vector<2x16x128xf32> to vector<2x1x128xf32>
    %95 = vector.shape_cast %94 : vector<2x1x128xf32> to vector<2x128xf32>
    %96 = arith.truncf %95 : vector<2x128xf32> to vector<2x128xbf16>
    %c10 = arith.constant 10 : index
    %c0_43 = arith.constant 0 : index
    %c0_44 = arith.constant 0 : index
    %97 = vector.load %arg6[%c10, %c0_43, %c0_44] : memref<16x128x512xbf16, #tpu.memory_space<vmem>>, vector<1x128x512xbf16>
    %98 = vector.shape_cast %97 : vector<1x128x512xbf16> to vector<128x512xbf16>
    %cst_45 = arith.constant dense<0.000000e+00> : vector<2x512xf32>
    %99 = tpu.matmul %96, %98, %cst_45 {dimension_numbers = #tpu.dot_dimension_numbers<[1], [0], [0], [1], [0, 0, 1, 1], [], []>} : vector<2x128xbf16>, vector<128x512xbf16>, vector<2x512xf32> -> vector<2x512xf32>
    %100 = arith.addf %93, %99 : vector<2x512xf32>
    %101 = vector.extract_strided_slice %22 {offsets = [0, 11, 0], sizes = [2, 1, 128], strides = [1, 1, 1]} : vector<2x16x128xf32> to vector<2x1x128xf32>
    %102 = vector.shape_cast %101 : vector<2x1x128xf32> to vector<2x128xf32>
    %103 = arith.truncf %102 : vector<2x128xf32> to vector<2x128xbf16>
    %c11 = arith.constant 11 : index
    %c0_46 = arith.constant 0 : index
    %c0_47 = arith.constant 0 : index
    %104 = vector.load %arg6[%c11, %c0_46, %c0_47] : memref<16x128x512xbf16, #tpu.memory_space<vmem>>, vector<1x128x512xbf16>
    %105 = vector.shape_cast %104 : vector<1x128x512xbf16> to vector<128x512xbf16>
    %cst_48 = arith.constant dense<0.000000e+00> : vector<2x512xf32>
    %106 = tpu.matmul %103, %105, %cst_48 {dimension_numbers = #tpu.dot_dimension_numbers<[1], [0], [0], [1], [0, 0, 1, 1], [], []>} : vector<2x128xbf16>, vector<128x512xbf16>, vector<2x512xf32> -> vector<2x512xf32>
    %107 = arith.addf %100, %106 : vector<2x512xf32>
    %108 = vector.extract_strided_slice %22 {offsets = [0, 12, 0], sizes = [2, 1, 128], strides = [1, 1, 1]} : vector<2x16x128xf32> to vector<2x1x128xf32>
    %109 = vector.shape_cast %108 : vector<2x1x128xf32> to vector<2x128xf32>
    %110 = arith.truncf %109 : vector<2x128xf32> to vector<2x128xbf16>
    %c12 = arith.constant 12 : index
    %c0_49 = arith.constant 0 : index
    %c0_50 = arith.constant 0 : index
    %111 = vector.load %arg6[%c12, %c0_49, %c0_50] : memref<16x128x512xbf16, #tpu.memory_space<vmem>>, vector<1x128x512xbf16>
    %112 = vector.shape_cast %111 : vector<1x128x512xbf16> to vector<128x512xbf16>
    %cst_51 = arith.constant dense<0.000000e+00> : vector<2x512xf32>
    %113 = tpu.matmul %110, %112, %cst_51 {dimension_numbers = #tpu.dot_dimension_numbers<[1], [0], [0], [1], [0, 0, 1, 1], [], []>} : vector<2x128xbf16>, vector<128x512xbf16>, vector<2x512xf32> -> vector<2x512xf32>
    %114 = arith.addf %107, %113 : vector<2x512xf32>
    %115 = vector.extract_strided_slice %22 {offsets = [0, 13, 0], sizes = [2, 1, 128], strides = [1, 1, 1]} : vector<2x16x128xf32> to vector<2x1x128xf32>
    %116 = vector.shape_cast %115 : vector<2x1x128xf32> to vector<2x128xf32>
    %117 = arith.truncf %116 : vector<2x128xf32> to vector<2x128xbf16>
    %c13 = arith.constant 13 : index
    %c0_52 = arith.constant 0 : index
    %c0_53 = arith.constant 0 : index
    %118 = vector.load %arg6[%c13, %c0_52, %c0_53] : memref<16x128x512xbf16, #tpu.memory_space<vmem>>, vector<1x128x512xbf16>
    %119 = vector.shape_cast %118 : vector<1x128x512xbf16> to vector<128x512xbf16>
    %cst_54 = arith.constant dense<0.000000e+00> : vector<2x512xf32>
    %120 = tpu.matmul %117, %119, %cst_54 {dimension_numbers = #tpu.dot_dimension_numbers<[1], [0], [0], [1], [0, 0, 1, 1], [], []>} : vector<2x128xbf16>, vector<128x512xbf16>, vector<2x512xf32> -> vector<2x512xf32>
    %121 = arith.addf %114, %120 : vector<2x512xf32>
    %122 = vector.extract_strided_slice %22 {offsets = [0, 14, 0], sizes = [2, 1, 128], strides = [1, 1, 1]} : vector<2x16x128xf32> to vector<2x1x128xf32>
    %123 = vector.shape_cast %122 : vector<2x1x128xf32> to vector<2x128xf32>
    %124 = arith.truncf %123 : vector<2x128xf32> to vector<2x128xbf16>
    %c14 = arith.constant 14 : index
    %c0_55 = arith.constant 0 : index
    %c0_56 = arith.constant 0 : index
    %125 = vector.load %arg6[%c14, %c0_55, %c0_56] : memref<16x128x512xbf16, #tpu.memory_space<vmem>>, vector<1x128x512xbf16>
    %126 = vector.shape_cast %125 : vector<1x128x512xbf16> to vector<128x512xbf16>
    %cst_57 = arith.constant dense<0.000000e+00> : vector<2x512xf32>
    %127 = tpu.matmul %124, %126, %cst_57 {dimension_numbers = #tpu.dot_dimension_numbers<[1], [0], [0], [1], [0, 0, 1, 1], [], []>} : vector<2x128xbf16>, vector<128x512xbf16>, vector<2x512xf32> -> vector<2x512xf32>
    %128 = arith.addf %121, %127 : vector<2x512xf32>
    %129 = vector.extract_strided_slice %22 {offsets = [0, 15, 0], sizes = [2, 1, 128], strides = [1, 1, 1]} : vector<2x16x128xf32> to vector<2x1x128xf32>
    %130 = vector.shape_cast %129 : vector<2x1x128xf32> to vector<2x128xf32>
    %131 = arith.truncf %130 : vector<2x128xf32> to vector<2x128xbf16>
    %c15 = arith.constant 15 : index
    %c0_58 = arith.constant 0 : index
    %c0_59 = arith.constant 0 : index
    %132 = vector.load %arg6[%c15, %c0_58, %c0_59] : memref<16x128x512xbf16, #tpu.memory_space<vmem>>, vector<1x128x512xbf16>
    %133 = vector.shape_cast %132 : vector<1x128x512xbf16> to vector<128x512xbf16>
    %cst_60 = arith.constant dense<0.000000e+00> : vector<2x512xf32>
    %134 = tpu.matmul %131, %133, %cst_60 {dimension_numbers = #tpu.dot_dimension_numbers<[1], [0], [0], [1], [0, 0, 1, 1], [], []>} : vector<2x128xbf16>, vector<128x512xbf16>, vector<2x512xf32> -> vector<2x512xf32>
    %135 = arith.addf %128, %134 : vector<2x512xf32>
    %c0_61 = arith.constant 0 : index
    %c0_62 = arith.constant 0 : index
    %136 = vector.load %arg7[%c0_61, %c0_62] : memref<1x512xf32, #tpu.memory_space<vmem>>, vector<1x512xf32>
    %137 = vector.broadcast %136 : vector<1x512xf32> to vector<2x512xf32>
    %138 = arith.addf %135, %137 : vector<2x512xf32>
    %cst_63 = arith.constant 0.000000e+00 : f32
    %139 = vector.broadcast %cst_63 : f32 to vector<2x512xf32>
    %140 = arith.maximumf %138, %139 : vector<2x512xf32>
    %141 = arith.truncf %140 : vector<2x512xf32> to vector<2x512xbf16>
    %c0_64 = arith.constant 0 : index
    %c0_65 = arith.constant 0 : index
    %142 = vector.load %arg8[%c0_64, %c0_65] : memref<512x64xbf16, #tpu.memory_space<vmem>>, vector<512x64xbf16>
    %cst_66 = arith.constant dense<0.000000e+00> : vector<2x64xf32>
    %143 = tpu.matmul %141, %142, %cst_66 {dimension_numbers = #tpu.dot_dimension_numbers<[1], [0], [0], [1], [0, 0, 1, 1], [], []>} : vector<2x512xbf16>, vector<512x64xbf16>, vector<2x64xf32> -> vector<2x64xf32>
    %c0_67 = arith.constant 0 : index
    %c0_68 = arith.constant 0 : index
    %144 = vector.load %arg9[%c0_67, %c0_68] : memref<1x64xf32, #tpu.memory_space<vmem>>, vector<1x64xf32>
    %145 = vector.broadcast %144 : vector<1x64xf32> to vector<2x64xf32>
    %146 = arith.addf %143, %145 : vector<2x64xf32>
    %c0_69 = arith.constant 0 : index
    %c0_70 = arith.constant 0 : index
    %147 = vector.load %arg10[%c0_69, %c0_70] : memref<2x64xf32, #tpu.memory_space<vmem>>, vector<2x64xf32>
    tpu.vector_store %arg10[%c0_69, %c0_70], %146 {strides = array<i32>} : memref<2x64xf32, #tpu.memory_space<vmem>>, vector<2x64xf32>,
    return
  }
  func.func @transform_0(%arg0: i32) -> (i32, i32, i32) {
    %c0_i32 = arith.constant 0 : i32
    %c0_i32_0 = arith.constant 0 : i32
    %c0_i32_1 = arith.constant 0 : i32
    %c0_i32_2 = arith.constant 0 : i32
    return %c0_i32, %c0_i32_0, %c0_i32_1 : i32, i32, i32
  }
  func.func @transform_1(%arg0: i32) -> (i32, i32) {
    %c0_i32 = arith.constant 0 : i32
    %c0_i32_0 = arith.constant 0 : i32
    %c0_i32_1 = arith.constant 0 : i32
    return %c0_i32, %c0_i32_0 : i32, i32
  }
  func.func @transform_2(%arg0: i32) -> (i32, i32) {
    %c0_i32 = arith.constant 0 : i32
    %c0_i32_0 = arith.constant 0 : i32
    %c0_i32_1 = arith.constant 0 : i32
    return %c0_i32, %c0_i32_0 : i32, i32
  }
  func.func @transform_3(%arg0: i32) -> (i32, i32) {
    %c0_i32 = arith.constant 0 : i32
    %c0_i32_0 = arith.constant 0 : i32
    %c0_i32_1 = arith.constant 0 : i32
    return %c0_i32, %c0_i32_0 : i32, i32
  }
  func.func @transform_4(%arg0: i32) -> (i32, i32) {
    %c0_i32 = arith.constant 0 : i32
    %c0_i32_0 = arith.constant 0 : i32
    %c0_i32_1 = arith.constant 0 : i32
    return %c0_i32, %c0_i32_0 : i32, i32
  }
  func.func @transform_5(%arg0: i32) -> (i32, i32, i32) {
    %c0_i32 = arith.constant 0 : i32
    %c0_i32_0 = arith.constant 0 : i32
    %c0_i32_1 = arith.constant 0 : i32
    %c0_i32_2 = arith.constant 0 : i32
    return %c0_i32, %c0_i32_0, %c0_i32_1 : i32, i32, i32
  }
  func.func @transform_6(%arg0: i32) -> (i32, i32) {
    %c0_i32 = arith.constant 0 : i32
    %c0_i32_0 = arith.constant 0 : i32
    %c0_i32_1 = arith.constant 0 : i32
    return %c0_i32, %c0_i32_0 : i32, i32
  }
  func.func @transform_7(%arg0: i32) -> (i32, i32) {
    %c0_i32 = arith.constant 0 : i32
    %c0_i32_0 = arith.constant 0 : i32
    %c0_i32_1 = arith.constant 0 : i32
    return %c0_i32, %c0_i32_0 : i32, i32
  }
  func.func @transform_8(%arg0: i32) -> (i32, i32) {
    %c0_i32 = arith.constant 0 : i32
    %c0_i32_0 = arith.constant 0 : i32
    %c0_i32_1 = arith.constant 0 : i32
    return %c0_i32, %c0_i32_0 : i32, i32
  }
  func.func @transform_9(%arg0: i32) -> (i32, i32) {
    %c0_i32 = arith.constant 0 : i32
    %c0_i32_0 = arith.constant 0 : i32
    %c0_i32_1 = arith.constant 0 : i32
    return %c0_i32, %c0_i32_0 : i32, i32
  }
}

</mosaic_0001>

<llo_original>
// kernel: encoder_cifar_forward.3
$region0: #{encoder_cifar_forward.3}
  #allocation0 [shape = 'u32[]', space=smem, size = 0x4, offset = 0x4, fixed_abs, tag = 'smem constant byte address 0x4 - core index']
  #allocation1 [shape = 'u32[72,128]{1,0:T(1,128)}', space=vmem, size = 0x9000, scoped, tag = 'internal scratch']
  %s0 = inlined_call_operand.vmem [shape: bf16[4,512,128], index: 0, kind: input, shape index: {}]
  %s1 = inlined_call_operand.vmem [shape: bf16[128,32], index: 1, kind: input, shape index: {}]
  %s2 = inlined_call_operand.vmem [shape: f32[1,32], index: 2, kind: input, shape index: {}]
  %s3 = inlined_call_operand.vmem [shape: f32[1,32], index: 3, kind: input, shape index: {}]
  %s4 = inlined_call_operand.vmem [shape: f32[1,32], index: 4, kind: input, shape index: {}]
  %s5 = inlined_call_operand.vmem [shape: bf16[512,32], index: 5, kind: output, shape index: {}]
  %s6 = sld [smem:[#allocation0]]
  $region94: #{encoder_cifar_forward.3} parent=0
    _
  %s8 = ssub.s32 1, %s6
  %s9 = scalar_select 0, %s8, %s6
  $region1: #{encoder_cifar_forward.3} parent=0
    #allocation2 [shape = 'u8[524288]{0}', space=vmem, size = 0x80000, scoped, tag = 'input window, operand 0']
    loop: start=0, step=1, limit=4
    $region2: #{encoder_cifar_forward.3} parent=1 // loop_pre_header
      _
    $region3: #{encoder_cifar_forward.3} parent=1 // loop_header
      %s11 = sphi 0, %s15
      %p12 = scmp.ge.s32.totalorder %s11, 4
      %s21 = sphi 0, %s23
      %s24 = sphi 0, %s21
      %s25 = sphi 0, %s24
      %s41 = sphi 0, %s25
      %s45 = sphi 0, %s45
      %s47 = sphi 0, %s45
      %s48 = sphi 0, %s47
      %s62 = sphi 0, %s48
      %s66 = sphi 0, %s66
      %s68 = sphi 0, %s66
      %s69 = sphi 0, %s68
      %s83 = sphi 0, %s69
      %s87 = sphi 0, %s87
      %s89 = sphi 0, %s87
      %s90 = sphi 0, %s89
      %s104 = sphi 0, %s90
      %s108 = sphi 0, %s108
      %s110 = sphi 0, %s108
      %s111 = sphi 0, %s110
      %s125 = sphi 0, %s111
      %s131 = sphi 0, %s133
      %s134 = sphi 0, %s131
      %s135 = sphi 0, %s134
      %s151 = sphi 0, %s135
    $region4: #{encoder_cifar_forward.3} parent=1 // loop_header_branch
      %14 = sbr.rel (%p12) target = $region8
    $region5: #{encoder_cifar_forward.3} parent=1 // loop_body
      %s16 = ssub.s32 %s11, 1
      %s17 = ssub.s32 %s11, 2
      %s18 = sadd.s32 %s11, 1
      %s19 = ssub.s32 %s11, %s18
      %p20 = scmp.eq.s32.totalorder %s19, 0
      %s22 = sadd.s32 %s21, 1
      %s23 = scalar_select %p20, %s21, %s22
      %p26 = pneg %p20
      %p27 = scmp.eq.s32.totalorder %s11, 1
      %p28 = por %p26, %p27
      %p29 = scmp.ne.s32.totalorder %s21, %s24
      %p30 = scmp.eq.s32.totalorder %s11, 0
      %p31 = por %p29, %p30
      %p32 = scmp.ne.s32.totalorder %s21, %s24
      %p33 = scmp.eq.s32.totalorder %s16, 1
      %p34 = por %p32, %p33
      %p35 = scmp.ne.s32.totalorder %s24, %s25
      %p36 = scmp.eq.s32.totalorder %s16, 0
      %p37 = por %p35, %p36
      %p38 = scmp.ne.s32.totalorder %s24, %s25
      %p39 = scmp.eq.s32.totalorder %s17, 1
      %p40 = por %p38, %p39
      %p42 = scmp.ne.s32.totalorder %s25, %s41
      %p43 = scmp.eq.s32.totalorder %s17, 0
      %p44 = por %p42, %p43
      %s46 = sadd.s32 %s45, 1
      %p49 = scmp.eq.s32.totalorder %s11, 1
      %p50 = scmp.ne.s32.totalorder %s45, %s47
      %p51 = scmp.eq.s32.totalorder %s11, 0
      %p52 = por %p50, %p51
      %p53 = scmp.ne.s32.totalorder %s45, %s47
      %p54 = scmp.eq.s32.totalorder %s16, 1
      %p55 = por %p53, %p54
      %p56 = scmp.ne.s32.totalorder %s47, %s48
      %p57 = scmp.eq.s32.totalorder %s16, 0
      %p58 = por %p56, %p57
      %p59 = scmp.ne.s32.totalorder %s47, %s48
      %p60 = scmp.eq.s32.totalorder %s17, 1
      %p61 = por %p59, %p60
      %p63 = scmp.ne.s32.totalorder %s48, %s62
      %p64 = scmp.eq.s32.totalorder %s17, 0
      %p65 = por %p63, %p64
      %s67 = sadd.s32 %s66, 1
      %p70 = scmp.eq.s32.totalorder %s11, 1
      %p71 = scmp.ne.s32.totalorder %s66, %s68
      %p72 = scmp.eq.s32.totalorder %s11, 0
      %p73 = por %p71, %p72
      %p74 = scmp.ne.s32.totalorder %s66, %s68
      %p75 = scmp.eq.s32.totalorder %s16, 1
      %p76 = por %p74, %p75
      %p77 = scmp.ne.s32.totalorder %s68, %s69
      %p78 = scmp.eq.s32.totalorder %s16, 0
      %p79 = por %p77, %p78
      %p80 = scmp.ne.s32.totalorder %s68, %s69
      %p81 = scmp.eq.s32.totalorder %s17, 1
      %p82 = por %p80, %p81
      %p84 = scmp.ne.s32.totalorder %s69, %s83
      %p85 = scmp.eq.s32.totalorder %s17, 0
      %p86 = por %p84, %p85
      %s88 = sadd.s32 %s87, 1
      %p91 = scmp.eq.s32.totalorder %s11, 1
      %p92 = scmp.ne.s32.totalorder %s87, %s89
      %p93 = scmp.eq.s32.totalorder %s11, 0
      %p94 = por %p92, %p93
      %p95 = scmp.ne.s32.totalorder %s87, %s89
      %p96 = scmp.eq.s32.totalorder %s16, 1
      %p97 = por %p95, %p96
      %p98 = scmp.ne.s32.totalorder %s89, %s90
      %p99 = scmp.eq.s32.totalorder %s16, 0
      %p100 = por %p98, %p99
      %p101 = scmp.ne.s32.totalorder %s89, %s90
      %p102 = scmp.eq.s32.totalorder %s17, 1
      %p103 = por %p101, %p102
      %p105 = scmp.ne.s32.totalorder %s90, %s104
      %p106 = scmp.eq.s32.totalorder %s17, 0
      %p107 = por %p105, %p106
      %s109 = sadd.s32 %s108, 1
      %p112 = scmp.eq.s32.totalorder %s11, 1
      %p113 = scmp.ne.s32.totalorder %s108, %s110
      %p114 = scmp.eq.s32.totalorder %s11, 0
      %p115 = por %p113, %p114
      %p116 = scmp.ne.s32.totalorder %s108, %s110
      %p117 = scmp.eq.s32.totalorder %s16, 1
      %p118 = por %p116, %p117
      %p119 = scmp.ne.s32.totalorder %s110, %s111
      %p120 = scmp.eq.s32.totalorder %s16, 0
      %p121 = por %p119, %p120
      %p122 = scmp.ne.s32.totalorder %s110, %s111
      %p123 = scmp.eq.s32.totalorder %s17, 1
      %p124 = por %p122, %p123
      %p126 = scmp.ne.s32.totalorder %s111, %s125
      %p127 = scmp.eq.s32.totalorder %s17, 0
      %p128 = por %p126, %p127
      %s129 = ssub.s32 %s11, %s18
      %p130 = scmp.eq.s32.totalorder %s129, 0
      %s132 = sadd.s32 %s131, 1
      %s133 = scalar_select %p130, %s131, %s132
      %p136 = pneg %p130
      %p137 = scmp.eq.s32.totalorder %s11, 1
      %p138 = por %p136, %p137
      %p139 = scmp.ne.s32.totalorder %s131, %s134
      %p140 = scmp.eq.s32.totalorder %s11, 0
      %p141 = por %p139, %p140
      %p142 = scmp.ne.s32.totalorder %s131, %s134
      %p143 = scmp.eq.s32.totalorder %s16, 1
      %p144 = por %p142, %p143
      %p145 = scmp.ne.s32.totalorder %s134, %s135
      %p146 = scmp.eq.s32.totalorder %s16, 0
      %p147 = por %p145, %p146
      %p148 = scmp.ne.s32.totalorder %s134, %s135
      %p149 = scmp.eq.s32.totalorder %s17, 1
      %p150 = por %p148, %p149
      %p152 = scmp.ne.s32.totalorder %s135, %s151
      %p153 = scmp.eq.s32.totalorder %s17, 0
      %p154 = por %p152, %p153
      %p155 = scmp.le.s32.totalorder 1, %s11
      %p156 = scmp.lt.s32.totalorder %s11, 3
      %p157 = pnand %p155, %p156
      %p158 = pneg %p157
      // Predicated region
      $region9: #{encoder_cifar_forward.3} parent=5 // pred_check
        _
      $region10: #{encoder_cifar_forward.3} parent=5 // pred_check_branch
        %160 = sbr.rel (%p157) target = $region12
      $region11: #{encoder_cifar_forward.3} parent=5 // pred_region
        %s161 = ssub.s32 %s11, 1
        // Predicated region
        $region13: #{encoder_cifar_forward.3} parent=11 // pred_check
          %p162 = pneg %p58
        $region14: #{encoder_cifar_forward.3} parent=11 // pred_check_branch
          %164 = sbr.rel (%p162) target = $region16
        $region15: #{encoder_cifar_forward.3} parent=11 // pred_region
          _
        $region16: #{encoder_cifar_forward.3} parent=11 // pred_fallthru
          _
        // Predicated region
        $region17: #{encoder_cifar_forward.3} parent=11 // pred_check
          %p165 = pneg %p79
        $region18: #{encoder_cifar_forward.3} parent=11 // pred_check_branch
          %167 = sbr.rel (%p165) target = $region20
        $region19: #{encoder_cifar_forward.3} parent=11 // pred_region
          _
        $region20: #{encoder_cifar_forward.3} parent=11 // pred_fallthru
          _
        // Predicated region
        $region21: #{encoder_cifar_forward.3} parent=11 // pred_check
          %p168 = pneg %p100
        $region22: #{encoder_cifar_forward.3} parent=11 // pred_check_branch
          %170 = sbr.rel (%p168) target = $region24
        $region23: #{encoder_cifar_forward.3} parent=11 // pred_region
          _
        $region24: #{encoder_cifar_forward.3} parent=11 // pred_fallthru
          _
        // Predicated region
        $region25: #{encoder_cifar_forward.3} parent=11 // pred_check
          %p171 = pneg %p121
        $region26: #{encoder_cifar_forward.3} parent=11 // pred_check_branch
          %173 = sbr.rel (%p171) target = $region28
        $region27: #{encoder_cifar_forward.3} parent=11 // pred_region
          _
        $region28: #{encoder_cifar_forward.3} parent=11 // pred_fallthru
          _
      $region12: #{encoder_cifar_forward.3} parent=5 // pred_fallthru
        _
      %p174 = scmp.lt.s32.totalorder %s11, 2
      // Predicated region
      $region29: #{encoder_cifar_forward.3} parent=5 // pred_check
        %p175 = pneg %p174
      $region30: #{encoder_cifar_forward.3} parent=5 // pred_check_branch
        %177 = sbr.rel (%p175) target = $region32
      $region31: #{encoder_cifar_forward.3} parent=5 // pred_region
        // Predicated region
        $region33: #{encoder_cifar_forward.3} parent=31 // pred_check
          %p178 = pneg %p31
        $region34: #{encoder_cifar_forward.3} parent=31 // pred_check_branch
          %180 = sbr.rel (%p178) target = $region36
        $region35: #{encoder_cifar_forward.3} parent=31 // pred_region
          %s181 = sand.u32 %s21, 1
          %s182 = sand.u32 %s21, 1
          %s183 = smul.addr %s182, 512
          %s184 = scalar_lea.vmem [#allocation2], %s183
          %s185 = smul.u32 32, %s11
          %s186 = smul.addr %s185, 4
          %s187 = scalar_lea.vmem %s0, %s186
          // Predicated region
          $region37: #{encoder_cifar_forward.3} parent=35 // pred_check
            _
          $region38: #{encoder_cifar_forward.3} parent=35 // pred_check_branch
            %189 = sbr.rel (0) target = $region40
          $region39: #{encoder_cifar_forward.3} parent=35 // pred_region
            // Predicated region
            $region41: #{encoder_cifar_forward.3} parent=39 // pred_check
              _
            $region42: #{encoder_cifar_forward.3} parent=39 // pred_check_branch
              %191 = sbr.rel target = $region44
            $region43: #{encoder_cifar_forward.3} parent=39 // pred_region
              // Predicated region
              $region56: #{encoder_cifar_forward.3} parent=43 // pred_check
                _
              $region57: #{encoder_cifar_forward.3} parent=43 // pred_check_branch
                %461 = sbr.rel (0) target = $region59
              $region58: #{encoder_cifar_forward.3} parent=43 // pred_region
                loop: start=0, step=1, limit=1
                $region60: #{encoder_cifar_forward.3} parent=58 // loop_pre_header
                  _
                $region61: #{encoder_cifar_forward.3} parent=58 // loop_header
                  %s463 = sphi 0, %s467
                  %p464 = scmp.ge.s32.totalorder %s463, 1
                  %s468 = sphi %s187, %s187
                  %s469 = sphi %s184, %s184
                $region62: #{encoder_cifar_forward.3} parent=58 // loop_header_branch
                  %466 = sbr.rel (%p464) target = $region66
                $region63: #{encoder_cifar_forward.3} parent=58 // loop_body
                  _
                $region64: #{encoder_cifar_forward.3} parent=58 // loop_footer
                  %s467 = sadd.s32 1, %s463
                $region65: #{encoder_cifar_forward.3} parent=58 // loop_footer_branch
                  %462 = sbr.rel target = $region61
                $region66: #{encoder_cifar_forward.3} parent=58 // loop_exit
                  _
                %s471 = ssub.s32 16, 1
                loop: start=0, step=1, limit=1
                $region67: #{encoder_cifar_forward.3} parent=58 // loop_pre_header
                  _
                $region68: #{encoder_cifar_forward.3} parent=58 // loop_header
                  %s473 = sphi 0, %s477
                  %p474 = scmp.ge.s32.totalorder %s473, 1
                  %s478 = sphi %s187, %s187
                  %s479 = sphi %s184, %s184
                $region69: #{encoder_cifar_forward.3} parent=58 // loop_header_branch
                  %476 = sbr.rel (%p474) target = $region73
                $region70: #{encoder_cifar_forward.3} parent=58 // loop_body
                  %v480 = vld [vmem:[%s478] sm:%s471]
                  %481 = vst [vmem:[%s479] sm:%s471] %v480
                  %v482 = vld [vmem:[%s478 + $0x4] sm:%s471]
                  %483 = vst [vmem:[%s479 + $0x4] sm:%s471] %v482
                  %v484 = vld [vmem:[%s478 + $0x8] sm:%s471]
                  %485 = vst [vmem:[%s479 + $0x8] sm:%s471] %v484
                  %v486 = vld [vmem:[%s478 + $0xc] sm:%s471]
                  %487 = vst [vmem:[%s479 + $0xc] sm:%s471] %v486
                  %v488 = vld [vmem:[%s478 + $0x10] sm:%s471]
                  %489 = vst [vmem:[%s479 + $0x10] sm:%s471] %v488
                  %v490 = vld [vmem:[%s478 + $0x14] sm:%s471]
                  %491 = vst [vmem:[%s479 + $0x14] sm:%s471] %v490
                  %v492 = vld [vmem:[%s478 + $0x18] sm:%s471]
                  %493 = vst [vmem:[%s479 + $0x18] sm:%s471] %v492
                  %v494 = vld [vmem:[%s478 + $0x1c] sm:%s471]
                  %495 = vst [vmem:[%s479 + $0x1c] sm:%s471] %v494
                  %v496 = vld [vmem:[%s478 + $0x20] sm:%s471]
                  %497 = vst [vmem:[%s479 + $0x20] sm:%s471] %v496
                  %v498 = vld [vmem:[%s478 + $0x24] sm:%s471]
                  %499 = vst [vmem:[%s479 + $0x24] sm:%s471] %v498
                  %v500 = vld [vmem:[%s478 + $0x28] sm:%s471]
                  %501 = vst [vmem:[%s479 + $0x28] sm:%s471] %v500
                  %v502 = vld [vmem:[%s478 + $0x2c] sm:%s471]
                  %503 = vst [vmem:[%s479 + $0x2c] sm:%s471] %v502
                  %v504 = vld [vmem:[%s478 + $0x30] sm:%s471]
                  %505 = vst [vmem:[%s479 + $0x30] sm:%s471] %v504
                  %v506 = vld [vmem:[%s478 + $0x34] sm:%s471]
                  %507 = vst [vmem:[%s479 + $0x34] sm:%s471] %v506
                  %v508 = vld [vmem:[%s478 + $0x38] sm:%s471]
                  %509 = vst [vmem:[%s479 + $0x38] sm:%s471] %v508
                  %v510 = vld [vmem:[%s478 + $0x3c] sm:%s471]
                  %511 = vst [vmem:[%s479 + $0x3c] sm:%s471] %v510
                  %v512 = vld [vmem:[%s478 + $0x40] sm:%s471]
                  %513 = vst [vmem:[%s479 + $0x40] sm:%s471] %v512
                  %v514 = vld [vmem:[%s478 + $0x44] sm:%s471]
                  %515 = vst [vmem:[%s479 + $0x44] sm:%s471] %v514
                  %v516 = vld [vmem:[%s478 + $0x48] sm:%s471]
                  %517 = vst [vmem:[%s479 + $0x48] sm:%s471] %v516
                  %v518 = vld [vmem:[%s478 + $0x4c] sm:%s471]
                  %519 = vst [vmem:[%s479 + $0x4c] sm:%s471] %v518
                  %v520 = vld [vmem:[%s478 + $0x50] sm:%s471]
                  %521 = vst [vmem:[%s479 + $0x50] sm:%s471] %v520
                  %v522 = vld [vmem:[%s478 + $0x54] sm:%s471]
                  %523 = vst [vmem:[%s479 + $0x54] sm:%s471] %v522
                  %v524 = vld [vmem:[%s478 + $0x58] sm:%s471]
                  %525 = vst [vmem:[%s479 + $0x58] sm:%s471] %v524
                  %v526 = vld [vmem:[%s478 + $0x5c] sm:%s471]
                  %527 = vst [vmem:[%s479 + $0x5c] sm:%s471] %v526
                  %v528 = vld [vmem:[%s478 + $0x60] sm:%s471]
                  %529 = vst [vmem:[%s479 + $0x60] sm:%s471] %v528
                  %v530 = vld [vmem:[%s478 + $0x64] sm:%s471]
                  %531 = vst [vmem:[%s479 + $0x64] sm:%s471] %v530
                  %v532 = vld [vmem:[%s478 + $0x68] sm:%s471]
                  %533 = vst [vmem:[%s479 + $0x68] sm:%s471] %v532
                  %v534 = vld [vmem:[%s478 + $0x6c] sm:%s471]
                  %535 = vst [vmem:[%s479 + $0x6c] sm:%s471] %v534
                  %v536 = vld [vmem:[%s478 + $0x70] sm:%s471]
                  %537 = vst [vmem:[%s479 + $0x70] sm:%s471] %v536
                  %v538 = vld [vmem:[%s478 + $0x74] sm:%s471]
                  %539 = vst [vmem:[%s479 + $0x74] sm:%s471] %v538
                  %v540 = vld [vmem:[%s478 + $0x78] sm:%s471]
                  %541 = vst [vmem:[%s479 + $0x78] sm:%s471] %v540
                  %v542 = vld [vmem:[%s478 + $0x7c] sm:%s471]
                  %543 = vst [vmem:[%s479 + $0x7c] sm:%s471] %v542
                  %v544 = vld [vmem:[%s478 + $0x100] sm:%s471]
                  %545 = vst [vmem:[%s479 + $0x80] sm:%s471] %v544
                  %v546 = vld [vmem:[%s478 + $0x104] sm:%s471]
                  %547 = vst [vmem:[%s479 + $0x84] sm:%s471] %v546
                  %v548 = vld [vmem:[%s478 + $0x108] sm:%s471]
                  %549 = vst [vmem:[%s479 + $0x88] sm:%s471] %v548
                  %v550 = vld [vmem:[%s478 + $0x10c] sm:%s471]
                  %551 = vst [vmem:[%s479 + $0x8c] sm:%s471] %v550
                  %v552 = vld [vmem:[%s478 + $0x110] sm:%s471]
                  %553 = vst [vmem:[%s479 + $0x90] sm:%s471] %v552
                  %v554 = vld [vmem:[%s478 + $0x114] sm:%s471]
                  %555 = vst [vmem:[%s479 + $0x94] sm:%s471] %v554
                  %v556 = vld [vmem:[%s478 + $0x118] sm:%s471]
                  %557 = vst [vmem:[%s479 + $0x98] sm:%s471] %v556
                  %v558 = vld [vmem:[%s478 + $0x11c] sm:%s471]
                  %559 = vst [vmem:[%s479 + $0x9c] sm:%s471] %v558
                  %v560 = vld [vmem:[%s478 + $0x120] sm:%s471]
                  %561 = vst [vmem:[%s479 + $0xa0] sm:%s471] %v560
                  %v562 = vld [vmem:[%s478 + $0x124] sm:%s471]
                  %563 = vst [vmem:[%s479 + $0xa4] sm:%s471] %v562
                  %v564 = vld [vmem:[%s478 + $0x128] sm:%s471]
                  %565 = vst [vmem:[%s479 + $0xa8] sm:%s471] %v564
                  %v566 = vld [vmem:[%s478 + $0x12c] sm:%s471]
                  %567 = vst [vmem:[%s479 + $0xac] sm:%s471] %v566
                  %v568 = vld [vmem:[%s478 + $0x130] sm:%s471]
                  %569 = vst [vmem:[%s479 + $0xb0] sm:%s471] %v568
                  %v570 = vld [vmem:[%s478 + $0x134] sm:%s471]
                  %571 = vst [vmem:[%s479 + $0xb4] sm:%s471] %v570
                  %v572 = vld [vmem:[%s478 + $0x138] sm:%s471]
                  %573 = vst [vmem:[%s479 + $0xb8] sm:%s471] %v572
                  %v574 = vld [vmem:[%s478 + $0x13c] sm:%s471]
                  %575 = vst [vmem:[%s479 + $0xbc] sm:%s471] %v574
                  %v576 = vld [vmem:[%s478 + $0x140] sm:%s471]
                  %577 = vst [vmem:[%s479 + $0xc0] sm:%s471] %v576
                  %v578 = vld [vmem:[%s478 + $0x144] sm:%s471]
                  %579 = vst [vmem:[%s479 + $0xc4] sm:%s471] %v578
                  %v580 = vld [vmem:[%s478 + $0x148] sm:%s471]
                  %581 = vst [vmem:[%s479 + $0xc8] sm:%s471] %v580
                  %v582 = vld [vmem:[%s478 + $0x14c] sm:%s471]
                  %583 = vst [vmem:[%s479 + $0xcc] sm:%s471] %v582
                  %v584 = vld [vmem:[%s478 + $0x150] sm:%s471]
                  %585 = vst [vmem:[%s479 + $0xd0] sm:%s471] %v584
                  %v586 = vld [vmem:[%s478 + $0x154] sm:%s471]
                  %587 = vst [vmem:[%s479 + $0xd4] sm:%s471] %v586
                  %v588 = vld [vmem:[%s478 + $0x158] sm:%s471]
                  %589 = vst [vmem:[%s479 + $0xd8] sm:%s471] %v588
                  %v590 = vld [vmem:[%s478 + $0x15c] sm:%s471]
                  %591 = vst [vmem:[%s479 + $0xdc] sm:%s471] %v590
                  %v592 = vld [vmem:[%s478 + $0x160] sm:%s471]
                  %593 = vst [vmem:[%s479 + $0xe0] sm:%s471] %v592
                  %v594 = vld [vmem:[%s478 + $0x164] sm:%s471]
                  %595 = vst [vmem:[%s479 + $0xe4] sm:%s471] %v594
                  %v596 = vld [vmem:[%s478 + $0x168] sm:%s471]
                  %597 = vst [vmem:[%s479 + $0xe8] sm:%s471] %v596
                  %v598 = vld [vmem:[%s478 + $0x16c] sm:%s471]
                  %599 = vst [vmem:[%s479 + $0xec] sm:%s471] %v598
                  %v600 = vld [vmem:[%s478 + $0x170] sm:%s471]
                  %601 = vst [vmem:[%s479 + $0xf0] sm:%s471] %v600
                  %v602 = vld [vmem:[%s478 + $0x174] sm:%s471]
                  %603 = vst [vmem:[%s479 + $0xf4] sm:%s471] %v602
                  %v604 = vld [vmem:[%s478 + $0x178] sm:%s471]
                  %605 = vst [vmem:[%s479 + $0xf8] sm:%s471] %v604
                  %v606 = vld [vmem:[%s478 + $0x17c] sm:%s471]
                  %607 = vst [vmem:[%s479 + $0xfc] sm:%s471] %v606
                  %v608 = vld [vmem:[%s478 + $0x200] sm:%s471]
                  %609 = vst [vmem:[%s479 + $0x100] sm:%s471] %v608
                  %v610 = vld [vmem:[%s478 + $0x204] sm:%s471]
                  %611 = vst [vmem:[%s479 + $0x104] sm:%s471] %v610
                  %v612 = vld [vmem:[%s478 + $0x208] sm:%s471]
                  %613 = vst [vmem:[%s479 + $0x108] sm:%s471] %v612
                  %v614 = vld [vmem:[%s478 + $0x20c] sm:%s471]
                  %615 = vst [vmem:[%s479 + $0x10c] sm:%s471] %v614
                  %v616 = vld [vmem:[%s478 + $0x210] sm:%s471]
                  %617 = vst [vmem:[%s479 + $0x110] sm:%s471] %v616
                  %v618 = vld [vmem:[%s478 + $0x214] sm:%s471]
                  %619 = vst [vmem:[%s479 + $0x114] sm:%s471] %v618
                  %v620 = vld [vmem:[%s478 + $0x218] sm:%s471]
                  %621 = vst [vmem:[%s479 + $0x118] sm:%s471] %v620
                  %v622 = vld [vmem:[%s478 + $0x21c] sm:%s471]
                  %623 = vst [vmem:[%s479 + $0x11c] sm:%s471] %v622
                  %v624 = vld [vmem:[%s478 + $0x220] sm:%s471]
                  %625 = vst [vmem:[%s479 + $0x120] sm:%s471] %v624
                  %v626 = vld [vmem:[%s478 + $0x224] sm:%s471]
                  %627 = vst [vmem:[%s479 + $0x124] sm:%s471] %v626
                  %v628 = vld [vmem:[%s478 + $0x228] sm:%s471]
                  %629 = vst [vmem:[%s479 + $0x128] sm:%s471] %v628
                  %v630 = vld [vmem:[%s478 + $0x22c] sm:%s471]
                  %631 = vst [vmem:[%s479 + $0x12c] sm:%s471] %v630
                  %v632 = vld [vmem:[%s478 + $0x230] sm:%s471]
                  %633 = vst [vmem:[%s479 + $0x130] sm:%s471] %v632
                  %v634 = vld [vmem:[%s478 + $0x234] sm:%s471]
                  %635 = vst [vmem:[%s479 + $0x134] sm:%s471] %v634
                  %v636 = vld [vmem:[%s478 + $0x238] sm:%s471]
                  %637 = vst [vmem:[%s479 + $0x138] sm:%s471] %v636
                  %v638 = vld [vmem:[%s478 + $0x23c] sm:%s471]
                  %639 = vst [vmem:[%s479 + $0x13c] sm:%s471] %v638
                  %v640 = vld [vmem:[%s478 + $0x240] sm:%s471]
                  %641 = vst [vmem:[%s479 + $0x140] sm:%s471] %v640
                  %v642 = vld [vmem:[%s478 + $0x244] sm:%s471]
                  %643 = vst [vmem:[%s479 + $0x144] sm:%s471] %v642
                  %v644 = vld [vmem:[%s478 + $0x248] sm:%s471]
                  %645 = vst [vmem:[%s479 + $0x148] sm:%s471] %v644
                  %v646 = vld [vmem:[%s478 + $0x24c] sm:%s471]
                  %647 = vst [vmem:[%s479 + $0x14c] sm:%s471] %v646
                  %v648 = vld [vmem:[%s478 + $0x250] sm:%s471]
                  %649 = vst [vmem:[%s479 + $0x150] sm:%s471] %v648
                  %v650 = vld [vmem:[%s478 + $0x254] sm:%s471]
                  %651 = vst [vmem:[%s479 + $0x154] sm:%s471] %v650
                  %v652 = vld [vmem:[%s478 + $0x258] sm:%s471]
                  %653 = vst [vmem:[%s479 + $0x158] sm:%s471] %v652
                  %v654 = vld [vmem:[%s478 + $0x25c] sm:%s471]
                  %655 = vst [vmem:[%s479 + $0x15c] sm:%s471] %v654
                  %v656 = vld [vmem:[%s478 + $0x260] sm:%s471]
                  %657 = vst [vmem:[%s479 + $0x160] sm:%s471] %v656
                  %v658 = vld [vmem:[%s478 + $0x264] sm:%s471]
                  %659 = vst [vmem:[%s479 + $0x164] sm:%s471] %v658
                  %v660 = vld [vmem:[%s478 + $0x268] sm:%s471]
                  %661 = vst [vmem:[%s479 + $0x168] sm:%s471] %v660
                  %v662 = vld [vmem:[%s478 + $0x26c] sm:%s471]
                  %663 = vst [vmem:[%s479 + $0x16c] sm:%s471] %v662
                  %v664 = vld [vmem:[%s478 + $0x270] sm:%s471]
                  %665 = vst [vmem:[%s479 + $0x170] sm:%s471] %v664
                  %v666 = vld [vmem:[%s478 + $0x274] sm:%s471]
                  %667 = vst [vmem:[%s479 + $0x174] sm:%s471] %v666
                  %v668 = vld [vmem:[%s478 + $0x278] sm:%s471]
                  %669 = vst [vmem:[%s479 + $0x178] sm:%s471] %v668
                  %v670 = vld [vmem:[%s478 + $0x27c] sm:%s471]
                  %671 = vst [vmem:[%s479 + $0x17c] sm:%s471] %v670
                  %v672 = vld [vmem:[%s478 + $0x300] sm:%s471]
                  %673 = vst [vmem:[%s479 + $0x180] sm:%s471] %v672
                  %v674 = vld [vmem:[%s478 + $0x304] sm:%s471]
                  %675 = vst [vmem:[%s479 + $0x184] sm:%s471] %v674
                  %v676 = vld [vmem:[%s478 + $0x308] sm:%s471]
                  %677 = vst [vmem:[%s479 + $0x188] sm:%s471] %v676
                  %v678 = vld [vmem:[%s478 + $0x30c] sm:%s471]
                  %679 = vst [vmem:[%s479 + $0x18c] sm:%s471] %v678
                  %v680 = vld [vmem:[%s478 + $0x310] sm:%s471]
                  %681 = vst [vmem:[%s479 + $0x190] sm:%s471] %v680
                  %v682 = vld [vmem:[%s478 + $0x314] sm:%s471]
                  %683 = vst [vmem:[%s479 + $0x194] sm:%s471] %v682
                  %v684 = vld [vmem:[%s478 + $0x318] sm:%s471]
                  %685 = vst [vmem:[%s479 + $0x198] sm:%s471] %v684
                  %v686 = vld [vmem:[%s478 + $0x31c] sm:%s471]
                  %687 = vst [vmem:[%s479 + $0x19c] sm:%s471] %v686
                  %v688 = vld [vmem:[%s478 + $0x320] sm:%s471]
                  %689 = vst [vmem:[%s479 + $0x1a0] sm:%s471] %v688
                  %v690 = vld [vmem:[%s478 + $0x324] sm:%s471]
                  %691 = vst [vmem:[%s479 + $0x1a4] sm:%s471] %v690
                  %v692 = vld [vmem:[%s478 + $0x328] sm:%s471]
                  %693 = vst [vmem:[%s479 + $0x1a8] sm:%s471] %v692
                  %v694 = vld [vmem:[%s478 + $0x32c] sm:%s471]
                  %695 = vst [vmem:[%s479 + $0x1ac] sm:%s471] %v694
                  %v696 = vld [vmem:[%s478 + $0x330] sm:%s471]
                  %697 = vst [vmem:[%s479 + $0x1b0] sm:%s471] %v696
                  %v698 = vld [vmem:[%s478 + $0x334] sm:%s471]
                  %699 = vst [vmem:[%s479 + $0x1b4] sm:%s471] %v698
                  %v700 = vld [vmem:[%s478 + $0x338] sm:%s471]
                  %701 = vst [vmem:[%s479 + $0x1b8] sm:%s471] %v700
                  %v702 = vld [vmem:[%s478 + $0x33c] sm:%s471]
                  %703 = vst [vmem:[%s479 + $0x1bc] sm:%s471] %v702
                  %v704 = vld [vmem:[%s478 + $0x340] sm:%s471]
                  %705 = vst [vmem:[%s479 + $0x1c0] sm:%s471] %v704
                  %v706 = vld [vmem:[%s478 + $0x344] sm:%s471]
                  %707 = vst [vmem:[%s479 + $0x1c4] sm:%s471] %v706
                  %v708 = vld [vmem:[%s478 + $0x348] sm:%s471]
                  %709 = vst [vmem:[%s479 + $0x1c8] sm:%s471] %v708
                  %v710 = vld [vmem:[%s478 + $0x34c] sm:%s471]
                  %711 = vst [vmem:[%s479 + $0x1cc] sm:%s471] %v710
                  %v712 = vld [vmem:[%s478 + $0x350] sm:%s471]
                  %713 = vst [vmem:[%s479 + $0x1d0] sm:%s471] %v712
                  %v714 = vld [vmem:[%s478 + $0x354] sm:%s471]
                  %715 = vst [vmem:[%s479 + $0x1d4] sm:%s471] %v714
                  %v716 = vld [vmem:[%s478 + $0x358] sm:%s471]
                  %717 = vst [vmem:[%s479 + $0x1d8] sm:%s471] %v716
                  %v718 = vld [vmem:[%s478 + $0x35c] sm:%s471]
                  %719 = vst [vmem:[%s479 + $0x1dc] sm:%s471] %v718
                  %v720 = vld [vmem:[%s478 + $0x360] sm:%s471]
                  %721 = vst [vmem:[%s479 + $0x1e0] sm:%s471] %v720
                  %v722 = vld [vmem:[%s478 + $0x364] sm:%s471]
                  %723 = vst [vmem:[%s479 + $0x1e4] sm:%s471] %v722
                  %v724 = vld [vmem:[%s478 + $0x368] sm:%s471]
                  %725 = vst [vmem:[%s479 + $0x1e8] sm:%s471] %v724
                  %v726 = vld [vmem:[%s478 + $0x36c] sm:%s471]
                  %727 = vst [vmem:[%s479 + $0x1ec] sm:%s471] %v726
                  %v728 = vld [vmem:[%s478 + $0x370] sm:%s471]
                  %729 = vst [vmem:[%s479 + $0x1f0] sm:%s471] %v728
                  %v730 = vld [vmem:[%s478 + $0x374] sm:%s471]
                  %731 = vst [vmem:[%s479 + $0x1f4] sm:%s471] %v730
                  %v732 = vld [vmem:[%s478 + $0x378] sm:%s471]
                  %733 = vst [vmem:[%s479 + $0x1f8] sm:%s471] %v732
                  %v734 = vld [vmem:[%s478 + $0x37c] sm:%s471]
                  %735 = vst [vmem:[%s479 + $0x1fc] sm:%s471] %v734
                $region71: #{encoder_cifar_forward.3} parent=58 // loop_footer
                  %s477 = sadd.s32 1, %s473
                $region72: #{encoder_cifar_forward.3} parent=58 // loop_footer_branch
                  %472 = sbr.rel target = $region68
                $region73: #{encoder_cifar_forward.3} parent=58 // loop_exit
                  _
              $region59: #{encoder_cifar_forward.3} parent=43 // pred_fallthru
                _
            $region44: #{encoder_cifar_forward.3} parent=39 // pred_fallthru
              _
            // Predicated region
            $region45: #{encoder_cifar_forward.3} parent=39 // pred_check
              _
            $region46: #{encoder_cifar_forward.3} parent=39 // pred_check_branch
              %193 = sbr.rel (0) target = $region48
            $region47: #{encoder_cifar_forward.3} parent=39 // pred_region
              %s195 = ssub.s32 16, 1
              loop: start=0, step=1, limit=1
              $region49: #{encoder_cifar_forward.3} parent=47 // loop_pre_header
                _
              $region50: #{encoder_cifar_forward.3} parent=47 // loop_header
                %s197 = sphi 0, %s201
                %p198 = scmp.ge.s32.totalorder %s197, 1
                %s202 = sphi %s187, %s187
                %s203 = sphi %s184, %s184
              $region51: #{encoder_cifar_forward.3} parent=47 // loop_header_branch
                %200 = sbr.rel (%p198) target = $region55
              $region52: #{encoder_cifar_forward.3} parent=47 // loop_body
                %v204 = vld [vmem:[%s202] sm:%s195]
                %205 = vst [vmem:[%s203] sm:%s195] %v204
                %v206 = vld [vmem:[%s202 + $0x4] sm:%s195]
                %207 = vst [vmem:[%s203 + $0x4] sm:%s195] %v206
                %v208 = vld [vmem:[%s202 + $0x8] sm:%s195]
                %209 = vst [vmem:[%s203 + $0x8] sm:%s195] %v208
                %v210 = vld [vmem:[%s202 + $0xc] sm:%s195]
                %211 = vst [vmem:[%s203 + $0xc] sm:%s195] %v210
                %v212 = vld [vmem:[%s202 + $0x10] sm:%s195]
                %213 = vst [vmem:[%s203 + $0x10] sm:%s195] %v212
                %v214 = vld [vmem:[%s202 + $0x14] sm:%s195]
                %215 = vst [vmem:[%s203 + $0x14] sm:%s195] %v214
                %v216 = vld [vmem:[%s202 + $0x18] sm:%s195]
                %217 = vst [vmem:[%s203 + $0x18] sm:%s195] %v216
                %v218 = vld [vmem:[%s202 + $0x1c] sm:%s195]
                %219 = vst [vmem:[%s203 + $0x1c] sm:%s195] %v218
                %v220 = vld [vmem:[%s202 + $0x20] sm:%s195]
                %221 = vst [vmem:[%s203 + $0x20] sm:%s195] %v220
                %v222 = vld [vmem:[%s202 + $0x24] sm:%s195]
                %223 = vst [vmem:[%s203 + $0x24] sm:%s195] %v222
                %v224 = vld [vmem:[%s202 + $0x28] sm:%s195]
                %225 = vst [vmem:[%s203 + $0x28] sm:%s195] %v224
                %v226 = vld [vmem:[%s202 + $0x2c] sm:%s195]
                %227 = vst [vmem:[%s203 + $0x2c] sm:%s195] %v226
                %v228 = vld [vmem:[%s202 + $0x30] sm:%s195]
                %229 = vst [vmem:[%s203 + $0x30] sm:%s195] %v228
                %v230 = vld [vmem:[%s202 + $0x34] sm:%s195]
                %231 = vst [vmem:[%s203 + $0x34] sm:%s195] %v230
                %v232 = vld [vmem:[%s202 + $0x38] sm:%s195]
                %233 = vst [vmem:[%s203 + $0x38] sm:%s195] %v232
                %v234 = vld [vmem:[%s202 + $0x3c] sm:%s195]
                %235 = vst [vmem:[%s203 + $0x3c] sm:%s195] %v234
                %v236 = vld [vmem:[%s202 + $0x40] sm:%s195]
                %237 = vst [vmem:[%s203 + $0x40] sm:%s195] %v236
                %v238 = vld [vmem:[%s202 + $0x44] sm:%s195]
                %239 = vst [vmem:[%s203 + $0x44] sm:%s195] %v238
                %v240 = vld [vmem:[%s202 + $0x48] sm:%s195]
                %241 = vst [vmem:[%s203 + $0x48] sm:%s195] %v240
                %v242 = vld [vmem:[%s202 + $0x4c] sm:%s195]
                %243 = vst [vmem:[%s203 + $0x4c] sm:%s195] %v242
                %v244 = vld [vmem:[%s202 + $0x50] sm:%s195]
                %245 = vst [vmem:[%s203 + $0x50] sm:%s195] %v244
                %v246 = vld [vmem:[%s202 + $0x54] sm:%s195]
                %247 = vst [vmem:[%s203 + $0x54] sm:%s195] %v246
                %v248 = vld [vmem:[%s202 + $0x58] sm:%s195]
                %249 = vst [vmem:[%s203 + $0x58] sm:%s195] %v248
                %v250 = vld [vmem:[%s202 + $0x5c] sm:%s195]
                %251 = vst [vmem:[%s203 + $0x5c] sm:%s195] %v250
                %v252 = vld [vmem:[%s202 + $0x60] sm:%s195]
                %253 = vst [vmem:[%s203 + $0x60] sm:%s195] %v252
                %v254 = vld [vmem:[%s202 + $0x64] sm:%s195]
                %255 = vst [vmem:[%s203 + $0x64] sm:%s195] %v254
                %v256 = vld [vmem:[%s202 + $0x68] sm:%s195]
                %257 = vst [vmem:[%s203 + $0x68] sm:%s195] %v256
                %v258 = vld [vmem:[%s202 + $0x6c] sm:%s195]
                %259 = vst [vmem:[%s203 + $0x6c] sm:%s195] %v258
                %v260 = vld [vmem:[%s202 + $0x70] sm:%s195]
                %261 = vst [vmem:[%s203 + $0x70] sm:%s195] %v260
                %v262 = vld [vmem:[%s202 + $0x74] sm:%s195]
                %263 = vst [vmem:[%s203 + $0x74] sm:%s195] %v262
                %v264 = vld [vmem:[%s202 + $0x78] sm:%s195]
                %265 = vst [vmem:[%s203 + $0x78] sm:%s195] %v264
                %v266 = vld [vmem:[%s202 + $0x7c] sm:%s195]
                %267 = vst [vmem:[%s203 + $0x7c] sm:%s195] %v266
                %v268 = vld [vmem:[%s202 + $0x100] sm:%s195]
                %269 = vst [vmem:[%s203 + $0x80] sm:%s195] %v268
                %v270 = vld [vmem:[%s202 + $0x104] sm:%s195]
                %271 = vst [vmem:[%s203 + $0x84] sm:%s195] %v270
                %v272 = vld [vmem:[%s202 + $0x108] sm:%s195]
                %273 = vst [vmem:[%s203 + $0x88] sm:%s195] %v272
                %v274 = vld [vmem:[%s202 + $0x10c] sm:%s195]
                %275 = vst [vmem:[%s203 + $0x8c] sm:%s195] %v274
                %v276 = vld [vmem:[%s202 + $0x110] sm:%s195]
                %277 = vst [vmem:[%s203 + $0x90] sm:%s195] %v276
                %v278 = vld [vmem:[%s202 + $0x114] sm:%s195]
                %279 = vst [vmem:[%s203 + $0x94] sm:%s195] %v278
                %v280 = vld [vmem:[%s202 + $0x118] sm:%s195]
                %281 = vst [vmem:[%s203 + $0x98] sm:%s195] %v280
                %v282 = vld [vmem:[%s202 + $0x11c] sm:%s195]
                %283 = vst [vmem:[%s203 + $0x9c] sm:%s195] %v282
                %v284 = vld [vmem:[%s202 + $0x120] sm:%s195]
                %285 = vst [vmem:[%s203 + $0xa0] sm:%s195] %v284
                %v286 = vld [vmem:[%s202 + $0x124] sm:%s195]
                %287 = vst [vmem:[%s203 + $0xa4] sm:%s195] %v286
                %v288 = vld [vmem:[%s202 + $0x128] sm:%s195]
                %289 = vst [vmem:[%s203 + $0xa8] sm:%s195] %v288
                %v290 = vld [vmem:[%s202 + $0x12c] sm:%s195]
                %291 = vst [vmem:[%s203 + $0xac] sm:%s195] %v290
                %v292 = vld [vmem:[%s202 + $0x130] sm:%s195]
                %293 = vst [vmem:[%s203 + $0xb0] sm:%s195] %v292
                %v294 = vld [vmem:[%s202 + $0x134] sm:%s195]
                %295 = vst [vmem:[%s203 + $0xb4] sm:%s195] %v294
                %v296 = vld [vmem:[%s202 + $0x138] sm:%s195]
                %297 = vst [vmem:[%s203 + $0xb8] sm:%s195] %v296
                %v298 = vld [vmem:[%s202 + $0x13c] sm:%s195]
                %299 = vst [vmem:[%s203 + $0xbc] sm:%s195] %v298
                %v300 = vld [vmem:[%s202 + $0x140] sm:%s195]
                %301 = vst [vmem:[%s203 + $0xc0] sm:%s195] %v300
                %v302 = vld [vmem:[%s202 + $0x144] sm:%s195]
                %303 = vst [vmem:[%s203 + $0xc4] sm:%s195] %v302
                %v304 = vld [vmem:[%s202 + $0x148] sm:%s195]
                %305 = vst [vmem:[%s203 + $0xc8] sm:%s195] %v304
                %v306 = vld [vmem:[%s202 + $0x14c] sm:%s195]
                %307 = vst [vmem:[%s203 + $0xcc] sm:%s195] %v306
                %v308 = vld [vmem:[%s202 + $0x150] sm:%s195]
                %309 = vst [vmem:[%s203 + $0xd0] sm:%s195] %v308
                %v310 = vld [vmem:[%s202 + $0x154] sm:%s195]
                %311 = vst [vmem:[%s203 + $0xd4] sm:%s195] %v310
                %v312 = vld [vmem:[%s202 + $0x158] sm:%s195]
                %313 = vst [vmem:[%s203 + $0xd8] sm:%s195] %v312
                %v314 = vld [vmem:[%s202 + $0x15c] sm:%s195]
                %315 = vst [vmem:[%s203 + $0xdc] sm:%s195] %v314
                %v316 = vld [vmem:[%s202 + $0x160] sm:%s195]
                %317 = vst [vmem:[%s203 + $0xe0] sm:%s195] %v316
                %v318 = vld [vmem:[%s202 + $0x164] sm:%s195]
                %319 = vst [vmem:[%s203 + $0xe4] sm:%s195] %v318
                %v320 = vld [vmem:[%s202 + $0x168] sm:%s195]
                %321 = vst [vmem:[%s203 + $0xe8] sm:%s195] %v320
                %v322 = vld [vmem:[%s202 + $0x16c] sm:%s195]
                %323 = vst [vmem:[%s203 + $0xec] sm:%s195] %v322
                %v324 = vld [vmem:[%s202 + $0x170] sm:%s195]
                %325 = vst [vmem:[%s203 + $0xf0] sm:%s195] %v324
                %v326 = vld [vmem:[%s202 + $0x174] sm:%s195]
                %327 = vst [vmem:[%s203 + $0xf4] sm:%s195] %v326
                %v328 = vld [vmem:[%s202 + $0x178] sm:%s195]
                %329 = vst [vmem:[%s203 + $0xf8] sm:%s195] %v328
                %v330 = vld [vmem:[%s202 + $0x17c] sm:%s195]
                %331 = vst [vmem:[%s203 + $0xfc] sm:%s195] %v330
                %v332 = vld [vmem:[%s202 + $0x200] sm:%s195]
                %333 = vst [vmem:[%s203 + $0x100] sm:%s195] %v332
                %v334 = vld [vmem:[%s202 + $0x204] sm:%s195]
                %335 = vst [vmem:[%s203 + $0x104] sm:%s195] %v334
                %v336 = vld [vmem:[%s202 + $0x208] sm:%s195]
                %337 = vst [vmem:[%s203 + $0x108] sm:%s195] %v336
                %v338 = vld [vmem:[%s202 + $0x20c] sm:%s195]
                %339 = vst [vmem:[%s203 + $0x10c] sm:%s195] %v338
                %v340 = vld [vmem:[%s202 + $0x210] sm:%s195]
                %341 = vst [vmem:[%s203 + $0x110] sm:%s195] %v340
                %v342 = vld [vmem:[%s202 + $0x214] sm:%s195]
                %343 = vst [vmem:[%s203 + $0x114] sm:%s195] %v342
                %v344 = vld [vmem:[%s202 + $0x218] sm:%s195]
                %345 = vst [vmem:[%s203 + $0x118] sm:%s195] %v344
                %v346 = vld [vmem:[%s202 + $0x21c] sm:%s195]
                %347 = vst [vmem:[%s203 + $0x11c] sm:%s195] %v346
                %v348 = vld [vmem:[%s202 + $0x220] sm:%s195]
                %349 = vst [vmem:[%s203 + $0x120] sm:%s195] %v348
                %v350 = vld [vmem:[%s202 + $0x224] sm:%s195]
                %351 = vst [vmem:[%s203 + $0x124] sm:%s195] %v350
                %v352 = vld [vmem:[%s202 + $0x228] sm:%s195]
                %353 = vst [vmem:[%s203 + $0x128] sm:%s195] %v352
                %v354 = vld [vmem:[%s202 + $0x22c] sm:%s195]
                %355 = vst [vmem:[%s203 + $0x12c] sm:%s195] %v354
                %v356 = vld [vmem:[%s202 + $0x230] sm:%s195]
                %357 = vst [vmem:[%s203 + $0x130] sm:%s195] %v356
                %v358 = vld [vmem:[%s202 + $0x234] sm:%s195]
                %359 = vst [vmem:[%s203 + $0x134] sm:%s195] %v358
                %v360 = vld [vmem:[%s202 + $0x238] sm:%s195]
                %361 = vst [vmem:[%s203 + $0x138] sm:%s195] %v360
                %v362 = vld [vmem:[%s202 + $0x23c] sm:%s195]
                %363 = vst [vmem:[%s203 + $0x13c] sm:%s195] %v362
                %v364 = vld [vmem:[%s202 + $0x240] sm:%s195]
                %365 = vst [vmem:[%s203 + $0x140] sm:%s195] %v364
                %v366 = vld [vmem:[%s202 + $0x244] sm:%s195]
                %367 = vst [vmem:[%s203 + $0x144] sm:%s195] %v366
                %v368 = vld [vmem:[%s202 + $0x248] sm:%s195]
                %369 = vst [vmem:[%s203 + $0x148] sm:%s195] %v368
                %v370 = vld [vmem:[%s202 + $0x24c] sm:%s195]
                %371 = vst [vmem:[%s203 + $0x14c] sm:%s195] %v370
                %v372 = vld [vmem:[%s202 + $0x250] sm:%s195]
                %373 = vst [vmem:[%s203 + $0x150] sm:%s195] %v372
                %v374 = vld [vmem:[%s202 + $0x254] sm:%s195]
                %375 = vst [vmem:[%s203 + $0x154] sm:%s195] %v374
                %v376 = vld [vmem:[%s202 + $0x258] sm:%s195]
                %377 = vst [vmem:[%s203 + $0x158] sm:%s195] %v376
                %v378 = vld [vmem:[%s202 + $0x25c] sm:%s195]
                %379 = vst [vmem:[%s203 + $0x15c] sm:%s195] %v378
                %v380 = vld [vmem:[%s202 + $0x260] sm:%s195]
                %381 = vst [vmem:[%s203 + $0x160] sm:%s195] %v380
                %v382 = vld [vmem:[%s202 + $0x264] sm:%s195]
                %383 = vst [vmem:[%s203 + $0x164] sm:%s195] %v382
                %v384 = vld [vmem:[%s202 + $0x268] sm:%s195]
                %385 = vst [vmem:[%s203 + $0x168] sm:%s195] %v384
                %v386 = vld [vmem:[%s202 + $0x26c] sm:%s195]
                %387 = vst [vmem:[%s203 + $0x16c] sm:%s195] %v386
                %v388 = vld [vmem:[%s202 + $0x270] sm:%s195]
                %389 = vst [vmem:[%s203 + $0x170] sm:%s195] %v388
                %v390 = vld [vmem:[%s202 + $0x274] sm:%s195]
                %391 = vst [vmem:[%s203 + $0x174] sm:%s195] %v390
                %v392 = vld [vmem:[%s202 + $0x278] sm:%s195]
                %393 = vst [vmem:[%s203 + $0x178] sm:%s195] %v392
                %v394 = vld [vmem:[%s202 + $0x27c] sm:%s195]
                %395 = vst [vmem:[%s203 + $0x17c] sm:%s195] %v394
                %v396 = vld [vmem:[%s202 + $0x300] sm:%s195]
                %397 = vst [vmem:[%s203 + $0x180] sm:%s195] %v396
                %v398 = vld [vmem:[%s202 + $0x304] sm:%s195]
                %399 = vst [vmem:[%s203 + $0x184] sm:%s195] %v398
                %v400 = vld [vmem:[%s202 + $0x308] sm:%s195]
                %401 = vst [vmem:[%s203 + $0x188] sm:%s195] %v400
                %v402 = vld [vmem:[%s202 + $0x30c] sm:%s195]
                %403 = vst [vmem:[%s203 + $0x18c] sm:%s195] %v402
                %v404 = vld [vmem:[%s202 + $0x310] sm:%s195]
                %405 = vst [vmem:[%s203 + $0x190] sm:%s195] %v404
                %v406 = vld [vmem:[%s202 + $0x314] sm:%s195]
                %407 = vst [vmem:[%s203 + $0x194] sm:%s195] %v406
                %v408 = vld [vmem:[%s202 + $0x318] sm:%s195]
                %409 = vst [vmem:[%s203 + $0x198] sm:%s195] %v408
                %v410 = vld [vmem:[%s202 + $0x31c] sm:%s195]
                %411 = vst [vmem:[%s203 + $0x19c] sm:%s195] %v410
                %v412 = vld [vmem:[%s202 + $0x320] sm:%s195]
                %413 = vst [vmem:[%s203 + $0x1a0] sm:%s195] %v412
                %v414 = vld [vmem:[%s202 + $0x324] sm:%s195]
                %415 = vst [vmem:[%s203 + $0x1a4] sm:%s195] %v414
                %v416 = vld [vmem:[%s202 + $0x328] sm:%s195]
                %417 = vst [vmem:[%s203 + $0x1a8] sm:%s195] %v416
                %v418 = vld [vmem:[%s202 + $0x32c] sm:%s195]
                %419 = vst [vmem:[%s203 + $0x1ac] sm:%s195] %v418
                %v420 = vld [vmem:[%s202 + $0x330] sm:%s195]
                %421 = vst [vmem:[%s203 + $0x1b0] sm:%s195] %v420
                %v422 = vld [vmem:[%s202 + $0x334] sm:%s195]
                %423 = vst [vmem:[%s203 + $0x1b4] sm:%s195] %v422
                %v424 = vld [vmem:[%s202 + $0x338] sm:%s195]
                %425 = vst [vmem:[%s203 + $0x1b8] sm:%s195] %v424
                %v426 = vld [vmem:[%s202 + $0x33c] sm:%s195]
                %427 = vst [vmem:[%s203 + $0x1bc] sm:%s195] %v426
                %v428 = vld [vmem:[%s202 + $0x340] sm:%s195]
                %429 = vst [vmem:[%s203 + $0x1c0] sm:%s195] %v428
                %v430 = vld [vmem:[%s202 + $0x344] sm:%s195]
                %431 = vst [vmem:[%s203 + $0x1c4] sm:%s195] %v430
                %v432 = vld [vmem:[%s202 + $0x348] sm:%s195]
                %433 = vst [vmem:[%s203 + $0x1c8] sm:%s195] %v432
                %v434 = vld [vmem:[%s202 + $0x34c] sm:%s195]
                %435 = vst [vmem:[%s203 + $0x1cc] sm:%s195] %v434
                %v436 = vld [vmem:[%s202 + $0x350] sm:%s195]
                %437 = vst [vmem:[%s203 + $0x1d0] sm:%s195] %v436
                %v438 = vld [vmem:[%s202 + $0x354] sm:%s195]
                %439 = vst [vmem:[%s203 + $0x1d4] sm:%s195] %v438
                %v440 = vld [vmem:[%s202 + $0x358] sm:%s195]
                %441 = vst [vmem:[%s203 + $0x1d8] sm:%s195] %v440
                %v442 = vld [vmem:[%s202 + $0x35c] sm:%s195]
                %443 = vst [vmem:[%s203 + $0x1dc] sm:%s195] %v442
                %v444 = vld [vmem:[%s202 + $0x360] sm:%s195]
                %445 = vst [vmem:[%s203 + $0x1e0] sm:%s195] %v444
                %v446 = vld [vmem:[%s202 + $0x364] sm:%s195]
                %447 = vst [vmem:[%s203 + $0x1e4] sm:%s195] %v446
                %v448 = vld [vmem:[%s202 + $0x368] sm:%s195]
                %449 = vst [vmem:[%s203 + $0x1e8] sm:%s195] %v448
                %v450 = vld [vmem:[%s202 + $0x36c] sm:%s195]
                %451 = vst [vmem:[%s203 + $0x1ec] sm:%s195] %v450
                %v452 = vld [vmem:[%s202 + $0x370] sm:%s195]
                %453 = vst [vmem:[%s203 + $0x1f0] sm:%s195] %v452
                %v454 = vld [vmem:[%s202 + $0x374] sm:%s195]
                %455 = vst [vmem:[%s203 + $0x1f4] sm:%s195] %v454
                %v456 = vld [vmem:[%s202 + $0x378] sm:%s195]
                %457 = vst [vmem:[%s203 + $0x1f8] sm:%s195] %v456
                %v458 = vld [vmem:[%s202 + $0x37c] sm:%s195]
                %459 = vst [vmem:[%s203 + $0x1fc] sm:%s195] %v458
              $region53: #{encoder_cifar_forward.3} parent=47 // loop_footer
                %s201 = sadd.s32 1, %s197
              $region54: #{encoder_cifar_forward.3} parent=47 // loop_footer_branch
                %196 = sbr.rel target = $region50
              $region55: #{encoder_cifar_forward.3} parent=47 // loop_exit
                _
            $region48: #{encoder_cifar_forward.3} parent=39 // pred_fallthru
              _
          $region40: #{encoder_cifar_forward.3} parent=35 // pred_fallthru
            _
          %736 = vnop
        $region36: #{encoder_cifar_forward.3} parent=31 // pred_fallthru
          _
      $region32: #{encoder_cifar_forward.3} parent=5 // pred_fallthru
        _
      %p737 = scmp.le.s32.totalorder 1, %s11
      %p738 = scmp.lt.s32.totalorder %s11, 3
      %p739 = pnand %p737, %p738
      %p740 = pneg %p739
      // Predicated region
      $region74: #{encoder_cifar_forward.3} parent=5 // pred_check
        _
      $region75: #{encoder_cifar_forward.3} parent=5 // pred_check_branch
        %742 = sbr.rel (%p739) target = $region77
      $region76: #{encoder_cifar_forward.3} parent=5 // pred_region
        %s743 = ssub.s32 %s11, 1
        %s744 = sand.u32 %s24, 1
        %s745 = sand.u32 %s24, 1
        %s746 = smul.addr %s745, 512
        %s747 = scalar_lea.vmem [#allocation2], %s746
        // Predicated region
        $region78: #{encoder_cifar_forward.3} parent=76 // pred_check
          %p748 = pneg %p37
        $region79: #{encoder_cifar_forward.3} parent=76 // pred_check_branch
          %750 = sbr.rel (%p748) target = $region81
        $region80: #{encoder_cifar_forward.3} parent=76 // pred_region
          _
        $region81: #{encoder_cifar_forward.3} parent=76 // pred_fallthru
          _
        %s751 = sand.u32 %s24, 1
        %s752 = sand.u32 %s24, 1
        %s753 = smul.addr %s752, 512
        %s754 = scalar_lea.vmem [#allocation2], %s753
        %p755 = pneg %p37
        %p756 = pneg %p34
        %p757 = pneg %p58
        %p758 = pneg %p55
        %p759 = pneg %p79
        %p760 = pneg %p76
        %p761 = pneg %p100
        %p762 = pneg %p97
        %p763 = pneg %p121
        %p764 = pneg %p118
        %p765 = pneg %p147
        %p766 = pneg %p144
        %s767 = smul.u32 32, %s16
        %p768 = scmp.lt.s32.totalorder %s767, 63
        %s769 = scalar_select %p768, %s767, 63
        %s770 = smul.addr %s769, 4
        %s771 = scalar_lea.vmem %s5, %s770
        %s772 = smul.u32 32, %s16
        %s773 = smul.u32 32, %s16
        %p774 = scmp.lt.s32.totalorder %s773, 63
        %s775 = scalar_select %p774, %s773, 63
        %s776 = smul.addr %s775, 4
        %s777 = scalar_lea.vmem %s5, %s776
        %s778 = smul.u32 32, %s16
        %v779 = vld [vmem:[%s747] sm:$0xf]
        %v780 = vld [vmem:[%s747 + $0x4] sm:$0xf]
        %v781 = vld [vmem:[%s747 + $0x8] sm:$0xf]
        %v782 = vld [vmem:[%s747 + $0xc] sm:$0xf]
        %v783 = vld [vmem:[%s747 + $0x10] sm:$0xf]
        %v784 = vld [vmem:[%s747 + $0x14] sm:$0xf]
        %v785 = vld [vmem:[%s747 + $0x18] sm:$0xf]
        %v786 = vld [vmem:[%s747 + $0x1c] sm:$0xf]
        %v787 = vld [vmem:[%s747 + $0x20] sm:$0xf]
        %v788 = vld [vmem:[%s747 + $0x24] sm:$0xf]
        %v789 = vld [vmem:[%s747 + $0x28] sm:$0xf]
        %v790 = vld [vmem:[%s747 + $0x2c] sm:$0xf]
        %v791 = vld [vmem:[%s747 + $0x30] sm:$0xf]
        %v792 = vld [vmem:[%s747 + $0x34] sm:$0xf]
        %v793 = vld [vmem:[%s747 + $0x38] sm:$0xf]
        %v794 = vld [vmem:[%s747 + $0x3c] sm:$0xf]
        %v795 = vld [vmem:[%s747 + $0x40] sm:$0xf]
        %v796 = vld [vmem:[%s747 + $0x44] sm:$0xf]
        %v797 = vld [vmem:[%s747 + $0x48] sm:$0xf]
        %v798 = vld [vmem:[%s747 + $0x4c] sm:$0xf]
        %v799 = vld [vmem:[%s747 + $0x50] sm:$0xf]
        %v800 = vld [vmem:[%s747 + $0x54] sm:$0xf]
        %v801 = vld [vmem:[%s747 + $0x58] sm:$0xf]
        %v802 = vld [vmem:[%s747 + $0x5c] sm:$0xf]
        %v803 = vld [vmem:[%s747 + $0x60] sm:$0xf]
        %v804 = vld [vmem:[%s747 + $0x64] sm:$0xf]
        %v805 = vld [vmem:[%s747 + $0x68] sm:$0xf]
        %v806 = vld [vmem:[%s747 + $0x6c] sm:$0xf]
        %v807 = vld [vmem:[%s747 + $0x70] sm:$0xf]
        %v808 = vld [vmem:[%s747 + $0x74] sm:$0xf]
        %v809 = vld [vmem:[%s747 + $0x78] sm:$0xf]
        %v810 = vld [vmem:[%s747 + $0x7c] sm:$0xf]
        %v811 = vld [vmem:[%s747 + $0x80] sm:$0xf]
        %v812 = vld [vmem:[%s747 + $0x84] sm:$0xf]
        %v813 = vld [vmem:[%s747 + $0x88] sm:$0xf]
        %v814 = vld [vmem:[%s747 + $0x8c] sm:$0xf]
        %v815 = vld [vmem:[%s747 + $0x90] sm:$0xf]
        %v816 = vld [vmem:[%s747 + $0x94] sm:$0xf]
        %v817 = vld [vmem:[%s747 + $0x98] sm:$0xf]
        %v818 = vld [vmem:[%s747 + $0x9c] sm:$0xf]
        %v819 = vld [vmem:[%s747 + $0xa0] sm:$0xf]
        %v820 = vld [vmem:[%s747 + $0xa4] sm:$0xf]
        %v821 = vld [vmem:[%s747 + $0xa8] sm:$0xf]
        %v822 = vld [vmem:[%s747 + $0xac] sm:$0xf]
        %v823 = vld [vmem:[%s747 + $0xb0] sm:$0xf]
        %v824 = vld [vmem:[%s747 + $0xb4] sm:$0xf]
        %v825 = vld [vmem:[%s747 + $0xb8] sm:$0xf]
        %v826 = vld [vmem:[%s747 + $0xbc] sm:$0xf]
        %v827 = vld [vmem:[%s747 + $0xc0] sm:$0xf]
        %v828 = vld [vmem:[%s747 + $0xc4] sm:$0xf]
        %v829 = vld [vmem:[%s747 + $0xc8] sm:$0xf]
        %v830 = vld [vmem:[%s747 + $0xcc] sm:$0xf]
        %v831 = vld [vmem:[%s747 + $0xd0] sm:$0xf]
        %v832 = vld [vmem:[%s747 + $0xd4] sm:$0xf]
        %v833 = vld [vmem:[%s747 + $0xd8] sm:$0xf]
        %v834 = vld [vmem:[%s747 + $0xdc] sm:$0xf]
        %v835 = vld [vmem:[%s747 + $0xe0] sm:$0xf]
        %v836 = vld [vmem:[%s747 + $0xe4] sm:$0xf]
        %v837 = vld [vmem:[%s747 + $0xe8] sm:$0xf]
        %v838 = vld [vmem:[%s747 + $0xec] sm:$0xf]
        %v839 = vld [vmem:[%s747 + $0xf0] sm:$0xf]
        %v840 = vld [vmem:[%s747 + $0xf4] sm:$0xf]
        %v841 = vld [vmem:[%s747 + $0xf8] sm:$0xf]
        %v842 = vld [vmem:[%s747 + $0xfc] sm:$0xf]
        %v843 = vld [vmem:[%s747 + $0x100] sm:$0xf]
        %v844 = vld [vmem:[%s747 + $0x104] sm:$0xf]
        %v845 = vld [vmem:[%s747 + $0x108] sm:$0xf]
        %v846 = vld [vmem:[%s747 + $0x10c] sm:$0xf]
        %v847 = vld [vmem:[%s747 + $0x110] sm:$0xf]
        %v848 = vld [vmem:[%s747 + $0x114] sm:$0xf]
        %v849 = vld [vmem:[%s747 + $0x118] sm:$0xf]
        %v850 = vld [vmem:[%s747 + $0x11c] sm:$0xf]
        %v851 = vld [vmem:[%s747 + $0x120] sm:$0xf]
        %v852 = vld [vmem:[%s747 + $0x124] sm:$0xf]
        %v853 = vld [vmem:[%s747 + $0x128] sm:$0xf]
        %v854 = vld [vmem:[%s747 + $0x12c] sm:$0xf]
        %v855 = vld [vmem:[%s747 + $0x130] sm:$0xf]
        %v856 = vld [vmem:[%s747 + $0x134] sm:$0xf]
        %v857 = vld [vmem:[%s747 + $0x138] sm:$0xf]
        %v858 = vld [vmem:[%s747 + $0x13c] sm:$0xf]
        %v859 = vld [vmem:[%s747 + $0x140] sm:$0xf]
        %v860 = vld [vmem:[%s747 + $0x144] sm:$0xf]
        %v861 = vld [vmem:[%s747 + $0x148] sm:$0xf]
        %v862 = vld [vmem:[%s747 + $0x14c] sm:$0xf]
        %v863 = vld [vmem:[%s747 + $0x150] sm:$0xf]
        %v864 = vld [vmem:[%s747 + $0x154] sm:$0xf]
        %v865 = vld [vmem:[%s747 + $0x158] sm:$0xf]
        %v866 = vld [vmem:[%s747 + $0x15c] sm:$0xf]
        %v867 = vld [vmem:[%s747 + $0x160] sm:$0xf]
        %v868 = vld [vmem:[%s747 + $0x164] sm:$0xf]
        %v869 = vld [vmem:[%s747 + $0x168] sm:$0xf]
        %v870 = vld [vmem:[%s747 + $0x16c] sm:$0xf]
        %v871 = vld [vmem:[%s747 + $0x170] sm:$0xf]
        %v872 = vld [vmem:[%s747 + $0x174] sm:$0xf]
        %v873 = vld [vmem:[%s747 + $0x178] sm:$0xf]
        %v874 = vld [vmem:[%s747 + $0x17c] sm:$0xf]
        %v875 = vld [vmem:[%s747 + $0x180] sm:$0xf]
        %v876 = vld [vmem:[%s747 + $0x184] sm:$0xf]
        %v877 = vld [vmem:[%s747 + $0x188] sm:$0xf]
        %v878 = vld [vmem:[%s747 + $0x18c] sm:$0xf]
        %v879 = vld [vmem:[%s747 + $0x190] sm:$0xf]
        %v880 = vld [vmem:[%s747 + $0x194] sm:$0xf]
        %v881 = vld [vmem:[%s747 + $0x198] sm:$0xf]
        %v882 = vld [vmem:[%s747 + $0x19c] sm:$0xf]
        %v883 = vld [vmem:[%s747 + $0x1a0] sm:$0xf]
        %v884 = vld [vmem:[%s747 + $0x1a4] sm:$0xf]
        %v885 = vld [vmem:[%s747 + $0x1a8] sm:$0xf]
        %v886 = vld [vmem:[%s747 + $0x1ac] sm:$0xf]
        %v887 = vld [vmem:[%s747 + $0x1b0] sm:$0xf]
        %v888 = vld [vmem:[%s747 + $0x1b4] sm:$0xf]
        %v889 = vld [vmem:[%s747 + $0x1b8] sm:$0xf]
        %v890 = vld [vmem:[%s747 + $0x1bc] sm:$0xf]
        %v891 = vld [vmem:[%s747 + $0x1c0] sm:$0xf]
        %v892 = vld [vmem:[%s747 + $0x1c4] sm:$0xf]
        %v893 = vld [vmem:[%s747 + $0x1c8] sm:$0xf]
        %v894 = vld [vmem:[%s747 + $0x1cc] sm:$0xf]
        %v895 = vld [vmem:[%s747 + $0x1d0] sm:$0xf]
        %v896 = vld [vmem:[%s747 + $0x1d4] sm:$0xf]
        %v897 = vld [vmem:[%s747 + $0x1d8] sm:$0xf]
        %v898 = vld [vmem:[%s747 + $0x1dc] sm:$0xf]
        %v899 = vld [vmem:[%s747 + $0x1e0] sm:$0xf]
        %v900 = vld [vmem:[%s747 + $0x1e4] sm:$0xf]
        %v901 = vld [vmem:[%s747 + $0x1e8] sm:$0xf]
        %v902 = vld [vmem:[%s747 + $0x1ec] sm:$0xf]
        %v903 = vld [vmem:[%s747 + $0x1f0] sm:$0xf]
        %v904 = vld [vmem:[%s747 + $0x1f4] sm:$0xf]
        %v905 = vld [vmem:[%s747 + $0x1f8] sm:$0xf]
        %v906 = vld [vmem:[%s747 + $0x1fc] sm:$0xf]
        %v907 = vld [vmem:[%s1] sm:$0xf]
        %v908 = vld [vmem:[%s1 + $0x4] sm:$0xf]
        %v909 = vld [vmem:[%s1 + $0x8] sm:$0xf]
        %v910 = vld [vmem:[%s1 + $0xc] sm:$0xf]
        %v911 = vld [vmem:[%s1 + $0x10] sm:$0xf]
        %v912 = vld [vmem:[%s1 + $0x14] sm:$0xf]
        %v913 = vld [vmem:[%s1 + $0x18] sm:$0xf]
        %v914 = vld [vmem:[%s1 + $0x1c] sm:$0xf]
        %v915 = vld [vmem:[%s1 + $0x20] sm:$0xf]
        %v916 = vld [vmem:[%s1 + $0x24] sm:$0xf]
        %v917 = vld [vmem:[%s1 + $0x28] sm:$0xf]
        %v918 = vld [vmem:[%s1 + $0x2c] sm:$0xf]
        %v919 = vld [vmem:[%s1 + $0x30] sm:$0xf]
        %v920 = vld [vmem:[%s1 + $0x34] sm:$0xf]
        %v921 = vld [vmem:[%s1 + $0x38] sm:$0xf]
        %v922 = vld [vmem:[%s1 + $0x3c] sm:$0xf]
        %v923 = vld [vmem:[%s2] sm:$0x1]
        %v925 = vperm.slane %v923, 0
        %v1055 = vunpack.c.l.b16 %v779
        %v1056 = vunpack.c.l.b16 %v780
        %v1057 = vunpack.c.l.b16 %v781
        %v1058 = vunpack.c.l.b16 %v782
        %v1059 = vunpack.c.l.b16 %v783
        %v1060 = vunpack.c.l.b16 %v784
        %v1061 = vunpack.c.l.b16 %v785
        %v1062 = vunpack.c.l.b16 %v786
        %v1063 = vunpack.c.l.b16 %v787
        %v1064 = vunpack.c.l.b16 %v788
        %v1065 = vunpack.c.l.b16 %v789
        %v1066 = vunpack.c.l.b16 %v790
        %v1067 = vunpack.c.l.b16 %v791
        %v1068 = vunpack.c.l.b16 %v792
        %v1069 = vunpack.c.l.b16 %v793
        %v1070 = vunpack.c.l.b16 %v794
        %v1071 = vunpack.c.l.b16 %v795
        %v1072 = vunpack.c.l.b16 %v796
        %v1073 = vunpack.c.l.b16 %v797
        %v1074 = vunpack.c.l.b16 %v798
        %v1075 = vunpack.c.l.b16 %v799
        %v1076 = vunpack.c.l.b16 %v800
        %v1077 = vunpack.c.l.b16 %v801
        %v1078 = vunpack.c.l.b16 %v802
        %v1079 = vunpack.c.l.b16 %v803
        %v1080 = vunpack.c.l.b16 %v804
        %v1081 = vunpack.c.l.b16 %v805
        %v1082 = vunpack.c.l.b16 %v806
        %v1083 = vunpack.c.l.b16 %v807
        %v1084 = vunpack.c.l.b16 %v808
        %v1085 = vunpack.c.l.b16 %v809
        %v1086 = vunpack.c.l.b16 %v810
        %v1087 = vunpack.c.l.b16 %v811
        %v1088 = vunpack.c.l.b16 %v812
        %v1089 = vunpack.c.l.b16 %v813
        %v1090 = vunpack.c.l.b16 %v814
        %v1091 = vunpack.c.l.b16 %v815
        %v1092 = vunpack.c.l.b16 %v816
        %v1093 = vunpack.c.l.b16 %v817
        %v1094 = vunpack.c.l.b16 %v818
        %v1095 = vunpack.c.l.b16 %v819
        %v1096 = vunpack.c.l.b16 %v820
        %v1097 = vunpack.c.l.b16 %v821
        %v1098 = vunpack.c.l.b16 %v822
        %v1099 = vunpack.c.l.b16 %v823
        %v1100 = vunpack.c.l.b16 %v824
        %v1101 = vunpack.c.l.b16 %v825
        %v1102 = vunpack.c.l.b16 %v826
        %v1103 = vunpack.c.l.b16 %v827
        %v1104 = vunpack.c.l.b16 %v828
        %v1105 = vunpack.c.l.b16 %v829
        %v1106 = vunpack.c.l.b16 %v830
        %v1107 = vunpack.c.l.b16 %v831
        %v1108 = vunpack.c.l.b16 %v832
        %v1109 = vunpack.c.l.b16 %v833
        %v1110 = vunpack.c.l.b16 %v834
        %v1111 = vunpack.c.l.b16 %v835
        %v1112 = vunpack.c.l.b16 %v836
        %v1113 = vunpack.c.l.b16 %v837
        %v1114 = vunpack.c.l.b16 %v838
        %v1115 = vunpack.c.l.b16 %v839
        %v1116 = vunpack.c.l.b16 %v840
        %v1117 = vunpack.c.l.b16 %v841
        %v1118 = vunpack.c.l.b16 %v842
        %v1119 = vunpack.c.l.b16 %v843
        %v1120 = vunpack.c.l.b16 %v844
        %v1121 = vunpack.c.l.b16 %v845
        %v1122 = vunpack.c.l.b16 %v846
        %v1123 = vunpack.c.l.b16 %v847
        %v1124 = vunpack.c.l.b16 %v848
        %v1125 = vunpack.c.l.b16 %v849
        %v1126 = vunpack.c.l.b16 %v850
        %v1127 = vunpack.c.l.b16 %v851
        %v1128 = vunpack.c.l.b16 %v852
        %v1129 = vunpack.c.l.b16 %v853
        %v1130 = vunpack.c.l.b16 %v854
        %v1131 = vunpack.c.l.b16 %v855
        %v1132 = vunpack.c.l.b16 %v856
        %v1133 = vunpack.c.l.b16 %v857
        %v1134 = vunpack.c.l.b16 %v858
        %v1135 = vunpack.c.l.b16 %v859
        %v1136 = vunpack.c.l.b16 %v860
        %v1137 = vunpack.c.l.b16 %v861
        %v1138 = vunpack.c.l.b16 %v862
        %v1139 = vunpack.c.l.b16 %v863
        %v1140 = vunpack.c.l.b16 %v864
        %v1141 = vunpack.c.l.b16 %v865
        %v1142 = vunpack.c.l.b16 %v866
        %v1143 = vunpack.c.l.b16 %v867
        %v1144 = vunpack.c.l.b16 %v868
        %v1145 = vunpack.c.l.b16 %v869
        %v1146 = vunpack.c.l.b16 %v870
        %v1147 = vunpack.c.l.b16 %v871
        %v1148 = vunpack.c.l.b16 %v872
        %v1149 = vunpack.c.l.b16 %v873
        %v1150 = vunpack.c.l.b16 %v874
        %v1151 = vunpack.c.l.b16 %v875
        %v1152 = vunpack.c.l.b16 %v876
        %v1153 = vunpack.c.l.b16 %v877
        %v1154 = vunpack.c.l.b16 %v878
        %v1155 = vunpack.c.l.b16 %v879
        %v1156 = vunpack.c.l.b16 %v880
        %v1157 = vunpack.c.l.b16 %v881
        %v1158 = vunpack.c.l.b16 %v882
        %v1159 = vunpack.c.l.b16 %v883
        %v1160 = vunpack.c.l.b16 %v884
        %v1161 = vunpack.c.l.b16 %v885
        %v1162 = vunpack.c.l.b16 %v886
        %v1163 = vunpack.c.l.b16 %v887
        %v1164 = vunpack.c.l.b16 %v888
        %v1165 = vunpack.c.l.b16 %v889
        %v1166 = vunpack.c.l.b16 %v890
        %v1167 = vunpack.c.l.b16 %v891
        %v1168 = vunpack.c.l.b16 %v892
        %v1169 = vunpack.c.l.b16 %v893
        %v1170 = vunpack.c.l.b16 %v894
        %v1171 = vunpack.c.l.b16 %v895
        %v1172 = vunpack.c.l.b16 %v896
        %v1173 = vunpack.c.l.b16 %v897
        %v1174 = vunpack.c.l.b16 %v898
        %v1175 = vunpack.c.l.b16 %v899
        %v1176 = vunpack.c.l.b16 %v900
        %v1177 = vunpack.c.l.b16 %v901
        %v1178 = vunpack.c.l.b16 %v902
        %v1179 = vunpack.c.l.b16 %v903
        %v1180 = vunpack.c.l.b16 %v904
        %v1181 = vunpack.c.l.b16 %v905
        %v1182 = vunpack.c.l.b16 %v906
        %v1183 = vpack.c.b16 %v1056, %v1055
        %v1184 = vpack.c.b16 %v1058, %v1057
        %v1185 = vpack.c.b16 %v1060, %v1059
        %v1186 = vpack.c.b16 %v1062, %v1061
        %v1187 = vpack.c.b16 %v1064, %v1063
        %v1188 = vpack.c.b16 %v1066, %v1065
        %v1189 = vpack.c.b16 %v1068, %v1067
        %v1190 = vpack.c.b16 %v1070, %v1069
        %v1191 = vpack.c.b16 %v1072, %v1071
        %v1192 = vpack.c.b16 %v1074, %v1073
        %v1193 = vpack.c.b16 %v1076, %v1075
        %v1194 = vpack.c.b16 %v1078, %v1077
        %v1195 = vpack.c.b16 %v1080, %v1079
        %v1196 = vpack.c.b16 %v1082, %v1081
        %v1197 = vpack.c.b16 %v1084, %v1083
        %v1198 = vpack.c.b16 %v1086, %v1085
        %v1199 = vpack.c.b16 %v1088, %v1087
        %v1200 = vpack.c.b16 %v1090, %v1089
        %v1201 = vpack.c.b16 %v1092, %v1091
        %v1202 = vpack.c.b16 %v1094, %v1093
        %v1203 = vpack.c.b16 %v1096, %v1095
        %v1204 = vpack.c.b16 %v1098, %v1097
        %v1205 = vpack.c.b16 %v1100, %v1099
        %v1206 = vpack.c.b16 %v1102, %v1101
        %v1207 = vpack.c.b16 %v1104, %v1103
        %v1208 = vpack.c.b16 %v1106, %v1105
        %v1209 = vpack.c.b16 %v1108, %v1107
        %v1210 = vpack.c.b16 %v1110, %v1109
        %v1211 = vpack.c.b16 %v1112, %v1111
        %v1212 = vpack.c.b16 %v1114, %v1113
        %v1213 = vpack.c.b16 %v1116, %v1115
        %v1214 = vpack.c.b16 %v1118, %v1117
        %v1215 = vpack.c.b16 %v1120, %v1119
        %v1216 = vpack.c.b16 %v1122, %v1121
        %v1217 = vpack.c.b16 %v1124, %v1123
        %v1218 = vpack.c.b16 %v1126, %v1125
        %v1219 = vpack.c.b16 %v1128, %v1127
        %v1220 = vpack.c.b16 %v1130, %v1129
        %v1221 = vpack.c.b16 %v1132, %v1131
        %v1222 = vpack.c.b16 %v1134, %v1133
        %v1223 = vpack.c.b16 %v1136, %v1135
        %v1224 = vpack.c.b16 %v1138, %v1137
        %v1225 = vpack.c.b16 %v1140, %v1139
        %v1226 = vpack.c.b16 %v1142, %v1141
        %v1227 = vpack.c.b16 %v1144, %v1143
        %v1228 = vpack.c.b16 %v1146, %v1145
        %v1229 = vpack.c.b16 %v1148, %v1147
        %v1230 = vpack.c.b16 %v1150, %v1149
        %v1231 = vpack.c.b16 %v1152, %v1151
        %v1232 = vpack.c.b16 %v1154, %v1153
        %v1233 = vpack.c.b16 %v1156, %v1155
        %v1234 = vpack.c.b16 %v1158, %v1157
        %v1235 = vpack.c.b16 %v1160, %v1159
        %v1236 = vpack.c.b16 %v1162, %v1161
        %v1237 = vpack.c.b16 %v1164, %v1163
        %v1238 = vpack.c.b16 %v1166, %v1165
        %v1239 = vpack.c.b16 %v1168, %v1167
        %v1240 = vpack.c.b16 %v1170, %v1169
        %v1241 = vpack.c.b16 %v1172, %v1171
        %v1242 = vpack.c.b16 %v1174, %v1173
        %v1243 = vpack.c.b16 %v1176, %v1175
        %v1244 = vpack.c.b16 %v1178, %v1177
        %v1245 = vpack.c.b16 %v1180, %v1179
        %v1246 = vpack.c.b16 %v1182, %v1181
        %v1327 = vunpack.c.l.b16 %v907
        %v1328 = vunpack.c.l.b16 %v908
        %v1329 = vunpack.c.l.b16 %v909
        %v1330 = vunpack.c.l.b16 %v910
        %v1331 = vunpack.c.l.b16 %v911
        %v1332 = vunpack.c.l.b16 %v912
        %v1333 = vunpack.c.l.b16 %v913
        %v1334 = vunpack.c.l.b16 %v914
        %v1335 = vunpack.c.l.b16 %v915
        %v1336 = vunpack.c.l.b16 %v916
        %v1337 = vunpack.c.l.b16 %v917
        %v1338 = vunpack.c.l.b16 %v918
        %v1339 = vunpack.c.l.b16 %v919
        %v1340 = vunpack.c.l.b16 %v920
        %v1341 = vunpack.c.l.b16 %v921
        %v1342 = vunpack.c.l.b16 %v922
        %v1343 = vpack.c.b16 %v1328, %v1327
        %v1344 = vpack.c.b16 %v1330, %v1329
        %v1345 = vpack.c.b16 %v1332, %v1331
        %v1346 = vpack.c.b16 %v1334, %v1333
        %v1347 = vpack.c.b16 %v1336, %v1335
        %v1348 = vpack.c.b16 %v1338, %v1337
        %v1349 = vpack.c.b16 %v1340, %v1339
        %v1350 = vpack.c.b16 %v1342, %v1341
        %1359 = vmatpush.bf16.msra.mxu0 %v1350
        %1360 = vmatpush.bf16.msra.mxu0 %v1349
        %1361 = vmatpush.bf16.msra.mxu0 %v1348
        %1362 = vmatpush.bf16.msra.mxu0 %v1347
        %1363 = vmatpush.bf16.msra.mxu0 %v1346
        %1364 = vmatpush.bf16.msra.mxu0 %v1345
        %1365 = vmatpush.bf16.msra.mxu0 %v1344
        %1366 = vmatpush.bf16.msra.mxu0 %v1343
        %1367 = vmatmul.bf16.gmra.mxu0 %v1183
        %v1368 = vpop.f32.mrf.mxu0
        %v1369 = vadd.f32 %v925, %v1368
        %v1370 = vpop.f32.mrf.mxu0
        %v1371 = vadd.f32 %v925, %v1370
        %1372 = vmatmul.bf16.gmra.mxu0 %v1184
        %v1373 = vpop.f32.mrf.mxu0
        %v1374 = vadd.f32 %v925, %v1373
        %v1375 = vpop.f32.mrf.mxu0
        %v1376 = vadd.f32 %v925, %v1375
        %1377 = vmatmul.bf16.gmra.mxu0 %v1185
        %v1378 = vpop.f32.mrf.mxu0
        %v1379 = vadd.f32 %v925, %v1378
        %v1380 = vpop.f32.mrf.mxu0
        %v1381 = vadd.f32 %v925, %v1380
        %1382 = vmatmul.bf16.gmra.mxu0 %v1186
        %v1383 = vpop.f32.mrf.mxu0
        %v1384 = vadd.f32 %v925, %v1383
        %v1385 = vpop.f32.mrf.mxu0
        %v1386 = vadd.f32 %v925, %v1385
        %1387 = vmatmul.bf16.gmra.mxu0 %v1187
        %v1388 = vpop.f32.mrf.mxu0
        %v1389 = vadd.f32 %v925, %v1388
        %v1390 = vpop.f32.mrf.mxu0
        %v1391 = vadd.f32 %v925, %v1390
        %1392 = vmatmul.bf16.gmra.mxu0 %v1188
        %v1393 = vpop.f32.mrf.mxu0
        %v1394 = vadd.f32 %v925, %v1393
        %v1395 = vpop.f32.mrf.mxu0
        %v1396 = vadd.f32 %v925, %v1395
        %1397 = vmatmul.bf16.gmra.mxu0 %v1189
        %v1398 = vpop.f32.mrf.mxu0
        %v1399 = vadd.f32 %v925, %v1398
        %v1400 = vpop.f32.mrf.mxu0
        %v1401 = vadd.f32 %v925, %v1400
        %1402 = vmatmul.bf16.gmra.mxu0 %v1190
        %v1403 = vpop.f32.mrf.mxu0
        %v1404 = vadd.f32 %v925, %v1403
        %v1405 = vpop.f32.mrf.mxu0
        %v1406 = vadd.f32 %v925, %v1405
        %1407 = vmatmul.bf16.gmra.mxu0 %v1191
        %v1408 = vpop.f32.mrf.mxu0
        %v1409 = vadd.f32 %v925, %v1408
        %v1410 = vpop.f32.mrf.mxu0
        %v1411 = vadd.f32 %v925, %v1410
        %1412 = vmatmul.bf16.gmra.mxu0 %v1192
        %v1413 = vpop.f32.mrf.mxu0
        %v1414 = vadd.f32 %v925, %v1413
        %v1415 = vpop.f32.mrf.mxu0
        %v1416 = vadd.f32 %v925, %v1415
        %1417 = vmatmul.bf16.gmra.mxu0 %v1193
        %v1418 = vpop.f32.mrf.mxu0
        %v1419 = vadd.f32 %v925, %v1418
        %v1420 = vpop.f32.mrf.mxu0
        %v1421 = vadd.f32 %v925, %v1420
        %1422 = vmatmul.bf16.gmra.mxu0 %v1194
        %v1423 = vpop.f32.mrf.mxu0
        %v1424 = vadd.f32 %v925, %v1423
        %v1425 = vpop.f32.mrf.mxu0
        %v1426 = vadd.f32 %v925, %v1425
        %1427 = vmatmul.bf16.gmra.mxu0 %v1195
        %v1428 = vpop.f32.mrf.mxu0
        %v1429 = vadd.f32 %v925, %v1428
        %v1430 = vpop.f32.mrf.mxu0
        %v1431 = vadd.f32 %v925, %v1430
        %1432 = vmatmul.bf16.gmra.mxu0 %v1196
        %v1433 = vpop.f32.mrf.mxu0
        %v1434 = vadd.f32 %v925, %v1433
        %v1435 = vpop.f32.mrf.mxu0
        %v1436 = vadd.f32 %v925, %v1435
        %1437 = vmatmul.bf16.gmra.mxu0 %v1197
        %v1438 = vpop.f32.mrf.mxu0
        %v1439 = vadd.f32 %v925, %v1438
        %v1440 = vpop.f32.mrf.mxu0
        %v1441 = vadd.f32 %v925, %v1440
        %1442 = vmatmul.bf16.gmra.mxu0 %v1198
        %v1443 = vpop.f32.mrf.mxu0
        %v1444 = vadd.f32 %v925, %v1443
        %v1445 = vpop.f32.mrf.mxu0
        %v1446 = vadd.f32 %v925, %v1445
        %1447 = vmatmul.bf16.gmra.mxu0 %v1199
        %v1448 = vpop.f32.mrf.mxu0
        %v1449 = vadd.f32 %v925, %v1448
        %v1450 = vpop.f32.mrf.mxu0
        %v1451 = vadd.f32 %v925, %v1450
        %1452 = vmatmul.bf16.gmra.mxu0 %v1200
        %v1453 = vpop.f32.mrf.mxu0
        %v1454 = vadd.f32 %v925, %v1453
        %v1455 = vpop.f32.mrf.mxu0
        %v1456 = vadd.f32 %v925, %v1455
        %1457 = vmatmul.bf16.gmra.mxu0 %v1201
        %v1458 = vpop.f32.mrf.mxu0
        %v1459 = vadd.f32 %v925, %v1458
        %v1460 = vpop.f32.mrf.mxu0
        %v1461 = vadd.f32 %v925, %v1460
        %1462 = vmatmul.bf16.gmra.mxu0 %v1202
        %v1463 = vpop.f32.mrf.mxu0
        %v1464 = vadd.f32 %v925, %v1463
        %v1465 = vpop.f32.mrf.mxu0
        %v1466 = vadd.f32 %v925, %v1465
        %1467 = vmatmul.bf16.gmra.mxu0 %v1203
        %v1468 = vpop.f32.mrf.mxu0
        %v1469 = vadd.f32 %v925, %v1468
        %v1470 = vpop.f32.mrf.mxu0
        %v1471 = vadd.f32 %v925, %v1470
        %1472 = vmatmul.bf16.gmra.mxu0 %v1204
        %v1473 = vpop.f32.mrf.mxu0
        %v1474 = vadd.f32 %v925, %v1473
        %v1475 = vpop.f32.mrf.mxu0
        %v1476 = vadd.f32 %v925, %v1475
        %1477 = vmatmul.bf16.gmra.mxu0 %v1205
        %v1478 = vpop.f32.mrf.mxu0
        %v1479 = vadd.f32 %v925, %v1478
        %v1480 = vpop.f32.mrf.mxu0
        %v1481 = vadd.f32 %v925, %v1480
        %1482 = vmatmul.bf16.gmra.mxu0 %v1206
        %v1483 = vpop.f32.mrf.mxu0
        %v1484 = vadd.f32 %v925, %v1483
        %v1485 = vpop.f32.mrf.mxu0
        %v1486 = vadd.f32 %v925, %v1485
        %1487 = vmatmul.bf16.gmra.mxu0 %v1207
        %v1488 = vpop.f32.mrf.mxu0
        %v1489 = vadd.f32 %v925, %v1488
        %v1490 = vpop.f32.mrf.mxu0
        %v1491 = vadd.f32 %v925, %v1490
        %1492 = vmatmul.bf16.gmra.mxu0 %v1208
        %v1493 = vpop.f32.mrf.mxu0
        %v1494 = vadd.f32 %v925, %v1493
        %v1495 = vpop.f32.mrf.mxu0
        %v1496 = vadd.f32 %v925, %v1495
        %1497 = vmatmul.bf16.gmra.mxu0 %v1209
        %v1498 = vpop.f32.mrf.mxu0
        %v1499 = vadd.f32 %v925, %v1498
        %v1500 = vpop.f32.mrf.mxu0
        %v1501 = vadd.f32 %v925, %v1500
        %1502 = vmatmul.bf16.gmra.mxu0 %v1210
        %v1503 = vpop.f32.mrf.mxu0
        %v1504 = vadd.f32 %v925, %v1503
        %v1505 = vpop.f32.mrf.mxu0
        %v1506 = vadd.f32 %v925, %v1505
        %1507 = vmatmul.bf16.gmra.mxu0 %v1211
        %v1508 = vpop.f32.mrf.mxu0
        %v1509 = vadd.f32 %v925, %v1508
        %v1510 = vpop.f32.mrf.mxu0
        %v1511 = vadd.f32 %v925, %v1510
        %1512 = vmatmul.bf16.gmra.mxu0 %v1212
        %v1513 = vpop.f32.mrf.mxu0
        %v1514 = vadd.f32 %v925, %v1513
        %v1515 = vpop.f32.mrf.mxu0
        %v1516 = vadd.f32 %v925, %v1515
        %1517 = vmatmul.bf16.gmra.mxu0 %v1213
        %v1518 = vpop.f32.mrf.mxu0
        %v1519 = vadd.f32 %v925, %v1518
        %v1520 = vpop.f32.mrf.mxu0
        %v1521 = vadd.f32 %v925, %v1520
        %1522 = vmatmul.bf16.gmra.mxu0 %v1214
        %v1523 = vpop.f32.mrf.mxu0
        %v1524 = vadd.f32 %v925, %v1523
        %v1525 = vpop.f32.mrf.mxu0
        %v1526 = vadd.f32 %v925, %v1525
        %1527 = vmatmul.bf16.gmra.mxu0 %v1215
        %v1528 = vpop.f32.mrf.mxu0
        %v1529 = vadd.f32 %v925, %v1528
        %v1530 = vpop.f32.mrf.mxu0
        %v1531 = vadd.f32 %v925, %v1530
        %1532 = vmatmul.bf16.gmra.mxu0 %v1216
        %v1533 = vpop.f32.mrf.mxu0
        %v1534 = vadd.f32 %v925, %v1533
        %v1535 = vpop.f32.mrf.mxu0
        %v1536 = vadd.f32 %v925, %v1535
        %1537 = vmatmul.bf16.gmra.mxu0 %v1217
        %v1538 = vpop.f32.mrf.mxu0
        %v1539 = vadd.f32 %v925, %v1538
        %v1540 = vpop.f32.mrf.mxu0
        %v1541 = vadd.f32 %v925, %v1540
        %1542 = vmatmul.bf16.gmra.mxu0 %v1218
        %v1543 = vpop.f32.mrf.mxu0
        %v1544 = vadd.f32 %v925, %v1543
        %v1545 = vpop.f32.mrf.mxu0
        %v1546 = vadd.f32 %v925, %v1545
        %1547 = vmatmul.bf16.gmra.mxu0 %v1219
        %v1548 = vpop.f32.mrf.mxu0
        %v1549 = vadd.f32 %v925, %v1548
        %v1550 = vpop.f32.mrf.mxu0
        %v1551 = vadd.f32 %v925, %v1550
        %1552 = vmatmul.bf16.gmra.mxu0 %v1220
        %v1553 = vpop.f32.mrf.mxu0
        %v1554 = vadd.f32 %v925, %v1553
        %v1555 = vpop.f32.mrf.mxu0
        %v1556 = vadd.f32 %v925, %v1555
        %1557 = vmatmul.bf16.gmra.mxu0 %v1221
        %v1558 = vpop.f32.mrf.mxu0
        %v1559 = vadd.f32 %v925, %v1558
        %v1560 = vpop.f32.mrf.mxu0
        %v1561 = vadd.f32 %v925, %v1560
        %1562 = vmatmul.bf16.gmra.mxu0 %v1222
        %v1563 = vpop.f32.mrf.mxu0
        %v1564 = vadd.f32 %v925, %v1563
        %v1565 = vpop.f32.mrf.mxu0
        %v1566 = vadd.f32 %v925, %v1565
        %1567 = vmatmul.bf16.gmra.mxu0 %v1223
        %v1568 = vpop.f32.mrf.mxu0
        %v1569 = vadd.f32 %v925, %v1568
        %v1570 = vpop.f32.mrf.mxu0
        %v1571 = vadd.f32 %v925, %v1570
        %1572 = vmatmul.bf16.gmra.mxu0 %v1224
        %v1573 = vpop.f32.mrf.mxu0
        %v1574 = vadd.f32 %v925, %v1573
        %v1575 = vpop.f32.mrf.mxu0
        %v1576 = vadd.f32 %v925, %v1575
        %1577 = vmatmul.bf16.gmra.mxu0 %v1225
        %v1578 = vpop.f32.mrf.mxu0
        %v1579 = vadd.f32 %v925, %v1578
        %v1580 = vpop.f32.mrf.mxu0
        %v1581 = vadd.f32 %v925, %v1580
        %1582 = vmatmul.bf16.gmra.mxu0 %v1226
        %v1583 = vpop.f32.mrf.mxu0
        %v1584 = vadd.f32 %v925, %v1583
        %v1585 = vpop.f32.mrf.mxu0
        %v1586 = vadd.f32 %v925, %v1585
        %1587 = vmatmul.bf16.gmra.mxu0 %v1227
        %v1588 = vpop.f32.mrf.mxu0
        %v1589 = vadd.f32 %v925, %v1588
        %v1590 = vpop.f32.mrf.mxu0
        %v1591 = vadd.f32 %v925, %v1590
        %1592 = vmatmul.bf16.gmra.mxu0 %v1228
        %v1593 = vpop.f32.mrf.mxu0
        %v1594 = vadd.f32 %v925, %v1593
        %v1595 = vpop.f32.mrf.mxu0
        %v1596 = vadd.f32 %v925, %v1595
        %1597 = vmatmul.bf16.gmra.mxu0 %v1229
        %v1598 = vpop.f32.mrf.mxu0
        %v1599 = vadd.f32 %v925, %v1598
        %v1600 = vpop.f32.mrf.mxu0
        %v1601 = vadd.f32 %v925, %v1600
        %1602 = vmatmul.bf16.gmra.mxu0 %v1230
        %v1603 = vpop.f32.mrf.mxu0
        %v1604 = vadd.f32 %v925, %v1603
        %v1605 = vpop.f32.mrf.mxu0
        %v1606 = vadd.f32 %v925, %v1605
        %1607 = vmatmul.bf16.gmra.mxu0 %v1231
        %v1608 = vpop.f32.mrf.mxu0
        %v1609 = vadd.f32 %v925, %v1608
        %v1610 = vpop.f32.mrf.mxu0
        %v1611 = vadd.f32 %v925, %v1610
        %1612 = vmatmul.bf16.gmra.mxu0 %v1232
        %v1613 = vpop.f32.mrf.mxu0
        %v1614 = vadd.f32 %v925, %v1613
        %v1615 = vpop.f32.mrf.mxu0
        %v1616 = vadd.f32 %v925, %v1615
        %1617 = vmatmul.bf16.gmra.mxu0 %v1233
        %v1618 = vpop.f32.mrf.mxu0
        %v1619 = vadd.f32 %v925, %v1618
        %v1620 = vpop.f32.mrf.mxu0
        %v1621 = vadd.f32 %v925, %v1620
        %1622 = vmatmul.bf16.gmra.mxu0 %v1234
        %v1623 = vpop.f32.mrf.mxu0
        %v1624 = vadd.f32 %v925, %v1623
        %v1625 = vpop.f32.mrf.mxu0
        %v1626 = vadd.f32 %v925, %v1625
        %1627 = vmatmul.bf16.gmra.mxu0 %v1235
        %v1628 = vpop.f32.mrf.mxu0
        %v1629 = vadd.f32 %v925, %v1628
        %v1630 = vpop.f32.mrf.mxu0
        %v1631 = vadd.f32 %v925, %v1630
        %1632 = vmatmul.bf16.gmra.mxu0 %v1236
        %v1633 = vpop.f32.mrf.mxu0
        %v1634 = vadd.f32 %v925, %v1633
        %v1635 = vpop.f32.mrf.mxu0
        %v1636 = vadd.f32 %v925, %v1635
        %1637 = vmatmul.bf16.gmra.mxu0 %v1237
        %v1638 = vpop.f32.mrf.mxu0
        %v1639 = vadd.f32 %v925, %v1638
        %v1640 = vpop.f32.mrf.mxu0
        %v1641 = vadd.f32 %v925, %v1640
        %1642 = vmatmul.bf16.gmra.mxu0 %v1238
        %v1643 = vpop.f32.mrf.mxu0
        %v1644 = vadd.f32 %v925, %v1643
        %v1645 = vpop.f32.mrf.mxu0
        %v1646 = vadd.f32 %v925, %v1645
        %1647 = vmatmul.bf16.gmra.mxu0 %v1239
        %v1648 = vpop.f32.mrf.mxu0
        %v1649 = vadd.f32 %v925, %v1648
        %v1650 = vpop.f32.mrf.mxu0
        %v1651 = vadd.f32 %v925, %v1650
        %1652 = vmatmul.bf16.gmra.mxu0 %v1240
        %v1653 = vpop.f32.mrf.mxu0
        %v1654 = vadd.f32 %v925, %v1653
        %v1655 = vpop.f32.mrf.mxu0
        %v1656 = vadd.f32 %v925, %v1655
        %1657 = vmatmul.bf16.gmra.mxu0 %v1241
        %v1658 = vpop.f32.mrf.mxu0
        %v1659 = vadd.f32 %v925, %v1658
        %v1660 = vpop.f32.mrf.mxu0
        %v1661 = vadd.f32 %v925, %v1660
        %1662 = vmatmul.bf16.gmra.mxu0 %v1242
        %v1663 = vpop.f32.mrf.mxu0
        %v1664 = vadd.f32 %v925, %v1663
        %v1665 = vpop.f32.mrf.mxu0
        %v1666 = vadd.f32 %v925, %v1665
        %1667 = vmatmul.bf16.gmra.mxu0 %v1243
        %v1668 = vpop.f32.mrf.mxu0
        %v1669 = vadd.f32 %v925, %v1668
        %v1670 = vpop.f32.mrf.mxu0
        %v1671 = vadd.f32 %v925, %v1670
        %1672 = vmatmul.bf16.gmra.mxu0 %v1244
        %v1673 = vpop.f32.mrf.mxu0
        %v1674 = vadd.f32 %v925, %v1673
        %v1675 = vpop.f32.mrf.mxu0
        %v1676 = vadd.f32 %v925, %v1675
        %1677 = vmatmul.bf16.gmra.mxu0 %v1245
        %v1678 = vpop.f32.mrf.mxu0
        %v1679 = vadd.f32 %v925, %v1678
        %v1680 = vpop.f32.mrf.mxu0
        %v1681 = vadd.f32 %v925, %v1680
        %1682 = vmatmul.bf16.gmra.mxu0 %v1246
        %v1683 = vpop.f32.mrf.mxu0
        %v1684 = vadd.f32 %v925, %v1683
        %v1685 = vpop.f32.mrf.mxu0
        %v1686 = vadd.f32 %v925, %v1685
        %1687 = vdwg.mxu0
        %v1688 = vmax.f32 %v1369, 0.0
        %v1689 = vmax.f32 %v1371, 0.0
        %v1690 = vmax.f32 %v1374, 0.0
        %v1691 = vmax.f32 %v1376, 0.0
        %v1692 = vmax.f32 %v1379, 0.0
        %v1693 = vmax.f32 %v1381, 0.0
        %v1694 = vmax.f32 %v1384, 0.0
        %v1695 = vmax.f32 %v1386, 0.0
        %v1696 = vmax.f32 %v1389, 0.0
        %v1697 = vmax.f32 %v1391, 0.0
        %v1698 = vmax.f32 %v1394, 0.0
        %v1699 = vmax.f32 %v1396, 0.0
        %v1700 = vmax.f32 %v1399, 0.0
        %v1701 = vmax.f32 %v1401, 0.0
        %v1702 = vmax.f32 %v1404, 0.0
        %v1703 = vmax.f32 %v1406, 0.0
        %v1704 = vmax.f32 %v1409, 0.0
        %v1705 = vmax.f32 %v1411, 0.0
        %v1706 = vmax.f32 %v1414, 0.0
        %v1707 = vmax.f32 %v1416, 0.0
        %v1708 = vmax.f32 %v1419, 0.0
        %v1709 = vmax.f32 %v1421, 0.0
        %v1710 = vmax.f32 %v1424, 0.0
        %v1711 = vmax.f32 %v1426, 0.0
        %v1712 = vmax.f32 %v1429, 0.0
        %v1713 = vmax.f32 %v1431, 0.0
        %v1714 = vmax.f32 %v1434, 0.0
        %v1715 = vmax.f32 %v1436, 0.0
        %v1716 = vmax.f32 %v1439, 0.0
        %v1717 = vmax.f32 %v1441, 0.0
        %v1718 = vmax.f32 %v1444, 0.0
        %v1719 = vmax.f32 %v1446, 0.0
        %v1720 = vmax.f32 %v1449, 0.0
        %v1721 = vmax.f32 %v1451, 0.0
        %v1722 = vmax.f32 %v1454, 0.0
        %v1723 = vmax.f32 %v1456, 0.0
        %v1724 = vmax.f32 %v1459, 0.0
        %v1725 = vmax.f32 %v1461, 0.0
        %v1726 = vmax.f32 %v1464, 0.0
        %v1727 = vmax.f32 %v1466, 0.0
        %v1728 = vmax.f32 %v1469, 0.0
        %v1729 = vmax.f32 %v1471, 0.0
        %v1730 = vmax.f32 %v1474, 0.0
        %v1731 = vmax.f32 %v1476, 0.0
        %v1732 = vmax.f32 %v1479, 0.0
        %v1733 = vmax.f32 %v1481, 0.0
        %v1734 = vmax.f32 %v1484, 0.0
        %v1735 = vmax.f32 %v1486, 0.0
        %v1736 = vmax.f32 %v1489, 0.0
        %v1737 = vmax.f32 %v1491, 0.0
        %v1738 = vmax.f32 %v1494, 0.0
        %v1739 = vmax.f32 %v1496, 0.0
        %v1740 = vmax.f32 %v1499, 0.0
        %v1741 = vmax.f32 %v1501, 0.0
        %v1742 = vmax.f32 %v1504, 0.0
        %v1743 = vmax.f32 %v1506, 0.0
        %v1744 = vmax.f32 %v1509, 0.0
        %v1745 = vmax.f32 %v1511, 0.0
        %v1746 = vmax.f32 %v1514, 0.0
        %v1747 = vmax.f32 %v1516, 0.0
        %v1748 = vmax.f32 %v1519, 0.0
        %v1749 = vmax.f32 %v1521, 0.0
        %v1750 = vmax.f32 %v1524, 0.0
        %v1751 = vmax.f32 %v1526, 0.0
        %v1752 = vmax.f32 %v1529, 0.0
        %v1753 = vmax.f32 %v1531, 0.0
        %v1754 = vmax.f32 %v1534, 0.0
        %v1755 = vmax.f32 %v1536, 0.0
        %v1756 = vmax.f32 %v1539, 0.0
        %v1757 = vmax.f32 %v1541, 0.0
        %v1758 = vmax.f32 %v1544, 0.0
        %v1759 = vmax.f32 %v1546, 0.0
        %v1760 = vmax.f32 %v1549, 0.0
        %v1761 = vmax.f32 %v1551, 0.0
        %v1762 = vmax.f32 %v1554, 0.0
        %v1763 = vmax.f32 %v1556, 0.0
        %v1764 = vmax.f32 %v1559, 0.0
        %v1765 = vmax.f32 %v1561, 0.0
        %v1766 = vmax.f32 %v1564, 0.0
        %v1767 = vmax.f32 %v1566, 0.0
        %v1768 = vmax.f32 %v1569, 0.0
        %v1769 = vmax.f32 %v1571, 0.0
        %v1770 = vmax.f32 %v1574, 0.0
        %v1771 = vmax.f32 %v1576, 0.0
        %v1772 = vmax.f32 %v1579, 0.0
        %v1773 = vmax.f32 %v1581, 0.0
        %v1774 = vmax.f32 %v1584, 0.0
        %v1775 = vmax.f32 %v1586, 0.0
        %v1776 = vmax.f32 %v1589, 0.0
        %v1777 = vmax.f32 %v1591, 0.0
        %v1778 = vmax.f32 %v1594, 0.0
        %v1779 = vmax.f32 %v1596, 0.0
        %v1780 = vmax.f32 %v1599, 0.0
        %v1781 = vmax.f32 %v1601, 0.0
        %v1782 = vmax.f32 %v1604, 0.0
        %v1783 = vmax.f32 %v1606, 0.0
        %v1784 = vmax.f32 %v1609, 0.0
        %v1785 = vmax.f32 %v1611, 0.0
        %v1786 = vmax.f32 %v1614, 0.0
        %v1787 = vmax.f32 %v1616, 0.0
        %v1788 = vmax.f32 %v1619, 0.0
        %v1789 = vmax.f32 %v1621, 0.0
        %v1790 = vmax.f32 %v1624, 0.0
        %v1791 = vmax.f32 %v1626, 0.0
        %v1792 = vmax.f32 %v1629, 0.0
        %v1793 = vmax.f32 %v1631, 0.0
        %v1794 = vmax.f32 %v1634, 0.0
        %v1795 = vmax.f32 %v1636, 0.0
        %v1796 = vmax.f32 %v1639, 0.0
        %v1797 = vmax.f32 %v1641, 0.0
        %v1798 = vmax.f32 %v1644, 0.0
        %v1799 = vmax.f32 %v1646, 0.0
        %v1800 = vmax.f32 %v1649, 0.0
        %v1801 = vmax.f32 %v1651, 0.0
        %v1802 = vmax.f32 %v1654, 0.0
        %v1803 = vmax.f32 %v1656, 0.0
        %v1804 = vmax.f32 %v1659, 0.0
        %v1805 = vmax.f32 %v1661, 0.0
        %v1806 = vmax.f32 %v1664, 0.0
        %v1807 = vmax.f32 %v1666, 0.0
        %v1808 = vmax.f32 %v1669, 0.0
        %v1809 = vmax.f32 %v1671, 0.0
        %v1810 = vmax.f32 %v1674, 0.0
        %v1811 = vmax.f32 %v1676, 0.0
        %v1812 = vmax.f32 %v1679, 0.0
        %v1813 = vmax.f32 %v1681, 0.0
        %v1814 = vmax.f32 %v1684, 0.0
        %v1815 = vmax.f32 %v1686, 0.0
        %v1816 = vld [vmem:[%s3] sm:$0x1]
        %v1818 = vperm.slane %v1816, 0
        %v1820 = vmul.f32 %v1688, %v1818
        %v1821 = vmul.f32 %v1689, %v1818
        %v1822 = vmul.f32 %v1690, %v1818
        %v1823 = vmul.f32 %v1691, %v1818
        %v1824 = vmul.f32 %v1692, %v1818
        %v1825 = vmul.f32 %v1693, %v1818
        %v1826 = vmul.f32 %v1694, %v1818
        %v1827 = vmul.f32 %v1695, %v1818
        %v1828 = vmul.f32 %v1696, %v1818
        %v1829 = vmul.f32 %v1697, %v1818
        %v1830 = vmul.f32 %v1698, %v1818
        %v1831 = vmul.f32 %v1699, %v1818
        %v1832 = vmul.f32 %v1700, %v1818
        %v1833 = vmul.f32 %v1701, %v1818
        %v1834 = vmul.f32 %v1702, %v1818
        %v1835 = vmul.f32 %v1703, %v1818
        %v1836 = vmul.f32 %v1704, %v1818
        %v1837 = vmul.f32 %v1705, %v1818
        %v1838 = vmul.f32 %v1706, %v1818
        %v1839 = vmul.f32 %v1707, %v1818
        %v1840 = vmul.f32 %v1708, %v1818
        %v1841 = vmul.f32 %v1709, %v1818
        %v1842 = vmul.f32 %v1710, %v1818
        %v1843 = vmul.f32 %v1711, %v1818
        %v1844 = vmul.f32 %v1712, %v1818
        %v1845 = vmul.f32 %v1713, %v1818
        %v1846 = vmul.f32 %v1714, %v1818
        %v1847 = vmul.f32 %v1715, %v1818
        %v1848 = vmul.f32 %v1716, %v1818
        %v1849 = vmul.f32 %v1717, %v1818
        %v1850 = vmul.f32 %v1718, %v1818
        %v1851 = vmul.f32 %v1719, %v1818
        %v1852 = vmul.f32 %v1720, %v1818
        %v1853 = vmul.f32 %v1721, %v1818
        %v1854 = vmul.f32 %v1722, %v1818
        %v1855 = vmul.f32 %v1723, %v1818
        %v1856 = vmul.f32 %v1724, %v1818
        %v1857 = vmul.f32 %v1725, %v1818
        %v1858 = vmul.f32 %v1726, %v1818
        %v1859 = vmul.f32 %v1727, %v1818
        %v1860 = vmul.f32 %v1728, %v1818
        %v1861 = vmul.f32 %v1729, %v1818
        %v1862 = vmul.f32 %v1730, %v1818
        %v1863 = vmul.f32 %v1731, %v1818
        %v1864 = vmul.f32 %v1732, %v1818
        %v1865 = vmul.f32 %v1733, %v1818
        %v1866 = vmul.f32 %v1734, %v1818
        %v1867 = vmul.f32 %v1735, %v1818
        %v1868 = vmul.f32 %v1736, %v1818
        %v1869 = vmul.f32 %v1737, %v1818
        %v1870 = vmul.f32 %v1738, %v1818
        %v1871 = vmul.f32 %v1739, %v1818
        %v1872 = vmul.f32 %v1740, %v1818
        %v1873 = vmul.f32 %v1741, %v1818
        %v1874 = vmul.f32 %v1742, %v1818
        %v1875 = vmul.f32 %v1743, %v1818
        %v1876 = vmul.f32 %v1744, %v1818
        %v1877 = vmul.f32 %v1745, %v1818
        %v1878 = vmul.f32 %v1746, %v1818
        %v1879 = vmul.f32 %v1747, %v1818
        %v1880 = vmul.f32 %v1748, %v1818
        %v1881 = vmul.f32 %v1749, %v1818
        %v1882 = vmul.f32 %v1750, %v1818
        %v1883 = vmul.f32 %v1751, %v1818
        %v1884 = vmul.f32 %v1752, %v1818
        %v1885 = vmul.f32 %v1753, %v1818
        %v1886 = vmul.f32 %v1754, %v1818
        %v1887 = vmul.f32 %v1755, %v1818
        %v1888 = vmul.f32 %v1756, %v1818
        %v1889 = vmul.f32 %v1757, %v1818
        %v1890 = vmul.f32 %v1758, %v1818
        %v1891 = vmul.f32 %v1759, %v1818
        %v1892 = vmul.f32 %v1760, %v1818
        %v1893 = vmul.f32 %v1761, %v1818
        %v1894 = vmul.f32 %v1762, %v1818
        %v1895 = vmul.f32 %v1763, %v1818
        %v1896 = vmul.f32 %v1764, %v1818
        %v1897 = vmul.f32 %v1765, %v1818
        %v1898 = vmul.f32 %v1766, %v1818
        %v1899 = vmul.f32 %v1767, %v1818
        %v1900 = vmul.f32 %v1768, %v1818
        %v1901 = vmul.f32 %v1769, %v1818
        %v1902 = vmul.f32 %v1770, %v1818
        %v1903 = vmul.f32 %v1771, %v1818
        %v1904 = vmul.f32 %v1772, %v1818
        %v1905 = vmul.f32 %v1773, %v1818
        %v1906 = vmul.f32 %v1774, %v1818
        %v1907 = vmul.f32 %v1775, %v1818
        %v1908 = vmul.f32 %v1776, %v1818
        %v1909 = vmul.f32 %v1777, %v1818
        %v1910 = vmul.f32 %v1778, %v1818
        %v1911 = vmul.f32 %v1779, %v1818
        %v1912 = vmul.f32 %v1780, %v1818
        %v1913 = vmul.f32 %v1781, %v1818
        %v1914 = vmul.f32 %v1782, %v1818
        %v1915 = vmul.f32 %v1783, %v1818
        %v1916 = vmul.f32 %v1784, %v1818
        %v1917 = vmul.f32 %v1785, %v1818
        %v1918 = vmul.f32 %v1786, %v1818
        %v1919 = vmul.f32 %v1787, %v1818
        %v1920 = vmul.f32 %v1788, %v1818
        %v1921 = vmul.f32 %v1789, %v1818
        %v1922 = vmul.f32 %v1790, %v1818
        %v1923 = vmul.f32 %v1791, %v1818
        %v1924 = vmul.f32 %v1792, %v1818
        %v1925 = vmul.f32 %v1793, %v1818
        %v1926 = vmul.f32 %v1794, %v1818
        %v1927 = vmul.f32 %v1795, %v1818
        %v1928 = vmul.f32 %v1796, %v1818
        %v1929 = vmul.f32 %v1797, %v1818
        %v1930 = vmul.f32 %v1798, %v1818
        %v1931 = vmul.f32 %v1799, %v1818
        %v1932 = vmul.f32 %v1800, %v1818
        %v1933 = vmul.f32 %v1801, %v1818
        %v1934 = vmul.f32 %v1802, %v1818
        %v1935 = vmul.f32 %v1803, %v1818
        %v1936 = vmul.f32 %v1804, %v1818
        %v1937 = vmul.f32 %v1805, %v1818
        %v1938 = vmul.f32 %v1806, %v1818
        %v1939 = vmul.f32 %v1807, %v1818
        %v1940 = vmul.f32 %v1808, %v1818
        %v1941 = vmul.f32 %v1809, %v1818
        %v1942 = vmul.f32 %v1810, %v1818
        %v1943 = vmul.f32 %v1811, %v1818
        %v1944 = vmul.f32 %v1812, %v1818
        %v1945 = vmul.f32 %v1813, %v1818
        %v1946 = vmul.f32 %v1814, %v1818
        %v1947 = vmul.f32 %v1815, %v1818
        %v1948 = vld [vmem:[%s4] sm:$0x1]
        %v1950 = vperm.slane %v1948, 0
        %v1952 = vadd.f32 %v1820, %v1950
        %v1953 = vadd.f32 %v1821, %v1950
        %v1954 = vadd.f32 %v1822, %v1950
        %v1955 = vadd.f32 %v1823, %v1950
        %v1956 = vadd.f32 %v1824, %v1950
        %v1957 = vadd.f32 %v1825, %v1950
        %v1958 = vadd.f32 %v1826, %v1950
        %v1959 = vadd.f32 %v1827, %v1950
        %v1960 = vadd.f32 %v1828, %v1950
        %v1961 = vadd.f32 %v1829, %v1950
        %v1962 = vadd.f32 %v1830, %v1950
        %v1963 = vadd.f32 %v1831, %v1950
        %v1964 = vadd.f32 %v1832, %v1950
        %v1965 = vadd.f32 %v1833, %v1950
        %v1966 = vadd.f32 %v1834, %v1950
        %v1967 = vadd.f32 %v1835, %v1950
        %v1968 = vadd.f32 %v1836, %v1950
        %v1969 = vadd.f32 %v1837, %v1950
        %v1970 = vadd.f32 %v1838, %v1950
        %v1971 = vadd.f32 %v1839, %v1950
        %v1972 = vadd.f32 %v1840, %v1950
        %v1973 = vadd.f32 %v1841, %v1950
        %v1974 = vadd.f32 %v1842, %v1950
        %v1975 = vadd.f32 %v1843, %v1950
        %v1976 = vadd.f32 %v1844, %v1950
        %v1977 = vadd.f32 %v1845, %v1950
        %v1978 = vadd.f32 %v1846, %v1950
        %v1979 = vadd.f32 %v1847, %v1950
        %v1980 = vadd.f32 %v1848, %v1950
        %v1981 = vadd.f32 %v1849, %v1950
        %v1982 = vadd.f32 %v1850, %v1950
        %v1983 = vadd.f32 %v1851, %v1950
        %v1984 = vadd.f32 %v1852, %v1950
        %v1985 = vadd.f32 %v1853, %v1950
        %v1986 = vadd.f32 %v1854, %v1950
        %v1987 = vadd.f32 %v1855, %v1950
        %v1988 = vadd.f32 %v1856, %v1950
        %v1989 = vadd.f32 %v1857, %v1950
        %v1990 = vadd.f32 %v1858, %v1950
        %v1991 = vadd.f32 %v1859, %v1950
        %v1992 = vadd.f32 %v1860, %v1950
        %v1993 = vadd.f32 %v1861, %v1950
        %v1994 = vadd.f32 %v1862, %v1950
        %v1995 = vadd.f32 %v1863, %v1950
        %v1996 = vadd.f32 %v1864, %v1950
        %v1997 = vadd.f32 %v1865, %v1950
        %v1998 = vadd.f32 %v1866, %v1950
        %v1999 = vadd.f32 %v1867, %v1950
        %v2000 = vadd.f32 %v1868, %v1950
        %v2001 = vadd.f32 %v1869, %v1950
        %v2002 = vadd.f32 %v1870, %v1950
        %v2003 = vadd.f32 %v1871, %v1950
        %v2004 = vadd.f32 %v1872, %v1950
        %v2005 = vadd.f32 %v1873, %v1950
        %v2006 = vadd.f32 %v1874, %v1950
        %v2007 = vadd.f32 %v1875, %v1950
        %v2008 = vadd.f32 %v1876, %v1950
        %v2009 = vadd.f32 %v1877, %v1950
        %v2010 = vadd.f32 %v1878, %v1950
        %v2011 = vadd.f32 %v1879, %v1950
        %v2012 = vadd.f32 %v1880, %v1950
        %v2013 = vadd.f32 %v1881, %v1950
        %v2014 = vadd.f32 %v1882, %v1950
        %v2015 = vadd.f32 %v1883, %v1950
        %v2016 = vadd.f32 %v1884, %v1950
        %v2017 = vadd.f32 %v1885, %v1950
        %v2018 = vadd.f32 %v1886, %v1950
        %v2019 = vadd.f32 %v1887, %v1950
        %v2020 = vadd.f32 %v1888, %v1950
        %v2021 = vadd.f32 %v1889, %v1950
        %v2022 = vadd.f32 %v1890, %v1950
        %v2023 = vadd.f32 %v1891, %v1950
        %v2024 = vadd.f32 %v1892, %v1950
        %v2025 = vadd.f32 %v1893, %v1950
        %v2026 = vadd.f32 %v1894, %v1950
        %v2027 = vadd.f32 %v1895, %v1950
        %v2028 = vadd.f32 %v1896, %v1950
        %v2029 = vadd.f32 %v1897, %v1950
        %v2030 = vadd.f32 %v1898, %v1950
        %v2031 = vadd.f32 %v1899, %v1950
        %v2032 = vadd.f32 %v1900, %v1950
        %v2033 = vadd.f32 %v1901, %v1950
        %v2034 = vadd.f32 %v1902, %v1950
        %v2035 = vadd.f32 %v1903, %v1950
        %v2036 = vadd.f32 %v1904, %v1950
        %v2037 = vadd.f32 %v1905, %v1950
        %v2038 = vadd.f32 %v1906, %v1950
        %v2039 = vadd.f32 %v1907, %v1950
        %v2040 = vadd.f32 %v1908, %v1950
        %v2041 = vadd.f32 %v1909, %v1950
        %v2042 = vadd.f32 %v1910, %v1950
        %v2043 = vadd.f32 %v1911, %v1950
        %v2044 = vadd.f32 %v1912, %v1950
        %v2045 = vadd.f32 %v1913, %v1950
        %v2046 = vadd.f32 %v1914, %v1950
        %v2047 = vadd.f32 %v1915, %v1950
        %v2048 = vadd.f32 %v1916, %v1950
        %v2049 = vadd.f32 %v1917, %v1950
        %v2050 = vadd.f32 %v1918, %v1950
        %v2051 = vadd.f32 %v1919, %v1950
        %v2052 = vadd.f32 %v1920, %v1950
        %v2053 = vadd.f32 %v1921, %v1950
        %v2054 = vadd.f32 %v1922, %v1950
        %v2055 = vadd.f32 %v1923, %v1950
        %v2056 = vadd.f32 %v1924, %v1950
        %v2057 = vadd.f32 %v1925, %v1950
        %v2058 = vadd.f32 %v1926, %v1950
        %v2059 = vadd.f32 %v1927, %v1950
        %v2060 = vadd.f32 %v1928, %v1950
        %v2061 = vadd.f32 %v1929, %v1950
        %v2062 = vadd.f32 %v1930, %v1950
        %v2063 = vadd.f32 %v1931, %v1950
        %v2064 = vadd.f32 %v1932, %v1950
        %v2065 = vadd.f32 %v1933, %v1950
        %v2066 = vadd.f32 %v1934, %v1950
        %v2067 = vadd.f32 %v1935, %v1950
        %v2068 = vadd.f32 %v1936, %v1950
        %v2069 = vadd.f32 %v1937, %v1950
        %v2070 = vadd.f32 %v1938, %v1950
        %v2071 = vadd.f32 %v1939, %v1950
        %v2072 = vadd.f32 %v1940, %v1950
        %v2073 = vadd.f32 %v1941, %v1950
        %v2074 = vadd.f32 %v1942, %v1950
        %v2075 = vadd.f32 %v1943, %v1950
        %v2076 = vadd.f32 %v1944, %v1950
        %v2077 = vadd.f32 %v1945, %v1950
        %v2078 = vadd.f32 %v1946, %v1950
        %v2079 = vadd.f32 %v1947, %v1950
        %v2080 = vmax.f32 %v1952, %v1984
        %v2081 = vmax.f32 %v1953, %v1985
        %v2082 = vmax.f32 %v1954, %v1986
        %v2083 = vmax.f32 %v1955, %v1987
        %v2084 = vmax.f32 %v1956, %v1988
        %v2085 = vmax.f32 %v1957, %v1989
        %v2086 = vmax.f32 %v1958, %v1990
        %v2087 = vmax.f32 %v1959, %v1991
        %v2088 = vmax.f32 %v1960, %v1992
        %v2089 = vmax.f32 %v1961, %v1993
        %v2090 = vmax.f32 %v1962, %v1994
        %v2091 = vmax.f32 %v1963, %v1995
        %v2092 = vmax.f32 %v1964, %v1996
        %v2093 = vmax.f32 %v1965, %v1997
        %v2094 = vmax.f32 %v1966, %v1998
        %v2095 = vmax.f32 %v1967, %v1999
        %v2096 = vmax.f32 %v1968, %v2000
        %v2097 = vmax.f32 %v1969, %v2001
        %v2098 = vmax.f32 %v1970, %v2002
        %v2099 = vmax.f32 %v1971, %v2003
        %v2100 = vmax.f32 %v1972, %v2004
        %v2101 = vmax.f32 %v1973, %v2005
        %v2102 = vmax.f32 %v1974, %v2006
        %v2103 = vmax.f32 %v1975, %v2007
        %v2104 = vmax.f32 %v1976, %v2008
        %v2105 = vmax.f32 %v1977, %v2009
        %v2106 = vmax.f32 %v1978, %v2010
        %v2107 = vmax.f32 %v1979, %v2011
        %v2108 = vmax.f32 %v1980, %v2012
        %v2109 = vmax.f32 %v1981, %v2013
        %v2110 = vmax.f32 %v1982, %v2014
        %v2111 = vmax.f32 %v1983, %v2015
        %v2112 = vmax.f32 %v2016, %v2048
        %v2113 = vmax.f32 %v2017, %v2049
        %v2114 = vmax.f32 %v2018, %v2050
        %v2115 = vmax.f32 %v2019, %v2051
        %v2116 = vmax.f32 %v2020, %v2052
        %v2117 = vmax.f32 %v2021, %v2053
        %v2118 = vmax.f32 %v2022, %v2054
        %v2119 = vmax.f32 %v2023, %v2055
        %v2120 = vmax.f32 %v2024, %v2056
        %v2121 = vmax.f32 %v2025, %v2057
        %v2122 = vmax.f32 %v2026, %v2058
        %v2123 = vmax.f32 %v2027, %v2059
        %v2124 = vmax.f32 %v2028, %v2060
        %v2125 = vmax.f32 %v2029, %v2061
        %v2126 = vmax.f32 %v2030, %v2062
        %v2127 = vmax.f32 %v2031, %v2063
        %v2128 = vmax.f32 %v2032, %v2064
        %v2129 = vmax.f32 %v2033, %v2065
        %v2130 = vmax.f32 %v2034, %v2066
        %v2131 = vmax.f32 %v2035, %v2067
        %v2132 = vmax.f32 %v2036, %v2068
        %v2133 = vmax.f32 %v2037, %v2069
        %v2134 = vmax.f32 %v2038, %v2070
        %v2135 = vmax.f32 %v2039, %v2071
        %v2136 = vmax.f32 %v2040, %v2072
        %v2137 = vmax.f32 %v2041, %v2073
        %v2138 = vmax.f32 %v2042, %v2074
        %v2139 = vmax.f32 %v2043, %v2075
        %v2140 = vmax.f32 %v2044, %v2076
        %v2141 = vmax.f32 %v2045, %v2077
        %v2142 = vmax.f32 %v2046, %v2078
        %v2143 = vmax.f32 %v2047, %v2079
        %v2144 = vmax.f32 %v2080, %v2112
        %v2145 = vmax.f32 %v2081, %v2113
        %v2146 = vmax.f32 %v2082, %v2114
        %v2147 = vmax.f32 %v2083, %v2115
        %v2148 = vmax.f32 %v2084, %v2116
        %v2149 = vmax.f32 %v2085, %v2117
        %v2150 = vmax.f32 %v2086, %v2118
        %v2151 = vmax.f32 %v2087, %v2119
        %v2152 = vmax.f32 %v2088, %v2120
        %v2153 = vmax.f32 %v2089, %v2121
        %v2154 = vmax.f32 %v2090, %v2122
        %v2155 = vmax.f32 %v2091, %v2123
        %v2156 = vmax.f32 %v2092, %v2124
        %v2157 = vmax.f32 %v2093, %v2125
        %v2158 = vmax.f32 %v2094, %v2126
        %v2159 = vmax.f32 %v2095, %v2127
        %v2160 = vmax.f32 %v2096, %v2128
        %v2161 = vmax.f32 %v2097, %v2129
        %v2162 = vmax.f32 %v2098, %v2130
        %v2163 = vmax.f32 %v2099, %v2131
        %v2164 = vmax.f32 %v2100, %v2132
        %v2165 = vmax.f32 %v2101, %v2133
        %v2166 = vmax.f32 %v2102, %v2134
        %v2167 = vmax.f32 %v2103, %v2135
        %v2168 = vmax.f32 %v2104, %v2136
        %v2169 = vmax.f32 %v2105, %v2137
        %v2170 = vmax.f32 %v2106, %v2138
        %v2171 = vmax.f32 %v2107, %v2139
        %v2172 = vmax.f32 %v2108, %v2140
        %v2173 = vmax.f32 %v2109, %v2141
        %v2174 = vmax.f32 %v2110, %v2142
        %v2175 = vmax.f32 %v2111, %v2143
        %v2176 = vpack.c.bf16 %v2144, %v2144
        %v2177 = vpack.c.bf16 %v2145, %v2145
        %v2178 = vpack.c.bf16 %v2146, %v2146
        %v2179 = vpack.c.bf16 %v2147, %v2147
        %v2180 = vpack.c.bf16 %v2148, %v2148
        %v2181 = vpack.c.bf16 %v2149, %v2149
        %v2182 = vpack.c.bf16 %v2150, %v2150
        %v2183 = vpack.c.bf16 %v2151, %v2151
        %v2184 = vpack.c.bf16 %v2152, %v2152
        %v2185 = vpack.c.bf16 %v2153, %v2153
        %v2186 = vpack.c.bf16 %v2154, %v2154
        %v2187 = vpack.c.bf16 %v2155, %v2155
        %v2188 = vpack.c.bf16 %v2156, %v2156
        %v2189 = vpack.c.bf16 %v2157, %v2157
        %v2190 = vpack.c.bf16 %v2158, %v2158
        %v2191 = vpack.c.bf16 %v2159, %v2159
        %v2192 = vpack.c.bf16 %v2160, %v2160
        %v2193 = vpack.c.bf16 %v2161, %v2161
        %v2194 = vpack.c.bf16 %v2162, %v2162
        %v2195 = vpack.c.bf16 %v2163, %v2163
        %v2196 = vpack.c.bf16 %v2164, %v2164
        %v2197 = vpack.c.bf16 %v2165, %v2165
        %v2198 = vpack.c.bf16 %v2166, %v2166
        %v2199 = vpack.c.bf16 %v2167, %v2167
        %v2200 = vpack.c.bf16 %v2168, %v2168
        %v2201 = vpack.c.bf16 %v2169, %v2169
        %v2202 = vpack.c.bf16 %v2170, %v2170
        %v2203 = vpack.c.bf16 %v2171, %v2171
        %v2204 = vpack.c.bf16 %v2172, %v2172
        %v2205 = vpack.c.bf16 %v2173, %v2173
        %v2206 = vpack.c.bf16 %v2174, %v2174
        %v2207 = vpack.c.bf16 %v2175, %v2175
        %vm2208 = vcmask 257024
        %2209 = vst.msk [vmem:[%s777] sm:$0xf] %vm2208, %v2176
        %2210 = vst.msk [vmem:[%s777 + $0x4] sm:$0xf] %vm2208, %v2177
        %2211 = vst.msk [vmem:[%s777 + $0x8] sm:$0xf] %vm2208, %v2178
        %2212 = vst.msk [vmem:[%s777 + $0xc] sm:$0xf] %vm2208, %v2179
        %2213 = vst.msk [vmem:[%s777 + $0x10] sm:$0xf] %vm2208, %v2180
        %2214 = vst.msk [vmem:[%s777 + $0x14] sm:$0xf] %vm2208, %v2181
        %2215 = vst.msk [vmem:[%s777 + $0x18] sm:$0xf] %vm2208, %v2182
        %2216 = vst.msk [vmem:[%s777 + $0x1c] sm:$0xf] %vm2208, %v2183
        %2217 = vst.msk [vmem:[%s777 + $0x20] sm:$0xf] %vm2208, %v2184
        %2218 = vst.msk [vmem:[%s777 + $0x24] sm:$0xf] %vm2208, %v2185
        %2219 = vst.msk [vmem:[%s777 + $0x28] sm:$0xf] %vm2208, %v2186
        %2220 = vst.msk [vmem:[%s777 + $0x2c] sm:$0xf] %vm2208, %v2187
        %2221 = vst.msk [vmem:[%s777 + $0x30] sm:$0xf] %vm2208, %v2188
        %2222 = vst.msk [vmem:[%s777 + $0x34] sm:$0xf] %vm2208, %v2189
        %2223 = vst.msk [vmem:[%s777 + $0x38] sm:$0xf] %vm2208, %v2190
        %2224 = vst.msk [vmem:[%s777 + $0x3c] sm:$0xf] %vm2208, %v2191
        %2225 = vst.msk [vmem:[%s777 + $0x40] sm:$0xf] %vm2208, %v2192
        %2226 = vst.msk [vmem:[%s777 + $0x44] sm:$0xf] %vm2208, %v2193
        %2227 = vst.msk [vmem:[%s777 + $0x48] sm:$0xf] %vm2208, %v2194
        %2228 = vst.msk [vmem:[%s777 + $0x4c] sm:$0xf] %vm2208, %v2195
        %2229 = vst.msk [vmem:[%s777 + $0x50] sm:$0xf] %vm2208, %v2196
        %2230 = vst.msk [vmem:[%s777 + $0x54] sm:$0xf] %vm2208, %v2197
        %2231 = vst.msk [vmem:[%s777 + $0x58] sm:$0xf] %vm2208, %v2198
        %2232 = vst.msk [vmem:[%s777 + $0x5c] sm:$0xf] %vm2208, %v2199
        %2233 = vst.msk [vmem:[%s777 + $0x60] sm:$0xf] %vm2208, %v2200
        %2234 = vst.msk [vmem:[%s777 + $0x64] sm:$0xf] %vm2208, %v2201
        %2235 = vst.msk [vmem:[%s777 + $0x68] sm:$0xf] %vm2208, %v2202
        %2236 = vst.msk [vmem:[%s777 + $0x6c] sm:$0xf] %vm2208, %v2203
        %2237 = vst.msk [vmem:[%s777 + $0x70] sm:$0xf] %vm2208, %v2204
        %2238 = vst.msk [vmem:[%s777 + $0x74] sm:$0xf] %vm2208, %v2205
        %2239 = vst.msk [vmem:[%s777 + $0x78] sm:$0xf] %vm2208, %v2206
        %2240 = vst.msk [vmem:[%s777 + $0x7c] sm:$0xf] %vm2208, %v2207
        %s2241 = smul.u32 32, %s16
        %p2242 = scmp.lt.s32.totalorder %s2241, 63
        %s2243 = scalar_select %p2242, %s2241, 63
        %s2244 = smul.addr %s2243, 4
        %s2245 = scalar_lea.vmem %s5, %s2244
        // Predicated region
        $region82: #{encoder_cifar_forward.3} parent=76 // pred_check
          %p2246 = pneg %p144
        $region83: #{encoder_cifar_forward.3} parent=76 // pred_check_branch
          %2248 = sbr.rel (%p2246) target = $region85
        $region84: #{encoder_cifar_forward.3} parent=76 // pred_region
          %s2249 = smul.u32 32, %s16
        $region85: #{encoder_cifar_forward.3} parent=76 // pred_fallthru
          _
      $region77: #{encoder_cifar_forward.3} parent=5 // pred_fallthru
        _
      %p2250 = scmp.le.s32.totalorder 2, %s11
      // Predicated region
      $region86: #{encoder_cifar_forward.3} parent=5 // pred_check
        %p2251 = pneg %p2250
      $region87: #{encoder_cifar_forward.3} parent=5 // pred_check_branch
        %2253 = sbr.rel (%p2251) target = $region89
      $region88: #{encoder_cifar_forward.3} parent=5 // pred_region
        %s2254 = ssub.s32 %s11, 2
        // Predicated region
        $region90: #{encoder_cifar_forward.3} parent=88 // pred_check
          %p2255 = pneg %p150
        $region91: #{encoder_cifar_forward.3} parent=88 // pred_check_branch
          %2257 = sbr.rel (%p2255) target = $region93
        $region92: #{encoder_cifar_forward.3} parent=88 // pred_region
          %s2258 = smul.u32 32, %s17
          %p2259 = scmp.lt.s32.totalorder %s2258, 63
          %s2260 = scalar_select %p2259, %s2258, 63
          %s2261 = smul.addr %s2260, 4
          %s2262 = scalar_lea.vmem %s5, %s2261
        $region93: #{encoder_cifar_forward.3} parent=88 // pred_fallthru
          _
      $region89: #{encoder_cifar_forward.3} parent=5 // pred_fallthru
        _
    $region6: #{encoder_cifar_forward.3} parent=1 // loop_footer
      %s15 = sadd.s32 1, %s11
    $region7: #{encoder_cifar_forward.3} parent=1 // loop_footer_branch
      %10 = sbr.rel target = $region3
    $region8: #{encoder_cifar_forward.3} parent=1 // loop_exit
      _

// kernel: encoder_cifar_forward.4
$region0: #{encoder_cifar_forward.4}
  #allocation0 [shape = 'u32[]', space=smem, size = 0x4, offset = 0x4, fixed_abs, tag = 'smem constant byte address 0x4 - core index']
  #allocation1 [shape = 'u32[72,128]{1,0:T(1,128)}', space=vmem, size = 0x9000, scoped, tag = 'internal scratch']
  %s0 = inlined_call_operand.vmem [shape: bf16[4,128,288], index: 0, kind: input, shape index: {}]
  %s1 = inlined_call_operand.vmem [shape: bf16[288,64], index: 1, kind: input, shape index: {}]
  %s2 = inlined_call_operand.vmem [shape: f32[1,64], index: 2, kind: input, shape index: {}]
  %s3 = inlined_call_operand.vmem [shape: f32[1,64], index: 3, kind: input, shape index: {}]
  %s4 = inlined_call_operand.vmem [shape: f32[1,64], index: 4, kind: input, shape index: {}]
  %s5 = inlined_call_operand.vmem [shape: bf16[128,64], index: 5, kind: output, shape index: {}]
  %s6 = sld [smem:[#allocation0]]
  $region30: #{encoder_cifar_forward.4} parent=0
    _
  %s8 = ssub.s32 1, %s6
  %s9 = scalar_select 0, %s8, %s6
  // Predicated region
  $region2: #{encoder_cifar_forward.4} parent=0 // pred_check
    _
  $region3: #{encoder_cifar_forward.4} parent=0 // pred_check_branch
    %11 = sbr.rel (0) target = $region5
  $region4: #{encoder_cifar_forward.4} parent=0 // pred_region
    _
  $region5: #{encoder_cifar_forward.4} parent=0 // pred_fallthru
    _
  // Predicated region
  $region6: #{encoder_cifar_forward.4} parent=0 // pred_check
    _
  $region7: #{encoder_cifar_forward.4} parent=0 // pred_check_branch
    %13 = sbr.rel (0) target = $region9
  $region8: #{encoder_cifar_forward.4} parent=0 // pred_region
    _
  $region9: #{encoder_cifar_forward.4} parent=0 // pred_fallthru
    _
  // Predicated region
  $region10: #{encoder_cifar_forward.4} parent=0 // pred_check
    _
  $region11: #{encoder_cifar_forward.4} parent=0 // pred_check_branch
    %15 = sbr.rel (0) target = $region13
  $region12: #{encoder_cifar_forward.4} parent=0 // pred_region
    _
  $region13: #{encoder_cifar_forward.4} parent=0 // pred_fallthru
    _
  // Predicated region
  $region14: #{encoder_cifar_forward.4} parent=0 // pred_check
    _
  $region15: #{encoder_cifar_forward.4} parent=0 // pred_check_branch
    %17 = sbr.rel (0) target = $region17
  $region16: #{encoder_cifar_forward.4} parent=0 // pred_region
    _
  $region17: #{encoder_cifar_forward.4} parent=0 // pred_fallthru
    _
  // Predicated region
  $region18: #{encoder_cifar_forward.4} parent=0 // pred_check
    _
  $region19: #{encoder_cifar_forward.4} parent=0 // pred_check_branch
    %19 = sbr.rel (0) target = $region21
  $region20: #{encoder_cifar_forward.4} parent=0 // pred_region
    _
  $region21: #{encoder_cifar_forward.4} parent=0 // pred_fallthru
    _
  %v21 = vld [vmem:[%s0] sm:$0xff]
  %v22 = vld [vmem:[%s0 + $0x8] sm:$0xf]
  %v23 = vld [vmem:[%s0 + $0xc] sm:$0xff]
  %v24 = vld [vmem:[%s0 + $0x14] sm:$0xf]
  %v25 = vld [vmem:[%s0 + $0x18] sm:$0xff]
  %v26 = vld [vmem:[%s0 + $0x20] sm:$0xf]
  %v27 = vld [vmem:[%s0 + $0x24] sm:$0xff]
  %v28 = vld [vmem:[%s0 + $0x2c] sm:$0xf]
  %v29 = vld [vmem:[%s0 + $0x30] sm:$0xff]
  %v30 = vld [vmem:[%s0 + $0x38] sm:$0xf]
  %v31 = vld [vmem:[%s0 + $0x3c] sm:$0xff]
  %v32 = vld [vmem:[%s0 + $0x44] sm:$0xf]
  %v33 = vld [vmem:[%s0 + $0x48] sm:$0xff]
  %v34 = vld [vmem:[%s0 + $0x50] sm:$0xf]
  %v35 = vld [vmem:[%s0 + $0x54] sm:$0xff]
  %v36 = vld [vmem:[%s0 + $0x5c] sm:$0xf]
  %v37 = vld [vmem:[%s0 + $0x60] sm:$0xff]
  %v38 = vld [vmem:[%s0 + $0x68] sm:$0xf]
  %v39 = vld [vmem:[%s0 + $0x6c] sm:$0xff]
  %v40 = vld [vmem:[%s0 + $0x74] sm:$0xf]
  %v41 = vld [vmem:[%s0 + $0x78] sm:$0xff]
  %v42 = vld [vmem:[%s0 + $0x80] sm:$0xf]
  %v43 = vld [vmem:[%s0 + $0x84] sm:$0xff]
  %v44 = vld [vmem:[%s0 + $0x8c] sm:$0xf]
  %v45 = vld [vmem:[%s0 + $0x90] sm:$0xff]
  %v46 = vld [vmem:[%s0 + $0x98] sm:$0xf]
  %v47 = vld [vmem:[%s0 + $0x9c] sm:$0xff]
  %v48 = vld [vmem:[%s0 + $0xa4] sm:$0xf]
  %v49 = vld [vmem:[%s0 + $0xa8] sm:$0xff]
  %v50 = vld [vmem:[%s0 + $0xb0] sm:$0xf]
  %v51 = vld [vmem:[%s0 + $0xb4] sm:$0xff]
  %v52 = vld [vmem:[%s0 + $0xbc] sm:$0xf]
  %v53 = vld [vmem:[%s0 + $0xc0] sm:$0xff]
  %v54 = vld [vmem:[%s0 + $0xc8] sm:$0xf]
  %v55 = vld [vmem:[%s0 + $0xcc] sm:$0xff]
  %v56 = vld [vmem:[%s0 + $0xd4] sm:$0xf]
  %v57 = vld [vmem:[%s0 + $0xd8] sm:$0xff]
  %v58 = vld [vmem:[%s0 + $0xe0] sm:$0xf]
  %v59 = vld [vmem:[%s0 + $0xe4] sm:$0xff]
  %v60 = vld [vmem:[%s0 + $0xec] sm:$0xf]
  %v61 = vld [vmem:[%s0 + $0xf0] sm:$0xff]
  %v62 = vld [vmem:[%s0 + $0xf8] sm:$0xf]
  %v63 = vld [vmem:[%s0 + $0xfc] sm:$0xff]
  %v64 = vld [vmem:[%s0 + $0x104] sm:$0xf]
  %v65 = vld [vmem:[%s0 + $0x108] sm:$0xff]
  %v66 = vld [vmem:[%s0 + $0x110] sm:$0xf]
  %v67 = vld [vmem:[%s0 + $0x114] sm:$0xff]
  %v68 = vld [vmem:[%s0 + $0x11c] sm:$0xf]
  %v69 = vld [vmem:[%s0 + $0x120] sm:$0xff]
  %v70 = vld [vmem:[%s0 + $0x128] sm:$0xf]
  %v71 = vld [vmem:[%s0 + $0x12c] sm:$0xff]
  %v72 = vld [vmem:[%s0 + $0x134] sm:$0xf]
  %v73 = vld [vmem:[%s0 + $0x138] sm:$0xff]
  %v74 = vld [vmem:[%s0 + $0x140] sm:$0xf]
  %v75 = vld [vmem:[%s0 + $0x144] sm:$0xff]
  %v76 = vld [vmem:[%s0 + $0x14c] sm:$0xf]
  %v77 = vld [vmem:[%s0 + $0x150] sm:$0xff]
  %v78 = vld [vmem:[%s0 + $0x158] sm:$0xf]
  %v79 = vld [vmem:[%s0 + $0x15c] sm:$0xff]
  %v80 = vld [vmem:[%s0 + $0x164] sm:$0xf]
  %v81 = vld [vmem:[%s0 + $0x168] sm:$0xff]
  %v82 = vld [vmem:[%s0 + $0x170] sm:$0xf]
  %v83 = vld [vmem:[%s0 + $0x174] sm:$0xff]
  %v84 = vld [vmem:[%s0 + $0x17c] sm:$0xf]
  %v85 = vld [vmem:[%s0 + $0x180] sm:$0xff]
  %v86 = vld [vmem:[%s0 + $0x188] sm:$0xf]
  %v87 = vld [vmem:[%s0 + $0x18c] sm:$0xff]
  %v88 = vld [vmem:[%s0 + $0x194] sm:$0xf]
  %v89 = vld [vmem:[%s0 + $0x198] sm:$0xff]
  %v90 = vld [vmem:[%s0 + $0x1a0] sm:$0xf]
  %v91 = vld [vmem:[%s0 + $0x1a4] sm:$0xff]
  %v92 = vld [vmem:[%s0 + $0x1ac] sm:$0xf]
  %v93 = vld [vmem:[%s0 + $0x1b0] sm:$0xff]
  %v94 = vld [vmem:[%s0 + $0x1b8] sm:$0xf]
  %v95 = vld [vmem:[%s0 + $0x1bc] sm:$0xff]
  %v96 = vld [vmem:[%s0 + $0x1c4] sm:$0xf]
  %v97 = vld [vmem:[%s0 + $0x1c8] sm:$0xff]
  %v98 = vld [vmem:[%s0 + $0x1d0] sm:$0xf]
  %v99 = vld [vmem:[%s0 + $0x1d4] sm:$0xff]
  %v100 = vld [vmem:[%s0 + $0x1dc] sm:$0xf]
  %v101 = vld [vmem:[%s0 + $0x1e0] sm:$0xff]
  %v102 = vld [vmem:[%s0 + $0x1e8] sm:$0xf]
  %v103 = vld [vmem:[%s0 + $0x1ec] sm:$0xff]
  %v104 = vld [vmem:[%s0 + $0x1f4] sm:$0xf]
  %v105 = vld [vmem:[%s0 + $0x1f8] sm:$0xff]
  %v106 = vld [vmem:[%s0 + $0x200] sm:$0xf]
  %v107 = vld [vmem:[%s0 + $0x204] sm:$0xff]
  %v108 = vld [vmem:[%s0 + $0x20c] sm:$0xf]
  %v109 = vld [vmem:[%s0 + $0x210] sm:$0xff]
  %v110 = vld [vmem:[%s0 + $0x218] sm:$0xf]
  %v111 = vld [vmem:[%s0 + $0x21c] sm:$0xff]
  %v112 = vld [vmem:[%s0 + $0x224] sm:$0xf]
  %v113 = vld [vmem:[%s0 + $0x228] sm:$0xff]
  %v114 = vld [vmem:[%s0 + $0x230] sm:$0xf]
  %v115 = vld [vmem:[%s0 + $0x234] sm:$0xff]
  %v116 = vld [vmem:[%s0 + $0x23c] sm:$0xf]
  %v117 = vld [vmem:[%s0 + $0x240] sm:$0xff]
  %v118 = vld [vmem:[%s0 + $0x248] sm:$0xf]
  %v119 = vld [vmem:[%s0 + $0x24c] sm:$0xff]
  %v120 = vld [vmem:[%s0 + $0x254] sm:$0xf]
  %v121 = vld [vmem:[%s0 + $0x258] sm:$0xff]
  %v122 = vld [vmem:[%s0 + $0x260] sm:$0xf]
  %v123 = vld [vmem:[%s0 + $0x264] sm:$0xff]
  %v124 = vld [vmem:[%s0 + $0x26c] sm:$0xf]
  %v125 = vld [vmem:[%s0 + $0x270] sm:$0xff]
  %v126 = vld [vmem:[%s0 + $0x278] sm:$0xf]
  %v127 = vld [vmem:[%s0 + $0x27c] sm:$0xff]
  %v128 = vld [vmem:[%s0 + $0x284] sm:$0xf]
  %v129 = vld [vmem:[%s0 + $0x288] sm:$0xff]
  %v130 = vld [vmem:[%s0 + $0x290] sm:$0xf]
  %v131 = vld [vmem:[%s0 + $0x294] sm:$0xff]
  %v132 = vld [vmem:[%s0 + $0x29c] sm:$0xf]
  %v133 = vld [vmem:[%s0 + $0x2a0] sm:$0xff]
  %v134 = vld [vmem:[%s0 + $0x2a8] sm:$0xf]
  %v135 = vld [vmem:[%s0 + $0x2ac] sm:$0xff]
  %v136 = vld [vmem:[%s0 + $0x2b4] sm:$0xf]
  %v137 = vld [vmem:[%s0 + $0x2b8] sm:$0xff]
  %v138 = vld [vmem:[%s0 + $0x2c0] sm:$0xf]
  %v139 = vld [vmem:[%s0 + $0x2c4] sm:$0xff]
  %v140 = vld [vmem:[%s0 + $0x2cc] sm:$0xf]
  %v141 = vld [vmem:[%s0 + $0x2d0] sm:$0xff]
  %v142 = vld [vmem:[%s0 + $0x2d8] sm:$0xf]
  %v143 = vld [vmem:[%s0 + $0x2dc] sm:$0xff]
  %v144 = vld [vmem:[%s0 + $0x2e4] sm:$0xf]
  %v145 = vld [vmem:[%s0 + $0x2e8] sm:$0xff]
  %v146 = vld [vmem:[%s0 + $0x2f0] sm:$0xf]
  %v147 = vld [vmem:[%s0 + $0x2f4] sm:$0xff]
  %v148 = vld [vmem:[%s0 + $0x2fc] sm:$0xf]
  %v149 = vld [vmem:[%s1] sm:$0xf]
  %v150 = vld [vmem:[%s1 + $0x4] sm:$0xf]
  %v151 = vld [vmem:[%s1 + $0x8] sm:$0xf]
  %v152 = vld [vmem:[%s1 + $0xc] sm:$0xf]
  %v153 = vld [vmem:[%s1 + $0x10] sm:$0xf]
  %v154 = vld [vmem:[%s1 + $0x14] sm:$0xf]
  %v155 = vld [vmem:[%s1 + $0x18] sm:$0xf]
  %v156 = vld [vmem:[%s1 + $0x1c] sm:$0xf]
  %v157 = vld [vmem:[%s1 + $0x20] sm:$0xf]
  %v158 = vld [vmem:[%s1 + $0x24] sm:$0xf]
  %v159 = vld [vmem:[%s1 + $0x28] sm:$0xf]
  %v160 = vld [vmem:[%s1 + $0x2c] sm:$0xf]
  %v161 = vld [vmem:[%s1 + $0x30] sm:$0xf]
  %v162 = vld [vmem:[%s1 + $0x34] sm:$0xf]
  %v163 = vld [vmem:[%s1 + $0x38] sm:$0xf]
  %v164 = vld [vmem:[%s1 + $0x3c] sm:$0xf]
  %v165 = vld [vmem:[%s1 + $0x40] sm:$0xf]
  %v166 = vld [vmem:[%s1 + $0x44] sm:$0xf]
  %v167 = vld [vmem:[%s1 + $0x48] sm:$0xf]
  %v168 = vld [vmem:[%s1 + $0x4c] sm:$0xf]
  %v169 = vld [vmem:[%s1 + $0x50] sm:$0xf]
  %v170 = vld [vmem:[%s1 + $0x54] sm:$0xf]
  %v171 = vld [vmem:[%s1 + $0x58] sm:$0xf]
  %v172 = vld [vmem:[%s1 + $0x5c] sm:$0xf]
  %v173 = vld [vmem:[%s1 + $0x60] sm:$0xf]
  %v174 = vld [vmem:[%s1 + $0x64] sm:$0xf]
  %v175 = vld [vmem:[%s1 + $0x68] sm:$0xf]
  %v176 = vld [vmem:[%s1 + $0x6c] sm:$0xf]
  %v177 = vld [vmem:[%s1 + $0x70] sm:$0xf]
  %v178 = vld [vmem:[%s1 + $0x74] sm:$0xf]
  %v179 = vld [vmem:[%s1 + $0x78] sm:$0xf]
  %v180 = vld [vmem:[%s1 + $0x7c] sm:$0xf]
  %v181 = vld [vmem:[%s1 + $0x80] sm:$0xf]
  %v182 = vld [vmem:[%s1 + $0x84] sm:$0xf]
  %v183 = vld [vmem:[%s1 + $0x88] sm:$0xf]
  %v184 = vld [vmem:[%s1 + $0x8c] sm:$0xf]
  %v185 = vld [vmem:[%s2] sm:$0x1]
  %v187 = vperm.slane %v185, 0
  %v317 = vunpack.c.l.b16 %v21
  %v318 = vunpack.c.h.b16 %v21
  %v319 = vunpack.c.l.b16 %v22
  %v320 = vunpack.c.l.b16 %v23
  %v321 = vunpack.c.h.b16 %v23
  %v322 = vunpack.c.l.b16 %v24
  %v323 = vunpack.c.l.b16 %v25
  %v324 = vunpack.c.h.b16 %v25
  %v325 = vunpack.c.l.b16 %v26
  %v326 = vunpack.c.l.b16 %v27
  %v327 = vunpack.c.h.b16 %v27
  %v328 = vunpack.c.l.b16 %v28
  %v329 = vunpack.c.l.b16 %v29
  %v330 = vunpack.c.h.b16 %v29
  %v331 = vunpack.c.l.b16 %v30
  %v332 = vunpack.c.l.b16 %v31
  %v333 = vunpack.c.h.b16 %v31
  %v334 = vunpack.c.l.b16 %v32
  %v335 = vunpack.c.l.b16 %v33
  %v336 = vunpack.c.h.b16 %v33
  %v337 = vunpack.c.l.b16 %v34
  %v338 = vunpack.c.l.b16 %v35
  %v339 = vunpack.c.h.b16 %v35
  %v340 = vunpack.c.l.b16 %v36
  %v341 = vunpack.c.l.b16 %v37
  %v342 = vunpack.c.h.b16 %v37
  %v343 = vunpack.c.l.b16 %v38
  %v344 = vunpack.c.l.b16 %v39
  %v345 = vunpack.c.h.b16 %v39
  %v346 = vunpack.c.l.b16 %v40
  %v347 = vunpack.c.l.b16 %v41
  %v348 = vunpack.c.h.b16 %v41
  %v349 = vunpack.c.l.b16 %v42
  %v350 = vunpack.c.l.b16 %v43
  %v351 = vunpack.c.h.b16 %v43
  %v352 = vunpack.c.l.b16 %v44
  %v353 = vunpack.c.l.b16 %v45
  %v354 = vunpack.c.h.b16 %v45
  %v355 = vunpack.c.l.b16 %v46
  %v356 = vunpack.c.l.b16 %v47
  %v357 = vunpack.c.h.b16 %v47
  %v358 = vunpack.c.l.b16 %v48
  %v359 = vunpack.c.l.b16 %v49
  %v360 = vunpack.c.h.b16 %v49
  %v361 = vunpack.c.l.b16 %v50
  %v362 = vunpack.c.l.b16 %v51
  %v363 = vunpack.c.h.b16 %v51
  %v364 = vunpack.c.l.b16 %v52
  %v365 = vunpack.c.l.b16 %v53
  %v366 = vunpack.c.h.b16 %v53
  %v367 = vunpack.c.l.b16 %v54
  %v368 = vunpack.c.l.b16 %v55
  %v369 = vunpack.c.h.b16 %v55
  %v370 = vunpack.c.l.b16 %v56
  %v371 = vunpack.c.l.b16 %v57
  %v372 = vunpack.c.h.b16 %v57
  %v373 = vunpack.c.l.b16 %v58
  %v374 = vunpack.c.l.b16 %v59
  %v375 = vunpack.c.h.b16 %v59
  %v376 = vunpack.c.l.b16 %v60
  %v377 = vunpack.c.l.b16 %v61
  %v378 = vunpack.c.h.b16 %v61
  %v379 = vunpack.c.l.b16 %v62
  %v380 = vunpack.c.l.b16 %v63
  %v381 = vunpack.c.h.b16 %v63
  %v382 = vunpack.c.l.b16 %v64
  %v383 = vunpack.c.l.b16 %v65
  %v384 = vunpack.c.h.b16 %v65
  %v385 = vunpack.c.l.b16 %v66
  %v386 = vunpack.c.l.b16 %v67
  %v387 = vunpack.c.h.b16 %v67
  %v388 = vunpack.c.l.b16 %v68
  %v389 = vunpack.c.l.b16 %v69
  %v390 = vunpack.c.h.b16 %v69
  %v391 = vunpack.c.l.b16 %v70
  %v392 = vunpack.c.l.b16 %v71
  %v393 = vunpack.c.h.b16 %v71
  %v394 = vunpack.c.l.b16 %v72
  %v395 = vunpack.c.l.b16 %v73
  %v396 = vunpack.c.h.b16 %v73
  %v397 = vunpack.c.l.b16 %v74
  %v398 = vunpack.c.l.b16 %v75
  %v399 = vunpack.c.h.b16 %v75
  %v400 = vunpack.c.l.b16 %v76
  %v401 = vunpack.c.l.b16 %v77
  %v402 = vunpack.c.h.b16 %v77
  %v403 = vunpack.c.l.b16 %v78
  %v404 = vunpack.c.l.b16 %v79
  %v405 = vunpack.c.h.b16 %v79
  %v406 = vunpack.c.l.b16 %v80
  %v407 = vunpack.c.l.b16 %v81
  %v408 = vunpack.c.h.b16 %v81
  %v409 = vunpack.c.l.b16 %v82
  %v410 = vunpack.c.l.b16 %v83
  %v411 = vunpack.c.h.b16 %v83
  %v412 = vunpack.c.l.b16 %v84
  %v413 = vunpack.c.l.b16 %v85
  %v414 = vunpack.c.h.b16 %v85
  %v415 = vunpack.c.l.b16 %v86
  %v416 = vunpack.c.l.b16 %v87
  %v417 = vunpack.c.h.b16 %v87
  %v418 = vunpack.c.l.b16 %v88
  %v419 = vunpack.c.l.b16 %v89
  %v420 = vunpack.c.h.b16 %v89
  %v421 = vunpack.c.l.b16 %v90
  %v422 = vunpack.c.l.b16 %v91
  %v423 = vunpack.c.h.b16 %v91
  %v424 = vunpack.c.l.b16 %v92
  %v425 = vunpack.c.l.b16 %v93
  %v426 = vunpack.c.h.b16 %v93
  %v427 = vunpack.c.l.b16 %v94
  %v428 = vunpack.c.l.b16 %v95
  %v429 = vunpack.c.h.b16 %v95
  %v430 = vunpack.c.l.b16 %v96
  %v431 = vunpack.c.l.b16 %v97
  %v432 = vunpack.c.h.b16 %v97
  %v433 = vunpack.c.l.b16 %v98
  %v434 = vunpack.c.l.b16 %v99
  %v435 = vunpack.c.h.b16 %v99
  %v436 = vunpack.c.l.b16 %v100
  %v437 = vunpack.c.l.b16 %v101
  %v438 = vunpack.c.h.b16 %v101
  %v439 = vunpack.c.l.b16 %v102
  %v440 = vunpack.c.l.b16 %v103
  %v441 = vunpack.c.h.b16 %v103
  %v442 = vunpack.c.l.b16 %v104
  %v443 = vunpack.c.l.b16 %v105
  %v444 = vunpack.c.h.b16 %v105
  %v445 = vunpack.c.l.b16 %v106
  %v446 = vunpack.c.l.b16 %v107
  %v447 = vunpack.c.h.b16 %v107
  %v448 = vunpack.c.l.b16 %v108
  %v449 = vunpack.c.l.b16 %v109
  %v450 = vunpack.c.h.b16 %v109
  %v451 = vunpack.c.l.b16 %v110
  %v452 = vunpack.c.l.b16 %v111
  %v453 = vunpack.c.h.b16 %v111
  %v454 = vunpack.c.l.b16 %v112
  %v455 = vunpack.c.l.b16 %v113
  %v456 = vunpack.c.h.b16 %v113
  %v457 = vunpack.c.l.b16 %v114
  %v458 = vunpack.c.l.b16 %v115
  %v459 = vunpack.c.h.b16 %v115
  %v460 = vunpack.c.l.b16 %v116
  %v461 = vunpack.c.l.b16 %v117
  %v462 = vunpack.c.h.b16 %v117
  %v463 = vunpack.c.l.b16 %v118
  %v464 = vunpack.c.l.b16 %v119
  %v465 = vunpack.c.h.b16 %v119
  %v466 = vunpack.c.l.b16 %v120
  %v467 = vunpack.c.l.b16 %v121
  %v468 = vunpack.c.h.b16 %v121
  %v469 = vunpack.c.l.b16 %v122
  %v470 = vunpack.c.l.b16 %v123
  %v471 = vunpack.c.h.b16 %v123
  %v472 = vunpack.c.l.b16 %v124
  %v473 = vunpack.c.l.b16 %v125
  %v474 = vunpack.c.h.b16 %v125
  %v475 = vunpack.c.l.b16 %v126
  %v476 = vunpack.c.l.b16 %v127
  %v477 = vunpack.c.h.b16 %v127
  %v478 = vunpack.c.l.b16 %v128
  %v479 = vunpack.c.l.b16 %v129
  %v480 = vunpack.c.h.b16 %v129
  %v481 = vunpack.c.l.b16 %v130
  %v482 = vunpack.c.l.b16 %v131
  %v483 = vunpack.c.h.b16 %v131
  %v484 = vunpack.c.l.b16 %v132
  %v485 = vunpack.c.l.b16 %v133
  %v486 = vunpack.c.h.b16 %v133
  %v487 = vunpack.c.l.b16 %v134
  %v488 = vunpack.c.l.b16 %v135
  %v489 = vunpack.c.h.b16 %v135
  %v490 = vunpack.c.l.b16 %v136
  %v491 = vunpack.c.l.b16 %v137
  %v492 = vunpack.c.h.b16 %v137
  %v493 = vunpack.c.l.b16 %v138
  %v494 = vunpack.c.l.b16 %v139
  %v495 = vunpack.c.h.b16 %v139
  %v496 = vunpack.c.l.b16 %v140
  %v497 = vunpack.c.l.b16 %v141
  %v498 = vunpack.c.h.b16 %v141
  %v499 = vunpack.c.l.b16 %v142
  %v500 = vunpack.c.l.b16 %v143
  %v501 = vunpack.c.h.b16 %v143
  %v502 = vunpack.c.l.b16 %v144
  %v503 = vunpack.c.l.b16 %v145
  %v504 = vunpack.c.h.b16 %v145
  %v505 = vunpack.c.l.b16 %v146
  %v506 = vunpack.c.l.b16 %v147
  %v507 = vunpack.c.h.b16 %v147
  %v508 = vunpack.c.l.b16 %v148
  %v509 = vpack.c.b16 %v320, %v317
  %v510 = vpack.c.b16 %v321, %v318
  %v511 = vpack.c.b16 %v322, %v319
  %v512 = vpack.c.b16 %v326, %v323
  %v513 = vpack.c.b16 %v327, %v324
  %v514 = vpack.c.b16 %v328, %v325
  %v515 = vpack.c.b16 %v332, %v329
  %v516 = vpack.c.b16 %v333, %v330
  %v517 = vpack.c.b16 %v334, %v331
  %v518 = vpack.c.b16 %v338, %v335
  %v519 = vpack.c.b16 %v339, %v336
  %v520 = vpack.c.b16 %v340, %v337
  %v521 = vpack.c.b16 %v344, %v341
  %v522 = vpack.c.b16 %v345, %v342
  %v523 = vpack.c.b16 %v346, %v343
  %v524 = vpack.c.b16 %v350, %v347
  %v525 = vpack.c.b16 %v351, %v348
  %v526 = vpack.c.b16 %v352, %v349
  %v527 = vpack.c.b16 %v356, %v353
  %v528 = vpack.c.b16 %v357, %v354
  %v529 = vpack.c.b16 %v358, %v355
  %v530 = vpack.c.b16 %v362, %v359
  %v531 = vpack.c.b16 %v363, %v360
  %v532 = vpack.c.b16 %v364, %v361
  %v533 = vpack.c.b16 %v368, %v365
  %v534 = vpack.c.b16 %v369, %v366
  %v535 = vpack.c.b16 %v370, %v367
  %v536 = vpack.c.b16 %v374, %v371
  %v537 = vpack.c.b16 %v375, %v372
  %v538 = vpack.c.b16 %v376, %v373
  %v539 = vpack.c.b16 %v380, %v377
  %v540 = vpack.c.b16 %v381, %v378
  %v541 = vpack.c.b16 %v382, %v379
  %v542 = vpack.c.b16 %v386, %v383
  %v543 = vpack.c.b16 %v387, %v384
  %v544 = vpack.c.b16 %v388, %v385
  %v545 = vpack.c.b16 %v392, %v389
  %v546 = vpack.c.b16 %v393, %v390
  %v547 = vpack.c.b16 %v394, %v391
  %v548 = vpack.c.b16 %v398, %v395
  %v549 = vpack.c.b16 %v399, %v396
  %v550 = vpack.c.b16 %v400, %v397
  %v551 = vpack.c.b16 %v404, %v401
  %v552 = vpack.c.b16 %v405, %v402
  %v553 = vpack.c.b16 %v406, %v403
  %v554 = vpack.c.b16 %v410, %v407
  %v555 = vpack.c.b16 %v411, %v408
  %v556 = vpack.c.b16 %v412, %v409
  %v557 = vpack.c.b16 %v416, %v413
  %v558 = vpack.c.b16 %v417, %v414
  %v559 = vpack.c.b16 %v418, %v415
  %v560 = vpack.c.b16 %v422, %v419
  %v561 = vpack.c.b16 %v423, %v420
  %v562 = vpack.c.b16 %v424, %v421
  %v563 = vpack.c.b16 %v428, %v425
  %v564 = vpack.c.b16 %v429, %v426
  %v565 = vpack.c.b16 %v430, %v427
  %v566 = vpack.c.b16 %v434, %v431
  %v567 = vpack.c.b16 %v435, %v432
  %v568 = vpack.c.b16 %v436, %v433
  %v569 = vpack.c.b16 %v440, %v437
  %v570 = vpack.c.b16 %v441, %v438
  %v571 = vpack.c.b16 %v442, %v439
  %v572 = vpack.c.b16 %v446, %v443
  %v573 = vpack.c.b16 %v447, %v444
  %v574 = vpack.c.b16 %v448, %v445
  %v575 = vpack.c.b16 %v452, %v449
  %v576 = vpack.c.b16 %v453, %v450
  %v577 = vpack.c.b16 %v454, %v451
  %v578 = vpack.c.b16 %v458, %v455
  %v579 = vpack.c.b16 %v459, %v456
  %v580 = vpack.c.b16 %v460, %v457
  %v581 = vpack.c.b16 %v464, %v461
  %v582 = vpack.c.b16 %v465, %v462
  %v583 = vpack.c.b16 %v466, %v463
  %v584 = vpack.c.b16 %v470, %v467
  %v585 = vpack.c.b16 %v471, %v468
  %v586 = vpack.c.b16 %v472, %v469
  %v587 = vpack.c.b16 %v476, %v473
  %v588 = vpack.c.b16 %v477, %v474
  %v589 = vpack.c.b16 %v478, %v475
  %v590 = vpack.c.b16 %v482, %v479
  %v591 = vpack.c.b16 %v483, %v480
  %v592 = vpack.c.b16 %v484, %v481
  %v593 = vpack.c.b16 %v488, %v485
  %v594 = vpack.c.b16 %v489, %v486
  %v595 = vpack.c.b16 %v490, %v487
  %v596 = vpack.c.b16 %v494, %v491
  %v597 = vpack.c.b16 %v495, %v492
  %v598 = vpack.c.b16 %v496, %v493
  %v599 = vpack.c.b16 %v500, %v497
  %v600 = vpack.c.b16 %v501, %v498
  %v601 = vpack.c.b16 %v502, %v499
  %v602 = vpack.c.b16 %v506, %v503
  %v603 = vpack.c.b16 %v507, %v504
  %v604 = vpack.c.b16 %v508, %v505
  %v705 = vunpack.c.l.b16 %v149
  %v706 = vunpack.c.l.b16 %v150
  %v707 = vunpack.c.l.b16 %v151
  %v708 = vunpack.c.l.b16 %v152
  %v709 = vunpack.c.l.b16 %v153
  %v710 = vunpack.c.l.b16 %v154
  %v711 = vunpack.c.l.b16 %v155
  %v712 = vunpack.c.l.b16 %v156
  %v713 = vunpack.c.l.b16 %v157
  %v714 = vunpack.c.l.b16 %v158
  %v715 = vunpack.c.l.b16 %v159
  %v716 = vunpack.c.l.b16 %v160
  %v717 = vunpack.c.l.b16 %v161
  %v718 = vunpack.c.l.b16 %v162
  %v719 = vunpack.c.l.b16 %v163
  %v720 = vunpack.c.l.b16 %v164
  %v721 = vunpack.c.l.b16 %v165
  %v722 = vunpack.c.l.b16 %v166
  %v723 = vunpack.c.l.b16 %v167
  %v724 = vunpack.c.l.b16 %v168
  %v725 = vunpack.c.l.b16 %v169
  %v726 = vunpack.c.l.b16 %v170
  %v727 = vunpack.c.l.b16 %v171
  %v728 = vunpack.c.l.b16 %v172
  %v729 = vunpack.c.l.b16 %v173
  %v730 = vunpack.c.l.b16 %v174
  %v731 = vunpack.c.l.b16 %v175
  %v732 = vunpack.c.l.b16 %v176
  %v733 = vunpack.c.l.b16 %v177
  %v734 = vunpack.c.l.b16 %v178
  %v735 = vunpack.c.l.b16 %v179
  %v736 = vunpack.c.l.b16 %v180
  %v737 = vunpack.c.l.b16 %v181
  %v738 = vunpack.c.l.b16 %v182
  %v739 = vunpack.c.l.b16 %v183
  %v740 = vunpack.c.l.b16 %v184
  %v741 = vpack.c.b16 %v706, %v705
  %v742 = vpack.c.b16 %v708, %v707
  %v743 = vpack.c.b16 %v710, %v709
  %v744 = vpack.c.b16 %v712, %v711
  %v745 = vpack.c.b16 %v714, %v713
  %v746 = vpack.c.b16 %v716, %v715
  %v747 = vpack.c.b16 %v718, %v717
  %v748 = vpack.c.b16 %v720, %v719
  %v749 = vpack.c.b16 %v722, %v721
  %v750 = vpack.c.b16 %v724, %v723
  %v751 = vpack.c.b16 %v726, %v725
  %v752 = vpack.c.b16 %v728, %v727
  %v753 = vpack.c.b16 %v730, %v729
  %v754 = vpack.c.b16 %v732, %v731
  %v755 = vpack.c.b16 %v734, %v733
  %v756 = vpack.c.b16 %v736, %v735
  %v757 = vpack.c.b16 %v738, %v737
  %v758 = vpack.c.b16 %v740, %v739
  %vm777 = vcmask 261120
  %v779 = vsel %vm777, %v511, 0
  %v782 = vsel %vm777, %v514, 0
  %v785 = vsel %vm777, %v517, 0
  %v788 = vsel %vm777, %v520, 0
  %v791 = vsel %vm777, %v523, 0
  %v794 = vsel %vm777, %v526, 0
  %v797 = vsel %vm777, %v529, 0
  %v800 = vsel %vm777, %v532, 0
  %v803 = vsel %vm777, %v535, 0
  %v806 = vsel %vm777, %v538, 0
  %v809 = vsel %vm777, %v541, 0
  %v812 = vsel %vm777, %v544, 0
  %v815 = vsel %vm777, %v547, 0
  %v818 = vsel %vm777, %v550, 0
  %v821 = vsel %vm777, %v553, 0
  %v824 = vsel %vm777, %v556, 0
  %v827 = vsel %vm777, %v559, 0
  %v830 = vsel %vm777, %v562, 0
  %v833 = vsel %vm777, %v565, 0
  %v836 = vsel %vm777, %v568, 0
  %v839 = vsel %vm777, %v571, 0
  %v842 = vsel %vm777, %v574, 0
  %v845 = vsel %vm777, %v577, 0
  %v848 = vsel %vm777, %v580, 0
  %v851 = vsel %vm777, %v583, 0
  %v854 = vsel %vm777, %v586, 0
  %v857 = vsel %vm777, %v589, 0
  %v860 = vsel %vm777, %v592, 0
  %v863 = vsel %vm777, %v595, 0
  %v866 = vsel %vm777, %v598, 0
  %v869 = vsel %vm777, %v601, 0
  %v872 = vsel %vm777, %v604, 0
  %874 = vmatpush.bf16.msra.mxu0 %v748
  %875 = vmatpush.bf16.msra.mxu0 %v747
  %876 = vmatpush.bf16.msra.mxu0 %v746
  %877 = vmatpush.bf16.msra.mxu0 %v745
  %878 = vmatpush.bf16.msra.mxu0 %v744
  %879 = vmatpush.bf16.msra.mxu0 %v743
  %880 = vmatpush.bf16.msra.mxu0 %v742
  %881 = vmatpush.bf16.msra.mxu0 %v741
  %882 = vmatmul.bf16.gmra.mxu0 %v509
  %v883 = vpop.f32.mrf.mxu0
  %v884 = vadd.f32 %v187, %v883
  %v885 = vpop.f32.mrf.mxu0
  %v886 = vadd.f32 %v187, %v885
  %887 = vmatmul.bf16.gmra.mxu0 %v512
  %v888 = vpop.f32.mrf.mxu0
  %v889 = vadd.f32 %v187, %v888
  %v890 = vpop.f32.mrf.mxu0
  %v891 = vadd.f32 %v187, %v890
  %892 = vmatmul.bf16.gmra.mxu0 %v515
  %v893 = vpop.f32.mrf.mxu0
  %v894 = vadd.f32 %v187, %v893
  %v895 = vpop.f32.mrf.mxu0
  %v896 = vadd.f32 %v187, %v895
  %897 = vmatmul.bf16.gmra.mxu0 %v518
  %v898 = vpop.f32.mrf.mxu0
  %v899 = vadd.f32 %v187, %v898
  %v900 = vpop.f32.mrf.mxu0
  %v901 = vadd.f32 %v187, %v900
  %902 = vmatmul.bf16.gmra.mxu0 %v521
  %v903 = vpop.f32.mrf.mxu0
  %v904 = vadd.f32 %v187, %v903
  %v905 = vpop.f32.mrf.mxu0
  %v906 = vadd.f32 %v187, %v905
  %907 = vmatmul.bf16.gmra.mxu0 %v524
  %v908 = vpop.f32.mrf.mxu0
  %v909 = vadd.f32 %v187, %v908
  %v910 = vpop.f32.mrf.mxu0
  %v911 = vadd.f32 %v187, %v910
  %912 = vmatmul.bf16.gmra.mxu0 %v527
  %v913 = vpop.f32.mrf.mxu0
  %v914 = vadd.f32 %v187, %v913
  %v915 = vpop.f32.mrf.mxu0
  %v916 = vadd.f32 %v187, %v915
  %917 = vmatmul.bf16.gmra.mxu0 %v530
  %v918 = vpop.f32.mrf.mxu0
  %v919 = vadd.f32 %v187, %v918
  %v920 = vpop.f32.mrf.mxu0
  %v921 = vadd.f32 %v187, %v920
  %922 = vmatmul.bf16.gmra.mxu0 %v533
  %v923 = vpop.f32.mrf.mxu0
  %v924 = vadd.f32 %v187, %v923
  %v925 = vpop.f32.mrf.mxu0
  %v926 = vadd.f32 %v187, %v925
  %927 = vmatmul.bf16.gmra.mxu0 %v536
  %v928 = vpop.f32.mrf.mxu0
  %v929 = vadd.f32 %v187, %v928
  %v930 = vpop.f32.mrf.mxu0
  %v931 = vadd.f32 %v187, %v930
  %932 = vmatmul.bf16.gmra.mxu0 %v539
  %v933 = vpop.f32.mrf.mxu0
  %v934 = vadd.f32 %v187, %v933
  %v935 = vpop.f32.mrf.mxu0
  %v936 = vadd.f32 %v187, %v935
  %937 = vmatmul.bf16.gmra.mxu0 %v542
  %v938 = vpop.f32.mrf.mxu0
  %v939 = vadd.f32 %v187, %v938
  %v940 = vpop.f32.mrf.mxu0
  %v941 = vadd.f32 %v187, %v940
  %942 = vmatmul.bf16.gmra.mxu0 %v545
  %v943 = vpop.f32.mrf.mxu0
  %v944 = vadd.f32 %v187, %v943
  %v945 = vpop.f32.mrf.mxu0
  %v946 = vadd.f32 %v187, %v945
  %947 = vmatmul.bf16.gmra.mxu0 %v548
  %v948 = vpop.f32.mrf.mxu0
  %v949 = vadd.f32 %v187, %v948
  %v950 = vpop.f32.mrf.mxu0
  %v951 = vadd.f32 %v187, %v950
  %952 = vmatmul.bf16.gmra.mxu0 %v551
  %v953 = vpop.f32.mrf.mxu0
  %v954 = vadd.f32 %v187, %v953
  %v955 = vpop.f32.mrf.mxu0
  %v956 = vadd.f32 %v187, %v955
  %957 = vmatmul.bf16.gmra.mxu0 %v554
  %v958 = vpop.f32.mrf.mxu0
  %v959 = vadd.f32 %v187, %v958
  %v960 = vpop.f32.mrf.mxu0
  %v961 = vadd.f32 %v187, %v960
  %962 = vmatmul.bf16.gmra.mxu0 %v557
  %v963 = vpop.f32.mrf.mxu0
  %v964 = vadd.f32 %v187, %v963
  %v965 = vpop.f32.mrf.mxu0
  %v966 = vadd.f32 %v187, %v965
  %967 = vmatmul.bf16.gmra.mxu0 %v560
  %v968 = vpop.f32.mrf.mxu0
  %v969 = vadd.f32 %v187, %v968
  %v970 = vpop.f32.mrf.mxu0
  %v971 = vadd.f32 %v187, %v970
  %972 = vmatmul.bf16.gmra.mxu0 %v563
  %v973 = vpop.f32.mrf.mxu0
  %v974 = vadd.f32 %v187, %v973
  %v975 = vpop.f32.mrf.mxu0
  %v976 = vadd.f32 %v187, %v975
  %977 = vmatmul.bf16.gmra.mxu0 %v566
  %v978 = vpop.f32.mrf.mxu0
  %v979 = vadd.f32 %v187, %v978
  %v980 = vpop.f32.mrf.mxu0
  %v981 = vadd.f32 %v187, %v980
  %982 = vmatmul.bf16.gmra.mxu0 %v569
  %v983 = vpop.f32.mrf.mxu0
  %v984 = vadd.f32 %v187, %v983
  %v985 = vpop.f32.mrf.mxu0
  %v986 = vadd.f32 %v187, %v985
  %987 = vmatmul.bf16.gmra.mxu0 %v572
  %v988 = vpop.f32.mrf.mxu0
  %v989 = vadd.f32 %v187, %v988
  %v990 = vpop.f32.mrf.mxu0
  %v991 = vadd.f32 %v187, %v990
  %992 = vmatmul.bf16.gmra.mxu0 %v575
  %v993 = vpop.f32.mrf.mxu0
  %v994 = vadd.f32 %v187, %v993
  %v995 = vpop.f32.mrf.mxu0
  %v996 = vadd.f32 %v187, %v995
  %997 = vmatmul.bf16.gmra.mxu0 %v578
  %v998 = vpop.f32.mrf.mxu0
  %v999 = vadd.f32 %v187, %v998
  %v1000 = vpop.f32.mrf.mxu0
  %v1001 = vadd.f32 %v187, %v1000
  %1002 = vmatmul.bf16.gmra.mxu0 %v581
  %v1003 = vpop.f32.mrf.mxu0
  %v1004 = vadd.f32 %v187, %v1003
  %v1005 = vpop.f32.mrf.mxu0
  %v1006 = vadd.f32 %v187, %v1005
  %1007 = vmatmul.bf16.gmra.mxu0 %v584
  %v1008 = vpop.f32.mrf.mxu0
  %v1009 = vadd.f32 %v187, %v1008
  %v1010 = vpop.f32.mrf.mxu0
  %v1011 = vadd.f32 %v187, %v1010
  %1012 = vmatmul.bf16.gmra.mxu0 %v587
  %v1013 = vpop.f32.mrf.mxu0
  %v1014 = vadd.f32 %v187, %v1013
  %v1015 = vpop.f32.mrf.mxu0
  %v1016 = vadd.f32 %v187, %v1015
  %1017 = vmatmul.bf16.gmra.mxu0 %v590
  %v1018 = vpop.f32.mrf.mxu0
  %v1019 = vadd.f32 %v187, %v1018
  %v1020 = vpop.f32.mrf.mxu0
  %v1021 = vadd.f32 %v187, %v1020
  %1022 = vmatmul.bf16.gmra.mxu0 %v593
  %v1023 = vpop.f32.mrf.mxu0
  %v1024 = vadd.f32 %v187, %v1023
  %v1025 = vpop.f32.mrf.mxu0
  %v1026 = vadd.f32 %v187, %v1025
  %1027 = vmatmul.bf16.gmra.mxu0 %v596
  %v1028 = vpop.f32.mrf.mxu0
  %v1029 = vadd.f32 %v187, %v1028
  %v1030 = vpop.f32.mrf.mxu0
  %v1031 = vadd.f32 %v187, %v1030
  %1032 = vmatmul.bf16.gmra.mxu0 %v599
  %v1033 = vpop.f32.mrf.mxu0
  %v1034 = vadd.f32 %v187, %v1033
  %v1035 = vpop.f32.mrf.mxu0
  %v1036 = vadd.f32 %v187, %v1035
  %1037 = vmatmul.bf16.gmra.mxu0 %v602
  %v1038 = vpop.f32.mrf.mxu0
  %v1039 = vadd.f32 %v187, %v1038
  %v1040 = vpop.f32.mrf.mxu0
  %v1041 = vadd.f32 %v187, %v1040
  %1042 = vdwg.mxu0
  %1043 = vmatpush.bf16.msra.mxu0 %v756
  %1044 = vmatpush.bf16.msra.mxu0 %v755
  %1045 = vmatpush.bf16.msra.mxu0 %v754
  %1046 = vmatpush.bf16.msra.mxu0 %v753
  %1047 = vmatpush.bf16.msra.mxu0 %v752
  %1048 = vmatpush.bf16.msra.mxu0 %v751
  %1049 = vmatpush.bf16.msra.mxu0 %v750
  %1050 = vmatpush.bf16.msra.mxu0 %v749
  %1051 = vmatmul.bf16.gmra.mxu0 %v510
  %v1052 = vpop.f32.mrf.mxu0
  %v1053 = vadd.f32 %v884, %v1052
  %v1054 = vpop.f32.mrf.mxu0
  %v1055 = vadd.f32 %v886, %v1054
  %1056 = vmatmul.bf16.gmra.mxu0 %v513
  %v1057 = vpop.f32.mrf.mxu0
  %v1058 = vadd.f32 %v889, %v1057
  %v1059 = vpop.f32.mrf.mxu0
  %v1060 = vadd.f32 %v891, %v1059
  %1061 = vmatmul.bf16.gmra.mxu0 %v516
  %v1062 = vpop.f32.mrf.mxu0
  %v1063 = vadd.f32 %v894, %v1062
  %v1064 = vpop.f32.mrf.mxu0
  %v1065 = vadd.f32 %v896, %v1064
  %1066 = vmatmul.bf16.gmra.mxu0 %v519
  %v1067 = vpop.f32.mrf.mxu0
  %v1068 = vadd.f32 %v899, %v1067
  %v1069 = vpop.f32.mrf.mxu0
  %v1070 = vadd.f32 %v901, %v1069
  %1071 = vmatmul.bf16.gmra.mxu0 %v522
  %v1072 = vpop.f32.mrf.mxu0
  %v1073 = vadd.f32 %v904, %v1072
  %v1074 = vpop.f32.mrf.mxu0
  %v1075 = vadd.f32 %v906, %v1074
  %1076 = vmatmul.bf16.gmra.mxu0 %v525
  %v1077 = vpop.f32.mrf.mxu0
  %v1078 = vadd.f32 %v909, %v1077
  %v1079 = vpop.f32.mrf.mxu0
  %v1080 = vadd.f32 %v911, %v1079
  %1081 = vmatmul.bf16.gmra.mxu0 %v528
  %v1082 = vpop.f32.mrf.mxu0
  %v1083 = vadd.f32 %v914, %v1082
  %v1084 = vpop.f32.mrf.mxu0
  %v1085 = vadd.f32 %v916, %v1084
  %1086 = vmatmul.bf16.gmra.mxu0 %v531
  %v1087 = vpop.f32.mrf.mxu0
  %v1088 = vadd.f32 %v919, %v1087
  %v1089 = vpop.f32.mrf.mxu0
  %v1090 = vadd.f32 %v921, %v1089
  %1091 = vmatmul.bf16.gmra.mxu0 %v534
  %v1092 = vpop.f32.mrf.mxu0
  %v1093 = vadd.f32 %v924, %v1092
  %v1094 = vpop.f32.mrf.mxu0
  %v1095 = vadd.f32 %v926, %v1094
  %1096 = vmatmul.bf16.gmra.mxu0 %v537
  %v1097 = vpop.f32.mrf.mxu0
  %v1098 = vadd.f32 %v929, %v1097
  %v1099 = vpop.f32.mrf.mxu0
  %v1100 = vadd.f32 %v931, %v1099
  %1101 = vmatmul.bf16.gmra.mxu0 %v540
  %v1102 = vpop.f32.mrf.mxu0
  %v1103 = vadd.f32 %v934, %v1102
  %v1104 = vpop.f32.mrf.mxu0
  %v1105 = vadd.f32 %v936, %v1104
  %1106 = vmatmul.bf16.gmra.mxu0 %v543
  %v1107 = vpop.f32.mrf.mxu0
  %v1108 = vadd.f32 %v939, %v1107
  %v1109 = vpop.f32.mrf.mxu0
  %v1110 = vadd.f32 %v941, %v1109
  %1111 = vmatmul.bf16.gmra.mxu0 %v546
  %v1112 = vpop.f32.mrf.mxu0
  %v1113 = vadd.f32 %v944, %v1112
  %v1114 = vpop.f32.mrf.mxu0
  %v1115 = vadd.f32 %v946, %v1114
  %1116 = vmatmul.bf16.gmra.mxu0 %v549
  %v1117 = vpop.f32.mrf.mxu0
  %v1118 = vadd.f32 %v949, %v1117
  %v1119 = vpop.f32.mrf.mxu0
  %v1120 = vadd.f32 %v951, %v1119
  %1121 = vmatmul.bf16.gmra.mxu0 %v552
  %v1122 = vpop.f32.mrf.mxu0
  %v1123 = vadd.f32 %v954, %v1122
  %v1124 = vpop.f32.mrf.mxu0
  %v1125 = vadd.f32 %v956, %v1124
  %1126 = vmatmul.bf16.gmra.mxu0 %v555
  %v1127 = vpop.f32.mrf.mxu0
  %v1128 = vadd.f32 %v959, %v1127
  %v1129 = vpop.f32.mrf.mxu0
  %v1130 = vadd.f32 %v961, %v1129
  %1131 = vmatmul.bf16.gmra.mxu0 %v558
  %v1132 = vpop.f32.mrf.mxu0
  %v1133 = vadd.f32 %v964, %v1132
  %v1134 = vpop.f32.mrf.mxu0
  %v1135 = vadd.f32 %v966, %v1134
  %1136 = vmatmul.bf16.gmra.mxu0 %v561
  %v1137 = vpop.f32.mrf.mxu0
  %v1138 = vadd.f32 %v969, %v1137
  %v1139 = vpop.f32.mrf.mxu0
  %v1140 = vadd.f32 %v971, %v1139
  %1141 = vmatmul.bf16.gmra.mxu0 %v564
  %v1142 = vpop.f32.mrf.mxu0
  %v1143 = vadd.f32 %v974, %v1142
  %v1144 = vpop.f32.mrf.mxu0
  %v1145 = vadd.f32 %v976, %v1144
  %1146 = vmatmul.bf16.gmra.mxu0 %v567
  %v1147 = vpop.f32.mrf.mxu0
  %v1148 = vadd.f32 %v979, %v1147
  %v1149 = vpop.f32.mrf.mxu0
  %v1150 = vadd.f32 %v981, %v1149
  %1151 = vmatmul.bf16.gmra.mxu0 %v570
  %v1152 = vpop.f32.mrf.mxu0
  %v1153 = vadd.f32 %v984, %v1152
  %v1154 = vpop.f32.mrf.mxu0
  %v1155 = vadd.f32 %v986, %v1154
  %1156 = vmatmul.bf16.gmra.mxu0 %v573
  %v1157 = vpop.f32.mrf.mxu0
  %v1158 = vadd.f32 %v989, %v1157
  %v1159 = vpop.f32.mrf.mxu0
  %v1160 = vadd.f32 %v991, %v1159
  %1161 = vmatmul.bf16.gmra.mxu0 %v576
  %v1162 = vpop.f32.mrf.mxu0
  %v1163 = vadd.f32 %v994, %v1162
  %v1164 = vpop.f32.mrf.mxu0
  %v1165 = vadd.f32 %v996, %v1164
  %1166 = vmatmul.bf16.gmra.mxu0 %v579
  %v1167 = vpop.f32.mrf.mxu0
  %v1168 = vadd.f32 %v999, %v1167
  %v1169 = vpop.f32.mrf.mxu0
  %v1170 = vadd.f32 %v1001, %v1169
  %1171 = vmatmul.bf16.gmra.mxu0 %v582
  %v1172 = vpop.f32.mrf.mxu0
  %v1173 = vadd.f32 %v1004, %v1172
  %v1174 = vpop.f32.mrf.mxu0
  %v1175 = vadd.f32 %v1006, %v1174
  %1176 = vmatmul.bf16.gmra.mxu0 %v585
  %v1177 = vpop.f32.mrf.mxu0
  %v1178 = vadd.f32 %v1009, %v1177
  %v1179 = vpop.f32.mrf.mxu0
  %v1180 = vadd.f32 %v1011, %v1179
  %1181 = vmatmul.bf16.gmra.mxu0 %v588
  %v1182 = vpop.f32.mrf.mxu0
  %v1183 = vadd.f32 %v1014, %v1182
  %v1184 = vpop.f32.mrf.mxu0
  %v1185 = vadd.f32 %v1016, %v1184
  %1186 = vmatmul.bf16.gmra.mxu0 %v591
  %v1187 = vpop.f32.mrf.mxu0
  %v1188 = vadd.f32 %v1019, %v1187
  %v1189 = vpop.f32.mrf.mxu0
  %v1190 = vadd.f32 %v1021, %v1189
  %1191 = vmatmul.bf16.gmra.mxu0 %v594
  %v1192 = vpop.f32.mrf.mxu0
  %v1193 = vadd.f32 %v1024, %v1192
  %v1194 = vpop.f32.mrf.mxu0
  %v1195 = vadd.f32 %v1026, %v1194
  %1196 = vmatmul.bf16.gmra.mxu0 %v597
  %v1197 = vpop.f32.mrf.mxu0
  %v1198 = vadd.f32 %v1029, %v1197
  %v1199 = vpop.f32.mrf.mxu0
  %v1200 = vadd.f32 %v1031, %v1199
  %1201 = vmatmul.bf16.gmra.mxu0 %v600
  %v1202 = vpop.f32.mrf.mxu0
  %v1203 = vadd.f32 %v1034, %v1202
  %v1204 = vpop.f32.mrf.mxu0
  %v1205 = vadd.f32 %v1036, %v1204
  %1206 = vmatmul.bf16.gmra.mxu0 %v603
  %v1207 = vpop.f32.mrf.mxu0
  %v1208 = vadd.f32 %v1039, %v1207
  %v1209 = vpop.f32.mrf.mxu0
  %v1210 = vadd.f32 %v1041, %v1209
  %1211 = vdwg.mxu0
  %1212 = vmatpush.bf16.msra.mxu0 0
  %1213 = vmatpush.bf16.msra.mxu0 0
  %1214 = vmatpush.bf16.msra.mxu0 0
  %1215 = vmatpush.bf16.msra.mxu0 0
  %1216 = vmatpush.bf16.msra.mxu0 0
  %1217 = vmatpush.bf16.msra.mxu0 0
  %1218 = vmatpush.bf16.msra.mxu0 %v758
  %1219 = vmatpush.bf16.msra.mxu0 %v757
  %1220 = vmatmul.bf16.gmra.mxu0 %v779
  %v1221 = vpop.f32.mrf.mxu0
  %v1222 = vadd.f32 %v1053, %v1221
  %v1223 = vpop.f32.mrf.mxu0
  %v1224 = vadd.f32 %v1055, %v1223
  %1225 = vmatmul.bf16.gmra.mxu0 %v782
  %v1226 = vpop.f32.mrf.mxu0
  %v1227 = vadd.f32 %v1058, %v1226
  %v1228 = vpop.f32.mrf.mxu0
  %v1229 = vadd.f32 %v1060, %v1228
  %1230 = vmatmul.bf16.gmra.mxu0 %v785
  %v1231 = vpop.f32.mrf.mxu0
  %v1232 = vadd.f32 %v1063, %v1231
  %v1233 = vpop.f32.mrf.mxu0
  %v1234 = vadd.f32 %v1065, %v1233
  %1235 = vmatmul.bf16.gmra.mxu0 %v788
  %v1236 = vpop.f32.mrf.mxu0
  %v1237 = vadd.f32 %v1068, %v1236
  %v1238 = vpop.f32.mrf.mxu0
  %v1239 = vadd.f32 %v1070, %v1238
  %1240 = vmatmul.bf16.gmra.mxu0 %v791
  %v1241 = vpop.f32.mrf.mxu0
  %v1242 = vadd.f32 %v1073, %v1241
  %v1243 = vpop.f32.mrf.mxu0
  %v1244 = vadd.f32 %v1075, %v1243
  %1245 = vmatmul.bf16.gmra.mxu0 %v794
  %v1246 = vpop.f32.mrf.mxu0
  %v1247 = vadd.f32 %v1078, %v1246
  %v1248 = vpop.f32.mrf.mxu0
  %v1249 = vadd.f32 %v1080, %v1248
  %1250 = vmatmul.bf16.gmra.mxu0 %v797
  %v1251 = vpop.f32.mrf.mxu0
  %v1252 = vadd.f32 %v1083, %v1251
  %v1253 = vpop.f32.mrf.mxu0
  %v1254 = vadd.f32 %v1085, %v1253
  %1255 = vmatmul.bf16.gmra.mxu0 %v800
  %v1256 = vpop.f32.mrf.mxu0
  %v1257 = vadd.f32 %v1088, %v1256
  %v1258 = vpop.f32.mrf.mxu0
  %v1259 = vadd.f32 %v1090, %v1258
  %1260 = vmatmul.bf16.gmra.mxu0 %v803
  %v1261 = vpop.f32.mrf.mxu0
  %v1262 = vadd.f32 %v1093, %v1261
  %v1263 = vpop.f32.mrf.mxu0
  %v1264 = vadd.f32 %v1095, %v1263
  %1265 = vmatmul.bf16.gmra.mxu0 %v806
  %v1266 = vpop.f32.mrf.mxu0
  %v1267 = vadd.f32 %v1098, %v1266
  %v1268 = vpop.f32.mrf.mxu0
  %v1269 = vadd.f32 %v1100, %v1268
  %1270 = vmatmul.bf16.gmra.mxu0 %v809
  %v1271 = vpop.f32.mrf.mxu0
  %v1272 = vadd.f32 %v1103, %v1271
  %v1273 = vpop.f32.mrf.mxu0
  %v1274 = vadd.f32 %v1105, %v1273
  %1275 = vmatmul.bf16.gmra.mxu0 %v812
  %v1276 = vpop.f32.mrf.mxu0
  %v1277 = vadd.f32 %v1108, %v1276
  %v1278 = vpop.f32.mrf.mxu0
  %v1279 = vadd.f32 %v1110, %v1278
  %1280 = vmatmul.bf16.gmra.mxu0 %v815
  %v1281 = vpop.f32.mrf.mxu0
  %v1282 = vadd.f32 %v1113, %v1281
  %v1283 = vpop.f32.mrf.mxu0
  %v1284 = vadd.f32 %v1115, %v1283
  %1285 = vmatmul.bf16.gmra.mxu0 %v818
  %v1286 = vpop.f32.mrf.mxu0
  %v1287 = vadd.f32 %v1118, %v1286
  %v1288 = vpop.f32.mrf.mxu0
  %v1289 = vadd.f32 %v1120, %v1288
  %1290 = vmatmul.bf16.gmra.mxu0 %v821
  %v1291 = vpop.f32.mrf.mxu0
  %v1292 = vadd.f32 %v1123, %v1291
  %v1293 = vpop.f32.mrf.mxu0
  %v1294 = vadd.f32 %v1125, %v1293
  %1295 = vmatmul.bf16.gmra.mxu0 %v824
  %v1296 = vpop.f32.mrf.mxu0
  %v1297 = vadd.f32 %v1128, %v1296
  %v1298 = vpop.f32.mrf.mxu0
  %v1299 = vadd.f32 %v1130, %v1298
  %1300 = vmatmul.bf16.gmra.mxu0 %v827
  %v1301 = vpop.f32.mrf.mxu0
  %v1302 = vadd.f32 %v1133, %v1301
  %v1303 = vpop.f32.mrf.mxu0
  %v1304 = vadd.f32 %v1135, %v1303
  %1305 = vmatmul.bf16.gmra.mxu0 %v830
  %v1306 = vpop.f32.mrf.mxu0
  %v1307 = vadd.f32 %v1138, %v1306
  %v1308 = vpop.f32.mrf.mxu0
  %v1309 = vadd.f32 %v1140, %v1308
  %1310 = vmatmul.bf16.gmra.mxu0 %v833
  %v1311 = vpop.f32.mrf.mxu0
  %v1312 = vadd.f32 %v1143, %v1311
  %v1313 = vpop.f32.mrf.mxu0
  %v1314 = vadd.f32 %v1145, %v1313
  %1315 = vmatmul.bf16.gmra.mxu0 %v836
  %v1316 = vpop.f32.mrf.mxu0
  %v1317 = vadd.f32 %v1148, %v1316
  %v1318 = vpop.f32.mrf.mxu0
  %v1319 = vadd.f32 %v1150, %v1318
  %1320 = vmatmul.bf16.gmra.mxu0 %v839
  %v1321 = vpop.f32.mrf.mxu0
  %v1322 = vadd.f32 %v1153, %v1321
  %v1323 = vpop.f32.mrf.mxu0
  %v1324 = vadd.f32 %v1155, %v1323
  %1325 = vmatmul.bf16.gmra.mxu0 %v842
  %v1326 = vpop.f32.mrf.mxu0
  %v1327 = vadd.f32 %v1158, %v1326
  %v1328 = vpop.f32.mrf.mxu0
  %v1329 = vadd.f32 %v1160, %v1328
  %1330 = vmatmul.bf16.gmra.mxu0 %v845
  %v1331 = vpop.f32.mrf.mxu0
  %v1332 = vadd.f32 %v1163, %v1331
  %v1333 = vpop.f32.mrf.mxu0
  %v1334 = vadd.f32 %v1165, %v1333
  %1335 = vmatmul.bf16.gmra.mxu0 %v848
  %v1336 = vpop.f32.mrf.mxu0
  %v1337 = vadd.f32 %v1168, %v1336
  %v1338 = vpop.f32.mrf.mxu0
  %v1339 = vadd.f32 %v1170, %v1338
  %1340 = vmatmul.bf16.gmra.mxu0 %v851
  %v1341 = vpop.f32.mrf.mxu0
  %v1342 = vadd.f32 %v1173, %v1341
  %v1343 = vpop.f32.mrf.mxu0
  %v1344 = vadd.f32 %v1175, %v1343
  %1345 = vmatmul.bf16.gmra.mxu0 %v854
  %v1346 = vpop.f32.mrf.mxu0
  %v1347 = vadd.f32 %v1178, %v1346
  %v1348 = vpop.f32.mrf.mxu0
  %v1349 = vadd.f32 %v1180, %v1348
  %1350 = vmatmul.bf16.gmra.mxu0 %v857
  %v1351 = vpop.f32.mrf.mxu0
  %v1352 = vadd.f32 %v1183, %v1351
  %v1353 = vpop.f32.mrf.mxu0
  %v1354 = vadd.f32 %v1185, %v1353
  %1355 = vmatmul.bf16.gmra.mxu0 %v860
  %v1356 = vpop.f32.mrf.mxu0
  %v1357 = vadd.f32 %v1188, %v1356
  %v1358 = vpop.f32.mrf.mxu0
  %v1359 = vadd.f32 %v1190, %v1358
  %1360 = vmatmul.bf16.gmra.mxu0 %v863
  %v1361 = vpop.f32.mrf.mxu0
  %v1362 = vadd.f32 %v1193, %v1361
  %v1363 = vpop.f32.mrf.mxu0
  %v1364 = vadd.f32 %v1195, %v1363
  %1365 = vmatmul.bf16.gmra.mxu0 %v866
  %v1366 = vpop.f32.mrf.mxu0
  %v1367 = vadd.f32 %v1198, %v1366
  %v1368 = vpop.f32.mrf.mxu0
  %v1369 = vadd.f32 %v1200, %v1368
  %1370 = vmatmul.bf16.gmra.mxu0 %v869
  %v1371 = vpop.f32.mrf.mxu0
  %v1372 = vadd.f32 %v1203, %v1371
  %v1373 = vpop.f32.mrf.mxu0
  %v1374 = vadd.f32 %v1205, %v1373
  %1375 = vmatmul.bf16.gmra.mxu0 %v872
  %v1376 = vpop.f32.mrf.mxu0
  %v1377 = vadd.f32 %v1208, %v1376
  %v1378 = vpop.f32.mrf.mxu0
  %v1379 = vadd.f32 %v1210, %v1378
  %1380 = vdwg.mxu0
  %v1381 = vmax.f32 %v1222, 0.0
  %v1382 = vmax.f32 %v1224, 0.0
  %v1383 = vmax.f32 %v1227, 0.0
  %v1384 = vmax.f32 %v1229, 0.0
  %v1385 = vmax.f32 %v1232, 0.0
  %v1386 = vmax.f32 %v1234, 0.0
  %v1387 = vmax.f32 %v1237, 0.0
  %v1388 = vmax.f32 %v1239, 0.0
  %v1389 = vmax.f32 %v1242, 0.0
  %v1390 = vmax.f32 %v1244, 0.0
  %v1391 = vmax.f32 %v1247, 0.0
  %v1392 = vmax.f32 %v1249, 0.0
  %v1393 = vmax.f32 %v1252, 0.0
  %v1394 = vmax.f32 %v1254, 0.0
  %v1395 = vmax.f32 %v1257, 0.0
  %v1396 = vmax.f32 %v1259, 0.0
  %v1397 = vmax.f32 %v1262, 0.0
  %v1398 = vmax.f32 %v1264, 0.0
  %v1399 = vmax.f32 %v1267, 0.0
  %v1400 = vmax.f32 %v1269, 0.0
  %v1401 = vmax.f32 %v1272, 0.0
  %v1402 = vmax.f32 %v1274, 0.0
  %v1403 = vmax.f32 %v1277, 0.0
  %v1404 = vmax.f32 %v1279, 0.0
  %v1405 = vmax.f32 %v1282, 0.0
  %v1406 = vmax.f32 %v1284, 0.0
  %v1407 = vmax.f32 %v1287, 0.0
  %v1408 = vmax.f32 %v1289, 0.0
  %v1409 = vmax.f32 %v1292, 0.0
  %v1410 = vmax.f32 %v1294, 0.0
  %v1411 = vmax.f32 %v1297, 0.0
  %v1412 = vmax.f32 %v1299, 0.0
  %v1413 = vmax.f32 %v1302, 0.0
  %v1414 = vmax.f32 %v1304, 0.0
  %v1415 = vmax.f32 %v1307, 0.0
  %v1416 = vmax.f32 %v1309, 0.0
  %v1417 = vmax.f32 %v1312, 0.0
  %v1418 = vmax.f32 %v1314, 0.0
  %v1419 = vmax.f32 %v1317, 0.0
  %v1420 = vmax.f32 %v1319, 0.0
  %v1421 = vmax.f32 %v1322, 0.0
  %v1422 = vmax.f32 %v1324, 0.0
  %v1423 = vmax.f32 %v1327, 0.0
  %v1424 = vmax.f32 %v1329, 0.0
  %v1425 = vmax.f32 %v1332, 0.0
  %v1426 = vmax.f32 %v1334, 0.0
  %v1427 = vmax.f32 %v1337, 0.0
  %v1428 = vmax.f32 %v1339, 0.0
  %v1429 = vmax.f32 %v1342, 0.0
  %v1430 = vmax.f32 %v1344, 0.0
  %v1431 = vmax.f32 %v1347, 0.0
  %v1432 = vmax.f32 %v1349, 0.0
  %v1433 = vmax.f32 %v1352, 0.0
  %v1434 = vmax.f32 %v1354, 0.0
  %v1435 = vmax.f32 %v1357, 0.0
  %v1436 = vmax.f32 %v1359, 0.0
  %v1437 = vmax.f32 %v1362, 0.0
  %v1438 = vmax.f32 %v1364, 0.0
  %v1439 = vmax.f32 %v1367, 0.0
  %v1440 = vmax.f32 %v1369, 0.0
  %v1441 = vmax.f32 %v1372, 0.0
  %v1442 = vmax.f32 %v1374, 0.0
  %v1443 = vmax.f32 %v1377, 0.0
  %v1444 = vmax.f32 %v1379, 0.0
  %v1445 = vld [vmem:[%s3] sm:$0x1]
  %v1447 = vperm.slane %v1445, 0
  %v1449 = vmul.f32 %v1381, %v1447
  %v1450 = vmul.f32 %v1382, %v1447
  %v1451 = vmul.f32 %v1383, %v1447
  %v1452 = vmul.f32 %v1384, %v1447
  %v1453 = vmul.f32 %v1385, %v1447
  %v1454 = vmul.f32 %v1386, %v1447
  %v1455 = vmul.f32 %v1387, %v1447
  %v1456 = vmul.f32 %v1388, %v1447
  %v1457 = vmul.f32 %v1389, %v1447
  %v1458 = vmul.f32 %v1390, %v1447
  %v1459 = vmul.f32 %v1391, %v1447
  %v1460 = vmul.f32 %v1392, %v1447
  %v1461 = vmul.f32 %v1393, %v1447
  %v1462 = vmul.f32 %v1394, %v1447
  %v1463 = vmul.f32 %v1395, %v1447
  %v1464 = vmul.f32 %v1396, %v1447
  %v1465 = vmul.f32 %v1397, %v1447
  %v1466 = vmul.f32 %v1398, %v1447
  %v1467 = vmul.f32 %v1399, %v1447
  %v1468 = vmul.f32 %v1400, %v1447
  %v1469 = vmul.f32 %v1401, %v1447
  %v1470 = vmul.f32 %v1402, %v1447
  %v1471 = vmul.f32 %v1403, %v1447
  %v1472 = vmul.f32 %v1404, %v1447
  %v1473 = vmul.f32 %v1405, %v1447
  %v1474 = vmul.f32 %v1406, %v1447
  %v1475 = vmul.f32 %v1407, %v1447
  %v1476 = vmul.f32 %v1408, %v1447
  %v1477 = vmul.f32 %v1409, %v1447
  %v1478 = vmul.f32 %v1410, %v1447
  %v1479 = vmul.f32 %v1411, %v1447
  %v1480 = vmul.f32 %v1412, %v1447
  %v1481 = vmul.f32 %v1413, %v1447
  %v1482 = vmul.f32 %v1414, %v1447
  %v1483 = vmul.f32 %v1415, %v1447
  %v1484 = vmul.f32 %v1416, %v1447
  %v1485 = vmul.f32 %v1417, %v1447
  %v1486 = vmul.f32 %v1418, %v1447
  %v1487 = vmul.f32 %v1419, %v1447
  %v1488 = vmul.f32 %v1420, %v1447
  %v1489 = vmul.f32 %v1421, %v1447
  %v1490 = vmul.f32 %v1422, %v1447
  %v1491 = vmul.f32 %v1423, %v1447
  %v1492 = vmul.f32 %v1424, %v1447
  %v1493 = vmul.f32 %v1425, %v1447
  %v1494 = vmul.f32 %v1426, %v1447
  %v1495 = vmul.f32 %v1427, %v1447
  %v1496 = vmul.f32 %v1428, %v1447
  %v1497 = vmul.f32 %v1429, %v1447
  %v1498 = vmul.f32 %v1430, %v1447
  %v1499 = vmul.f32 %v1431, %v1447
  %v1500 = vmul.f32 %v1432, %v1447
  %v1501 = vmul.f32 %v1433, %v1447
  %v1502 = vmul.f32 %v1434, %v1447
  %v1503 = vmul.f32 %v1435, %v1447
  %v1504 = vmul.f32 %v1436, %v1447
  %v1505 = vmul.f32 %v1437, %v1447
  %v1506 = vmul.f32 %v1438, %v1447
  %v1507 = vmul.f32 %v1439, %v1447
  %v1508 = vmul.f32 %v1440, %v1447
  %v1509 = vmul.f32 %v1441, %v1447
  %v1510 = vmul.f32 %v1442, %v1447
  %v1511 = vmul.f32 %v1443, %v1447
  %v1512 = vmul.f32 %v1444, %v1447
  %v1513 = vld [vmem:[%s4] sm:$0x1]
  %v1515 = vperm.slane %v1513, 0
  %v1517 = vadd.f32 %v1449, %v1515
  %v1518 = vadd.f32 %v1450, %v1515
  %v1519 = vadd.f32 %v1451, %v1515
  %v1520 = vadd.f32 %v1452, %v1515
  %v1521 = vadd.f32 %v1453, %v1515
  %v1522 = vadd.f32 %v1454, %v1515
  %v1523 = vadd.f32 %v1455, %v1515
  %v1524 = vadd.f32 %v1456, %v1515
  %v1525 = vadd.f32 %v1457, %v1515
  %v1526 = vadd.f32 %v1458, %v1515
  %v1527 = vadd.f32 %v1459, %v1515
  %v1528 = vadd.f32 %v1460, %v1515
  %v1529 = vadd.f32 %v1461, %v1515
  %v1530 = vadd.f32 %v1462, %v1515
  %v1531 = vadd.f32 %v1463, %v1515
  %v1532 = vadd.f32 %v1464, %v1515
  %v1533 = vadd.f32 %v1465, %v1515
  %v1534 = vadd.f32 %v1466, %v1515
  %v1535 = vadd.f32 %v1467, %v1515
  %v1536 = vadd.f32 %v1468, %v1515
  %v1537 = vadd.f32 %v1469, %v1515
  %v1538 = vadd.f32 %v1470, %v1515
  %v1539 = vadd.f32 %v1471, %v1515
  %v1540 = vadd.f32 %v1472, %v1515
  %v1541 = vadd.f32 %v1473, %v1515
  %v1542 = vadd.f32 %v1474, %v1515
  %v1543 = vadd.f32 %v1475, %v1515
  %v1544 = vadd.f32 %v1476, %v1515
  %v1545 = vadd.f32 %v1477, %v1515
  %v1546 = vadd.f32 %v1478, %v1515
  %v1547 = vadd.f32 %v1479, %v1515
  %v1548 = vadd.f32 %v1480, %v1515
  %v1549 = vadd.f32 %v1481, %v1515
  %v1550 = vadd.f32 %v1482, %v1515
  %v1551 = vadd.f32 %v1483, %v1515
  %v1552 = vadd.f32 %v1484, %v1515
  %v1553 = vadd.f32 %v1485, %v1515
  %v1554 = vadd.f32 %v1486, %v1515
  %v1555 = vadd.f32 %v1487, %v1515
  %v1556 = vadd.f32 %v1488, %v1515
  %v1557 = vadd.f32 %v1489, %v1515
  %v1558 = vadd.f32 %v1490, %v1515
  %v1559 = vadd.f32 %v1491, %v1515
  %v1560 = vadd.f32 %v1492, %v1515
  %v1561 = vadd.f32 %v1493, %v1515
  %v1562 = vadd.f32 %v1494, %v1515
  %v1563 = vadd.f32 %v1495, %v1515
  %v1564 = vadd.f32 %v1496, %v1515
  %v1565 = vadd.f32 %v1497, %v1515
  %v1566 = vadd.f32 %v1498, %v1515
  %v1567 = vadd.f32 %v1499, %v1515
  %v1568 = vadd.f32 %v1500, %v1515
  %v1569 = vadd.f32 %v1501, %v1515
  %v1570 = vadd.f32 %v1502, %v1515
  %v1571 = vadd.f32 %v1503, %v1515
  %v1572 = vadd.f32 %v1504, %v1515
  %v1573 = vadd.f32 %v1505, %v1515
  %v1574 = vadd.f32 %v1506, %v1515
  %v1575 = vadd.f32 %v1507, %v1515
  %v1576 = vadd.f32 %v1508, %v1515
  %v1577 = vadd.f32 %v1509, %v1515
  %v1578 = vadd.f32 %v1510, %v1515
  %v1579 = vadd.f32 %v1511, %v1515
  %v1580 = vadd.f32 %v1512, %v1515
  %v1581 = vmax.f32 %v1517, %v1533
  %v1582 = vmax.f32 %v1518, %v1534
  %v1583 = vmax.f32 %v1519, %v1535
  %v1584 = vmax.f32 %v1520, %v1536
  %v1585 = vmax.f32 %v1521, %v1537
  %v1586 = vmax.f32 %v1522, %v1538
  %v1587 = vmax.f32 %v1523, %v1539
  %v1588 = vmax.f32 %v1524, %v1540
  %v1589 = vmax.f32 %v1525, %v1541
  %v1590 = vmax.f32 %v1526, %v1542
  %v1591 = vmax.f32 %v1527, %v1543
  %v1592 = vmax.f32 %v1528, %v1544
  %v1593 = vmax.f32 %v1529, %v1545
  %v1594 = vmax.f32 %v1530, %v1546
  %v1595 = vmax.f32 %v1531, %v1547
  %v1596 = vmax.f32 %v1532, %v1548
  %v1597 = vmax.f32 %v1549, %v1565
  %v1598 = vmax.f32 %v1550, %v1566
  %v1599 = vmax.f32 %v1551, %v1567
  %v1600 = vmax.f32 %v1552, %v1568
  %v1601 = vmax.f32 %v1553, %v1569
  %v1602 = vmax.f32 %v1554, %v1570
  %v1603 = vmax.f32 %v1555, %v1571
  %v1604 = vmax.f32 %v1556, %v1572
  %v1605 = vmax.f32 %v1557, %v1573
  %v1606 = vmax.f32 %v1558, %v1574
  %v1607 = vmax.f32 %v1559, %v1575
  %v1608 = vmax.f32 %v1560, %v1576
  %v1609 = vmax.f32 %v1561, %v1577
  %v1610 = vmax.f32 %v1562, %v1578
  %v1611 = vmax.f32 %v1563, %v1579
  %v1612 = vmax.f32 %v1564, %v1580
  %v1613 = vmax.f32 %v1581, %v1597
  %v1614 = vmax.f32 %v1582, %v1598
  %v1615 = vmax.f32 %v1583, %v1599
  %v1616 = vmax.f32 %v1584, %v1600
  %v1617 = vmax.f32 %v1585, %v1601
  %v1618 = vmax.f32 %v1586, %v1602
  %v1619 = vmax.f32 %v1587, %v1603
  %v1620 = vmax.f32 %v1588, %v1604
  %v1621 = vmax.f32 %v1589, %v1605
  %v1622 = vmax.f32 %v1590, %v1606
  %v1623 = vmax.f32 %v1591, %v1607
  %v1624 = vmax.f32 %v1592, %v1608
  %v1625 = vmax.f32 %v1593, %v1609
  %v1626 = vmax.f32 %v1594, %v1610
  %v1627 = vmax.f32 %v1595, %v1611
  %v1628 = vmax.f32 %v1596, %v1612
  %v1629 = vpack.c.bf16 %v1613, %v1613
  %v1630 = vpack.c.bf16 %v1614, %v1614
  %v1631 = vpack.c.bf16 %v1615, %v1615
  %v1632 = vpack.c.bf16 %v1616, %v1616
  %v1633 = vpack.c.bf16 %v1617, %v1617
  %v1634 = vpack.c.bf16 %v1618, %v1618
  %v1635 = vpack.c.bf16 %v1619, %v1619
  %v1636 = vpack.c.bf16 %v1620, %v1620
  %v1637 = vpack.c.bf16 %v1621, %v1621
  %v1638 = vpack.c.bf16 %v1622, %v1622
  %v1639 = vpack.c.bf16 %v1623, %v1623
  %v1640 = vpack.c.bf16 %v1624, %v1624
  %v1641 = vpack.c.bf16 %v1625, %v1625
  %v1642 = vpack.c.bf16 %v1626, %v1626
  %v1643 = vpack.c.bf16 %v1627, %v1627
  %v1644 = vpack.c.bf16 %v1628, %v1628
  %vm1645 = vcmask 519168
  %1646 = vst.msk [vmem:[%s5] sm:$0xf] %vm1645, %v1629
  %1647 = vst.msk [vmem:[%s5 + $0x4] sm:$0xf] %vm1645, %v1630
  %1648 = vst.msk [vmem:[%s5 + $0x8] sm:$0xf] %vm1645, %v1631
  %1649 = vst.msk [vmem:[%s5 + $0xc] sm:$0xf] %vm1645, %v1632
  %1650 = vst.msk [vmem:[%s5 + $0x10] sm:$0xf] %vm1645, %v1633
  %1651 = vst.msk [vmem:[%s5 + $0x14] sm:$0xf] %vm1645, %v1634
  %1652 = vst.msk [vmem:[%s5 + $0x18] sm:$0xf] %vm1645, %v1635
  %1653 = vst.msk [vmem:[%s5 + $0x1c] sm:$0xf] %vm1645, %v1636
  %1654 = vst.msk [vmem:[%s5 + $0x20] sm:$0xf] %vm1645, %v1637
  %1655 = vst.msk [vmem:[%s5 + $0x24] sm:$0xf] %vm1645, %v1638
  %1656 = vst.msk [vmem:[%s5 + $0x28] sm:$0xf] %vm1645, %v1639
  %1657 = vst.msk [vmem:[%s5 + $0x2c] sm:$0xf] %vm1645, %v1640
  %1658 = vst.msk [vmem:[%s5 + $0x30] sm:$0xf] %vm1645, %v1641
  %1659 = vst.msk [vmem:[%s5 + $0x34] sm:$0xf] %vm1645, %v1642
  %1660 = vst.msk [vmem:[%s5 + $0x38] sm:$0xf] %vm1645, %v1643
  %1661 = vst.msk [vmem:[%s5 + $0x3c] sm:$0xf] %vm1645, %v1644
  // Predicated region
  $region22: #{encoder_cifar_forward.4} parent=0 // pred_check
    _
  $region23: #{encoder_cifar_forward.4} parent=0 // pred_check_branch
    %1663 = sbr.rel (0) target = $region25
  $region24: #{encoder_cifar_forward.4} parent=0 // pred_region
    _
  $region25: #{encoder_cifar_forward.4} parent=0 // pred_fallthru
    _
  // Predicated region
  $region26: #{encoder_cifar_forward.4} parent=0 // pred_check
    _
  $region27: #{encoder_cifar_forward.4} parent=0 // pred_check_branch
    %1665 = sbr.rel (0) target = $region29
  $region28: #{encoder_cifar_forward.4} parent=0 // pred_region
    _
  $region29: #{encoder_cifar_forward.4} parent=0 // pred_fallthru
    _

// kernel: encoder_cifar_forward.5
$region0: #{encoder_cifar_forward.5}
  #allocation0 [shape = 'u32[]', space=smem, size = 0x4, offset = 0x4, fixed_abs, tag = 'smem constant byte address 0x4 - core index']
  #allocation1 [shape = 'u32[72,128]{1,0:T(1,128)}', space=vmem, size = 0x9000, scoped, tag = 'internal scratch']
  %s0 = inlined_call_operand.vmem [shape: bf16[4,32,576], index: 0, kind: input, shape index: {}]
  %s1 = inlined_call_operand.vmem [shape: bf16[576,128], index: 1, kind: input, shape index: {}]
  %s2 = inlined_call_operand.vmem [shape: f32[1,128], index: 2, kind: input, shape index: {}]
  %s3 = inlined_call_operand.vmem [shape: f32[1,128], index: 3, kind: input, shape index: {}]
  %s4 = inlined_call_operand.vmem [shape: f32[1,128], index: 4, kind: input, shape index: {}]
  %s5 = inlined_call_operand.vmem [shape: bf16[16,128,512], index: 5, kind: input, shape index: {}]
  %s6 = inlined_call_operand.vmem [shape: f32[1,512], index: 6, kind: input, shape index: {}]
  %s7 = inlined_call_operand.vmem [shape: bf16[512,64], index: 7, kind: input, shape index: {}]
  %s8 = inlined_call_operand.vmem [shape: f32[1,64], index: 8, kind: input, shape index: {}]
  %s9 = inlined_call_operand.hbm [shape: f32[2,64], index: 9, kind: output, shape index: {}]
  %s10 = sld [smem:[#allocation0]]
  $region46: #{encoder_cifar_forward.5} parent=0
    _
  %s12 = ssub.s32 1, %s10
  %s13 = scalar_select 0, %s12, %s10
  $region1: #{encoder_cifar_forward.5} parent=0
    #allocation2 [shape = 'u8[1024]{0}', space=vmem, size = 0x400, scoped, tag = 'output window, operand 0, single buffered']
    #allocation3 [shape = 's32[1]{0}', space=sflag, size = 0x4, scoped, tag = 'scoped memory for encoder_cifar_forward.5']
    %14 = vsyncpa [#allocation3], 0
    // Predicated region
    $region2: #{encoder_cifar_forward.5} parent=1 // pred_check
      _
    $region3: #{encoder_cifar_forward.5} parent=1 // pred_check_branch
      %16 = sbr.rel (0) target = $region5
    $region4: #{encoder_cifar_forward.5} parent=1 // pred_region
      _
    $region5: #{encoder_cifar_forward.5} parent=1 // pred_fallthru
      _
    // Predicated region
    $region6: #{encoder_cifar_forward.5} parent=1 // pred_check
      _
    $region7: #{encoder_cifar_forward.5} parent=1 // pred_check_branch
      %18 = sbr.rel (0) target = $region9
    $region8: #{encoder_cifar_forward.5} parent=1 // pred_region
      _
    $region9: #{encoder_cifar_forward.5} parent=1 // pred_fallthru
      _
    // Predicated region
    $region10: #{encoder_cifar_forward.5} parent=1 // pred_check
      _
    $region11: #{encoder_cifar_forward.5} parent=1 // pred_check_branch
      %20 = sbr.rel (0) target = $region13
    $region12: #{encoder_cifar_forward.5} parent=1 // pred_region
      _
    $region13: #{encoder_cifar_forward.5} parent=1 // pred_fallthru
      _
    // Predicated region
    $region14: #{encoder_cifar_forward.5} parent=1 // pred_check
      _
    $region15: #{encoder_cifar_forward.5} parent=1 // pred_check_branch
      %22 = sbr.rel (0) target = $region17
    $region16: #{encoder_cifar_forward.5} parent=1 // pred_region
      _
    $region17: #{encoder_cifar_forward.5} parent=1 // pred_fallthru
      _
    // Predicated region
    $region18: #{encoder_cifar_forward.5} parent=1 // pred_check
      _
    $region19: #{encoder_cifar_forward.5} parent=1 // pred_check_branch
      %24 = sbr.rel (0) target = $region21
    $region20: #{encoder_cifar_forward.5} parent=1 // pred_region
      _
    $region21: #{encoder_cifar_forward.5} parent=1 // pred_fallthru
      _
    // Predicated region
    $region22: #{encoder_cifar_forward.5} parent=1 // pred_check
      _
    $region23: #{encoder_cifar_forward.5} parent=1 // pred_check_branch
      %26 = sbr.rel (0) target = $region25
    $region24: #{encoder_cifar_forward.5} parent=1 // pred_region
      _
    $region25: #{encoder_cifar_forward.5} parent=1 // pred_fallthru
      _
    // Predicated region
    $region26: #{encoder_cifar_forward.5} parent=1 // pred_check
      _
    $region27: #{encoder_cifar_forward.5} parent=1 // pred_check_branch
      %28 = sbr.rel (0) target = $region29
    $region28: #{encoder_cifar_forward.5} parent=1 // pred_region
      _
    $region29: #{encoder_cifar_forward.5} parent=1 // pred_fallthru
      _
    // Predicated region
    $region30: #{encoder_cifar_forward.5} parent=1 // pred_check
      _
    $region31: #{encoder_cifar_forward.5} parent=1 // pred_check_branch
      %30 = sbr.rel (0) target = $region33
    $region32: #{encoder_cifar_forward.5} parent=1 // pred_region
      _
    $region33: #{encoder_cifar_forward.5} parent=1 // pred_fallthru
      _
    // Predicated region
    $region34: #{encoder_cifar_forward.5} parent=1 // pred_check
      _
    $region35: #{encoder_cifar_forward.5} parent=1 // pred_check_branch
      %32 = sbr.rel (0) target = $region37
    $region36: #{encoder_cifar_forward.5} parent=1 // pred_region
      _
    $region37: #{encoder_cifar_forward.5} parent=1 // pred_fallthru
      _
    %v34 = vld [vmem:[%s0] sm:$0xff]
    %v35 = vld [vmem:[%s0 + $0x8] sm:$0xff]
    %v36 = vld [vmem:[%s0 + $0x10] sm:$0xf]
    %v37 = vld [vmem:[%s0 + $0x14] sm:$0xff]
    %v38 = vld [vmem:[%s0 + $0x1c] sm:$0xff]
    %v39 = vld [vmem:[%s0 + $0x24] sm:$0xf]
    %v40 = vld [vmem:[%s0 + $0x28] sm:$0xff]
    %v41 = vld [vmem:[%s0 + $0x30] sm:$0xff]
    %v42 = vld [vmem:[%s0 + $0x38] sm:$0xf]
    %v43 = vld [vmem:[%s0 + $0x3c] sm:$0xff]
    %v44 = vld [vmem:[%s0 + $0x44] sm:$0xff]
    %v45 = vld [vmem:[%s0 + $0x4c] sm:$0xf]
    %v46 = vld [vmem:[%s0 + $0x50] sm:$0xff]
    %v47 = vld [vmem:[%s0 + $0x58] sm:$0xff]
    %v48 = vld [vmem:[%s0 + $0x60] sm:$0xf]
    %v49 = vld [vmem:[%s0 + $0x64] sm:$0xff]
    %v50 = vld [vmem:[%s0 + $0x6c] sm:$0xff]
    %v51 = vld [vmem:[%s0 + $0x74] sm:$0xf]
    %v52 = vld [vmem:[%s0 + $0x78] sm:$0xff]
    %v53 = vld [vmem:[%s0 + $0x80] sm:$0xff]
    %v54 = vld [vmem:[%s0 + $0x88] sm:$0xf]
    %v55 = vld [vmem:[%s0 + $0x8c] sm:$0xff]
    %v56 = vld [vmem:[%s0 + $0x94] sm:$0xff]
    %v57 = vld [vmem:[%s0 + $0x9c] sm:$0xf]
    %v58 = vld [vmem:[%s0 + $0xa0] sm:$0xff]
    %v59 = vld [vmem:[%s0 + $0xa8] sm:$0xff]
    %v60 = vld [vmem:[%s0 + $0xb0] sm:$0xf]
    %v61 = vld [vmem:[%s0 + $0xb4] sm:$0xff]
    %v62 = vld [vmem:[%s0 + $0xbc] sm:$0xff]
    %v63 = vld [vmem:[%s0 + $0xc4] sm:$0xf]
    %v64 = vld [vmem:[%s0 + $0xc8] sm:$0xff]
    %v65 = vld [vmem:[%s0 + $0xd0] sm:$0xff]
    %v66 = vld [vmem:[%s0 + $0xd8] sm:$0xf]
    %v67 = vld [vmem:[%s0 + $0xdc] sm:$0xff]
    %v68 = vld [vmem:[%s0 + $0xe4] sm:$0xff]
    %v69 = vld [vmem:[%s0 + $0xec] sm:$0xf]
    %v70 = vld [vmem:[%s0 + $0xf0] sm:$0xff]
    %v71 = vld [vmem:[%s0 + $0xf8] sm:$0xff]
    %v72 = vld [vmem:[%s0 + $0x100] sm:$0xf]
    %v73 = vld [vmem:[%s0 + $0x104] sm:$0xff]
    %v74 = vld [vmem:[%s0 + $0x10c] sm:$0xff]
    %v75 = vld [vmem:[%s0 + $0x114] sm:$0xf]
    %v76 = vld [vmem:[%s0 + $0x118] sm:$0xff]
    %v77 = vld [vmem:[%s0 + $0x120] sm:$0xff]
    %v78 = vld [vmem:[%s0 + $0x128] sm:$0xf]
    %v79 = vld [vmem:[%s0 + $0x12c] sm:$0xff]
    %v80 = vld [vmem:[%s0 + $0x134] sm:$0xff]
    %v81 = vld [vmem:[%s0 + $0x13c] sm:$0xf]
    %v82 = vld [vmem:[%s1] sm:$0xf]
    %v83 = vld [vmem:[%s1 + $0x4] sm:$0xf]
    %v84 = vld [vmem:[%s1 + $0x8] sm:$0xf]
    %v85 = vld [vmem:[%s1 + $0xc] sm:$0xf]
    %v86 = vld [vmem:[%s1 + $0x10] sm:$0xf]
    %v87 = vld [vmem:[%s1 + $0x14] sm:$0xf]
    %v88 = vld [vmem:[%s1 + $0x18] sm:$0xf]
    %v89 = vld [vmem:[%s1 + $0x1c] sm:$0xf]
    %v90 = vld [vmem:[%s1 + $0x20] sm:$0xf]
    %v91 = vld [vmem:[%s1 + $0x24] sm:$0xf]
    %v92 = vld [vmem:[%s1 + $0x28] sm:$0xf]
    %v93 = vld [vmem:[%s1 + $0x2c] sm:$0xf]
    %v94 = vld [vmem:[%s1 + $0x30] sm:$0xf]
    %v95 = vld [vmem:[%s1 + $0x34] sm:$0xf]
    %v96 = vld [vmem:[%s1 + $0x38] sm:$0xf]
    %v97 = vld [vmem:[%s1 + $0x3c] sm:$0xf]
    %v98 = vld [vmem:[%s1 + $0x40] sm:$0xf]
    %v99 = vld [vmem:[%s1 + $0x44] sm:$0xf]
    %v100 = vld [vmem:[%s1 + $0x48] sm:$0xf]
    %v101 = vld [vmem:[%s1 + $0x4c] sm:$0xf]
    %v102 = vld [vmem:[%s1 + $0x50] sm:$0xf]
    %v103 = vld [vmem:[%s1 + $0x54] sm:$0xf]
    %v104 = vld [vmem:[%s1 + $0x58] sm:$0xf]
    %v105 = vld [vmem:[%s1 + $0x5c] sm:$0xf]
    %v106 = vld [vmem:[%s1 + $0x60] sm:$0xf]
    %v107 = vld [vmem:[%s1 + $0x64] sm:$0xf]
    %v108 = vld [vmem:[%s1 + $0x68] sm:$0xf]
    %v109 = vld [vmem:[%s1 + $0x6c] sm:$0xf]
    %v110 = vld [vmem:[%s1 + $0x70] sm:$0xf]
    %v111 = vld [vmem:[%s1 + $0x74] sm:$0xf]
    %v112 = vld [vmem:[%s1 + $0x78] sm:$0xf]
    %v113 = vld [vmem:[%s1 + $0x7c] sm:$0xf]
    %v114 = vld [vmem:[%s1 + $0x80] sm:$0xf]
    %v115 = vld [vmem:[%s1 + $0x84] sm:$0xf]
    %v116 = vld [vmem:[%s1 + $0x88] sm:$0xf]
    %v117 = vld [vmem:[%s1 + $0x8c] sm:$0xf]
    %v118 = vld [vmem:[%s1 + $0x90] sm:$0xf]
    %v119 = vld [vmem:[%s1 + $0x94] sm:$0xf]
    %v120 = vld [vmem:[%s1 + $0x98] sm:$0xf]
    %v121 = vld [vmem:[%s1 + $0x9c] sm:$0xf]
    %v122 = vld [vmem:[%s1 + $0xa0] sm:$0xf]
    %v123 = vld [vmem:[%s1 + $0xa4] sm:$0xf]
    %v124 = vld [vmem:[%s1 + $0xa8] sm:$0xf]
    %v125 = vld [vmem:[%s1 + $0xac] sm:$0xf]
    %v126 = vld [vmem:[%s1 + $0xb0] sm:$0xf]
    %v127 = vld [vmem:[%s1 + $0xb4] sm:$0xf]
    %v128 = vld [vmem:[%s1 + $0xb8] sm:$0xf]
    %v129 = vld [vmem:[%s1 + $0xbc] sm:$0xf]
    %v130 = vld [vmem:[%s1 + $0xc0] sm:$0xf]
    %v131 = vld [vmem:[%s1 + $0xc4] sm:$0xf]
    %v132 = vld [vmem:[%s1 + $0xc8] sm:$0xf]
    %v133 = vld [vmem:[%s1 + $0xcc] sm:$0xf]
    %v134 = vld [vmem:[%s1 + $0xd0] sm:$0xf]
    %v135 = vld [vmem:[%s1 + $0xd4] sm:$0xf]
    %v136 = vld [vmem:[%s1 + $0xd8] sm:$0xf]
    %v137 = vld [vmem:[%s1 + $0xdc] sm:$0xf]
    %v138 = vld [vmem:[%s1 + $0xe0] sm:$0xf]
    %v139 = vld [vmem:[%s1 + $0xe4] sm:$0xf]
    %v140 = vld [vmem:[%s1 + $0xe8] sm:$0xf]
    %v141 = vld [vmem:[%s1 + $0xec] sm:$0xf]
    %v142 = vld [vmem:[%s1 + $0xf0] sm:$0xf]
    %v143 = vld [vmem:[%s1 + $0xf4] sm:$0xf]
    %v144 = vld [vmem:[%s1 + $0xf8] sm:$0xf]
    %v145 = vld [vmem:[%s1 + $0xfc] sm:$0xf]
    %v146 = vld [vmem:[%s1 + $0x100] sm:$0xf]
    %v147 = vld [vmem:[%s1 + $0x104] sm:$0xf]
    %v148 = vld [vmem:[%s1 + $0x108] sm:$0xf]
    %v149 = vld [vmem:[%s1 + $0x10c] sm:$0xf]
    %v150 = vld [vmem:[%s1 + $0x110] sm:$0xf]
    %v151 = vld [vmem:[%s1 + $0x114] sm:$0xf]
    %v152 = vld [vmem:[%s1 + $0x118] sm:$0xf]
    %v153 = vld [vmem:[%s1 + $0x11c] sm:$0xf]
    %v154 = vld [vmem:[%s2] sm:$0x1]
    %v156 = vperm.slane %v154, 0
    %v206 = vunpack.c.l.b16 %v34
    %v207 = vunpack.c.h.b16 %v34
    %v208 = vunpack.c.l.b16 %v35
    %v209 = vunpack.c.h.b16 %v35
    %v210 = vunpack.c.l.b16 %v36
    %v211 = vunpack.c.l.b16 %v37
    %v212 = vunpack.c.h.b16 %v37
    %v213 = vunpack.c.l.b16 %v38
    %v214 = vunpack.c.h.b16 %v38
    %v215 = vunpack.c.l.b16 %v39
    %v216 = vunpack.c.l.b16 %v40
    %v217 = vunpack.c.h.b16 %v40
    %v218 = vunpack.c.l.b16 %v41
    %v219 = vunpack.c.h.b16 %v41
    %v220 = vunpack.c.l.b16 %v42
    %v221 = vunpack.c.l.b16 %v43
    %v222 = vunpack.c.h.b16 %v43
    %v223 = vunpack.c.l.b16 %v44
    %v224 = vunpack.c.h.b16 %v44
    %v225 = vunpack.c.l.b16 %v45
    %v226 = vunpack.c.l.b16 %v46
    %v227 = vunpack.c.h.b16 %v46
    %v228 = vunpack.c.l.b16 %v47
    %v229 = vunpack.c.h.b16 %v47
    %v230 = vunpack.c.l.b16 %v48
    %v231 = vunpack.c.l.b16 %v49
    %v232 = vunpack.c.h.b16 %v49
    %v233 = vunpack.c.l.b16 %v50
    %v234 = vunpack.c.h.b16 %v50
    %v235 = vunpack.c.l.b16 %v51
    %v236 = vunpack.c.l.b16 %v52
    %v237 = vunpack.c.h.b16 %v52
    %v238 = vunpack.c.l.b16 %v53
    %v239 = vunpack.c.h.b16 %v53
    %v240 = vunpack.c.l.b16 %v54
    %v241 = vunpack.c.l.b16 %v55
    %v242 = vunpack.c.h.b16 %v55
    %v243 = vunpack.c.l.b16 %v56
    %v244 = vunpack.c.h.b16 %v56
    %v245 = vunpack.c.l.b16 %v57
    %v246 = vunpack.c.l.b16 %v58
    %v247 = vunpack.c.h.b16 %v58
    %v248 = vunpack.c.l.b16 %v59
    %v249 = vunpack.c.h.b16 %v59
    %v250 = vunpack.c.l.b16 %v60
    %v251 = vunpack.c.l.b16 %v61
    %v252 = vunpack.c.h.b16 %v61
    %v253 = vunpack.c.l.b16 %v62
    %v254 = vunpack.c.h.b16 %v62
    %v255 = vunpack.c.l.b16 %v63
    %v256 = vunpack.c.l.b16 %v64
    %v257 = vunpack.c.h.b16 %v64
    %v258 = vunpack.c.l.b16 %v65
    %v259 = vunpack.c.h.b16 %v65
    %v260 = vunpack.c.l.b16 %v66
    %v261 = vunpack.c.l.b16 %v67
    %v262 = vunpack.c.h.b16 %v67
    %v263 = vunpack.c.l.b16 %v68
    %v264 = vunpack.c.h.b16 %v68
    %v265 = vunpack.c.l.b16 %v69
    %v266 = vunpack.c.l.b16 %v70
    %v267 = vunpack.c.h.b16 %v70
    %v268 = vunpack.c.l.b16 %v71
    %v269 = vunpack.c.h.b16 %v71
    %v270 = vunpack.c.l.b16 %v72
    %v271 = vunpack.c.l.b16 %v73
    %v272 = vunpack.c.h.b16 %v73
    %v273 = vunpack.c.l.b16 %v74
    %v274 = vunpack.c.h.b16 %v74
    %v275 = vunpack.c.l.b16 %v75
    %v276 = vunpack.c.l.b16 %v76
    %v277 = vunpack.c.h.b16 %v76
    %v278 = vunpack.c.l.b16 %v77
    %v279 = vunpack.c.h.b16 %v77
    %v280 = vunpack.c.l.b16 %v78
    %v281 = vunpack.c.l.b16 %v79
    %v282 = vunpack.c.h.b16 %v79
    %v283 = vunpack.c.l.b16 %v80
    %v284 = vunpack.c.h.b16 %v80
    %v285 = vunpack.c.l.b16 %v81
    %v286 = vpack.c.b16 %v211, %v206
    %v287 = vpack.c.b16 %v212, %v207
    %v288 = vpack.c.b16 %v213, %v208
    %v289 = vpack.c.b16 %v214, %v209
    %v290 = vpack.c.b16 %v215, %v210
    %v291 = vpack.c.b16 %v221, %v216
    %v292 = vpack.c.b16 %v222, %v217
    %v293 = vpack.c.b16 %v223, %v218
    %v294 = vpack.c.b16 %v224, %v219
    %v295 = vpack.c.b16 %v225, %v220
    %v296 = vpack.c.b16 %v231, %v226
    %v297 = vpack.c.b16 %v232, %v227
    %v298 = vpack.c.b16 %v233, %v228
    %v299 = vpack.c.b16 %v234, %v229
    %v300 = vpack.c.b16 %v235, %v230
    %v301 = vpack.c.b16 %v241, %v236
    %v302 = vpack.c.b16 %v242, %v237
    %v303 = vpack.c.b16 %v243, %v238
    %v304 = vpack.c.b16 %v244, %v239
    %v305 = vpack.c.b16 %v245, %v240
    %v306 = vpack.c.b16 %v251, %v246
    %v307 = vpack.c.b16 %v252, %v247
    %v308 = vpack.c.b16 %v253, %v248
    %v309 = vpack.c.b16 %v254, %v249
    %v310 = vpack.c.b16 %v255, %v250
    %v311 = vpack.c.b16 %v261, %v256
    %v312 = vpack.c.b16 %v262, %v257
    %v313 = vpack.c.b16 %v263, %v258
    %v314 = vpack.c.b16 %v264, %v259
    %v315 = vpack.c.b16 %v265, %v260
    %v316 = vpack.c.b16 %v271, %v266
    %v317 = vpack.c.b16 %v272, %v267
    %v318 = vpack.c.b16 %v273, %v268
    %v319 = vpack.c.b16 %v274, %v269
    %v320 = vpack.c.b16 %v275, %v270
    %v321 = vpack.c.b16 %v281, %v276
    %v322 = vpack.c.b16 %v282, %v277
    %v323 = vpack.c.b16 %v283, %v278
    %v324 = vpack.c.b16 %v284, %v279
    %v325 = vpack.c.b16 %v285, %v280
    %v430 = vunpack.c.l.b16 %v82
    %v431 = vunpack.c.l.b16 %v83
    %v432 = vunpack.c.l.b16 %v84
    %v433 = vunpack.c.l.b16 %v85
    %v434 = vunpack.c.l.b16 %v86
    %v435 = vunpack.c.l.b16 %v87
    %v436 = vunpack.c.l.b16 %v88
    %v437 = vunpack.c.l.b16 %v89
    %v438 = vunpack.c.l.b16 %v90
    %v439 = vunpack.c.l.b16 %v91
    %v440 = vunpack.c.l.b16 %v92
    %v441 = vunpack.c.l.b16 %v93
    %v442 = vunpack.c.l.b16 %v94
    %v443 = vunpack.c.l.b16 %v95
    %v444 = vunpack.c.l.b16 %v96
    %v445 = vunpack.c.l.b16 %v97
    %v446 = vunpack.c.l.b16 %v98
    %v447 = vunpack.c.l.b16 %v99
    %v448 = vunpack.c.l.b16 %v100
    %v449 = vunpack.c.l.b16 %v101
    %v450 = vunpack.c.l.b16 %v102
    %v451 = vunpack.c.l.b16 %v103
    %v452 = vunpack.c.l.b16 %v104
    %v453 = vunpack.c.l.b16 %v105
    %v454 = vunpack.c.l.b16 %v106
    %v455 = vunpack.c.l.b16 %v107
    %v456 = vunpack.c.l.b16 %v108
    %v457 = vunpack.c.l.b16 %v109
    %v458 = vunpack.c.l.b16 %v110
    %v459 = vunpack.c.l.b16 %v111
    %v460 = vunpack.c.l.b16 %v112
    %v461 = vunpack.c.l.b16 %v113
    %v462 = vunpack.c.l.b16 %v114
    %v463 = vunpack.c.l.b16 %v115
    %v464 = vunpack.c.l.b16 %v116
    %v465 = vunpack.c.l.b16 %v117
    %v466 = vunpack.c.l.b16 %v118
    %v467 = vunpack.c.l.b16 %v119
    %v468 = vunpack.c.l.b16 %v120
    %v469 = vunpack.c.l.b16 %v121
    %v470 = vunpack.c.l.b16 %v122
    %v471 = vunpack.c.l.b16 %v123
    %v472 = vunpack.c.l.b16 %v124
    %v473 = vunpack.c.l.b16 %v125
    %v474 = vunpack.c.l.b16 %v126
    %v475 = vunpack.c.l.b16 %v127
    %v476 = vunpack.c.l.b16 %v128
    %v477 = vunpack.c.l.b16 %v129
    %v478 = vunpack.c.l.b16 %v130
    %v479 = vunpack.c.l.b16 %v131
    %v480 = vunpack.c.l.b16 %v132
    %v481 = vunpack.c.l.b16 %v133
    %v482 = vunpack.c.l.b16 %v134
    %v483 = vunpack.c.l.b16 %v135
    %v484 = vunpack.c.l.b16 %v136
    %v485 = vunpack.c.l.b16 %v137
    %v486 = vunpack.c.l.b16 %v138
    %v487 = vunpack.c.l.b16 %v139
    %v488 = vunpack.c.l.b16 %v140
    %v489 = vunpack.c.l.b16 %v141
    %v490 = vunpack.c.l.b16 %v142
    %v491 = vunpack.c.l.b16 %v143
    %v492 = vunpack.c.l.b16 %v144
    %v493 = vunpack.c.l.b16 %v145
    %v494 = vunpack.c.l.b16 %v146
    %v495 = vunpack.c.l.b16 %v147
    %v496 = vunpack.c.l.b16 %v148
    %v497 = vunpack.c.l.b16 %v149
    %v498 = vunpack.c.l.b16 %v150
    %v499 = vunpack.c.l.b16 %v151
    %v500 = vunpack.c.l.b16 %v152
    %v501 = vunpack.c.l.b16 %v153
    %v502 = vpack.c.b16 %v431, %v430
    %v503 = vpack.c.b16 %v433, %v432
    %v504 = vpack.c.b16 %v435, %v434
    %v505 = vpack.c.b16 %v437, %v436
    %v506 = vpack.c.b16 %v439, %v438
    %v507 = vpack.c.b16 %v441, %v440
    %v508 = vpack.c.b16 %v443, %v442
    %v509 = vpack.c.b16 %v445, %v444
    %v510 = vpack.c.b16 %v447, %v446
    %v511 = vpack.c.b16 %v449, %v448
    %v512 = vpack.c.b16 %v451, %v450
    %v513 = vpack.c.b16 %v453, %v452
    %v514 = vpack.c.b16 %v455, %v454
    %v515 = vpack.c.b16 %v457, %v456
    %v516 = vpack.c.b16 %v459, %v458
    %v517 = vpack.c.b16 %v461, %v460
    %v518 = vpack.c.b16 %v463, %v462
    %v519 = vpack.c.b16 %v465, %v464
    %v520 = vpack.c.b16 %v467, %v466
    %v521 = vpack.c.b16 %v469, %v468
    %v522 = vpack.c.b16 %v471, %v470
    %v523 = vpack.c.b16 %v473, %v472
    %v524 = vpack.c.b16 %v475, %v474
    %v525 = vpack.c.b16 %v477, %v476
    %v526 = vpack.c.b16 %v479, %v478
    %v527 = vpack.c.b16 %v481, %v480
    %v528 = vpack.c.b16 %v483, %v482
    %v529 = vpack.c.b16 %v485, %v484
    %v530 = vpack.c.b16 %v487, %v486
    %v531 = vpack.c.b16 %v489, %v488
    %v532 = vpack.c.b16 %v491, %v490
    %v533 = vpack.c.b16 %v493, %v492
    %v534 = vpack.c.b16 %v495, %v494
    %v535 = vpack.c.b16 %v497, %v496
    %v536 = vpack.c.b16 %v499, %v498
    %v537 = vpack.c.b16 %v501, %v500
    %vm574 = vcmask 523264
    %v576 = vsel %vm574, %v290, 0
    %v579 = vsel %vm574, %v295, 0
    %v582 = vsel %vm574, %v300, 0
    %v585 = vsel %vm574, %v305, 0
    %v588 = vsel %vm574, %v310, 0
    %v591 = vsel %vm574, %v315, 0
    %v594 = vsel %vm574, %v320, 0
    %v597 = vsel %vm574, %v325, 0
    %599 = vmatpush.bf16.msra.mxu0 %v509
    %600 = vmatpush.bf16.msra.mxu0 %v508
    %601 = vmatpush.bf16.msra.mxu0 %v507
    %602 = vmatpush.bf16.msra.mxu0 %v506
    %603 = vmatpush.bf16.msra.mxu0 %v505
    %604 = vmatpush.bf16.msra.mxu0 %v504
    %605 = vmatpush.bf16.msra.mxu0 %v503
    %606 = vmatpush.bf16.msra.mxu0 %v502
    %607 = vmatmul.bf16.gmra.mxu0 %v286
    %v608 = vpop.f32.mrf.mxu0
    %v609 = vadd.f32 %v156, %v608
    %v610 = vpop.f32.mrf.mxu0
    %v611 = vadd.f32 %v156, %v610
    %612 = vmatmul.bf16.gmra.mxu0 %v291
    %v613 = vpop.f32.mrf.mxu0
    %v614 = vadd.f32 %v156, %v613
    %v615 = vpop.f32.mrf.mxu0
    %v616 = vadd.f32 %v156, %v615
    %617 = vmatmul.bf16.gmra.mxu0 %v296
    %v618 = vpop.f32.mrf.mxu0
    %v619 = vadd.f32 %v156, %v618
    %v620 = vpop.f32.mrf.mxu0
    %v621 = vadd.f32 %v156, %v620
    %622 = vmatmul.bf16.gmra.mxu0 %v301
    %v623 = vpop.f32.mrf.mxu0
    %v624 = vadd.f32 %v156, %v623
    %v625 = vpop.f32.mrf.mxu0
    %v626 = vadd.f32 %v156, %v625
    %627 = vmatmul.bf16.gmra.mxu0 %v306
    %v628 = vpop.f32.mrf.mxu0
    %v629 = vadd.f32 %v156, %v628
    %v630 = vpop.f32.mrf.mxu0
    %v631 = vadd.f32 %v156, %v630
    %632 = vmatmul.bf16.gmra.mxu0 %v311
    %v633 = vpop.f32.mrf.mxu0
    %v634 = vadd.f32 %v156, %v633
    %v635 = vpop.f32.mrf.mxu0
    %v636 = vadd.f32 %v156, %v635
    %637 = vmatmul.bf16.gmra.mxu0 %v316
    %v638 = vpop.f32.mrf.mxu0
    %v639 = vadd.f32 %v156, %v638
    %v640 = vpop.f32.mrf.mxu0
    %v641 = vadd.f32 %v156, %v640
    %642 = vmatmul.bf16.gmra.mxu0 %v321
    %v643 = vpop.f32.mrf.mxu0
    %v644 = vadd.f32 %v156, %v643
    %v645 = vpop.f32.mrf.mxu0
    %v646 = vadd.f32 %v156, %v645
    %647 = vdwg.mxu0
    %648 = vmatpush.bf16.msra.mxu0 %v517
    %649 = vmatpush.bf16.msra.mxu0 %v516
    %650 = vmatpush.bf16.msra.mxu0 %v515
    %651 = vmatpush.bf16.msra.mxu0 %v514
    %652 = vmatpush.bf16.msra.mxu0 %v513
    %653 = vmatpush.bf16.msra.mxu0 %v512
    %654 = vmatpush.bf16.msra.mxu0 %v511
    %655 = vmatpush.bf16.msra.mxu0 %v510
    %656 = vmatmul.bf16.gmra.mxu0 %v287
    %v657 = vpop.f32.mrf.mxu0
    %v658 = vadd.f32 %v609, %v657
    %v659 = vpop.f32.mrf.mxu0
    %v660 = vadd.f32 %v611, %v659
    %661 = vmatmul.bf16.gmra.mxu0 %v292
    %v662 = vpop.f32.mrf.mxu0
    %v663 = vadd.f32 %v614, %v662
    %v664 = vpop.f32.mrf.mxu0
    %v665 = vadd.f32 %v616, %v664
    %666 = vmatmul.bf16.gmra.mxu0 %v297
    %v667 = vpop.f32.mrf.mxu0
    %v668 = vadd.f32 %v619, %v667
    %v669 = vpop.f32.mrf.mxu0
    %v670 = vadd.f32 %v621, %v669
    %671 = vmatmul.bf16.gmra.mxu0 %v302
    %v672 = vpop.f32.mrf.mxu0
    %v673 = vadd.f32 %v624, %v672
    %v674 = vpop.f32.mrf.mxu0
    %v675 = vadd.f32 %v626, %v674
    %676 = vmatmul.bf16.gmra.mxu0 %v307
    %v677 = vpop.f32.mrf.mxu0
    %v678 = vadd.f32 %v629, %v677
    %v679 = vpop.f32.mrf.mxu0
    %v680 = vadd.f32 %v631, %v679
    %681 = vmatmul.bf16.gmra.mxu0 %v312
    %v682 = vpop.f32.mrf.mxu0
    %v683 = vadd.f32 %v634, %v682
    %v684 = vpop.f32.mrf.mxu0
    %v685 = vadd.f32 %v636, %v684
    %686 = vmatmul.bf16.gmra.mxu0 %v317
    %v687 = vpop.f32.mrf.mxu0
    %v688 = vadd.f32 %v639, %v687
    %v689 = vpop.f32.mrf.mxu0
    %v690 = vadd.f32 %v641, %v689
    %691 = vmatmul.bf16.gmra.mxu0 %v322
    %v692 = vpop.f32.mrf.mxu0
    %v693 = vadd.f32 %v644, %v692
    %v694 = vpop.f32.mrf.mxu0
    %v695 = vadd.f32 %v646, %v694
    %696 = vdwg.mxu0
    %697 = vmatpush.bf16.msra.mxu0 %v525
    %698 = vmatpush.bf16.msra.mxu0 %v524
    %699 = vmatpush.bf16.msra.mxu0 %v523
    %700 = vmatpush.bf16.msra.mxu0 %v522
    %701 = vmatpush.bf16.msra.mxu0 %v521
    %702 = vmatpush.bf16.msra.mxu0 %v520
    %703 = vmatpush.bf16.msra.mxu0 %v519
    %704 = vmatpush.bf16.msra.mxu0 %v518
    %705 = vmatmul.bf16.gmra.mxu0 %v288
    %v706 = vpop.f32.mrf.mxu0
    %v707 = vadd.f32 %v658, %v706
    %v708 = vpop.f32.mrf.mxu0
    %v709 = vadd.f32 %v660, %v708
    %710 = vmatmul.bf16.gmra.mxu0 %v293
    %v711 = vpop.f32.mrf.mxu0
    %v712 = vadd.f32 %v663, %v711
    %v713 = vpop.f32.mrf.mxu0
    %v714 = vadd.f32 %v665, %v713
    %715 = vmatmul.bf16.gmra.mxu0 %v298
    %v716 = vpop.f32.mrf.mxu0
    %v717 = vadd.f32 %v668, %v716
    %v718 = vpop.f32.mrf.mxu0
    %v719 = vadd.f32 %v670, %v718
    %720 = vmatmul.bf16.gmra.mxu0 %v303
    %v721 = vpop.f32.mrf.mxu0
    %v722 = vadd.f32 %v673, %v721
    %v723 = vpop.f32.mrf.mxu0
    %v724 = vadd.f32 %v675, %v723
    %725 = vmatmul.bf16.gmra.mxu0 %v308
    %v726 = vpop.f32.mrf.mxu0
    %v727 = vadd.f32 %v678, %v726
    %v728 = vpop.f32.mrf.mxu0
    %v729 = vadd.f32 %v680, %v728
    %730 = vmatmul.bf16.gmra.mxu0 %v313
    %v731 = vpop.f32.mrf.mxu0
    %v732 = vadd.f32 %v683, %v731
    %v733 = vpop.f32.mrf.mxu0
    %v734 = vadd.f32 %v685, %v733
    %735 = vmatmul.bf16.gmra.mxu0 %v318
    %v736 = vpop.f32.mrf.mxu0
    %v737 = vadd.f32 %v688, %v736
    %v738 = vpop.f32.mrf.mxu0
    %v739 = vadd.f32 %v690, %v738
    %740 = vmatmul.bf16.gmra.mxu0 %v323
    %v741 = vpop.f32.mrf.mxu0
    %v742 = vadd.f32 %v693, %v741
    %v743 = vpop.f32.mrf.mxu0
    %v744 = vadd.f32 %v695, %v743
    %745 = vdwg.mxu0
    %746 = vmatpush.bf16.msra.mxu0 %v533
    %747 = vmatpush.bf16.msra.mxu0 %v532
    %748 = vmatpush.bf16.msra.mxu0 %v531
    %749 = vmatpush.bf16.msra.mxu0 %v530
    %750 = vmatpush.bf16.msra.mxu0 %v529
    %751 = vmatpush.bf16.msra.mxu0 %v528
    %752 = vmatpush.bf16.msra.mxu0 %v527
    %753 = vmatpush.bf16.msra.mxu0 %v526
    %754 = vmatmul.bf16.gmra.mxu0 %v289
    %v755 = vpop.f32.mrf.mxu0
    %v756 = vadd.f32 %v707, %v755
    %v757 = vpop.f32.mrf.mxu0
    %v758 = vadd.f32 %v709, %v757
    %759 = vmatmul.bf16.gmra.mxu0 %v294
    %v760 = vpop.f32.mrf.mxu0
    %v761 = vadd.f32 %v712, %v760
    %v762 = vpop.f32.mrf.mxu0
    %v763 = vadd.f32 %v714, %v762
    %764 = vmatmul.bf16.gmra.mxu0 %v299
    %v765 = vpop.f32.mrf.mxu0
    %v766 = vadd.f32 %v717, %v765
    %v767 = vpop.f32.mrf.mxu0
    %v768 = vadd.f32 %v719, %v767
    %769 = vmatmul.bf16.gmra.mxu0 %v304
    %v770 = vpop.f32.mrf.mxu0
    %v771 = vadd.f32 %v722, %v770
    %v772 = vpop.f32.mrf.mxu0
    %v773 = vadd.f32 %v724, %v772
    %774 = vmatmul.bf16.gmra.mxu0 %v309
    %v775 = vpop.f32.mrf.mxu0
    %v776 = vadd.f32 %v727, %v775
    %v777 = vpop.f32.mrf.mxu0
    %v778 = vadd.f32 %v729, %v777
    %779 = vmatmul.bf16.gmra.mxu0 %v314
    %v780 = vpop.f32.mrf.mxu0
    %v781 = vadd.f32 %v732, %v780
    %v782 = vpop.f32.mrf.mxu0
    %v783 = vadd.f32 %v734, %v782
    %784 = vmatmul.bf16.gmra.mxu0 %v319
    %v785 = vpop.f32.mrf.mxu0
    %v786 = vadd.f32 %v737, %v785
    %v787 = vpop.f32.mrf.mxu0
    %v788 = vadd.f32 %v739, %v787
    %789 = vmatmul.bf16.gmra.mxu0 %v324
    %v790 = vpop.f32.mrf.mxu0
    %v791 = vadd.f32 %v742, %v790
    %v792 = vpop.f32.mrf.mxu0
    %v793 = vadd.f32 %v744, %v792
    %794 = vdwg.mxu0
    %795 = vmatpush.bf16.msra.mxu0 0
    %796 = vmatpush.bf16.msra.mxu0 0
    %797 = vmatpush.bf16.msra.mxu0 0
    %798 = vmatpush.bf16.msra.mxu0 0
    %799 = vmatpush.bf16.msra.mxu0 %v537
    %800 = vmatpush.bf16.msra.mxu0 %v536
    %801 = vmatpush.bf16.msra.mxu0 %v535
    %802 = vmatpush.bf16.msra.mxu0 %v534
    %803 = vmatmul.bf16.gmra.mxu0 %v576
    %v804 = vpop.f32.mrf.mxu0
    %v805 = vadd.f32 %v756, %v804
    %v806 = vpop.f32.mrf.mxu0
    %v807 = vadd.f32 %v758, %v806
    %808 = vmatmul.bf16.gmra.mxu0 %v579
    %v809 = vpop.f32.mrf.mxu0
    %v810 = vadd.f32 %v761, %v809
    %v811 = vpop.f32.mrf.mxu0
    %v812 = vadd.f32 %v763, %v811
    %813 = vmatmul.bf16.gmra.mxu0 %v582
    %v814 = vpop.f32.mrf.mxu0
    %v815 = vadd.f32 %v766, %v814
    %v816 = vpop.f32.mrf.mxu0
    %v817 = vadd.f32 %v768, %v816
    %818 = vmatmul.bf16.gmra.mxu0 %v585
    %v819 = vpop.f32.mrf.mxu0
    %v820 = vadd.f32 %v771, %v819
    %v821 = vpop.f32.mrf.mxu0
    %v822 = vadd.f32 %v773, %v821
    %823 = vmatmul.bf16.gmra.mxu0 %v588
    %v824 = vpop.f32.mrf.mxu0
    %v825 = vadd.f32 %v776, %v824
    %v826 = vpop.f32.mrf.mxu0
    %v827 = vadd.f32 %v778, %v826
    %828 = vmatmul.bf16.gmra.mxu0 %v591
    %v829 = vpop.f32.mrf.mxu0
    %v830 = vadd.f32 %v781, %v829
    %v831 = vpop.f32.mrf.mxu0
    %v832 = vadd.f32 %v783, %v831
    %833 = vmatmul.bf16.gmra.mxu0 %v594
    %v834 = vpop.f32.mrf.mxu0
    %v835 = vadd.f32 %v786, %v834
    %v836 = vpop.f32.mrf.mxu0
    %v837 = vadd.f32 %v788, %v836
    %838 = vmatmul.bf16.gmra.mxu0 %v597
    %v839 = vpop.f32.mrf.mxu0
    %v840 = vadd.f32 %v791, %v839
    %v841 = vpop.f32.mrf.mxu0
    %v842 = vadd.f32 %v793, %v841
    %843 = vdwg.mxu0
    %v844 = vmax.f32 %v805, 0.0
    %v845 = vmax.f32 %v807, 0.0
    %v846 = vmax.f32 %v810, 0.0
    %v847 = vmax.f32 %v812, 0.0
    %v848 = vmax.f32 %v815, 0.0
    %v849 = vmax.f32 %v817, 0.0
    %v850 = vmax.f32 %v820, 0.0
    %v851 = vmax.f32 %v822, 0.0
    %v852 = vmax.f32 %v825, 0.0
    %v853 = vmax.f32 %v827, 0.0
    %v854 = vmax.f32 %v830, 0.0
    %v855 = vmax.f32 %v832, 0.0
    %v856 = vmax.f32 %v835, 0.0
    %v857 = vmax.f32 %v837, 0.0
    %v858 = vmax.f32 %v840, 0.0
    %v859 = vmax.f32 %v842, 0.0
    %v860 = vld [vmem:[%s3] sm:$0x1]
    %v862 = vperm.slane %v860, 0
    %v864 = vmul.f32 %v844, %v862
    %v865 = vmul.f32 %v845, %v862
    %v866 = vmul.f32 %v846, %v862
    %v867 = vmul.f32 %v847, %v862
    %v868 = vmul.f32 %v848, %v862
    %v869 = vmul.f32 %v849, %v862
    %v870 = vmul.f32 %v850, %v862
    %v871 = vmul.f32 %v851, %v862
    %v872 = vmul.f32 %v852, %v862
    %v873 = vmul.f32 %v853, %v862
    %v874 = vmul.f32 %v854, %v862
    %v875 = vmul.f32 %v855, %v862
    %v876 = vmul.f32 %v856, %v862
    %v877 = vmul.f32 %v857, %v862
    %v878 = vmul.f32 %v858, %v862
    %v879 = vmul.f32 %v859, %v862
    %v880 = vld [vmem:[%s4] sm:$0x1]
    %v882 = vperm.slane %v880, 0
    %v884 = vadd.f32 %v864, %v882
    %v885 = vadd.f32 %v865, %v882
    %v886 = vadd.f32 %v866, %v882
    %v887 = vadd.f32 %v867, %v882
    %v888 = vadd.f32 %v868, %v882
    %v889 = vadd.f32 %v869, %v882
    %v890 = vadd.f32 %v870, %v882
    %v891 = vadd.f32 %v871, %v882
    %v892 = vadd.f32 %v872, %v882
    %v893 = vadd.f32 %v873, %v882
    %v894 = vadd.f32 %v874, %v882
    %v895 = vadd.f32 %v875, %v882
    %v896 = vadd.f32 %v876, %v882
    %v897 = vadd.f32 %v877, %v882
    %v898 = vadd.f32 %v878, %v882
    %v899 = vadd.f32 %v879, %v882
    %v900 = vmax.f32 %v884, %v888
    %v901 = vmax.f32 %v885, %v889
    %v902 = vmax.f32 %v886, %v890
    %v903 = vmax.f32 %v887, %v891
    %v904 = vmax.f32 %v892, %v896
    %v905 = vmax.f32 %v893, %v897
    %v906 = vmax.f32 %v894, %v898
    %v907 = vmax.f32 %v895, %v899
    %v908 = vmax.f32 %v900, %v904
    %v909 = vmax.f32 %v901, %v905
    %v910 = vmax.f32 %v902, %v906
    %v911 = vmax.f32 %v903, %v907
    %v912 = vpack.c.bf16 %v908, %v908
    %v913 = vpack.c.bf16 %v910, %v910
    %v914 = vld [vmem:[%s5] sm:$0xff]
    %v915 = vld [vmem:[%s5 + $0x8] sm:$0xff]
    %v916 = vld [vmem:[%s5 + $0x10] sm:$0xff]
    %v917 = vld [vmem:[%s5 + $0x18] sm:$0xff]
    %v918 = vld [vmem:[%s5 + $0x20] sm:$0xff]
    %v919 = vld [vmem:[%s5 + $0x28] sm:$0xff]
    %v920 = vld [vmem:[%s5 + $0x30] sm:$0xff]
    %v921 = vld [vmem:[%s5 + $0x38] sm:$0xff]
    %v922 = vld [vmem:[%s5 + $0x40] sm:$0xff]
    %v923 = vld [vmem:[%s5 + $0x48] sm:$0xff]
    %v924 = vld [vmem:[%s5 + $0x50] sm:$0xff]
    %v925 = vld [vmem:[%s5 + $0x58] sm:$0xff]
    %v926 = vld [vmem:[%s5 + $0x60] sm:$0xff]
    %v927 = vld [vmem:[%s5 + $0x68] sm:$0xff]
    %v928 = vld [vmem:[%s5 + $0x70] sm:$0xff]
    %v929 = vld [vmem:[%s5 + $0x78] sm:$0xff]
    %v930 = vld [vmem:[%s5 + $0x80] sm:$0xff]
    %v931 = vld [vmem:[%s5 + $0x88] sm:$0xff]
    %v932 = vld [vmem:[%s5 + $0x90] sm:$0xff]
    %v933 = vld [vmem:[%s5 + $0x98] sm:$0xff]
    %v934 = vld [vmem:[%s5 + $0xa0] sm:$0xff]
    %v935 = vld [vmem:[%s5 + $0xa8] sm:$0xff]
    %v936 = vld [vmem:[%s5 + $0xb0] sm:$0xff]
    %v937 = vld [vmem:[%s5 + $0xb8] sm:$0xff]
    %v938 = vld [vmem:[%s5 + $0xc0] sm:$0xff]
    %v939 = vld [vmem:[%s5 + $0xc8] sm:$0xff]
    %v940 = vld [vmem:[%s5 + $0xd0] sm:$0xff]
    %v941 = vld [vmem:[%s5 + $0xd8] sm:$0xff]
    %v942 = vld [vmem:[%s5 + $0xe0] sm:$0xff]
    %v943 = vld [vmem:[%s5 + $0xe8] sm:$0xff]
    %v944 = vld [vmem:[%s5 + $0xf0] sm:$0xff]
    %v945 = vld [vmem:[%s5 + $0xf8] sm:$0xff]
    %s946 = scalar_lea.vmem %s5, 256
    %v947 = vld [vmem:[%s946] sm:$0xff]
    %v948 = vld [vmem:[%s946 + $0x8] sm:$0xff]
    %v949 = vld [vmem:[%s946 + $0x10] sm:$0xff]
    %v950 = vld [vmem:[%s946 + $0x18] sm:$0xff]
    %v951 = vld [vmem:[%s946 + $0x20] sm:$0xff]
    %v952 = vld [vmem:[%s946 + $0x28] sm:$0xff]
    %v953 = vld [vmem:[%s946 + $0x30] sm:$0xff]
    %v954 = vld [vmem:[%s946 + $0x38] sm:$0xff]
    %v955 = vld [vmem:[%s946 + $0x40] sm:$0xff]
    %v956 = vld [vmem:[%s946 + $0x48] sm:$0xff]
    %v957 = vld [vmem:[%s946 + $0x50] sm:$0xff]
    %v958 = vld [vmem:[%s946 + $0x58] sm:$0xff]
    %v959 = vld [vmem:[%s946 + $0x60] sm:$0xff]
    %v960 = vld [vmem:[%s946 + $0x68] sm:$0xff]
    %v961 = vld [vmem:[%s946 + $0x70] sm:$0xff]
    %v962 = vld [vmem:[%s946 + $0x78] sm:$0xff]
    %v963 = vld [vmem:[%s946 + $0x80] sm:$0xff]
    %v964 = vld [vmem:[%s946 + $0x88] sm:$0xff]
    %v965 = vld [vmem:[%s946 + $0x90] sm:$0xff]
    %v966 = vld [vmem:[%s946 + $0x98] sm:$0xff]
    %v967 = vld [vmem:[%s946 + $0xa0] sm:$0xff]
    %v968 = vld [vmem:[%s946 + $0xa8] sm:$0xff]
    %v969 = vld [vmem:[%s946 + $0xb0] sm:$0xff]
    %v970 = vld [vmem:[%s946 + $0xb8] sm:$0xff]
    %v971 = vld [vmem:[%s946 + $0xc0] sm:$0xff]
    %v972 = vld [vmem:[%s946 + $0xc8] sm:$0xff]
    %v973 = vld [vmem:[%s946 + $0xd0] sm:$0xff]
    %v974 = vld [vmem:[%s946 + $0xd8] sm:$0xff]
    %v975 = vld [vmem:[%s946 + $0xe0] sm:$0xff]
    %v976 = vld [vmem:[%s946 + $0xe8] sm:$0xff]
    %v977 = vld [vmem:[%s946 + $0xf0] sm:$0xff]
    %v978 = vld [vmem:[%s946 + $0xf8] sm:$0xff]
    %v981 = vunpack.c.l.b16 %v912
    %v982 = vunpack.c.l.b16 %v913
    %v983 = vrot.slane %v981, 1
    %vm984 = vcmask 1041409
    %v985 = vsel %vm984, %v982, %v983
    %v986 = vpack.c.b16 %v985, %v985
    %v1020 = vunpack.c.l.b16 %v947
    %v1021 = vunpack.c.h.b16 %v947
    %v1022 = vunpack.c.l.b16 %v948
    %v1023 = vunpack.c.h.b16 %v948
    %v1024 = vunpack.c.l.b16 %v949
    %v1025 = vunpack.c.h.b16 %v949
    %v1026 = vunpack.c.l.b16 %v950
    %v1027 = vunpack.c.h.b16 %v950
    %v1028 = vunpack.c.l.b16 %v951
    %v1029 = vunpack.c.h.b16 %v951
    %v1030 = vunpack.c.l.b16 %v952
    %v1031 = vunpack.c.h.b16 %v952
    %v1032 = vunpack.c.l.b16 %v953
    %v1033 = vunpack.c.h.b16 %v953
    %v1034 = vunpack.c.l.b16 %v954
    %v1035 = vunpack.c.h.b16 %v954
    %v1036 = vunpack.c.l.b16 %v955
    %v1037 = vunpack.c.h.b16 %v955
    %v1038 = vunpack.c.l.b16 %v956
    %v1039 = vunpack.c.h.b16 %v956
    %v1040 = vunpack.c.l.b16 %v957
    %v1041 = vunpack.c.h.b16 %v957
    %v1042 = vunpack.c.l.b16 %v958
    %v1043 = vunpack.c.h.b16 %v958
    %v1044 = vunpack.c.l.b16 %v959
    %v1045 = vunpack.c.h.b16 %v959
    %v1046 = vunpack.c.l.b16 %v960
    %v1047 = vunpack.c.h.b16 %v960
    %v1048 = vunpack.c.l.b16 %v961
    %v1049 = vunpack.c.h.b16 %v961
    %v1050 = vunpack.c.l.b16 %v962
    %v1051 = vunpack.c.h.b16 %v962
    %v1052 = vunpack.c.l.b16 %v963
    %v1053 = vunpack.c.h.b16 %v963
    %v1054 = vunpack.c.l.b16 %v964
    %v1055 = vunpack.c.h.b16 %v964
    %v1056 = vunpack.c.l.b16 %v965
    %v1057 = vunpack.c.h.b16 %v965
    %v1058 = vunpack.c.l.b16 %v966
    %v1059 = vunpack.c.h.b16 %v966
    %v1060 = vunpack.c.l.b16 %v967
    %v1061 = vunpack.c.h.b16 %v967
    %v1062 = vunpack.c.l.b16 %v968
    %v1063 = vunpack.c.h.b16 %v968
    %v1064 = vunpack.c.l.b16 %v969
    %v1065 = vunpack.c.h.b16 %v969
    %v1066 = vunpack.c.l.b16 %v970
    %v1067 = vunpack.c.h.b16 %v970
    %v1068 = vunpack.c.l.b16 %v971
    %v1069 = vunpack.c.h.b16 %v971
    %v1070 = vunpack.c.l.b16 %v972
    %v1071 = vunpack.c.h.b16 %v972
    %v1072 = vunpack.c.l.b16 %v973
    %v1073 = vunpack.c.h.b16 %v973
    %v1074 = vunpack.c.l.b16 %v974
    %v1075 = vunpack.c.h.b16 %v974
    %v1076 = vunpack.c.l.b16 %v975
    %v1077 = vunpack.c.h.b16 %v975
    %v1078 = vunpack.c.l.b16 %v976
    %v1079 = vunpack.c.h.b16 %v976
    %v1080 = vunpack.c.l.b16 %v977
    %v1081 = vunpack.c.h.b16 %v977
    %v1082 = vunpack.c.l.b16 %v978
    %v1083 = vunpack.c.h.b16 %v978
    %v1084 = vpack.c.b16 %v1024, %v1020
    %v1085 = vpack.c.b16 %v1025, %v1021
    %v1086 = vpack.c.b16 %v1026, %v1022
    %v1087 = vpack.c.b16 %v1027, %v1023
    %v1088 = vpack.c.b16 %v1032, %v1028
    %v1089 = vpack.c.b16 %v1033, %v1029
    %v1090 = vpack.c.b16 %v1034, %v1030
    %v1091 = vpack.c.b16 %v1035, %v1031
    %v1092 = vpack.c.b16 %v1040, %v1036
    %v1093 = vpack.c.b16 %v1041, %v1037
    %v1094 = vpack.c.b16 %v1042, %v1038
    %v1095 = vpack.c.b16 %v1043, %v1039
    %v1096 = vpack.c.b16 %v1048, %v1044
    %v1097 = vpack.c.b16 %v1049, %v1045
    %v1098 = vpack.c.b16 %v1050, %v1046
    %v1099 = vpack.c.b16 %v1051, %v1047
    %v1100 = vpack.c.b16 %v1056, %v1052
    %v1101 = vpack.c.b16 %v1057, %v1053
    %v1102 = vpack.c.b16 %v1058, %v1054
    %v1103 = vpack.c.b16 %v1059, %v1055
    %v1104 = vpack.c.b16 %v1064, %v1060
    %v1105 = vpack.c.b16 %v1065, %v1061
    %v1106 = vpack.c.b16 %v1066, %v1062
    %v1107 = vpack.c.b16 %v1067, %v1063
    %v1108 = vpack.c.b16 %v1072, %v1068
    %v1109 = vpack.c.b16 %v1073, %v1069
    %v1110 = vpack.c.b16 %v1074, %v1070
    %v1111 = vpack.c.b16 %v1075, %v1071
    %v1112 = vpack.c.b16 %v1080, %v1076
    %v1113 = vpack.c.b16 %v1081, %v1077
    %v1114 = vpack.c.b16 %v1082, %v1078
    %v1115 = vpack.c.b16 %v1083, %v1079
    %1148 = vmatpush.bf16.msra.mxu0 %v1112
    %1149 = vmatpush.bf16.msra.mxu0 %v1108
    %1150 = vmatpush.bf16.msra.mxu0 %v1104
    %1151 = vmatpush.bf16.msra.mxu0 %v1100
    %1152 = vmatpush.bf16.msra.mxu0 %v1096
    %1153 = vmatpush.bf16.msra.mxu0 %v1092
    %1154 = vmatpush.bf16.msra.mxu0 %v1088
    %1155 = vmatpush.bf16.msra.mxu0 %v1084
    %1156 = vmatmul.bf16.gmra.mxu0 %v986
    %v1157 = vpop.f32.mrf.mxu0
    %v1158 = vadd.f32 0.0, %v1157
    %v1159 = vpop.f32.mrf.mxu0
    %1160 = vdwg.mxu0
    %1161 = vmatpush.bf16.msra.mxu0 %v1113
    %1162 = vmatpush.bf16.msra.mxu0 %v1109
    %1163 = vmatpush.bf16.msra.mxu0 %v1105
    %1164 = vmatpush.bf16.msra.mxu0 %v1101
    %1165 = vmatpush.bf16.msra.mxu0 %v1097
    %1166 = vmatpush.bf16.msra.mxu0 %v1093
    %1167 = vmatpush.bf16.msra.mxu0 %v1089
    %1168 = vmatpush.bf16.msra.mxu0 %v1085
    %1169 = vmatmul.bf16.gmra.mxu0 %v986
    %v1170 = vpop.f32.mrf.mxu0
    %v1171 = vadd.f32 0.0, %v1170
    %v1172 = vpop.f32.mrf.mxu0
    %1173 = vdwg.mxu0
    %1174 = vmatpush.bf16.msra.mxu0 %v1114
    %1175 = vmatpush.bf16.msra.mxu0 %v1110
    %1176 = vmatpush.bf16.msra.mxu0 %v1106
    %1177 = vmatpush.bf16.msra.mxu0 %v1102
    %1178 = vmatpush.bf16.msra.mxu0 %v1098
    %1179 = vmatpush.bf16.msra.mxu0 %v1094
    %1180 = vmatpush.bf16.msra.mxu0 %v1090
    %1181 = vmatpush.bf16.msra.mxu0 %v1086
    %1182 = vmatmul.bf16.gmra.mxu0 %v986
    %v1183 = vpop.f32.mrf.mxu0
    %v1184 = vadd.f32 0.0, %v1183
    %v1185 = vpop.f32.mrf.mxu0
    %1186 = vdwg.mxu0
    %1187 = vmatpush.bf16.msra.mxu0 %v1115
    %1188 = vmatpush.bf16.msra.mxu0 %v1111
    %1189 = vmatpush.bf16.msra.mxu0 %v1107
    %1190 = vmatpush.bf16.msra.mxu0 %v1103
    %1191 = vmatpush.bf16.msra.mxu0 %v1099
    %1192 = vmatpush.bf16.msra.mxu0 %v1095
    %1193 = vmatpush.bf16.msra.mxu0 %v1091
    %1194 = vmatpush.bf16.msra.mxu0 %v1087
    %1195 = vmatmul.bf16.gmra.mxu0 %v986
    %v1196 = vpop.f32.mrf.mxu0
    %v1197 = vadd.f32 0.0, %v1196
    %v1198 = vpop.f32.mrf.mxu0
    %1199 = vdwg.mxu0
    %v1200 = vrot.slane %v982, 7
    %v1201 = vsel %vm984, %v1200, %v981
    %v1202 = vpack.c.b16 %v1201, %v1201
    %v1236 = vunpack.c.l.b16 %v914
    %v1237 = vunpack.c.h.b16 %v914
    %v1238 = vunpack.c.l.b16 %v915
    %v1239 = vunpack.c.h.b16 %v915
    %v1240 = vunpack.c.l.b16 %v916
    %v1241 = vunpack.c.h.b16 %v916
    %v1242 = vunpack.c.l.b16 %v917
    %v1243 = vunpack.c.h.b16 %v917
    %v1244 = vunpack.c.l.b16 %v918
    %v1245 = vunpack.c.h.b16 %v918
    %v1246 = vunpack.c.l.b16 %v919
    %v1247 = vunpack.c.h.b16 %v919
    %v1248 = vunpack.c.l.b16 %v920
    %v1249 = vunpack.c.h.b16 %v920
    %v1250 = vunpack.c.l.b16 %v921
    %v1251 = vunpack.c.h.b16 %v921
    %v1252 = vunpack.c.l.b16 %v922
    %v1253 = vunpack.c.h.b16 %v922
    %v1254 = vunpack.c.l.b16 %v923
    %v1255 = vunpack.c.h.b16 %v923
    %v1256 = vunpack.c.l.b16 %v924
    %v1257 = vunpack.c.h.b16 %v924
    %v1258 = vunpack.c.l.b16 %v925
    %v1259 = vunpack.c.h.b16 %v925
    %v1260 = vunpack.c.l.b16 %v926
    %v1261 = vunpack.c.h.b16 %v926
    %v1262 = vunpack.c.l.b16 %v927
    %v1263 = vunpack.c.h.b16 %v927
    %v1264 = vunpack.c.l.b16 %v928
    %v1265 = vunpack.c.h.b16 %v928
    %v1266 = vunpack.c.l.b16 %v929
    %v1267 = vunpack.c.h.b16 %v929
    %v1268 = vunpack.c.l.b16 %v930
    %v1269 = vunpack.c.h.b16 %v930
    %v1270 = vunpack.c.l.b16 %v931
    %v1271 = vunpack.c.h.b16 %v931
    %v1272 = vunpack.c.l.b16 %v932
    %v1273 = vunpack.c.h.b16 %v932
    %v1274 = vunpack.c.l.b16 %v933
    %v1275 = vunpack.c.h.b16 %v933
    %v1276 = vunpack.c.l.b16 %v934
    %v1277 = vunpack.c.h.b16 %v934
    %v1278 = vunpack.c.l.b16 %v935
    %v1279 = vunpack.c.h.b16 %v935
    %v1280 = vunpack.c.l.b16 %v936
    %v1281 = vunpack.c.h.b16 %v936
    %v1282 = vunpack.c.l.b16 %v937
    %v1283 = vunpack.c.h.b16 %v937
    %v1284 = vunpack.c.l.b16 %v938
    %v1285 = vunpack.c.h.b16 %v938
    %v1286 = vunpack.c.l.b16 %v939
    %v1287 = vunpack.c.h.b16 %v939
    %v1288 = vunpack.c.l.b16 %v940
    %v1289 = vunpack.c.h.b16 %v940
    %v1290 = vunpack.c.l.b16 %v941
    %v1291 = vunpack.c.h.b16 %v941
    %v1292 = vunpack.c.l.b16 %v942
    %v1293 = vunpack.c.h.b16 %v942
    %v1294 = vunpack.c.l.b16 %v943
    %v1295 = vunpack.c.h.b16 %v943
    %v1296 = vunpack.c.l.b16 %v944
    %v1297 = vunpack.c.h.b16 %v944
    %v1298 = vunpack.c.l.b16 %v945
    %v1299 = vunpack.c.h.b16 %v945
    %v1300 = vpack.c.b16 %v1240, %v1236
    %v1301 = vpack.c.b16 %v1241, %v1237
    %v1302 = vpack.c.b16 %v1242, %v1238
    %v1303 = vpack.c.b16 %v1243, %v1239
    %v1304 = vpack.c.b16 %v1248, %v1244
    %v1305 = vpack.c.b16 %v1249, %v1245
    %v1306 = vpack.c.b16 %v1250, %v1246
    %v1307 = vpack.c.b16 %v1251, %v1247
    %v1308 = vpack.c.b16 %v1256, %v1252
    %v1309 = vpack.c.b16 %v1257, %v1253
    %v1310 = vpack.c.b16 %v1258, %v1254
    %v1311 = vpack.c.b16 %v1259, %v1255
    %v1312 = vpack.c.b16 %v1264, %v1260
    %v1313 = vpack.c.b16 %v1265, %v1261
    %v1314 = vpack.c.b16 %v1266, %v1262
    %v1315 = vpack.c.b16 %v1267, %v1263
    %v1316 = vpack.c.b16 %v1272, %v1268
    %v1317 = vpack.c.b16 %v1273, %v1269
    %v1318 = vpack.c.b16 %v1274, %v1270
    %v1319 = vpack.c.b16 %v1275, %v1271
    %v1320 = vpack.c.b16 %v1280, %v1276
    %v1321 = vpack.c.b16 %v1281, %v1277
    %v1322 = vpack.c.b16 %v1282, %v1278
    %v1323 = vpack.c.b16 %v1283, %v1279
    %v1324 = vpack.c.b16 %v1288, %v1284
    %v1325 = vpack.c.b16 %v1289, %v1285
    %v1326 = vpack.c.b16 %v1290, %v1286
    %v1327 = vpack.c.b16 %v1291, %v1287
    %v1328 = vpack.c.b16 %v1296, %v1292
    %v1329 = vpack.c.b16 %v1297, %v1293
    %v1330 = vpack.c.b16 %v1298, %v1294
    %v1331 = vpack.c.b16 %v1299, %v1295
    %1364 = vmatpush.bf16.msra.mxu0 %v1328
    %1365 = vmatpush.bf16.msra.mxu0 %v1324
    %1366 = vmatpush.bf16.msra.mxu0 %v1320
    %1367 = vmatpush.bf16.msra.mxu0 %v1316
    %1368 = vmatpush.bf16.msra.mxu0 %v1312
    %1369 = vmatpush.bf16.msra.mxu0 %v1308
    %1370 = vmatpush.bf16.msra.mxu0 %v1304
    %1371 = vmatpush.bf16.msra.mxu0 %v1300
    %1372 = vmatmul.bf16.gmra.mxu0 %v1202
    %v1373 = vpop.f32.mrf.mxu0
    %v1374 = vadd.f32 %v1158, %v1373
    %v1375 = vpop.f32.mrf.mxu0
    %1376 = vdwg.mxu0
    %1377 = vmatpush.bf16.msra.mxu0 %v1329
    %1378 = vmatpush.bf16.msra.mxu0 %v1325
    %1379 = vmatpush.bf16.msra.mxu0 %v1321
    %1380 = vmatpush.bf16.msra.mxu0 %v1317
    %1381 = vmatpush.bf16.msra.mxu0 %v1313
    %1382 = vmatpush.bf16.msra.mxu0 %v1309
    %1383 = vmatpush.bf16.msra.mxu0 %v1305
    %1384 = vmatpush.bf16.msra.mxu0 %v1301
    %1385 = vmatmul.bf16.gmra.mxu0 %v1202
    %v1386 = vpop.f32.mrf.mxu0
    %v1387 = vadd.f32 %v1171, %v1386
    %v1388 = vpop.f32.mrf.mxu0
    %1389 = vdwg.mxu0
    %1390 = vmatpush.bf16.msra.mxu0 %v1330
    %1391 = vmatpush.bf16.msra.mxu0 %v1326
    %1392 = vmatpush.bf16.msra.mxu0 %v1322
    %1393 = vmatpush.bf16.msra.mxu0 %v1318
    %1394 = vmatpush.bf16.msra.mxu0 %v1314
    %1395 = vmatpush.bf16.msra.mxu0 %v1310
    %1396 = vmatpush.bf16.msra.mxu0 %v1306
    %1397 = vmatpush.bf16.msra.mxu0 %v1302
    %1398 = vmatmul.bf16.gmra.mxu0 %v1202
    %v1399 = vpop.f32.mrf.mxu0
    %v1400 = vadd.f32 %v1184, %v1399
    %v1401 = vpop.f32.mrf.mxu0
    %1402 = vdwg.mxu0
    %1403 = vmatpush.bf16.msra.mxu0 %v1331
    %1404 = vmatpush.bf16.msra.mxu0 %v1327
    %1405 = vmatpush.bf16.msra.mxu0 %v1323
    %1406 = vmatpush.bf16.msra.mxu0 %v1319
    %1407 = vmatpush.bf16.msra.mxu0 %v1315
    %1408 = vmatpush.bf16.msra.mxu0 %v1311
    %1409 = vmatpush.bf16.msra.mxu0 %v1307
    %1410 = vmatpush.bf16.msra.mxu0 %v1303
    %1411 = vmatmul.bf16.gmra.mxu0 %v1202
    %v1412 = vpop.f32.mrf.mxu0
    %v1413 = vadd.f32 %v1197, %v1412
    %v1414 = vpop.f32.mrf.mxu0
    %1415 = vdwg.mxu0
    %s1416 = scalar_lea.vmem %s5, 512
    %v1417 = vld [vmem:[%s1416] sm:$0xff]
    %v1418 = vld [vmem:[%s1416 + $0x8] sm:$0xff]
    %v1419 = vld [vmem:[%s1416 + $0x10] sm:$0xff]
    %v1420 = vld [vmem:[%s1416 + $0x18] sm:$0xff]
    %v1421 = vld [vmem:[%s1416 + $0x20] sm:$0xff]
    %v1422 = vld [vmem:[%s1416 + $0x28] sm:$0xff]
    %v1423 = vld [vmem:[%s1416 + $0x30] sm:$0xff]
    %v1424 = vld [vmem:[%s1416 + $0x38] sm:$0xff]
    %v1425 = vld [vmem:[%s1416 + $0x40] sm:$0xff]
    %v1426 = vld [vmem:[%s1416 + $0x48] sm:$0xff]
    %v1427 = vld [vmem:[%s1416 + $0x50] sm:$0xff]
    %v1428 = vld [vmem:[%s1416 + $0x58] sm:$0xff]
    %v1429 = vld [vmem:[%s1416 + $0x60] sm:$0xff]
    %v1430 = vld [vmem:[%s1416 + $0x68] sm:$0xff]
    %v1431 = vld [vmem:[%s1416 + $0x70] sm:$0xff]
    %v1432 = vld [vmem:[%s1416 + $0x78] sm:$0xff]
    %v1433 = vld [vmem:[%s1416 + $0x80] sm:$0xff]
    %v1434 = vld [vmem:[%s1416 + $0x88] sm:$0xff]
    %v1435 = vld [vmem:[%s1416 + $0x90] sm:$0xff]
    %v1436 = vld [vmem:[%s1416 + $0x98] sm:$0xff]
    %v1437 = vld [vmem:[%s1416 + $0xa0] sm:$0xff]
    %v1438 = vld [vmem:[%s1416 + $0xa8] sm:$0xff]
    %v1439 = vld [vmem:[%s1416 + $0xb0] sm:$0xff]
    %v1440 = vld [vmem:[%s1416 + $0xb8] sm:$0xff]
    %v1441 = vld [vmem:[%s1416 + $0xc0] sm:$0xff]
    %v1442 = vld [vmem:[%s1416 + $0xc8] sm:$0xff]
    %v1443 = vld [vmem:[%s1416 + $0xd0] sm:$0xff]
    %v1444 = vld [vmem:[%s1416 + $0xd8] sm:$0xff]
    %v1445 = vld [vmem:[%s1416 + $0xe0] sm:$0xff]
    %v1446 = vld [vmem:[%s1416 + $0xe8] sm:$0xff]
    %v1447 = vld [vmem:[%s1416 + $0xf0] sm:$0xff]
    %v1448 = vld [vmem:[%s1416 + $0xf8] sm:$0xff]
    %v1449 = vrot.slane %v981, 2
    %v1450 = vrot.slane %v982, 1
    %v1451 = vsel %vm984, %v1450, %v1449
    %v1452 = vpack.c.b16 %v1451, %v1451
    %v1486 = vunpack.c.l.b16 %v1417
    %v1487 = vunpack.c.h.b16 %v1417
    %v1488 = vunpack.c.l.b16 %v1418
    %v1489 = vunpack.c.h.b16 %v1418
    %v1490 = vunpack.c.l.b16 %v1419
    %v1491 = vunpack.c.h.b16 %v1419
    %v1492 = vunpack.c.l.b16 %v1420
    %v1493 = vunpack.c.h.b16 %v1420
    %v1494 = vunpack.c.l.b16 %v1421
    %v1495 = vunpack.c.h.b16 %v1421
    %v1496 = vunpack.c.l.b16 %v1422
    %v1497 = vunpack.c.h.b16 %v1422
    %v1498 = vunpack.c.l.b16 %v1423
    %v1499 = vunpack.c.h.b16 %v1423
    %v1500 = vunpack.c.l.b16 %v1424
    %v1501 = vunpack.c.h.b16 %v1424
    %v1502 = vunpack.c.l.b16 %v1425
    %v1503 = vunpack.c.h.b16 %v1425
    %v1504 = vunpack.c.l.b16 %v1426
    %v1505 = vunpack.c.h.b16 %v1426
    %v1506 = vunpack.c.l.b16 %v1427
    %v1507 = vunpack.c.h.b16 %v1427
    %v1508 = vunpack.c.l.b16 %v1428
    %v1509 = vunpack.c.h.b16 %v1428
    %v1510 = vunpack.c.l.b16 %v1429
    %v1511 = vunpack.c.h.b16 %v1429
    %v1512 = vunpack.c.l.b16 %v1430
    %v1513 = vunpack.c.h.b16 %v1430
    %v1514 = vunpack.c.l.b16 %v1431
    %v1515 = vunpack.c.h.b16 %v1431
    %v1516 = vunpack.c.l.b16 %v1432
    %v1517 = vunpack.c.h.b16 %v1432
    %v1518 = vunpack.c.l.b16 %v1433
    %v1519 = vunpack.c.h.b16 %v1433
    %v1520 = vunpack.c.l.b16 %v1434
    %v1521 = vunpack.c.h.b16 %v1434
    %v1522 = vunpack.c.l.b16 %v1435
    %v1523 = vunpack.c.h.b16 %v1435
    %v1524 = vunpack.c.l.b16 %v1436
    %v1525 = vunpack.c.h.b16 %v1436
    %v1526 = vunpack.c.l.b16 %v1437
    %v1527 = vunpack.c.h.b16 %v1437
    %v1528 = vunpack.c.l.b16 %v1438
    %v1529 = vunpack.c.h.b16 %v1438
    %v1530 = vunpack.c.l.b16 %v1439
    %v1531 = vunpack.c.h.b16 %v1439
    %v1532 = vunpack.c.l.b16 %v1440
    %v1533 = vunpack.c.h.b16 %v1440
    %v1534 = vunpack.c.l.b16 %v1441
    %v1535 = vunpack.c.h.b16 %v1441
    %v1536 = vunpack.c.l.b16 %v1442
    %v1537 = vunpack.c.h.b16 %v1442
    %v1538 = vunpack.c.l.b16 %v1443
    %v1539 = vunpack.c.h.b16 %v1443
    %v1540 = vunpack.c.l.b16 %v1444
    %v1541 = vunpack.c.h.b16 %v1444
    %v1542 = vunpack.c.l.b16 %v1445
    %v1543 = vunpack.c.h.b16 %v1445
    %v1544 = vunpack.c.l.b16 %v1446
    %v1545 = vunpack.c.h.b16 %v1446
    %v1546 = vunpack.c.l.b16 %v1447
    %v1547 = vunpack.c.h.b16 %v1447
    %v1548 = vunpack.c.l.b16 %v1448
    %v1549 = vunpack.c.h.b16 %v1448
    %v1550 = vpack.c.b16 %v1490, %v1486
    %v1551 = vpack.c.b16 %v1491, %v1487
    %v1552 = vpack.c.b16 %v1492, %v1488
    %v1553 = vpack.c.b16 %v1493, %v1489
    %v1554 = vpack.c.b16 %v1498, %v1494
    %v1555 = vpack.c.b16 %v1499, %v1495
    %v1556 = vpack.c.b16 %v1500, %v1496
    %v1557 = vpack.c.b16 %v1501, %v1497
    %v1558 = vpack.c.b16 %v1506, %v1502
    %v1559 = vpack.c.b16 %v1507, %v1503
    %v1560 = vpack.c.b16 %v1508, %v1504
    %v1561 = vpack.c.b16 %v1509, %v1505
    %v1562 = vpack.c.b16 %v1514, %v1510
    %v1563 = vpack.c.b16 %v1515, %v1511
    %v1564 = vpack.c.b16 %v1516, %v1512
    %v1565 = vpack.c.b16 %v1517, %v1513
    %v1566 = vpack.c.b16 %v1522, %v1518
    %v1567 = vpack.c.b16 %v1523, %v1519
    %v1568 = vpack.c.b16 %v1524, %v1520
    %v1569 = vpack.c.b16 %v1525, %v1521
    %v1570 = vpack.c.b16 %v1530, %v1526
    %v1571 = vpack.c.b16 %v1531, %v1527
    %v1572 = vpack.c.b16 %v1532, %v1528
    %v1573 = vpack.c.b16 %v1533, %v1529
    %v1574 = vpack.c.b16 %v1538, %v1534
    %v1575 = vpack.c.b16 %v1539, %v1535
    %v1576 = vpack.c.b16 %v1540, %v1536
    %v1577 = vpack.c.b16 %v1541, %v1537
    %v1578 = vpack.c.b16 %v1546, %v1542
    %v1579 = vpack.c.b16 %v1547, %v1543
    %v1580 = vpack.c.b16 %v1548, %v1544
    %v1581 = vpack.c.b16 %v1549, %v1545
    %1614 = vmatpush.bf16.msra.mxu0 %v1578
    %1615 = vmatpush.bf16.msra.mxu0 %v1574
    %1616 = vmatpush.bf16.msra.mxu0 %v1570
    %1617 = vmatpush.bf16.msra.mxu0 %v1566
    %1618 = vmatpush.bf16.msra.mxu0 %v1562
    %1619 = vmatpush.bf16.msra.mxu0 %v1558
    %1620 = vmatpush.bf16.msra.mxu0 %v1554
    %1621 = vmatpush.bf16.msra.mxu0 %v1550
    %1622 = vmatmul.bf16.gmra.mxu0 %v1452
    %v1623 = vpop.f32.mrf.mxu0
    %v1624 = vadd.f32 0.0, %v1623
    %v1625 = vpop.f32.mrf.mxu0
    %1626 = vdwg.mxu0
    %1627 = vmatpush.bf16.msra.mxu0 %v1579
    %1628 = vmatpush.bf16.msra.mxu0 %v1575
    %1629 = vmatpush.bf16.msra.mxu0 %v1571
    %1630 = vmatpush.bf16.msra.mxu0 %v1567
    %1631 = vmatpush.bf16.msra.mxu0 %v1563
    %1632 = vmatpush.bf16.msra.mxu0 %v1559
    %1633 = vmatpush.bf16.msra.mxu0 %v1555
    %1634 = vmatpush.bf16.msra.mxu0 %v1551
    %1635 = vmatmul.bf16.gmra.mxu0 %v1452
    %v1636 = vpop.f32.mrf.mxu0
    %v1637 = vadd.f32 0.0, %v1636
    %v1638 = vpop.f32.mrf.mxu0
    %1639 = vdwg.mxu0
    %1640 = vmatpush.bf16.msra.mxu0 %v1580
    %1641 = vmatpush.bf16.msra.mxu0 %v1576
    %1642 = vmatpush.bf16.msra.mxu0 %v1572
    %1643 = vmatpush.bf16.msra.mxu0 %v1568
    %1644 = vmatpush.bf16.msra.mxu0 %v1564
    %1645 = vmatpush.bf16.msra.mxu0 %v1560
    %1646 = vmatpush.bf16.msra.mxu0 %v1556
    %1647 = vmatpush.bf16.msra.mxu0 %v1552
    %1648 = vmatmul.bf16.gmra.mxu0 %v1452
    %v1649 = vpop.f32.mrf.mxu0
    %v1650 = vadd.f32 0.0, %v1649
    %v1651 = vpop.f32.mrf.mxu0
    %1652 = vdwg.mxu0
    %1653 = vmatpush.bf16.msra.mxu0 %v1581
    %1654 = vmatpush.bf16.msra.mxu0 %v1577
    %1655 = vmatpush.bf16.msra.mxu0 %v1573
    %1656 = vmatpush.bf16.msra.mxu0 %v1569
    %1657 = vmatpush.bf16.msra.mxu0 %v1565
    %1658 = vmatpush.bf16.msra.mxu0 %v1561
    %1659 = vmatpush.bf16.msra.mxu0 %v1557
    %1660 = vmatpush.bf16.msra.mxu0 %v1553
    %1661 = vmatmul.bf16.gmra.mxu0 %v1452
    %v1662 = vpop.f32.mrf.mxu0
    %v1663 = vadd.f32 0.0, %v1662
    %v1664 = vpop.f32.mrf.mxu0
    %1665 = vdwg.mxu0
    %v1666 = vadd.f32 %v1374, %v1624
    %v1667 = vadd.f32 %v1387, %v1637
    %v1668 = vadd.f32 %v1400, %v1650
    %v1669 = vadd.f32 %v1413, %v1663
    %s1670 = scalar_lea.vmem %s5, 768
    %v1671 = vld [vmem:[%s1670] sm:$0xff]
    %v1672 = vld [vmem:[%s1670 + $0x8] sm:$0xff]
    %v1673 = vld [vmem:[%s1670 + $0x10] sm:$0xff]
    %v1674 = vld [vmem:[%s1670 + $0x18] sm:$0xff]
    %v1675 = vld [vmem:[%s1670 + $0x20] sm:$0xff]
    %v1676 = vld [vmem:[%s1670 + $0x28] sm:$0xff]
    %v1677 = vld [vmem:[%s1670 + $0x30] sm:$0xff]
    %v1678 = vld [vmem:[%s1670 + $0x38] sm:$0xff]
    %v1679 = vld [vmem:[%s1670 + $0x40] sm:$0xff]
    %v1680 = vld [vmem:[%s1670 + $0x48] sm:$0xff]
    %v1681 = vld [vmem:[%s1670 + $0x50] sm:$0xff]
    %v1682 = vld [vmem:[%s1670 + $0x58] sm:$0xff]
    %v1683 = vld [vmem:[%s1670 + $0x60] sm:$0xff]
    %v1684 = vld [vmem:[%s1670 + $0x68] sm:$0xff]
    %v1685 = vld [vmem:[%s1670 + $0x70] sm:$0xff]
    %v1686 = vld [vmem:[%s1670 + $0x78] sm:$0xff]
    %v1687 = vld [vmem:[%s1670 + $0x80] sm:$0xff]
    %v1688 = vld [vmem:[%s1670 + $0x88] sm:$0xff]
    %v1689 = vld [vmem:[%s1670 + $0x90] sm:$0xff]
    %v1690 = vld [vmem:[%s1670 + $0x98] sm:$0xff]
    %v1691 = vld [vmem:[%s1670 + $0xa0] sm:$0xff]
    %v1692 = vld [vmem:[%s1670 + $0xa8] sm:$0xff]
    %v1693 = vld [vmem:[%s1670 + $0xb0] sm:$0xff]
    %v1694 = vld [vmem:[%s1670 + $0xb8] sm:$0xff]
    %v1695 = vld [vmem:[%s1670 + $0xc0] sm:$0xff]
    %v1696 = vld [vmem:[%s1670 + $0xc8] sm:$0xff]
    %v1697 = vld [vmem:[%s1670 + $0xd0] sm:$0xff]
    %v1698 = vld [vmem:[%s1670 + $0xd8] sm:$0xff]
    %v1699 = vld [vmem:[%s1670 + $0xe0] sm:$0xff]
    %v1700 = vld [vmem:[%s1670 + $0xe8] sm:$0xff]
    %v1701 = vld [vmem:[%s1670 + $0xf0] sm:$0xff]
    %v1702 = vld [vmem:[%s1670 + $0xf8] sm:$0xff]
    %v1703 = vrot.slane %v981, 3
    %v1704 = vrot.slane %v982, 2
    %v1705 = vsel %vm984, %v1704, %v1703
    %v1706 = vpack.c.b16 %v1705, %v1705
    %v1740 = vunpack.c.l.b16 %v1671
    %v1741 = vunpack.c.h.b16 %v1671
    %v1742 = vunpack.c.l.b16 %v1672
    %v1743 = vunpack.c.h.b16 %v1672
    %v1744 = vunpack.c.l.b16 %v1673
    %v1745 = vunpack.c.h.b16 %v1673
    %v1746 = vunpack.c.l.b16 %v1674
    %v1747 = vunpack.c.h.b16 %v1674
    %v1748 = vunpack.c.l.b16 %v1675
    %v1749 = vunpack.c.h.b16 %v1675
    %v1750 = vunpack.c.l.b16 %v1676
    %v1751 = vunpack.c.h.b16 %v1676
    %v1752 = vunpack.c.l.b16 %v1677
    %v1753 = vunpack.c.h.b16 %v1677
    %v1754 = vunpack.c.l.b16 %v1678
    %v1755 = vunpack.c.h.b16 %v1678
    %v1756 = vunpack.c.l.b16 %v1679
    %v1757 = vunpack.c.h.b16 %v1679
    %v1758 = vunpack.c.l.b16 %v1680
    %v1759 = vunpack.c.h.b16 %v1680
    %v1760 = vunpack.c.l.b16 %v1681
    %v1761 = vunpack.c.h.b16 %v1681
    %v1762 = vunpack.c.l.b16 %v1682
    %v1763 = vunpack.c.h.b16 %v1682
    %v1764 = vunpack.c.l.b16 %v1683
    %v1765 = vunpack.c.h.b16 %v1683
    %v1766 = vunpack.c.l.b16 %v1684
    %v1767 = vunpack.c.h.b16 %v1684
    %v1768 = vunpack.c.l.b16 %v1685
    %v1769 = vunpack.c.h.b16 %v1685
    %v1770 = vunpack.c.l.b16 %v1686
    %v1771 = vunpack.c.h.b16 %v1686
    %v1772 = vunpack.c.l.b16 %v1687
    %v1773 = vunpack.c.h.b16 %v1687
    %v1774 = vunpack.c.l.b16 %v1688
    %v1775 = vunpack.c.h.b16 %v1688
    %v1776 = vunpack.c.l.b16 %v1689
    %v1777 = vunpack.c.h.b16 %v1689
    %v1778 = vunpack.c.l.b16 %v1690
    %v1779 = vunpack.c.h.b16 %v1690
    %v1780 = vunpack.c.l.b16 %v1691
    %v1781 = vunpack.c.h.b16 %v1691
    %v1782 = vunpack.c.l.b16 %v1692
    %v1783 = vunpack.c.h.b16 %v1692
    %v1784 = vunpack.c.l.b16 %v1693
    %v1785 = vunpack.c.h.b16 %v1693
    %v1786 = vunpack.c.l.b16 %v1694
    %v1787 = vunpack.c.h.b16 %v1694
    %v1788 = vunpack.c.l.b16 %v1695
    %v1789 = vunpack.c.h.b16 %v1695
    %v1790 = vunpack.c.l.b16 %v1696
    %v1791 = vunpack.c.h.b16 %v1696
    %v1792 = vunpack.c.l.b16 %v1697
    %v1793 = vunpack.c.h.b16 %v1697
    %v1794 = vunpack.c.l.b16 %v1698
    %v1795 = vunpack.c.h.b16 %v1698
    %v1796 = vunpack.c.l.b16 %v1699
    %v1797 = vunpack.c.h.b16 %v1699
    %v1798 = vunpack.c.l.b16 %v1700
    %v1799 = vunpack.c.h.b16 %v1700
    %v1800 = vunpack.c.l.b16 %v1701
    %v1801 = vunpack.c.h.b16 %v1701
    %v1802 = vunpack.c.l.b16 %v1702
    %v1803 = vunpack.c.h.b16 %v1702
    %v1804 = vpack.c.b16 %v1744, %v1740
    %v1805 = vpack.c.b16 %v1745, %v1741
    %v1806 = vpack.c.b16 %v1746, %v1742
    %v1807 = vpack.c.b16 %v1747, %v1743
    %v1808 = vpack.c.b16 %v1752, %v1748
    %v1809 = vpack.c.b16 %v1753, %v1749
    %v1810 = vpack.c.b16 %v1754, %v1750
    %v1811 = vpack.c.b16 %v1755, %v1751
    %v1812 = vpack.c.b16 %v1760, %v1756
    %v1813 = vpack.c.b16 %v1761, %v1757
    %v1814 = vpack.c.b16 %v1762, %v1758
    %v1815 = vpack.c.b16 %v1763, %v1759
    %v1816 = vpack.c.b16 %v1768, %v1764
    %v1817 = vpack.c.b16 %v1769, %v1765
    %v1818 = vpack.c.b16 %v1770, %v1766
    %v1819 = vpack.c.b16 %v1771, %v1767
    %v1820 = vpack.c.b16 %v1776, %v1772
    %v1821 = vpack.c.b16 %v1777, %v1773
    %v1822 = vpack.c.b16 %v1778, %v1774
    %v1823 = vpack.c.b16 %v1779, %v1775
    %v1824 = vpack.c.b16 %v1784, %v1780
    %v1825 = vpack.c.b16 %v1785, %v1781
    %v1826 = vpack.c.b16 %v1786, %v1782
    %v1827 = vpack.c.b16 %v1787, %v1783
    %v1828 = vpack.c.b16 %v1792, %v1788
    %v1829 = vpack.c.b16 %v1793, %v1789
    %v1830 = vpack.c.b16 %v1794, %v1790
    %v1831 = vpack.c.b16 %v1795, %v1791
    %v1832 = vpack.c.b16 %v1800, %v1796
    %v1833 = vpack.c.b16 %v1801, %v1797
    %v1834 = vpack.c.b16 %v1802, %v1798
    %v1835 = vpack.c.b16 %v1803, %v1799
    %1868 = vmatpush.bf16.msra.mxu0 %v1832
    %1869 = vmatpush.bf16.msra.mxu0 %v1828
    %1870 = vmatpush.bf16.msra.mxu0 %v1824
    %1871 = vmatpush.bf16.msra.mxu0 %v1820
    %1872 = vmatpush.bf16.msra.mxu0 %v1816
    %1873 = vmatpush.bf16.msra.mxu0 %v1812
    %1874 = vmatpush.bf16.msra.mxu0 %v1808
    %1875 = vmatpush.bf16.msra.mxu0 %v1804
    %1876 = vmatmul.bf16.gmra.mxu0 %v1706
    %v1877 = vpop.f32.mrf.mxu0
    %v1878 = vadd.f32 0.0, %v1877
    %v1879 = vpop.f32.mrf.mxu0
    %1880 = vdwg.mxu0
    %1881 = vmatpush.bf16.msra.mxu0 %v1833
    %1882 = vmatpush.bf16.msra.mxu0 %v1829
    %1883 = vmatpush.bf16.msra.mxu0 %v1825
    %1884 = vmatpush.bf16.msra.mxu0 %v1821
    %1885 = vmatpush.bf16.msra.mxu0 %v1817
    %1886 = vmatpush.bf16.msra.mxu0 %v1813
    %1887 = vmatpush.bf16.msra.mxu0 %v1809
    %1888 = vmatpush.bf16.msra.mxu0 %v1805
    %1889 = vmatmul.bf16.gmra.mxu0 %v1706
    %v1890 = vpop.f32.mrf.mxu0
    %v1891 = vadd.f32 0.0, %v1890
    %v1892 = vpop.f32.mrf.mxu0
    %1893 = vdwg.mxu0
    %1894 = vmatpush.bf16.msra.mxu0 %v1834
    %1895 = vmatpush.bf16.msra.mxu0 %v1830
    %1896 = vmatpush.bf16.msra.mxu0 %v1826
    %1897 = vmatpush.bf16.msra.mxu0 %v1822
    %1898 = vmatpush.bf16.msra.mxu0 %v1818
    %1899 = vmatpush.bf16.msra.mxu0 %v1814
    %1900 = vmatpush.bf16.msra.mxu0 %v1810
    %1901 = vmatpush.bf16.msra.mxu0 %v1806
    %1902 = vmatmul.bf16.gmra.mxu0 %v1706
    %v1903 = vpop.f32.mrf.mxu0
    %v1904 = vadd.f32 0.0, %v1903
    %v1905 = vpop.f32.mrf.mxu0
    %1906 = vdwg.mxu0
    %1907 = vmatpush.bf16.msra.mxu0 %v1835
    %1908 = vmatpush.bf16.msra.mxu0 %v1831
    %1909 = vmatpush.bf16.msra.mxu0 %v1827
    %1910 = vmatpush.bf16.msra.mxu0 %v1823
    %1911 = vmatpush.bf16.msra.mxu0 %v1819
    %1912 = vmatpush.bf16.msra.mxu0 %v1815
    %1913 = vmatpush.bf16.msra.mxu0 %v1811
    %1914 = vmatpush.bf16.msra.mxu0 %v1807
    %1915 = vmatmul.bf16.gmra.mxu0 %v1706
    %v1916 = vpop.f32.mrf.mxu0
    %v1917 = vadd.f32 0.0, %v1916
    %v1918 = vpop.f32.mrf.mxu0
    %1919 = vdwg.mxu0
    %v1920 = vadd.f32 %v1666, %v1878
    %v1921 = vadd.f32 %v1667, %v1891
    %v1922 = vadd.f32 %v1668, %v1904
    %v1923 = vadd.f32 %v1669, %v1917
    %s1924 = scalar_lea.vmem %s5, 1024
    %v1925 = vld [vmem:[%s1924] sm:$0xff]
    %v1926 = vld [vmem:[%s1924 + $0x8] sm:$0xff]
    %v1927 = vld [vmem:[%s1924 + $0x10] sm:$0xff]
    %v1928 = vld [vmem:[%s1924 + $0x18] sm:$0xff]
    %v1929 = vld [vmem:[%s1924 + $0x20] sm:$0xff]
    %v1930 = vld [vmem:[%s1924 + $0x28] sm:$0xff]
    %v1931 = vld [vmem:[%s1924 + $0x30] sm:$0xff]
    %v1932 = vld [vmem:[%s1924 + $0x38] sm:$0xff]
    %v1933 = vld [vmem:[%s1924 + $0x40] sm:$0xff]
    %v1934 = vld [vmem:[%s1924 + $0x48] sm:$0xff]
    %v1935 = vld [vmem:[%s1924 + $0x50] sm:$0xff]
    %v1936 = vld [vmem:[%s1924 + $0x58] sm:$0xff]
    %v1937 = vld [vmem:[%s1924 + $0x60] sm:$0xff]
    %v1938 = vld [vmem:[%s1924 + $0x68] sm:$0xff]
    %v1939 = vld [vmem:[%s1924 + $0x70] sm:$0xff]
    %v1940 = vld [vmem:[%s1924 + $0x78] sm:$0xff]
    %v1941 = vld [vmem:[%s1924 + $0x80] sm:$0xff]
    %v1942 = vld [vmem:[%s1924 + $0x88] sm:$0xff]
    %v1943 = vld [vmem:[%s1924 + $0x90] sm:$0xff]
    %v1944 = vld [vmem:[%s1924 + $0x98] sm:$0xff]
    %v1945 = vld [vmem:[%s1924 + $0xa0] sm:$0xff]
    %v1946 = vld [vmem:[%s1924 + $0xa8] sm:$0xff]
    %v1947 = vld [vmem:[%s1924 + $0xb0] sm:$0xff]
    %v1948 = vld [vmem:[%s1924 + $0xb8] sm:$0xff]
    %v1949 = vld [vmem:[%s1924 + $0xc0] sm:$0xff]
    %v1950 = vld [vmem:[%s1924 + $0xc8] sm:$0xff]
    %v1951 = vld [vmem:[%s1924 + $0xd0] sm:$0xff]
    %v1952 = vld [vmem:[%s1924 + $0xd8] sm:$0xff]
    %v1953 = vld [vmem:[%s1924 + $0xe0] sm:$0xff]
    %v1954 = vld [vmem:[%s1924 + $0xe8] sm:$0xff]
    %v1955 = vld [vmem:[%s1924 + $0xf0] sm:$0xff]
    %v1956 = vld [vmem:[%s1924 + $0xf8] sm:$0xff]
    %v1957 = vrot.slane %v981, 4
    %v1958 = vrot.slane %v982, 3
    %v1959 = vsel %vm984, %v1958, %v1957
    %v1960 = vpack.c.b16 %v1959, %v1959
    %v1994 = vunpack.c.l.b16 %v1925
    %v1995 = vunpack.c.h.b16 %v1925
    %v1996 = vunpack.c.l.b16 %v1926
    %v1997 = vunpack.c.h.b16 %v1926
    %v1998 = vunpack.c.l.b16 %v1927
    %v1999 = vunpack.c.h.b16 %v1927
    %v2000 = vunpack.c.l.b16 %v1928
    %v2001 = vunpack.c.h.b16 %v1928
    %v2002 = vunpack.c.l.b16 %v1929
    %v2003 = vunpack.c.h.b16 %v1929
    %v2004 = vunpack.c.l.b16 %v1930
    %v2005 = vunpack.c.h.b16 %v1930
    %v2006 = vunpack.c.l.b16 %v1931
    %v2007 = vunpack.c.h.b16 %v1931
    %v2008 = vunpack.c.l.b16 %v1932
    %v2009 = vunpack.c.h.b16 %v1932
    %v2010 = vunpack.c.l.b16 %v1933
    %v2011 = vunpack.c.h.b16 %v1933
    %v2012 = vunpack.c.l.b16 %v1934
    %v2013 = vunpack.c.h.b16 %v1934
    %v2014 = vunpack.c.l.b16 %v1935
    %v2015 = vunpack.c.h.b16 %v1935
    %v2016 = vunpack.c.l.b16 %v1936
    %v2017 = vunpack.c.h.b16 %v1936
    %v2018 = vunpack.c.l.b16 %v1937
    %v2019 = vunpack.c.h.b16 %v1937
    %v2020 = vunpack.c.l.b16 %v1938
    %v2021 = vunpack.c.h.b16 %v1938
    %v2022 = vunpack.c.l.b16 %v1939
    %v2023 = vunpack.c.h.b16 %v1939
    %v2024 = vunpack.c.l.b16 %v1940
    %v2025 = vunpack.c.h.b16 %v1940
    %v2026 = vunpack.c.l.b16 %v1941
    %v2027 = vunpack.c.h.b16 %v1941
    %v2028 = vunpack.c.l.b16 %v1942
    %v2029 = vunpack.c.h.b16 %v1942
    %v2030 = vunpack.c.l.b16 %v1943
    %v2031 = vunpack.c.h.b16 %v1943
    %v2032 = vunpack.c.l.b16 %v1944
    %v2033 = vunpack.c.h.b16 %v1944
    %v2034 = vunpack.c.l.b16 %v1945
    %v2035 = vunpack.c.h.b16 %v1945
    %v2036 = vunpack.c.l.b16 %v1946
    %v2037 = vunpack.c.h.b16 %v1946
    %v2038 = vunpack.c.l.b16 %v1947
    %v2039 = vunpack.c.h.b16 %v1947
    %v2040 = vunpack.c.l.b16 %v1948
    %v2041 = vunpack.c.h.b16 %v1948
    %v2042 = vunpack.c.l.b16 %v1949
    %v2043 = vunpack.c.h.b16 %v1949
    %v2044 = vunpack.c.l.b16 %v1950
    %v2045 = vunpack.c.h.b16 %v1950
    %v2046 = vunpack.c.l.b16 %v1951
    %v2047 = vunpack.c.h.b16 %v1951
    %v2048 = vunpack.c.l.b16 %v1952
    %v2049 = vunpack.c.h.b16 %v1952
    %v2050 = vunpack.c.l.b16 %v1953
    %v2051 = vunpack.c.h.b16 %v1953
    %v2052 = vunpack.c.l.b16 %v1954
    %v2053 = vunpack.c.h.b16 %v1954
    %v2054 = vunpack.c.l.b16 %v1955
    %v2055 = vunpack.c.h.b16 %v1955
    %v2056 = vunpack.c.l.b16 %v1956
    %v2057 = vunpack.c.h.b16 %v1956
    %v2058 = vpack.c.b16 %v1998, %v1994
    %v2059 = vpack.c.b16 %v1999, %v1995
    %v2060 = vpack.c.b16 %v2000, %v1996
    %v2061 = vpack.c.b16 %v2001, %v1997
    %v2062 = vpack.c.b16 %v2006, %v2002
    %v2063 = vpack.c.b16 %v2007, %v2003
    %v2064 = vpack.c.b16 %v2008, %v2004
    %v2065 = vpack.c.b16 %v2009, %v2005
    %v2066 = vpack.c.b16 %v2014, %v2010
    %v2067 = vpack.c.b16 %v2015, %v2011
    %v2068 = vpack.c.b16 %v2016, %v2012
    %v2069 = vpack.c.b16 %v2017, %v2013
    %v2070 = vpack.c.b16 %v2022, %v2018
    %v2071 = vpack.c.b16 %v2023, %v2019
    %v2072 = vpack.c.b16 %v2024, %v2020
    %v2073 = vpack.c.b16 %v2025, %v2021
    %v2074 = vpack.c.b16 %v2030, %v2026
    %v2075 = vpack.c.b16 %v2031, %v2027
    %v2076 = vpack.c.b16 %v2032, %v2028
    %v2077 = vpack.c.b16 %v2033, %v2029
    %v2078 = vpack.c.b16 %v2038, %v2034
    %v2079 = vpack.c.b16 %v2039, %v2035
    %v2080 = vpack.c.b16 %v2040, %v2036
    %v2081 = vpack.c.b16 %v2041, %v2037
    %v2082 = vpack.c.b16 %v2046, %v2042
    %v2083 = vpack.c.b16 %v2047, %v2043
    %v2084 = vpack.c.b16 %v2048, %v2044
    %v2085 = vpack.c.b16 %v2049, %v2045
    %v2086 = vpack.c.b16 %v2054, %v2050
    %v2087 = vpack.c.b16 %v2055, %v2051
    %v2088 = vpack.c.b16 %v2056, %v2052
    %v2089 = vpack.c.b16 %v2057, %v2053
    %2122 = vmatpush.bf16.msra.mxu0 %v2086
    %2123 = vmatpush.bf16.msra.mxu0 %v2082
    %2124 = vmatpush.bf16.msra.mxu0 %v2078
    %2125 = vmatpush.bf16.msra.mxu0 %v2074
    %2126 = vmatpush.bf16.msra.mxu0 %v2070
    %2127 = vmatpush.bf16.msra.mxu0 %v2066
    %2128 = vmatpush.bf16.msra.mxu0 %v2062
    %2129 = vmatpush.bf16.msra.mxu0 %v2058
    %2130 = vmatmul.bf16.gmra.mxu0 %v1960
    %v2131 = vpop.f32.mrf.mxu0
    %v2132 = vadd.f32 0.0, %v2131
    %v2133 = vpop.f32.mrf.mxu0
    %2134 = vdwg.mxu0
    %2135 = vmatpush.bf16.msra.mxu0 %v2087
    %2136 = vmatpush.bf16.msra.mxu0 %v2083
    %2137 = vmatpush.bf16.msra.mxu0 %v2079
    %2138 = vmatpush.bf16.msra.mxu0 %v2075
    %2139 = vmatpush.bf16.msra.mxu0 %v2071
    %2140 = vmatpush.bf16.msra.mxu0 %v2067
    %2141 = vmatpush.bf16.msra.mxu0 %v2063
    %2142 = vmatpush.bf16.msra.mxu0 %v2059
    %2143 = vmatmul.bf16.gmra.mxu0 %v1960
    %v2144 = vpop.f32.mrf.mxu0
    %v2145 = vadd.f32 0.0, %v2144
    %v2146 = vpop.f32.mrf.mxu0
    %2147 = vdwg.mxu0
    %2148 = vmatpush.bf16.msra.mxu0 %v2088
    %2149 = vmatpush.bf16.msra.mxu0 %v2084
    %2150 = vmatpush.bf16.msra.mxu0 %v2080
    %2151 = vmatpush.bf16.msra.mxu0 %v2076
    %2152 = vmatpush.bf16.msra.mxu0 %v2072
    %2153 = vmatpush.bf16.msra.mxu0 %v2068
    %2154 = vmatpush.bf16.msra.mxu0 %v2064
    %2155 = vmatpush.bf16.msra.mxu0 %v2060
    %2156 = vmatmul.bf16.gmra.mxu0 %v1960
    %v2157 = vpop.f32.mrf.mxu0
    %v2158 = vadd.f32 0.0, %v2157
    %v2159 = vpop.f32.mrf.mxu0
    %2160 = vdwg.mxu0
    %2161 = vmatpush.bf16.msra.mxu0 %v2089
    %2162 = vmatpush.bf16.msra.mxu0 %v2085
    %2163 = vmatpush.bf16.msra.mxu0 %v2081
    %2164 = vmatpush.bf16.msra.mxu0 %v2077
    %2165 = vmatpush.bf16.msra.mxu0 %v2073
    %2166 = vmatpush.bf16.msra.mxu0 %v2069
    %2167 = vmatpush.bf16.msra.mxu0 %v2065
    %2168 = vmatpush.bf16.msra.mxu0 %v2061
    %2169 = vmatmul.bf16.gmra.mxu0 %v1960
    %v2170 = vpop.f32.mrf.mxu0
    %v2171 = vadd.f32 0.0, %v2170
    %v2172 = vpop.f32.mrf.mxu0
    %2173 = vdwg.mxu0
    %v2174 = vadd.f32 %v1920, %v2132
    %v2175 = vadd.f32 %v1921, %v2145
    %v2176 = vadd.f32 %v1922, %v2158
    %v2177 = vadd.f32 %v1923, %v2171
    %s2178 = scalar_lea.vmem %s5, 1280
    %v2179 = vld [vmem:[%s2178] sm:$0xff]
    %v2180 = vld [vmem:[%s2178 + $0x8] sm:$0xff]
    %v2181 = vld [vmem:[%s2178 + $0x10] sm:$0xff]
    %v2182 = vld [vmem:[%s2178 + $0x18] sm:$0xff]
    %v2183 = vld [vmem:[%s2178 + $0x20] sm:$0xff]
    %v2184 = vld [vmem:[%s2178 + $0x28] sm:$0xff]
    %v2185 = vld [vmem:[%s2178 + $0x30] sm:$0xff]
    %v2186 = vld [vmem:[%s2178 + $0x38] sm:$0xff]
    %v2187 = vld [vmem:[%s2178 + $0x40] sm:$0xff]
    %v2188 = vld [vmem:[%s2178 + $0x48] sm:$0xff]
    %v2189 = vld [vmem:[%s2178 + $0x50] sm:$0xff]
    %v2190 = vld [vmem:[%s2178 + $0x58] sm:$0xff]
    %v2191 = vld [vmem:[%s2178 + $0x60] sm:$0xff]
    %v2192 = vld [vmem:[%s2178 + $0x68] sm:$0xff]
    %v2193 = vld [vmem:[%s2178 + $0x70] sm:$0xff]
    %v2194 = vld [vmem:[%s2178 + $0x78] sm:$0xff]
    %v2195 = vld [vmem:[%s2178 + $0x80] sm:$0xff]
    %v2196 = vld [vmem:[%s2178 + $0x88] sm:$0xff]
    %v2197 = vld [vmem:[%s2178 + $0x90] sm:$0xff]
    %v2198 = vld [vmem:[%s2178 + $0x98] sm:$0xff]
    %v2199 = vld [vmem:[%s2178 + $0xa0] sm:$0xff]
    %v2200 = vld [vmem:[%s2178 + $0xa8] sm:$0xff]
    %v2201 = vld [vmem:[%s2178 + $0xb0] sm:$0xff]
    %v2202 = vld [vmem:[%s2178 + $0xb8] sm:$0xff]
    %v2203 = vld [vmem:[%s2178 + $0xc0] sm:$0xff]
    %v2204 = vld [vmem:[%s2178 + $0xc8] sm:$0xff]
    %v2205 = vld [vmem:[%s2178 + $0xd0] sm:$0xff]
    %v2206 = vld [vmem:[%s2178 + $0xd8] sm:$0xff]
    %v2207 = vld [vmem:[%s2178 + $0xe0] sm:$0xff]
    %v2208 = vld [vmem:[%s2178 + $0xe8] sm:$0xff]
    %v2209 = vld [vmem:[%s2178 + $0xf0] sm:$0xff]
    %v2210 = vld [vmem:[%s2178 + $0xf8] sm:$0xff]
    %v2211 = vrot.slane %v981, 5
    %v2212 = vrot.slane %v982, 4
    %v2213 = vsel %vm984, %v2212, %v2211
    %v2214 = vpack.c.b16 %v2213, %v2213
    %v2248 = vunpack.c.l.b16 %v2179
    %v2249 = vunpack.c.h.b16 %v2179
    %v2250 = vunpack.c.l.b16 %v2180
    %v2251 = vunpack.c.h.b16 %v2180
    %v2252 = vunpack.c.l.b16 %v2181
    %v2253 = vunpack.c.h.b16 %v2181
    %v2254 = vunpack.c.l.b16 %v2182
    %v2255 = vunpack.c.h.b16 %v2182
    %v2256 = vunpack.c.l.b16 %v2183
    %v2257 = vunpack.c.h.b16 %v2183
    %v2258 = vunpack.c.l.b16 %v2184
    %v2259 = vunpack.c.h.b16 %v2184
    %v2260 = vunpack.c.l.b16 %v2185
    %v2261 = vunpack.c.h.b16 %v2185
    %v2262 = vunpack.c.l.b16 %v2186
    %v2263 = vunpack.c.h.b16 %v2186
    %v2264 = vunpack.c.l.b16 %v2187
    %v2265 = vunpack.c.h.b16 %v2187
    %v2266 = vunpack.c.l.b16 %v2188
    %v2267 = vunpack.c.h.b16 %v2188
    %v2268 = vunpack.c.l.b16 %v2189
    %v2269 = vunpack.c.h.b16 %v2189
    %v2270 = vunpack.c.l.b16 %v2190
    %v2271 = vunpack.c.h.b16 %v2190
    %v2272 = vunpack.c.l.b16 %v2191
    %v2273 = vunpack.c.h.b16 %v2191
    %v2274 = vunpack.c.l.b16 %v2192
    %v2275 = vunpack.c.h.b16 %v2192
    %v2276 = vunpack.c.l.b16 %v2193
    %v2277 = vunpack.c.h.b16 %v2193
    %v2278 = vunpack.c.l.b16 %v2194
    %v2279 = vunpack.c.h.b16 %v2194
    %v2280 = vunpack.c.l.b16 %v2195
    %v2281 = vunpack.c.h.b16 %v2195
    %v2282 = vunpack.c.l.b16 %v2196
    %v2283 = vunpack.c.h.b16 %v2196
    %v2284 = vunpack.c.l.b16 %v2197
    %v2285 = vunpack.c.h.b16 %v2197
    %v2286 = vunpack.c.l.b16 %v2198
    %v2287 = vunpack.c.h.b16 %v2198
    %v2288 = vunpack.c.l.b16 %v2199
    %v2289 = vunpack.c.h.b16 %v2199
    %v2290 = vunpack.c.l.b16 %v2200
    %v2291 = vunpack.c.h.b16 %v2200
    %v2292 = vunpack.c.l.b16 %v2201
    %v2293 = vunpack.c.h.b16 %v2201
    %v2294 = vunpack.c.l.b16 %v2202
    %v2295 = vunpack.c.h.b16 %v2202
    %v2296 = vunpack.c.l.b16 %v2203
    %v2297 = vunpack.c.h.b16 %v2203
    %v2298 = vunpack.c.l.b16 %v2204
    %v2299 = vunpack.c.h.b16 %v2204
    %v2300 = vunpack.c.l.b16 %v2205
    %v2301 = vunpack.c.h.b16 %v2205
    %v2302 = vunpack.c.l.b16 %v2206
    %v2303 = vunpack.c.h.b16 %v2206
    %v2304 = vunpack.c.l.b16 %v2207
    %v2305 = vunpack.c.h.b16 %v2207
    %v2306 = vunpack.c.l.b16 %v2208
    %v2307 = vunpack.c.h.b16 %v2208
    %v2308 = vunpack.c.l.b16 %v2209
    %v2309 = vunpack.c.h.b16 %v2209
    %v2310 = vunpack.c.l.b16 %v2210
    %v2311 = vunpack.c.h.b16 %v2210
    %v2312 = vpack.c.b16 %v2252, %v2248
    %v2313 = vpack.c.b16 %v2253, %v2249
    %v2314 = vpack.c.b16 %v2254, %v2250
    %v2315 = vpack.c.b16 %v2255, %v2251
    %v2316 = vpack.c.b16 %v2260, %v2256
    %v2317 = vpack.c.b16 %v2261, %v2257
    %v2318 = vpack.c.b16 %v2262, %v2258
    %v2319 = vpack.c.b16 %v2263, %v2259
    %v2320 = vpack.c.b16 %v2268, %v2264
    %v2321 = vpack.c.b16 %v2269, %v2265
    %v2322 = vpack.c.b16 %v2270, %v2266
    %v2323 = vpack.c.b16 %v2271, %v2267
    %v2324 = vpack.c.b16 %v2276, %v2272
    %v2325 = vpack.c.b16 %v2277, %v2273
    %v2326 = vpack.c.b16 %v2278, %v2274
    %v2327 = vpack.c.b16 %v2279, %v2275
    %v2328 = vpack.c.b16 %v2284, %v2280
    %v2329 = vpack.c.b16 %v2285, %v2281
    %v2330 = vpack.c.b16 %v2286, %v2282
    %v2331 = vpack.c.b16 %v2287, %v2283
    %v2332 = vpack.c.b16 %v2292, %v2288
    %v2333 = vpack.c.b16 %v2293, %v2289
    %v2334 = vpack.c.b16 %v2294, %v2290
    %v2335 = vpack.c.b16 %v2295, %v2291
    %v2336 = vpack.c.b16 %v2300, %v2296
    %v2337 = vpack.c.b16 %v2301, %v2297
    %v2338 = vpack.c.b16 %v2302, %v2298
    %v2339 = vpack.c.b16 %v2303, %v2299
    %v2340 = vpack.c.b16 %v2308, %v2304
    %v2341 = vpack.c.b16 %v2309, %v2305
    %v2342 = vpack.c.b16 %v2310, %v2306
    %v2343 = vpack.c.b16 %v2311, %v2307
    %2376 = vmatpush.bf16.msra.mxu0 %v2340
    %2377 = vmatpush.bf16.msra.mxu0 %v2336
    %2378 = vmatpush.bf16.msra.mxu0 %v2332
    %2379 = vmatpush.bf16.msra.mxu0 %v2328
    %2380 = vmatpush.bf16.msra.mxu0 %v2324
    %2381 = vmatpush.bf16.msra.mxu0 %v2320
    %2382 = vmatpush.bf16.msra.mxu0 %v2316
    %2383 = vmatpush.bf16.msra.mxu0 %v2312
    %2384 = vmatmul.bf16.gmra.mxu0 %v2214
    %v2385 = vpop.f32.mrf.mxu0
    %v2386 = vadd.f32 0.0, %v2385
    %v2387 = vpop.f32.mrf.mxu0
    %2388 = vdwg.mxu0
    %2389 = vmatpush.bf16.msra.mxu0 %v2341
    %2390 = vmatpush.bf16.msra.mxu0 %v2337
    %2391 = vmatpush.bf16.msra.mxu0 %v2333
    %2392 = vmatpush.bf16.msra.mxu0 %v2329
    %2393 = vmatpush.bf16.msra.mxu0 %v2325
    %2394 = vmatpush.bf16.msra.mxu0 %v2321
    %2395 = vmatpush.bf16.msra.mxu0 %v2317
    %2396 = vmatpush.bf16.msra.mxu0 %v2313
    %2397 = vmatmul.bf16.gmra.mxu0 %v2214
    %v2398 = vpop.f32.mrf.mxu0
    %v2399 = vadd.f32 0.0, %v2398
    %v2400 = vpop.f32.mrf.mxu0
    %2401 = vdwg.mxu0
    %2402 = vmatpush.bf16.msra.mxu0 %v2342
    %2403 = vmatpush.bf16.msra.mxu0 %v2338
    %2404 = vmatpush.bf16.msra.mxu0 %v2334
    %2405 = vmatpush.bf16.msra.mxu0 %v2330
    %2406 = vmatpush.bf16.msra.mxu0 %v2326
    %2407 = vmatpush.bf16.msra.mxu0 %v2322
    %2408 = vmatpush.bf16.msra.mxu0 %v2318
    %2409 = vmatpush.bf16.msra.mxu0 %v2314
    %2410 = vmatmul.bf16.gmra.mxu0 %v2214
    %v2411 = vpop.f32.mrf.mxu0
    %v2412 = vadd.f32 0.0, %v2411
    %v2413 = vpop.f32.mrf.mxu0
    %2414 = vdwg.mxu0
    %2415 = vmatpush.bf16.msra.mxu0 %v2343
    %2416 = vmatpush.bf16.msra.mxu0 %v2339
    %2417 = vmatpush.bf16.msra.mxu0 %v2335
    %2418 = vmatpush.bf16.msra.mxu0 %v2331
    %2419 = vmatpush.bf16.msra.mxu0 %v2327
    %2420 = vmatpush.bf16.msra.mxu0 %v2323
    %2421 = vmatpush.bf16.msra.mxu0 %v2319
    %2422 = vmatpush.bf16.msra.mxu0 %v2315
    %2423 = vmatmul.bf16.gmra.mxu0 %v2214
    %v2424 = vpop.f32.mrf.mxu0
    %v2425 = vadd.f32 0.0, %v2424
    %v2426 = vpop.f32.mrf.mxu0
    %2427 = vdwg.mxu0
    %v2428 = vadd.f32 %v2174, %v2386
    %v2429 = vadd.f32 %v2175, %v2399
    %v2430 = vadd.f32 %v2176, %v2412
    %v2431 = vadd.f32 %v2177, %v2425
    %s2432 = scalar_lea.vmem %s5, 1536
    %v2433 = vld [vmem:[%s2432] sm:$0xff]
    %v2434 = vld [vmem:[%s2432 + $0x8] sm:$0xff]
    %v2435 = vld [vmem:[%s2432 + $0x10] sm:$0xff]
    %v2436 = vld [vmem:[%s2432 + $0x18] sm:$0xff]
    %v2437 = vld [vmem:[%s2432 + $0x20] sm:$0xff]
    %v2438 = vld [vmem:[%s2432 + $0x28] sm:$0xff]
    %v2439 = vld [vmem:[%s2432 + $0x30] sm:$0xff]
    %v2440 = vld [vmem:[%s2432 + $0x38] sm:$0xff]
    %v2441 = vld [vmem:[%s2432 + $0x40] sm:$0xff]
    %v2442 = vld [vmem:[%s2432 + $0x48] sm:$0xff]
    %v2443 = vld [vmem:[%s2432 + $0x50] sm:$0xff]
    %v2444 = vld [vmem:[%s2432 + $0x58] sm:$0xff]
    %v2445 = vld [vmem:[%s2432 + $0x60] sm:$0xff]
    %v2446 = vld [vmem:[%s2432 + $0x68] sm:$0xff]
    %v2447 = vld [vmem:[%s2432 + $0x70] sm:$0xff]
    %v2448 = vld [vmem:[%s2432 + $0x78] sm:$0xff]
    %v2449 = vld [vmem:[%s2432 + $0x80] sm:$0xff]
    %v2450 = vld [vmem:[%s2432 + $0x88] sm:$0xff]
    %v2451 = vld [vmem:[%s2432 + $0x90] sm:$0xff]
    %v2452 = vld [vmem:[%s2432 + $0x98] sm:$0xff]
    %v2453 = vld [vmem:[%s2432 + $0xa0] sm:$0xff]
    %v2454 = vld [vmem:[%s2432 + $0xa8] sm:$0xff]
    %v2455 = vld [vmem:[%s2432 + $0xb0] sm:$0xff]
    %v2456 = vld [vmem:[%s2432 + $0xb8] sm:$0xff]
    %v2457 = vld [vmem:[%s2432 + $0xc0] sm:$0xff]
    %v2458 = vld [vmem:[%s2432 + $0xc8] sm:$0xff]
    %v2459 = vld [vmem:[%s2432 + $0xd0] sm:$0xff]
    %v2460 = vld [vmem:[%s2432 + $0xd8] sm:$0xff]
    %v2461 = vld [vmem:[%s2432 + $0xe0] sm:$0xff]
    %v2462 = vld [vmem:[%s2432 + $0xe8] sm:$0xff]
    %v2463 = vld [vmem:[%s2432 + $0xf0] sm:$0xff]
    %v2464 = vld [vmem:[%s2432 + $0xf8] sm:$0xff]
    %v2465 = vrot.slane %v981, 6
    %v2466 = vrot.slane %v982, 5
    %v2467 = vsel %vm984, %v2466, %v2465
    %v2468 = vpack.c.b16 %v2467, %v2467
    %v2502 = vunpack.c.l.b16 %v2433
    %v2503 = vunpack.c.h.b16 %v2433
    %v2504 = vunpack.c.l.b16 %v2434
    %v2505 = vunpack.c.h.b16 %v2434
    %v2506 = vunpack.c.l.b16 %v2435
    %v2507 = vunpack.c.h.b16 %v2435
    %v2508 = vunpack.c.l.b16 %v2436
    %v2509 = vunpack.c.h.b16 %v2436
    %v2510 = vunpack.c.l.b16 %v2437
    %v2511 = vunpack.c.h.b16 %v2437
    %v2512 = vunpack.c.l.b16 %v2438
    %v2513 = vunpack.c.h.b16 %v2438
    %v2514 = vunpack.c.l.b16 %v2439
    %v2515 = vunpack.c.h.b16 %v2439
    %v2516 = vunpack.c.l.b16 %v2440
    %v2517 = vunpack.c.h.b16 %v2440
    %v2518 = vunpack.c.l.b16 %v2441
    %v2519 = vunpack.c.h.b16 %v2441
    %v2520 = vunpack.c.l.b16 %v2442
    %v2521 = vunpack.c.h.b16 %v2442
    %v2522 = vunpack.c.l.b16 %v2443
    %v2523 = vunpack.c.h.b16 %v2443
    %v2524 = vunpack.c.l.b16 %v2444
    %v2525 = vunpack.c.h.b16 %v2444
    %v2526 = vunpack.c.l.b16 %v2445
    %v2527 = vunpack.c.h.b16 %v2445
    %v2528 = vunpack.c.l.b16 %v2446
    %v2529 = vunpack.c.h.b16 %v2446
    %v2530 = vunpack.c.l.b16 %v2447
    %v2531 = vunpack.c.h.b16 %v2447
    %v2532 = vunpack.c.l.b16 %v2448
    %v2533 = vunpack.c.h.b16 %v2448
    %v2534 = vunpack.c.l.b16 %v2449
    %v2535 = vunpack.c.h.b16 %v2449
    %v2536 = vunpack.c.l.b16 %v2450
    %v2537 = vunpack.c.h.b16 %v2450
    %v2538 = vunpack.c.l.b16 %v2451
    %v2539 = vunpack.c.h.b16 %v2451
    %v2540 = vunpack.c.l.b16 %v2452
    %v2541 = vunpack.c.h.b16 %v2452
    %v2542 = vunpack.c.l.b16 %v2453
    %v2543 = vunpack.c.h.b16 %v2453
    %v2544 = vunpack.c.l.b16 %v2454
    %v2545 = vunpack.c.h.b16 %v2454
    %v2546 = vunpack.c.l.b16 %v2455
    %v2547 = vunpack.c.h.b16 %v2455
    %v2548 = vunpack.c.l.b16 %v2456
    %v2549 = vunpack.c.h.b16 %v2456
    %v2550 = vunpack.c.l.b16 %v2457
    %v2551 = vunpack.c.h.b16 %v2457
    %v2552 = vunpack.c.l.b16 %v2458
    %v2553 = vunpack.c.h.b16 %v2458
    %v2554 = vunpack.c.l.b16 %v2459
    %v2555 = vunpack.c.h.b16 %v2459
    %v2556 = vunpack.c.l.b16 %v2460
    %v2557 = vunpack.c.h.b16 %v2460
    %v2558 = vunpack.c.l.b16 %v2461
    %v2559 = vunpack.c.h.b16 %v2461
    %v2560 = vunpack.c.l.b16 %v2462
    %v2561 = vunpack.c.h.b16 %v2462
    %v2562 = vunpack.c.l.b16 %v2463
    %v2563 = vunpack.c.h.b16 %v2463
    %v2564 = vunpack.c.l.b16 %v2464
    %v2565 = vunpack.c.h.b16 %v2464
    %v2566 = vpack.c.b16 %v2506, %v2502
    %v2567 = vpack.c.b16 %v2507, %v2503
    %v2568 = vpack.c.b16 %v2508, %v2504
    %v2569 = vpack.c.b16 %v2509, %v2505
    %v2570 = vpack.c.b16 %v2514, %v2510
    %v2571 = vpack.c.b16 %v2515, %v2511
    %v2572 = vpack.c.b16 %v2516, %v2512
    %v2573 = vpack.c.b16 %v2517, %v2513
    %v2574 = vpack.c.b16 %v2522, %v2518
    %v2575 = vpack.c.b16 %v2523, %v2519
    %v2576 = vpack.c.b16 %v2524, %v2520
    %v2577 = vpack.c.b16 %v2525, %v2521
    %v2578 = vpack.c.b16 %v2530, %v2526
    %v2579 = vpack.c.b16 %v2531, %v2527
    %v2580 = vpack.c.b16 %v2532, %v2528
    %v2581 = vpack.c.b16 %v2533, %v2529
    %v2582 = vpack.c.b16 %v2538, %v2534
    %v2583 = vpack.c.b16 %v2539, %v2535
    %v2584 = vpack.c.b16 %v2540, %v2536
    %v2585 = vpack.c.b16 %v2541, %v2537
    %v2586 = vpack.c.b16 %v2546, %v2542
    %v2587 = vpack.c.b16 %v2547, %v2543
    %v2588 = vpack.c.b16 %v2548, %v2544
    %v2589 = vpack.c.b16 %v2549, %v2545
    %v2590 = vpack.c.b16 %v2554, %v2550
    %v2591 = vpack.c.b16 %v2555, %v2551
    %v2592 = vpack.c.b16 %v2556, %v2552
    %v2593 = vpack.c.b16 %v2557, %v2553
    %v2594 = vpack.c.b16 %v2562, %v2558
    %v2595 = vpack.c.b16 %v2563, %v2559
    %v2596 = vpack.c.b16 %v2564, %v2560
    %v2597 = vpack.c.b16 %v2565, %v2561
    %2630 = vmatpush.bf16.msra.mxu0 %v2594
    %2631 = vmatpush.bf16.msra.mxu0 %v2590
    %2632 = vmatpush.bf16.msra.mxu0 %v2586
    %2633 = vmatpush.bf16.msra.mxu0 %v2582
    %2634 = vmatpush.bf16.msra.mxu0 %v2578
    %2635 = vmatpush.bf16.msra.mxu0 %v2574
    %2636 = vmatpush.bf16.msra.mxu0 %v2570
    %2637 = vmatpush.bf16.msra.mxu0 %v2566
    %2638 = vmatmul.bf16.gmra.mxu0 %v2468
    %v2639 = vpop.f32.mrf.mxu0
    %v2640 = vadd.f32 0.0, %v2639
    %v2641 = vpop.f32.mrf.mxu0
    %2642 = vdwg.mxu0
    %2643 = vmatpush.bf16.msra.mxu0 %v2595
    %2644 = vmatpush.bf16.msra.mxu0 %v2591
    %2645 = vmatpush.bf16.msra.mxu0 %v2587
    %2646 = vmatpush.bf16.msra.mxu0 %v2583
    %2647 = vmatpush.bf16.msra.mxu0 %v2579
    %2648 = vmatpush.bf16.msra.mxu0 %v2575
    %2649 = vmatpush.bf16.msra.mxu0 %v2571
    %2650 = vmatpush.bf16.msra.mxu0 %v2567
    %2651 = vmatmul.bf16.gmra.mxu0 %v2468
    %v2652 = vpop.f32.mrf.mxu0
    %v2653 = vadd.f32 0.0, %v2652
    %v2654 = vpop.f32.mrf.mxu0
    %2655 = vdwg.mxu0
    %2656 = vmatpush.bf16.msra.mxu0 %v2596
    %2657 = vmatpush.bf16.msra.mxu0 %v2592
    %2658 = vmatpush.bf16.msra.mxu0 %v2588
    %2659 = vmatpush.bf16.msra.mxu0 %v2584
    %2660 = vmatpush.bf16.msra.mxu0 %v2580
    %2661 = vmatpush.bf16.msra.mxu0 %v2576
    %2662 = vmatpush.bf16.msra.mxu0 %v2572
    %2663 = vmatpush.bf16.msra.mxu0 %v2568
    %2664 = vmatmul.bf16.gmra.mxu0 %v2468
    %v2665 = vpop.f32.mrf.mxu0
    %v2666 = vadd.f32 0.0, %v2665
    %v2667 = vpop.f32.mrf.mxu0
    %2668 = vdwg.mxu0
    %2669 = vmatpush.bf16.msra.mxu0 %v2597
    %2670 = vmatpush.bf16.msra.mxu0 %v2593
    %2671 = vmatpush.bf16.msra.mxu0 %v2589
    %2672 = vmatpush.bf16.msra.mxu0 %v2585
    %2673 = vmatpush.bf16.msra.mxu0 %v2581
    %2674 = vmatpush.bf16.msra.mxu0 %v2577
    %2675 = vmatpush.bf16.msra.mxu0 %v2573
    %2676 = vmatpush.bf16.msra.mxu0 %v2569
    %2677 = vmatmul.bf16.gmra.mxu0 %v2468
    %v2678 = vpop.f32.mrf.mxu0
    %v2679 = vadd.f32 0.0, %v2678
    %v2680 = vpop.f32.mrf.mxu0
    %2681 = vdwg.mxu0
    %v2682 = vadd.f32 %v2428, %v2640
    %v2683 = vadd.f32 %v2429, %v2653
    %v2684 = vadd.f32 %v2430, %v2666
    %v2685 = vadd.f32 %v2431, %v2679
    %s2686 = scalar_lea.vmem %s5, 1792
    %v2687 = vld [vmem:[%s2686] sm:$0xff]
    %v2688 = vld [vmem:[%s2686 + $0x8] sm:$0xff]
    %v2689 = vld [vmem:[%s2686 + $0x10] sm:$0xff]
    %v2690 = vld [vmem:[%s2686 + $0x18] sm:$0xff]
    %v2691 = vld [vmem:[%s2686 + $0x20] sm:$0xff]
    %v2692 = vld [vmem:[%s2686 + $0x28] sm:$0xff]
    %v2693 = vld [vmem:[%s2686 + $0x30] sm:$0xff]
    %v2694 = vld [vmem:[%s2686 + $0x38] sm:$0xff]
    %v2695 = vld [vmem:[%s2686 + $0x40] sm:$0xff]
    %v2696 = vld [vmem:[%s2686 + $0x48] sm:$0xff]
    %v2697 = vld [vmem:[%s2686 + $0x50] sm:$0xff]
    %v2698 = vld [vmem:[%s2686 + $0x58] sm:$0xff]
    %v2699 = vld [vmem:[%s2686 + $0x60] sm:$0xff]
    %v2700 = vld [vmem:[%s2686 + $0x68] sm:$0xff]
    %v2701 = vld [vmem:[%s2686 + $0x70] sm:$0xff]
    %v2702 = vld [vmem:[%s2686 + $0x78] sm:$0xff]
    %v2703 = vld [vmem:[%s2686 + $0x80] sm:$0xff]
    %v2704 = vld [vmem:[%s2686 + $0x88] sm:$0xff]
    %v2705 = vld [vmem:[%s2686 + $0x90] sm:$0xff]
    %v2706 = vld [vmem:[%s2686 + $0x98] sm:$0xff]
    %v2707 = vld [vmem:[%s2686 + $0xa0] sm:$0xff]
    %v2708 = vld [vmem:[%s2686 + $0xa8] sm:$0xff]
    %v2709 = vld [vmem:[%s2686 + $0xb0] sm:$0xff]
    %v2710 = vld [vmem:[%s2686 + $0xb8] sm:$0xff]
    %v2711 = vld [vmem:[%s2686 + $0xc0] sm:$0xff]
    %v2712 = vld [vmem:[%s2686 + $0xc8] sm:$0xff]
    %v2713 = vld [vmem:[%s2686 + $0xd0] sm:$0xff]
    %v2714 = vld [vmem:[%s2686 + $0xd8] sm:$0xff]
    %v2715 = vld [vmem:[%s2686 + $0xe0] sm:$0xff]
    %v2716 = vld [vmem:[%s2686 + $0xe8] sm:$0xff]
    %v2717 = vld [vmem:[%s2686 + $0xf0] sm:$0xff]
    %v2718 = vld [vmem:[%s2686 + $0xf8] sm:$0xff]
    %v2719 = vrot.slane %v981, 7
    %v2720 = vrot.slane %v982, 6
    %v2721 = vsel %vm984, %v2720, %v2719
    %v2722 = vpack.c.b16 %v2721, %v2721
    %v2756 = vunpack.c.l.b16 %v2687
    %v2757 = vunpack.c.h.b16 %v2687
    %v2758 = vunpack.c.l.b16 %v2688
    %v2759 = vunpack.c.h.b16 %v2688
    %v2760 = vunpack.c.l.b16 %v2689
    %v2761 = vunpack.c.h.b16 %v2689
    %v2762 = vunpack.c.l.b16 %v2690
    %v2763 = vunpack.c.h.b16 %v2690
    %v2764 = vunpack.c.l.b16 %v2691
    %v2765 = vunpack.c.h.b16 %v2691
    %v2766 = vunpack.c.l.b16 %v2692
    %v2767 = vunpack.c.h.b16 %v2692
    %v2768 = vunpack.c.l.b16 %v2693
    %v2769 = vunpack.c.h.b16 %v2693
    %v2770 = vunpack.c.l.b16 %v2694
    %v2771 = vunpack.c.h.b16 %v2694
    %v2772 = vunpack.c.l.b16 %v2695
    %v2773 = vunpack.c.h.b16 %v2695
    %v2774 = vunpack.c.l.b16 %v2696
    %v2775 = vunpack.c.h.b16 %v2696
    %v2776 = vunpack.c.l.b16 %v2697
    %v2777 = vunpack.c.h.b16 %v2697
    %v2778 = vunpack.c.l.b16 %v2698
    %v2779 = vunpack.c.h.b16 %v2698
    %v2780 = vunpack.c.l.b16 %v2699
    %v2781 = vunpack.c.h.b16 %v2699
    %v2782 = vunpack.c.l.b16 %v2700
    %v2783 = vunpack.c.h.b16 %v2700
    %v2784 = vunpack.c.l.b16 %v2701
    %v2785 = vunpack.c.h.b16 %v2701
    %v2786 = vunpack.c.l.b16 %v2702
    %v2787 = vunpack.c.h.b16 %v2702
    %v2788 = vunpack.c.l.b16 %v2703
    %v2789 = vunpack.c.h.b16 %v2703
    %v2790 = vunpack.c.l.b16 %v2704
    %v2791 = vunpack.c.h.b16 %v2704
    %v2792 = vunpack.c.l.b16 %v2705
    %v2793 = vunpack.c.h.b16 %v2705
    %v2794 = vunpack.c.l.b16 %v2706
    %v2795 = vunpack.c.h.b16 %v2706
    %v2796 = vunpack.c.l.b16 %v2707
    %v2797 = vunpack.c.h.b16 %v2707
    %v2798 = vunpack.c.l.b16 %v2708
    %v2799 = vunpack.c.h.b16 %v2708
    %v2800 = vunpack.c.l.b16 %v2709
    %v2801 = vunpack.c.h.b16 %v2709
    %v2802 = vunpack.c.l.b16 %v2710
    %v2803 = vunpack.c.h.b16 %v2710
    %v2804 = vunpack.c.l.b16 %v2711
    %v2805 = vunpack.c.h.b16 %v2711
    %v2806 = vunpack.c.l.b16 %v2712
    %v2807 = vunpack.c.h.b16 %v2712
    %v2808 = vunpack.c.l.b16 %v2713
    %v2809 = vunpack.c.h.b16 %v2713
    %v2810 = vunpack.c.l.b16 %v2714
    %v2811 = vunpack.c.h.b16 %v2714
    %v2812 = vunpack.c.l.b16 %v2715
    %v2813 = vunpack.c.h.b16 %v2715
    %v2814 = vunpack.c.l.b16 %v2716
    %v2815 = vunpack.c.h.b16 %v2716
    %v2816 = vunpack.c.l.b16 %v2717
    %v2817 = vunpack.c.h.b16 %v2717
    %v2818 = vunpack.c.l.b16 %v2718
    %v2819 = vunpack.c.h.b16 %v2718
    %v2820 = vpack.c.b16 %v2760, %v2756
    %v2821 = vpack.c.b16 %v2761, %v2757
    %v2822 = vpack.c.b16 %v2762, %v2758
    %v2823 = vpack.c.b16 %v2763, %v2759
    %v2824 = vpack.c.b16 %v2768, %v2764
    %v2825 = vpack.c.b16 %v2769, %v2765
    %v2826 = vpack.c.b16 %v2770, %v2766
    %v2827 = vpack.c.b16 %v2771, %v2767
    %v2828 = vpack.c.b16 %v2776, %v2772
    %v2829 = vpack.c.b16 %v2777, %v2773
    %v2830 = vpack.c.b16 %v2778, %v2774
    %v2831 = vpack.c.b16 %v2779, %v2775
    %v2832 = vpack.c.b16 %v2784, %v2780
    %v2833 = vpack.c.b16 %v2785, %v2781
    %v2834 = vpack.c.b16 %v2786, %v2782
    %v2835 = vpack.c.b16 %v2787, %v2783
    %v2836 = vpack.c.b16 %v2792, %v2788
    %v2837 = vpack.c.b16 %v2793, %v2789
    %v2838 = vpack.c.b16 %v2794, %v2790
    %v2839 = vpack.c.b16 %v2795, %v2791
    %v2840 = vpack.c.b16 %v2800, %v2796
    %v2841 = vpack.c.b16 %v2801, %v2797
    %v2842 = vpack.c.b16 %v2802, %v2798
    %v2843 = vpack.c.b16 %v2803, %v2799
    %v2844 = vpack.c.b16 %v2808, %v2804
    %v2845 = vpack.c.b16 %v2809, %v2805
    %v2846 = vpack.c.b16 %v2810, %v2806
    %v2847 = vpack.c.b16 %v2811, %v2807
    %v2848 = vpack.c.b16 %v2816, %v2812
    %v2849 = vpack.c.b16 %v2817, %v2813
    %v2850 = vpack.c.b16 %v2818, %v2814
    %v2851 = vpack.c.b16 %v2819, %v2815
    %2884 = vmatpush.bf16.msra.mxu0 %v2848
    %2885 = vmatpush.bf16.msra.mxu0 %v2844
    %2886 = vmatpush.bf16.msra.mxu0 %v2840
    %2887 = vmatpush.bf16.msra.mxu0 %v2836
    %2888 = vmatpush.bf16.msra.mxu0 %v2832
    %2889 = vmatpush.bf16.msra.mxu0 %v2828
    %2890 = vmatpush.bf16.msra.mxu0 %v2824
    %2891 = vmatpush.bf16.msra.mxu0 %v2820
    %2892 = vmatmul.bf16.gmra.mxu0 %v2722
    %v2893 = vpop.f32.mrf.mxu0
    %v2894 = vadd.f32 0.0, %v2893
    %v2895 = vpop.f32.mrf.mxu0
    %2896 = vdwg.mxu0
    %2897 = vmatpush.bf16.msra.mxu0 %v2849
    %2898 = vmatpush.bf16.msra.mxu0 %v2845
    %2899 = vmatpush.bf16.msra.mxu0 %v2841
    %2900 = vmatpush.bf16.msra.mxu0 %v2837
    %2901 = vmatpush.bf16.msra.mxu0 %v2833
    %2902 = vmatpush.bf16.msra.mxu0 %v2829
    %2903 = vmatpush.bf16.msra.mxu0 %v2825
    %2904 = vmatpush.bf16.msra.mxu0 %v2821
    %2905 = vmatmul.bf16.gmra.mxu0 %v2722
    %v2906 = vpop.f32.mrf.mxu0
    %v2907 = vadd.f32 0.0, %v2906
    %v2908 = vpop.f32.mrf.mxu0
    %2909 = vdwg.mxu0
    %2910 = vmatpush.bf16.msra.mxu0 %v2850
    %2911 = vmatpush.bf16.msra.mxu0 %v2846
    %2912 = vmatpush.bf16.msra.mxu0 %v2842
    %2913 = vmatpush.bf16.msra.mxu0 %v2838
    %2914 = vmatpush.bf16.msra.mxu0 %v2834
    %2915 = vmatpush.bf16.msra.mxu0 %v2830
    %2916 = vmatpush.bf16.msra.mxu0 %v2826
    %2917 = vmatpush.bf16.msra.mxu0 %v2822
    %2918 = vmatmul.bf16.gmra.mxu0 %v2722
    %v2919 = vpop.f32.mrf.mxu0
    %v2920 = vadd.f32 0.0, %v2919
    %v2921 = vpop.f32.mrf.mxu0
    %2922 = vdwg.mxu0
    %2923 = vmatpush.bf16.msra.mxu0 %v2851
    %2924 = vmatpush.bf16.msra.mxu0 %v2847
    %2925 = vmatpush.bf16.msra.mxu0 %v2843
    %2926 = vmatpush.bf16.msra.mxu0 %v2839
    %2927 = vmatpush.bf16.msra.mxu0 %v2835
    %2928 = vmatpush.bf16.msra.mxu0 %v2831
    %2929 = vmatpush.bf16.msra.mxu0 %v2827
    %2930 = vmatpush.bf16.msra.mxu0 %v2823
    %2931 = vmatmul.bf16.gmra.mxu0 %v2722
    %v2932 = vpop.f32.mrf.mxu0
    %v2933 = vadd.f32 0.0, %v2932
    %v2934 = vpop.f32.mrf.mxu0
    %2935 = vdwg.mxu0
    %v2936 = vadd.f32 %v2682, %v2894
    %v2937 = vadd.f32 %v2683, %v2907
    %v2938 = vadd.f32 %v2684, %v2920
    %v2939 = vadd.f32 %v2685, %v2933
    %v2940 = vpack.c.bf16 %v909, %v909
    %v2941 = vpack.c.bf16 %v911, %v911
    %s2942 = scalar_lea.vmem %s5, 2048
    %v2943 = vld [vmem:[%s2942] sm:$0xff]
    %v2944 = vld [vmem:[%s2942 + $0x8] sm:$0xff]
    %v2945 = vld [vmem:[%s2942 + $0x10] sm:$0xff]
    %v2946 = vld [vmem:[%s2942 + $0x18] sm:$0xff]
    %v2947 = vld [vmem:[%s2942 + $0x20] sm:$0xff]
    %v2948 = vld [vmem:[%s2942 + $0x28] sm:$0xff]
    %v2949 = vld [vmem:[%s2942 + $0x30] sm:$0xff]
    %v2950 = vld [vmem:[%s2942 + $0x38] sm:$0xff]
    %v2951 = vld [vmem:[%s2942 + $0x40] sm:$0xff]
    %v2952 = vld [vmem:[%s2942 + $0x48] sm:$0xff]
    %v2953 = vld [vmem:[%s2942 + $0x50] sm:$0xff]
    %v2954 = vld [vmem:[%s2942 + $0x58] sm:$0xff]
    %v2955 = vld [vmem:[%s2942 + $0x60] sm:$0xff]
    %v2956 = vld [vmem:[%s2942 + $0x68] sm:$0xff]
    %v2957 = vld [vmem:[%s2942 + $0x70] sm:$0xff]
    %v2958 = vld [vmem:[%s2942 + $0x78] sm:$0xff]
    %v2959 = vld [vmem:[%s2942 + $0x80] sm:$0xff]
    %v2960 = vld [vmem:[%s2942 + $0x88] sm:$0xff]
    %v2961 = vld [vmem:[%s2942 + $0x90] sm:$0xff]
    %v2962 = vld [vmem:[%s2942 + $0x98] sm:$0xff]
    %v2963 = vld [vmem:[%s2942 + $0xa0] sm:$0xff]
    %v2964 = vld [vmem:[%s2942 + $0xa8] sm:$0xff]
    %v2965 = vld [vmem:[%s2942 + $0xb0] sm:$0xff]
    %v2966 = vld [vmem:[%s2942 + $0xb8] sm:$0xff]
    %v2967 = vld [vmem:[%s2942 + $0xc0] sm:$0xff]
    %v2968 = vld [vmem:[%s2942 + $0xc8] sm:$0xff]
    %v2969 = vld [vmem:[%s2942 + $0xd0] sm:$0xff]
    %v2970 = vld [vmem:[%s2942 + $0xd8] sm:$0xff]
    %v2971 = vld [vmem:[%s2942 + $0xe0] sm:$0xff]
    %v2972 = vld [vmem:[%s2942 + $0xe8] sm:$0xff]
    %v2973 = vld [vmem:[%s2942 + $0xf0] sm:$0xff]
    %v2974 = vld [vmem:[%s2942 + $0xf8] sm:$0xff]
    %v2977 = vunpack.c.l.b16 %v2940
    %v2978 = vunpack.c.l.b16 %v2941
    %v2979 = vrot.slane %v2978, 7
    %v2980 = vsel %vm984, %v2979, %v2977
    %v2981 = vpack.c.b16 %v2980, %v2980
    %v3015 = vunpack.c.l.b16 %v2943
    %v3016 = vunpack.c.h.b16 %v2943
    %v3017 = vunpack.c.l.b16 %v2944
    %v3018 = vunpack.c.h.b16 %v2944
    %v3019 = vunpack.c.l.b16 %v2945
    %v3020 = vunpack.c.h.b16 %v2945
    %v3021 = vunpack.c.l.b16 %v2946
    %v3022 = vunpack.c.h.b16 %v2946
    %v3023 = vunpack.c.l.b16 %v2947
    %v3024 = vunpack.c.h.b16 %v2947
    %v3025 = vunpack.c.l.b16 %v2948
    %v3026 = vunpack.c.h.b16 %v2948
    %v3027 = vunpack.c.l.b16 %v2949
    %v3028 = vunpack.c.h.b16 %v2949
    %v3029 = vunpack.c.l.b16 %v2950
    %v3030 = vunpack.c.h.b16 %v2950
    %v3031 = vunpack.c.l.b16 %v2951
    %v3032 = vunpack.c.h.b16 %v2951
    %v3033 = vunpack.c.l.b16 %v2952
    %v3034 = vunpack.c.h.b16 %v2952
    %v3035 = vunpack.c.l.b16 %v2953
    %v3036 = vunpack.c.h.b16 %v2953
    %v3037 = vunpack.c.l.b16 %v2954
    %v3038 = vunpack.c.h.b16 %v2954
    %v3039 = vunpack.c.l.b16 %v2955
    %v3040 = vunpack.c.h.b16 %v2955
    %v3041 = vunpack.c.l.b16 %v2956
    %v3042 = vunpack.c.h.b16 %v2956
    %v3043 = vunpack.c.l.b16 %v2957
    %v3044 = vunpack.c.h.b16 %v2957
    %v3045 = vunpack.c.l.b16 %v2958
    %v3046 = vunpack.c.h.b16 %v2958
    %v3047 = vunpack.c.l.b16 %v2959
    %v3048 = vunpack.c.h.b16 %v2959
    %v3049 = vunpack.c.l.b16 %v2960
    %v3050 = vunpack.c.h.b16 %v2960
    %v3051 = vunpack.c.l.b16 %v2961
    %v3052 = vunpack.c.h.b16 %v2961
    %v3053 = vunpack.c.l.b16 %v2962
    %v3054 = vunpack.c.h.b16 %v2962
    %v3055 = vunpack.c.l.b16 %v2963
    %v3056 = vunpack.c.h.b16 %v2963
    %v3057 = vunpack.c.l.b16 %v2964
    %v3058 = vunpack.c.h.b16 %v2964
    %v3059 = vunpack.c.l.b16 %v2965
    %v3060 = vunpack.c.h.b16 %v2965
    %v3061 = vunpack.c.l.b16 %v2966
    %v3062 = vunpack.c.h.b16 %v2966
    %v3063 = vunpack.c.l.b16 %v2967
    %v3064 = vunpack.c.h.b16 %v2967
    %v3065 = vunpack.c.l.b16 %v2968
    %v3066 = vunpack.c.h.b16 %v2968
    %v3067 = vunpack.c.l.b16 %v2969
    %v3068 = vunpack.c.h.b16 %v2969
    %v3069 = vunpack.c.l.b16 %v2970
    %v3070 = vunpack.c.h.b16 %v2970
    %v3071 = vunpack.c.l.b16 %v2971
    %v3072 = vunpack.c.h.b16 %v2971
    %v3073 = vunpack.c.l.b16 %v2972
    %v3074 = vunpack.c.h.b16 %v2972
    %v3075 = vunpack.c.l.b16 %v2973
    %v3076 = vunpack.c.h.b16 %v2973
    %v3077 = vunpack.c.l.b16 %v2974
    %v3078 = vunpack.c.h.b16 %v2974
    %v3079 = vpack.c.b16 %v3019, %v3015
    %v3080 = vpack.c.b16 %v3020, %v3016
    %v3081 = vpack.c.b16 %v3021, %v3017
    %v3082 = vpack.c.b16 %v3022, %v3018
    %v3083 = vpack.c.b16 %v3027, %v3023
    %v3084 = vpack.c.b16 %v3028, %v3024
    %v3085 = vpack.c.b16 %v3029, %v3025
    %v3086 = vpack.c.b16 %v3030, %v3026
    %v3087 = vpack.c.b16 %v3035, %v3031
    %v3088 = vpack.c.b16 %v3036, %v3032
    %v3089 = vpack.c.b16 %v3037, %v3033
    %v3090 = vpack.c.b16 %v3038, %v3034
    %v3091 = vpack.c.b16 %v3043, %v3039
    %v3092 = vpack.c.b16 %v3044, %v3040
    %v3093 = vpack.c.b16 %v3045, %v3041
    %v3094 = vpack.c.b16 %v3046, %v3042
    %v3095 = vpack.c.b16 %v3051, %v3047
    %v3096 = vpack.c.b16 %v3052, %v3048
    %v3097 = vpack.c.b16 %v3053, %v3049
    %v3098 = vpack.c.b16 %v3054, %v3050
    %v3099 = vpack.c.b16 %v3059, %v3055
    %v3100 = vpack.c.b16 %v3060, %v3056
    %v3101 = vpack.c.b16 %v3061, %v3057
    %v3102 = vpack.c.b16 %v3062, %v3058
    %v3103 = vpack.c.b16 %v3067, %v3063
    %v3104 = vpack.c.b16 %v3068, %v3064
    %v3105 = vpack.c.b16 %v3069, %v3065
    %v3106 = vpack.c.b16 %v3070, %v3066
    %v3107 = vpack.c.b16 %v3075, %v3071
    %v3108 = vpack.c.b16 %v3076, %v3072
    %v3109 = vpack.c.b16 %v3077, %v3073
    %v3110 = vpack.c.b16 %v3078, %v3074
    %3143 = vmatpush.bf16.msra.mxu0 %v3107
    %3144 = vmatpush.bf16.msra.mxu0 %v3103
    %3145 = vmatpush.bf16.msra.mxu0 %v3099
    %3146 = vmatpush.bf16.msra.mxu0 %v3095
    %3147 = vmatpush.bf16.msra.mxu0 %v3091
    %3148 = vmatpush.bf16.msra.mxu0 %v3087
    %3149 = vmatpush.bf16.msra.mxu0 %v3083
    %3150 = vmatpush.bf16.msra.mxu0 %v3079
    %3151 = vmatmul.bf16.gmra.mxu0 %v2981
    %v3152 = vpop.f32.mrf.mxu0
    %v3153 = vadd.f32 0.0, %v3152
    %v3154 = vpop.f32.mrf.mxu0
    %3155 = vdwg.mxu0
    %3156 = vmatpush.bf16.msra.mxu0 %v3108
    %3157 = vmatpush.bf16.msra.mxu0 %v3104
    %3158 = vmatpush.bf16.msra.mxu0 %v3100
    %3159 = vmatpush.bf16.msra.mxu0 %v3096
    %3160 = vmatpush.bf16.msra.mxu0 %v3092
    %3161 = vmatpush.bf16.msra.mxu0 %v3088
    %3162 = vmatpush.bf16.msra.mxu0 %v3084
    %3163 = vmatpush.bf16.msra.mxu0 %v3080
    %3164 = vmatmul.bf16.gmra.mxu0 %v2981
    %v3165 = vpop.f32.mrf.mxu0
    %v3166 = vadd.f32 0.0, %v3165
    %v3167 = vpop.f32.mrf.mxu0
    %3168 = vdwg.mxu0
    %3169 = vmatpush.bf16.msra.mxu0 %v3109
    %3170 = vmatpush.bf16.msra.mxu0 %v3105
    %3171 = vmatpush.bf16.msra.mxu0 %v3101
    %3172 = vmatpush.bf16.msra.mxu0 %v3097
    %3173 = vmatpush.bf16.msra.mxu0 %v3093
    %3174 = vmatpush.bf16.msra.mxu0 %v3089
    %3175 = vmatpush.bf16.msra.mxu0 %v3085
    %3176 = vmatpush.bf16.msra.mxu0 %v3081
    %3177 = vmatmul.bf16.gmra.mxu0 %v2981
    %v3178 = vpop.f32.mrf.mxu0
    %v3179 = vadd.f32 0.0, %v3178
    %v3180 = vpop.f32.mrf.mxu0
    %3181 = vdwg.mxu0
    %3182 = vmatpush.bf16.msra.mxu0 %v3110
    %3183 = vmatpush.bf16.msra.mxu0 %v3106
    %3184 = vmatpush.bf16.msra.mxu0 %v3102
    %3185 = vmatpush.bf16.msra.mxu0 %v3098
    %3186 = vmatpush.bf16.msra.mxu0 %v3094
    %3187 = vmatpush.bf16.msra.mxu0 %v3090
    %3188 = vmatpush.bf16.msra.mxu0 %v3086
    %3189 = vmatpush.bf16.msra.mxu0 %v3082
    %3190 = vmatmul.bf16.gmra.mxu0 %v2981
    %v3191 = vpop.f32.mrf.mxu0
    %v3192 = vadd.f32 0.0, %v3191
    %v3193 = vpop.f32.mrf.mxu0
    %3194 = vdwg.mxu0
    %v3195 = vadd.f32 %v2936, %v3153
    %v3196 = vadd.f32 %v2937, %v3166
    %v3197 = vadd.f32 %v2938, %v3179
    %v3198 = vadd.f32 %v2939, %v3192
    %s3199 = scalar_lea.vmem %s5, 2304
    %v3200 = vld [vmem:[%s3199] sm:$0xff]
    %v3201 = vld [vmem:[%s3199 + $0x8] sm:$0xff]
    %v3202 = vld [vmem:[%s3199 + $0x10] sm:$0xff]
    %v3203 = vld [vmem:[%s3199 + $0x18] sm:$0xff]
    %v3204 = vld [vmem:[%s3199 + $0x20] sm:$0xff]
    %v3205 = vld [vmem:[%s3199 + $0x28] sm:$0xff]
    %v3206 = vld [vmem:[%s3199 + $0x30] sm:$0xff]
    %v3207 = vld [vmem:[%s3199 + $0x38] sm:$0xff]
    %v3208 = vld [vmem:[%s3199 + $0x40] sm:$0xff]
    %v3209 = vld [vmem:[%s3199 + $0x48] sm:$0xff]
    %v3210 = vld [vmem:[%s3199 + $0x50] sm:$0xff]
    %v3211 = vld [vmem:[%s3199 + $0x58] sm:$0xff]
    %v3212 = vld [vmem:[%s3199 + $0x60] sm:$0xff]
    %v3213 = vld [vmem:[%s3199 + $0x68] sm:$0xff]
    %v3214 = vld [vmem:[%s3199 + $0x70] sm:$0xff]
    %v3215 = vld [vmem:[%s3199 + $0x78] sm:$0xff]
    %v3216 = vld [vmem:[%s3199 + $0x80] sm:$0xff]
    %v3217 = vld [vmem:[%s3199 + $0x88] sm:$0xff]
    %v3218 = vld [vmem:[%s3199 + $0x90] sm:$0xff]
    %v3219 = vld [vmem:[%s3199 + $0x98] sm:$0xff]
    %v3220 = vld [vmem:[%s3199 + $0xa0] sm:$0xff]
    %v3221 = vld [vmem:[%s3199 + $0xa8] sm:$0xff]
    %v3222 = vld [vmem:[%s3199 + $0xb0] sm:$0xff]
    %v3223 = vld [vmem:[%s3199 + $0xb8] sm:$0xff]
    %v3224 = vld [vmem:[%s3199 + $0xc0] sm:$0xff]
    %v3225 = vld [vmem:[%s3199 + $0xc8] sm:$0xff]
    %v3226 = vld [vmem:[%s3199 + $0xd0] sm:$0xff]
    %v3227 = vld [vmem:[%s3199 + $0xd8] sm:$0xff]
    %v3228 = vld [vmem:[%s3199 + $0xe0] sm:$0xff]
    %v3229 = vld [vmem:[%s3199 + $0xe8] sm:$0xff]
    %v3230 = vld [vmem:[%s3199 + $0xf0] sm:$0xff]
    %v3231 = vld [vmem:[%s3199 + $0xf8] sm:$0xff]
    %v3232 = vrot.slane %v2977, 1
    %v3233 = vsel %vm984, %v2978, %v3232
    %v3234 = vpack.c.b16 %v3233, %v3233
    %v3268 = vunpack.c.l.b16 %v3200
    %v3269 = vunpack.c.h.b16 %v3200
    %v3270 = vunpack.c.l.b16 %v3201
    %v3271 = vunpack.c.h.b16 %v3201
    %v3272 = vunpack.c.l.b16 %v3202
    %v3273 = vunpack.c.h.b16 %v3202
    %v3274 = vunpack.c.l.b16 %v3203
    %v3275 = vunpack.c.h.b16 %v3203
    %v3276 = vunpack.c.l.b16 %v3204
    %v3277 = vunpack.c.h.b16 %v3204
    %v3278 = vunpack.c.l.b16 %v3205
    %v3279 = vunpack.c.h.b16 %v3205
    %v3280 = vunpack.c.l.b16 %v3206
    %v3281 = vunpack.c.h.b16 %v3206
    %v3282 = vunpack.c.l.b16 %v3207
    %v3283 = vunpack.c.h.b16 %v3207
    %v3284 = vunpack.c.l.b16 %v3208
    %v3285 = vunpack.c.h.b16 %v3208
    %v3286 = vunpack.c.l.b16 %v3209
    %v3287 = vunpack.c.h.b16 %v3209
    %v3288 = vunpack.c.l.b16 %v3210
    %v3289 = vunpack.c.h.b16 %v3210
    %v3290 = vunpack.c.l.b16 %v3211
    %v3291 = vunpack.c.h.b16 %v3211
    %v3292 = vunpack.c.l.b16 %v3212
    %v3293 = vunpack.c.h.b16 %v3212
    %v3294 = vunpack.c.l.b16 %v3213
    %v3295 = vunpack.c.h.b16 %v3213
    %v3296 = vunpack.c.l.b16 %v3214
    %v3297 = vunpack.c.h.b16 %v3214
    %v3298 = vunpack.c.l.b16 %v3215
    %v3299 = vunpack.c.h.b16 %v3215
    %v3300 = vunpack.c.l.b16 %v3216
    %v3301 = vunpack.c.h.b16 %v3216
    %v3302 = vunpack.c.l.b16 %v3217
    %v3303 = vunpack.c.h.b16 %v3217
    %v3304 = vunpack.c.l.b16 %v3218
    %v3305 = vunpack.c.h.b16 %v3218
    %v3306 = vunpack.c.l.b16 %v3219
    %v3307 = vunpack.c.h.b16 %v3219
    %v3308 = vunpack.c.l.b16 %v3220
    %v3309 = vunpack.c.h.b16 %v3220
    %v3310 = vunpack.c.l.b16 %v3221
    %v3311 = vunpack.c.h.b16 %v3221
    %v3312 = vunpack.c.l.b16 %v3222
    %v3313 = vunpack.c.h.b16 %v3222
    %v3314 = vunpack.c.l.b16 %v3223
    %v3315 = vunpack.c.h.b16 %v3223
    %v3316 = vunpack.c.l.b16 %v3224
    %v3317 = vunpack.c.h.b16 %v3224
    %v3318 = vunpack.c.l.b16 %v3225
    %v3319 = vunpack.c.h.b16 %v3225
    %v3320 = vunpack.c.l.b16 %v3226
    %v3321 = vunpack.c.h.b16 %v3226
    %v3322 = vunpack.c.l.b16 %v3227
    %v3323 = vunpack.c.h.b16 %v3227
    %v3324 = vunpack.c.l.b16 %v3228
    %v3325 = vunpack.c.h.b16 %v3228
    %v3326 = vunpack.c.l.b16 %v3229
    %v3327 = vunpack.c.h.b16 %v3229
    %v3328 = vunpack.c.l.b16 %v3230
    %v3329 = vunpack.c.h.b16 %v3230
    %v3330 = vunpack.c.l.b16 %v3231
    %v3331 = vunpack.c.h.b16 %v3231
    %v3332 = vpack.c.b16 %v3272, %v3268
    %v3333 = vpack.c.b16 %v3273, %v3269
    %v3334 = vpack.c.b16 %v3274, %v3270
    %v3335 = vpack.c.b16 %v3275, %v3271
    %v3336 = vpack.c.b16 %v3280, %v3276
    %v3337 = vpack.c.b16 %v3281, %v3277
    %v3338 = vpack.c.b16 %v3282, %v3278
    %v3339 = vpack.c.b16 %v3283, %v3279
    %v3340 = vpack.c.b16 %v3288, %v3284
    %v3341 = vpack.c.b16 %v3289, %v3285
    %v3342 = vpack.c.b16 %v3290, %v3286
    %v3343 = vpack.c.b16 %v3291, %v3287
    %v3344 = vpack.c.b16 %v3296, %v3292
    %v3345 = vpack.c.b16 %v3297, %v3293
    %v3346 = vpack.c.b16 %v3298, %v3294
    %v3347 = vpack.c.b16 %v3299, %v3295
    %v3348 = vpack.c.b16 %v3304, %v3300
    %v3349 = vpack.c.b16 %v3305, %v3301
    %v3350 = vpack.c.b16 %v3306, %v3302
    %v3351 = vpack.c.b16 %v3307, %v3303
    %v3352 = vpack.c.b16 %v3312, %v3308
    %v3353 = vpack.c.b16 %v3313, %v3309
    %v3354 = vpack.c.b16 %v3314, %v3310
    %v3355 = vpack.c.b16 %v3315, %v3311
    %v3356 = vpack.c.b16 %v3320, %v3316
    %v3357 = vpack.c.b16 %v3321, %v3317
    %v3358 = vpack.c.b16 %v3322, %v3318
    %v3359 = vpack.c.b16 %v3323, %v3319
    %v3360 = vpack.c.b16 %v3328, %v3324
    %v3361 = vpack.c.b16 %v3329, %v3325
    %v3362 = vpack.c.b16 %v3330, %v3326
    %v3363 = vpack.c.b16 %v3331, %v3327
    %3396 = vmatpush.bf16.msra.mxu0 %v3360
    %3397 = vmatpush.bf16.msra.mxu0 %v3356
    %3398 = vmatpush.bf16.msra.mxu0 %v3352
    %3399 = vmatpush.bf16.msra.mxu0 %v3348
    %3400 = vmatpush.bf16.msra.mxu0 %v3344
    %3401 = vmatpush.bf16.msra.mxu0 %v3340
    %3402 = vmatpush.bf16.msra.mxu0 %v3336
    %3403 = vmatpush.bf16.msra.mxu0 %v3332
    %3404 = vmatmul.bf16.gmra.mxu0 %v3234
    %v3405 = vpop.f32.mrf.mxu0
    %v3406 = vadd.f32 0.0, %v3405
    %v3407 = vpop.f32.mrf.mxu0
    %3408 = vdwg.mxu0
    %3409 = vmatpush.bf16.msra.mxu0 %v3361
    %3410 = vmatpush.bf16.msra.mxu0 %v3357
    %3411 = vmatpush.bf16.msra.mxu0 %v3353
    %3412 = vmatpush.bf16.msra.mxu0 %v3349
    %3413 = vmatpush.bf16.msra.mxu0 %v3345
    %3414 = vmatpush.bf16.msra.mxu0 %v3341
    %3415 = vmatpush.bf16.msra.mxu0 %v3337
    %3416 = vmatpush.bf16.msra.mxu0 %v3333
    %3417 = vmatmul.bf16.gmra.mxu0 %v3234
    %v3418 = vpop.f32.mrf.mxu0
    %v3419 = vadd.f32 0.0, %v3418
    %v3420 = vpop.f32.mrf.mxu0
    %3421 = vdwg.mxu0
    %3422 = vmatpush.bf16.msra.mxu0 %v3362
    %3423 = vmatpush.bf16.msra.mxu0 %v3358
    %3424 = vmatpush.bf16.msra.mxu0 %v3354
    %3425 = vmatpush.bf16.msra.mxu0 %v3350
    %3426 = vmatpush.bf16.msra.mxu0 %v3346
    %3427 = vmatpush.bf16.msra.mxu0 %v3342
    %3428 = vmatpush.bf16.msra.mxu0 %v3338
    %3429 = vmatpush.bf16.msra.mxu0 %v3334
    %3430 = vmatmul.bf16.gmra.mxu0 %v3234
    %v3431 = vpop.f32.mrf.mxu0
    %v3432 = vadd.f32 0.0, %v3431
    %v3433 = vpop.f32.mrf.mxu0
    %3434 = vdwg.mxu0
    %3435 = vmatpush.bf16.msra.mxu0 %v3363
    %3436 = vmatpush.bf16.msra.mxu0 %v3359
    %3437 = vmatpush.bf16.msra.mxu0 %v3355
    %3438 = vmatpush.bf16.msra.mxu0 %v3351
    %3439 = vmatpush.bf16.msra.mxu0 %v3347
    %3440 = vmatpush.bf16.msra.mxu0 %v3343
    %3441 = vmatpush.bf16.msra.mxu0 %v3339
    %3442 = vmatpush.bf16.msra.mxu0 %v3335
    %3443 = vmatmul.bf16.gmra.mxu0 %v3234
    %v3444 = vpop.f32.mrf.mxu0
    %v3445 = vadd.f32 0.0, %v3444
    %v3446 = vpop.f32.mrf.mxu0
    %3447 = vdwg.mxu0
    %v3448 = vadd.f32 %v3195, %v3406
    %v3449 = vadd.f32 %v3196, %v3419
    %v3450 = vadd.f32 %v3197, %v3432
    %v3451 = vadd.f32 %v3198, %v3445
    %s3452 = scalar_lea.vmem %s5, 2560
    %v3453 = vld [vmem:[%s3452] sm:$0xff]
    %v3454 = vld [vmem:[%s3452 + $0x8] sm:$0xff]
    %v3455 = vld [vmem:[%s3452 + $0x10] sm:$0xff]
    %v3456 = vld [vmem:[%s3452 + $0x18] sm:$0xff]
    %v3457 = vld [vmem:[%s3452 + $0x20] sm:$0xff]
    %v3458 = vld [vmem:[%s3452 + $0x28] sm:$0xff]
    %v3459 = vld [vmem:[%s3452 + $0x30] sm:$0xff]
    %v3460 = vld [vmem:[%s3452 + $0x38] sm:$0xff]
    %v3461 = vld [vmem:[%s3452 + $0x40] sm:$0xff]
    %v3462 = vld [vmem:[%s3452 + $0x48] sm:$0xff]
    %v3463 = vld [vmem:[%s3452 + $0x50] sm:$0xff]
    %v3464 = vld [vmem:[%s3452 + $0x58] sm:$0xff]
    %v3465 = vld [vmem:[%s3452 + $0x60] sm:$0xff]
    %v3466 = vld [vmem:[%s3452 + $0x68] sm:$0xff]
    %v3467 = vld [vmem:[%s3452 + $0x70] sm:$0xff]
    %v3468 = vld [vmem:[%s3452 + $0x78] sm:$0xff]
    %v3469 = vld [vmem:[%s3452 + $0x80] sm:$0xff]
    %v3470 = vld [vmem:[%s3452 + $0x88] sm:$0xff]
    %v3471 = vld [vmem:[%s3452 + $0x90] sm:$0xff]
    %v3472 = vld [vmem:[%s3452 + $0x98] sm:$0xff]
    %v3473 = vld [vmem:[%s3452 + $0xa0] sm:$0xff]
    %v3474 = vld [vmem:[%s3452 + $0xa8] sm:$0xff]
    %v3475 = vld [vmem:[%s3452 + $0xb0] sm:$0xff]
    %v3476 = vld [vmem:[%s3452 + $0xb8] sm:$0xff]
    %v3477 = vld [vmem:[%s3452 + $0xc0] sm:$0xff]
    %v3478 = vld [vmem:[%s3452 + $0xc8] sm:$0xff]
    %v3479 = vld [vmem:[%s3452 + $0xd0] sm:$0xff]
    %v3480 = vld [vmem:[%s3452 + $0xd8] sm:$0xff]
    %v3481 = vld [vmem:[%s3452 + $0xe0] sm:$0xff]
    %v3482 = vld [vmem:[%s3452 + $0xe8] sm:$0xff]
    %v3483 = vld [vmem:[%s3452 + $0xf0] sm:$0xff]
    %v3484 = vld [vmem:[%s3452 + $0xf8] sm:$0xff]
    %v3485 = vrot.slane %v2977, 2
    %v3486 = vrot.slane %v2978, 1
    %v3487 = vsel %vm984, %v3486, %v3485
    %v3488 = vpack.c.b16 %v3487, %v3487
    %v3522 = vunpack.c.l.b16 %v3453
    %v3523 = vunpack.c.h.b16 %v3453
    %v3524 = vunpack.c.l.b16 %v3454
    %v3525 = vunpack.c.h.b16 %v3454
    %v3526 = vunpack.c.l.b16 %v3455
    %v3527 = vunpack.c.h.b16 %v3455
    %v3528 = vunpack.c.l.b16 %v3456
    %v3529 = vunpack.c.h.b16 %v3456
    %v3530 = vunpack.c.l.b16 %v3457
    %v3531 = vunpack.c.h.b16 %v3457
    %v3532 = vunpack.c.l.b16 %v3458
    %v3533 = vunpack.c.h.b16 %v3458
    %v3534 = vunpack.c.l.b16 %v3459
    %v3535 = vunpack.c.h.b16 %v3459
    %v3536 = vunpack.c.l.b16 %v3460
    %v3537 = vunpack.c.h.b16 %v3460
    %v3538 = vunpack.c.l.b16 %v3461
    %v3539 = vunpack.c.h.b16 %v3461
    %v3540 = vunpack.c.l.b16 %v3462
    %v3541 = vunpack.c.h.b16 %v3462
    %v3542 = vunpack.c.l.b16 %v3463
    %v3543 = vunpack.c.h.b16 %v3463
    %v3544 = vunpack.c.l.b16 %v3464
    %v3545 = vunpack.c.h.b16 %v3464
    %v3546 = vunpack.c.l.b16 %v3465
    %v3547 = vunpack.c.h.b16 %v3465
    %v3548 = vunpack.c.l.b16 %v3466
    %v3549 = vunpack.c.h.b16 %v3466
    %v3550 = vunpack.c.l.b16 %v3467
    %v3551 = vunpack.c.h.b16 %v3467
    %v3552 = vunpack.c.l.b16 %v3468
    %v3553 = vunpack.c.h.b16 %v3468
    %v3554 = vunpack.c.l.b16 %v3469
    %v3555 = vunpack.c.h.b16 %v3469
    %v3556 = vunpack.c.l.b16 %v3470
    %v3557 = vunpack.c.h.b16 %v3470
    %v3558 = vunpack.c.l.b16 %v3471
    %v3559 = vunpack.c.h.b16 %v3471
    %v3560 = vunpack.c.l.b16 %v3472
    %v3561 = vunpack.c.h.b16 %v3472
    %v3562 = vunpack.c.l.b16 %v3473
    %v3563 = vunpack.c.h.b16 %v3473
    %v3564 = vunpack.c.l.b16 %v3474
    %v3565 = vunpack.c.h.b16 %v3474
    %v3566 = vunpack.c.l.b16 %v3475
    %v3567 = vunpack.c.h.b16 %v3475
    %v3568 = vunpack.c.l.b16 %v3476
    %v3569 = vunpack.c.h.b16 %v3476
    %v3570 = vunpack.c.l.b16 %v3477
    %v3571 = vunpack.c.h.b16 %v3477
    %v3572 = vunpack.c.l.b16 %v3478
    %v3573 = vunpack.c.h.b16 %v3478
    %v3574 = vunpack.c.l.b16 %v3479
    %v3575 = vunpack.c.h.b16 %v3479
    %v3576 = vunpack.c.l.b16 %v3480
    %v3577 = vunpack.c.h.b16 %v3480
    %v3578 = vunpack.c.l.b16 %v3481
    %v3579 = vunpack.c.h.b16 %v3481
    %v3580 = vunpack.c.l.b16 %v3482
    %v3581 = vunpack.c.h.b16 %v3482
    %v3582 = vunpack.c.l.b16 %v3483
    %v3583 = vunpack.c.h.b16 %v3483
    %v3584 = vunpack.c.l.b16 %v3484
    %v3585 = vunpack.c.h.b16 %v3484
    %v3586 = vpack.c.b16 %v3526, %v3522
    %v3587 = vpack.c.b16 %v3527, %v3523
    %v3588 = vpack.c.b16 %v3528, %v3524
    %v3589 = vpack.c.b16 %v3529, %v3525
    %v3590 = vpack.c.b16 %v3534, %v3530
    %v3591 = vpack.c.b16 %v3535, %v3531
    %v3592 = vpack.c.b16 %v3536, %v3532
    %v3593 = vpack.c.b16 %v3537, %v3533
    %v3594 = vpack.c.b16 %v3542, %v3538
    %v3595 = vpack.c.b16 %v3543, %v3539
    %v3596 = vpack.c.b16 %v3544, %v3540
    %v3597 = vpack.c.b16 %v3545, %v3541
    %v3598 = vpack.c.b16 %v3550, %v3546
    %v3599 = vpack.c.b16 %v3551, %v3547
    %v3600 = vpack.c.b16 %v3552, %v3548
    %v3601 = vpack.c.b16 %v3553, %v3549
    %v3602 = vpack.c.b16 %v3558, %v3554
    %v3603 = vpack.c.b16 %v3559, %v3555
    %v3604 = vpack.c.b16 %v3560, %v3556
    %v3605 = vpack.c.b16 %v3561, %v3557
    %v3606 = vpack.c.b16 %v3566, %v3562
    %v3607 = vpack.c.b16 %v3567, %v3563
    %v3608 = vpack.c.b16 %v3568, %v3564
    %v3609 = vpack.c.b16 %v3569, %v3565
    %v3610 = vpack.c.b16 %v3574, %v3570
    %v3611 = vpack.c.b16 %v3575, %v3571
    %v3612 = vpack.c.b16 %v3576, %v3572
    %v3613 = vpack.c.b16 %v3577, %v3573
    %v3614 = vpack.c.b16 %v3582, %v3578
    %v3615 = vpack.c.b16 %v3583, %v3579
    %v3616 = vpack.c.b16 %v3584, %v3580
    %v3617 = vpack.c.b16 %v3585, %v3581
    %3650 = vmatpush.bf16.msra.mxu0 %v3614
    %3651 = vmatpush.bf16.msra.mxu0 %v3610
    %3652 = vmatpush.bf16.msra.mxu0 %v3606
    %3653 = vmatpush.bf16.msra.mxu0 %v3602
    %3654 = vmatpush.bf16.msra.mxu0 %v3598
    %3655 = vmatpush.bf16.msra.mxu0 %v3594
    %3656 = vmatpush.bf16.msra.mxu0 %v3590
    %3657 = vmatpush.bf16.msra.mxu0 %v3586
    %3658 = vmatmul.bf16.gmra.mxu0 %v3488
    %v3659 = vpop.f32.mrf.mxu0
    %v3660 = vadd.f32 0.0, %v3659
    %v3661 = vpop.f32.mrf.mxu0
    %3662 = vdwg.mxu0
    %3663 = vmatpush.bf16.msra.mxu0 %v3615
    %3664 = vmatpush.bf16.msra.mxu0 %v3611
    %3665 = vmatpush.bf16.msra.mxu0 %v3607
    %3666 = vmatpush.bf16.msra.mxu0 %v3603
    %3667 = vmatpush.bf16.msra.mxu0 %v3599
    %3668 = vmatpush.bf16.msra.mxu0 %v3595
    %3669 = vmatpush.bf16.msra.mxu0 %v3591
    %3670 = vmatpush.bf16.msra.mxu0 %v3587
    %3671 = vmatmul.bf16.gmra.mxu0 %v3488
    %v3672 = vpop.f32.mrf.mxu0
    %v3673 = vadd.f32 0.0, %v3672
    %v3674 = vpop.f32.mrf.mxu0
    %3675 = vdwg.mxu0
    %3676 = vmatpush.bf16.msra.mxu0 %v3616
    %3677 = vmatpush.bf16.msra.mxu0 %v3612
    %3678 = vmatpush.bf16.msra.mxu0 %v3608
    %3679 = vmatpush.bf16.msra.mxu0 %v3604
    %3680 = vmatpush.bf16.msra.mxu0 %v3600
    %3681 = vmatpush.bf16.msra.mxu0 %v3596
    %3682 = vmatpush.bf16.msra.mxu0 %v3592
    %3683 = vmatpush.bf16.msra.mxu0 %v3588
    %3684 = vmatmul.bf16.gmra.mxu0 %v3488
    %v3685 = vpop.f32.mrf.mxu0
    %v3686 = vadd.f32 0.0, %v3685
    %v3687 = vpop.f32.mrf.mxu0
    %3688 = vdwg.mxu0
    %3689 = vmatpush.bf16.msra.mxu0 %v3617
    %3690 = vmatpush.bf16.msra.mxu0 %v3613
    %3691 = vmatpush.bf16.msra.mxu0 %v3609
    %3692 = vmatpush.bf16.msra.mxu0 %v3605
    %3693 = vmatpush.bf16.msra.mxu0 %v3601
    %3694 = vmatpush.bf16.msra.mxu0 %v3597
    %3695 = vmatpush.bf16.msra.mxu0 %v3593
    %3696 = vmatpush.bf16.msra.mxu0 %v3589
    %3697 = vmatmul.bf16.gmra.mxu0 %v3488
    %v3698 = vpop.f32.mrf.mxu0
    %v3699 = vadd.f32 0.0, %v3698
    %v3700 = vpop.f32.mrf.mxu0
    %3701 = vdwg.mxu0
    %v3702 = vadd.f32 %v3448, %v3660
    %v3703 = vadd.f32 %v3449, %v3673
    %v3704 = vadd.f32 %v3450, %v3686
    %v3705 = vadd.f32 %v3451, %v3699
    %s3706 = scalar_lea.vmem %s5, 2816
    %v3707 = vld [vmem:[%s3706] sm:$0xff]
    %v3708 = vld [vmem:[%s3706 + $0x8] sm:$0xff]
    %v3709 = vld [vmem:[%s3706 + $0x10] sm:$0xff]
    %v3710 = vld [vmem:[%s3706 + $0x18] sm:$0xff]
    %v3711 = vld [vmem:[%s3706 + $0x20] sm:$0xff]
    %v3712 = vld [vmem:[%s3706 + $0x28] sm:$0xff]
    %v3713 = vld [vmem:[%s3706 + $0x30] sm:$0xff]
    %v3714 = vld [vmem:[%s3706 + $0x38] sm:$0xff]
    %v3715 = vld [vmem:[%s3706 + $0x40] sm:$0xff]
    %v3716 = vld [vmem:[%s3706 + $0x48] sm:$0xff]
    %v3717 = vld [vmem:[%s3706 + $0x50] sm:$0xff]
    %v3718 = vld [vmem:[%s3706 + $0x58] sm:$0xff]
    %v3719 = vld [vmem:[%s3706 + $0x60] sm:$0xff]
    %v3720 = vld [vmem:[%s3706 + $0x68] sm:$0xff]
    %v3721 = vld [vmem:[%s3706 + $0x70] sm:$0xff]
    %v3722 = vld [vmem:[%s3706 + $0x78] sm:$0xff]
    %v3723 = vld [vmem:[%s3706 + $0x80] sm:$0xff]
    %v3724 = vld [vmem:[%s3706 + $0x88] sm:$0xff]
    %v3725 = vld [vmem:[%s3706 + $0x90] sm:$0xff]
    %v3726 = vld [vmem:[%s3706 + $0x98] sm:$0xff]
    %v3727 = vld [vmem:[%s3706 + $0xa0] sm:$0xff]
    %v3728 = vld [vmem:[%s3706 + $0xa8] sm:$0xff]
    %v3729 = vld [vmem:[%s3706 + $0xb0] sm:$0xff]
    %v3730 = vld [vmem:[%s3706 + $0xb8] sm:$0xff]
    %v3731 = vld [vmem:[%s3706 + $0xc0] sm:$0xff]
    %v3732 = vld [vmem:[%s3706 + $0xc8] sm:$0xff]
    %v3733 = vld [vmem:[%s3706 + $0xd0] sm:$0xff]
    %v3734 = vld [vmem:[%s3706 + $0xd8] sm:$0xff]
    %v3735 = vld [vmem:[%s3706 + $0xe0] sm:$0xff]
    %v3736 = vld [vmem:[%s3706 + $0xe8] sm:$0xff]
    %v3737 = vld [vmem:[%s3706 + $0xf0] sm:$0xff]
    %v3738 = vld [vmem:[%s3706 + $0xf8] sm:$0xff]
    %v3739 = vrot.slane %v2977, 3
    %v3740 = vrot.slane %v2978, 2
    %v3741 = vsel %vm984, %v3740, %v3739
    %v3742 = vpack.c.b16 %v3741, %v3741
    %v3776 = vunpack.c.l.b16 %v3707
    %v3777 = vunpack.c.h.b16 %v3707
    %v3778 = vunpack.c.l.b16 %v3708
    %v3779 = vunpack.c.h.b16 %v3708
    %v3780 = vunpack.c.l.b16 %v3709
    %v3781 = vunpack.c.h.b16 %v3709
    %v3782 = vunpack.c.l.b16 %v3710
    %v3783 = vunpack.c.h.b16 %v3710
    %v3784 = vunpack.c.l.b16 %v3711
    %v3785 = vunpack.c.h.b16 %v3711
    %v3786 = vunpack.c.l.b16 %v3712
    %v3787 = vunpack.c.h.b16 %v3712
    %v3788 = vunpack.c.l.b16 %v3713
    %v3789 = vunpack.c.h.b16 %v3713
    %v3790 = vunpack.c.l.b16 %v3714
    %v3791 = vunpack.c.h.b16 %v3714
    %v3792 = vunpack.c.l.b16 %v3715
    %v3793 = vunpack.c.h.b16 %v3715
    %v3794 = vunpack.c.l.b16 %v3716
    %v3795 = vunpack.c.h.b16 %v3716
    %v3796 = vunpack.c.l.b16 %v3717
    %v3797 = vunpack.c.h.b16 %v3717
    %v3798 = vunpack.c.l.b16 %v3718
    %v3799 = vunpack.c.h.b16 %v3718
    %v3800 = vunpack.c.l.b16 %v3719
    %v3801 = vunpack.c.h.b16 %v3719
    %v3802 = vunpack.c.l.b16 %v3720
    %v3803 = vunpack.c.h.b16 %v3720
    %v3804 = vunpack.c.l.b16 %v3721
    %v3805 = vunpack.c.h.b16 %v3721
    %v3806 = vunpack.c.l.b16 %v3722
    %v3807 = vunpack.c.h.b16 %v3722
    %v3808 = vunpack.c.l.b16 %v3723
    %v3809 = vunpack.c.h.b16 %v3723
    %v3810 = vunpack.c.l.b16 %v3724
    %v3811 = vunpack.c.h.b16 %v3724
    %v3812 = vunpack.c.l.b16 %v3725
    %v3813 = vunpack.c.h.b16 %v3725
    %v3814 = vunpack.c.l.b16 %v3726
    %v3815 = vunpack.c.h.b16 %v3726
    %v3816 = vunpack.c.l.b16 %v3727
    %v3817 = vunpack.c.h.b16 %v3727
    %v3818 = vunpack.c.l.b16 %v3728
    %v3819 = vunpack.c.h.b16 %v3728
    %v3820 = vunpack.c.l.b16 %v3729
    %v3821 = vunpack.c.h.b16 %v3729
    %v3822 = vunpack.c.l.b16 %v3730
    %v3823 = vunpack.c.h.b16 %v3730
    %v3824 = vunpack.c.l.b16 %v3731
    %v3825 = vunpack.c.h.b16 %v3731
    %v3826 = vunpack.c.l.b16 %v3732
    %v3827 = vunpack.c.h.b16 %v3732
    %v3828 = vunpack.c.l.b16 %v3733
    %v3829 = vunpack.c.h.b16 %v3733
    %v3830 = vunpack.c.l.b16 %v3734
    %v3831 = vunpack.c.h.b16 %v3734
    %v3832 = vunpack.c.l.b16 %v3735
    %v3833 = vunpack.c.h.b16 %v3735
    %v3834 = vunpack.c.l.b16 %v3736
    %v3835 = vunpack.c.h.b16 %v3736
    %v3836 = vunpack.c.l.b16 %v3737
    %v3837 = vunpack.c.h.b16 %v3737
    %v3838 = vunpack.c.l.b16 %v3738
    %v3839 = vunpack.c.h.b16 %v3738
    %v3840 = vpack.c.b16 %v3780, %v3776
    %v3841 = vpack.c.b16 %v3781, %v3777
    %v3842 = vpack.c.b16 %v3782, %v3778
    %v3843 = vpack.c.b16 %v3783, %v3779
    %v3844 = vpack.c.b16 %v3788, %v3784
    %v3845 = vpack.c.b16 %v3789, %v3785
    %v3846 = vpack.c.b16 %v3790, %v3786
    %v3847 = vpack.c.b16 %v3791, %v3787
    %v3848 = vpack.c.b16 %v3796, %v3792
    %v3849 = vpack.c.b16 %v3797, %v3793
    %v3850 = vpack.c.b16 %v3798, %v3794
    %v3851 = vpack.c.b16 %v3799, %v3795
    %v3852 = vpack.c.b16 %v3804, %v3800
    %v3853 = vpack.c.b16 %v3805, %v3801
    %v3854 = vpack.c.b16 %v3806, %v3802
    %v3855 = vpack.c.b16 %v3807, %v3803
    %v3856 = vpack.c.b16 %v3812, %v3808
    %v3857 = vpack.c.b16 %v3813, %v3809
    %v3858 = vpack.c.b16 %v3814, %v3810
    %v3859 = vpack.c.b16 %v3815, %v3811
    %v3860 = vpack.c.b16 %v3820, %v3816
    %v3861 = vpack.c.b16 %v3821, %v3817
    %v3862 = vpack.c.b16 %v3822, %v3818
    %v3863 = vpack.c.b16 %v3823, %v3819
    %v3864 = vpack.c.b16 %v3828, %v3824
    %v3865 = vpack.c.b16 %v3829, %v3825
    %v3866 = vpack.c.b16 %v3830, %v3826
    %v3867 = vpack.c.b16 %v3831, %v3827
    %v3868 = vpack.c.b16 %v3836, %v3832
    %v3869 = vpack.c.b16 %v3837, %v3833
    %v3870 = vpack.c.b16 %v3838, %v3834
    %v3871 = vpack.c.b16 %v3839, %v3835
    %3904 = vmatpush.bf16.msra.mxu0 %v3868
    %3905 = vmatpush.bf16.msra.mxu0 %v3864
    %3906 = vmatpush.bf16.msra.mxu0 %v3860
    %3907 = vmatpush.bf16.msra.mxu0 %v3856
    %3908 = vmatpush.bf16.msra.mxu0 %v3852
    %3909 = vmatpush.bf16.msra.mxu0 %v3848
    %3910 = vmatpush.bf16.msra.mxu0 %v3844
    %3911 = vmatpush.bf16.msra.mxu0 %v3840
    %3912 = vmatmul.bf16.gmra.mxu0 %v3742
    %v3913 = vpop.f32.mrf.mxu0
    %v3914 = vadd.f32 0.0, %v3913
    %v3915 = vpop.f32.mrf.mxu0
    %3916 = vdwg.mxu0
    %3917 = vmatpush.bf16.msra.mxu0 %v3869
    %3918 = vmatpush.bf16.msra.mxu0 %v3865
    %3919 = vmatpush.bf16.msra.mxu0 %v3861
    %3920 = vmatpush.bf16.msra.mxu0 %v3857
    %3921 = vmatpush.bf16.msra.mxu0 %v3853
    %3922 = vmatpush.bf16.msra.mxu0 %v3849
    %3923 = vmatpush.bf16.msra.mxu0 %v3845
    %3924 = vmatpush.bf16.msra.mxu0 %v3841
    %3925 = vmatmul.bf16.gmra.mxu0 %v3742
    %v3926 = vpop.f32.mrf.mxu0
    %v3927 = vadd.f32 0.0, %v3926
    %v3928 = vpop.f32.mrf.mxu0
    %3929 = vdwg.mxu0
    %3930 = vmatpush.bf16.msra.mxu0 %v3870
    %3931 = vmatpush.bf16.msra.mxu0 %v3866
    %3932 = vmatpush.bf16.msra.mxu0 %v3862
    %3933 = vmatpush.bf16.msra.mxu0 %v3858
    %3934 = vmatpush.bf16.msra.mxu0 %v3854
    %3935 = vmatpush.bf16.msra.mxu0 %v3850
    %3936 = vmatpush.bf16.msra.mxu0 %v3846
    %3937 = vmatpush.bf16.msra.mxu0 %v3842
    %3938 = vmatmul.bf16.gmra.mxu0 %v3742
    %v3939 = vpop.f32.mrf.mxu0
    %v3940 = vadd.f32 0.0, %v3939
    %v3941 = vpop.f32.mrf.mxu0
    %3942 = vdwg.mxu0
    %3943 = vmatpush.bf16.msra.mxu0 %v3871
    %3944 = vmatpush.bf16.msra.mxu0 %v3867
    %3945 = vmatpush.bf16.msra.mxu0 %v3863
    %3946 = vmatpush.bf16.msra.mxu0 %v3859
    %3947 = vmatpush.bf16.msra.mxu0 %v3855
    %3948 = vmatpush.bf16.msra.mxu0 %v3851
    %3949 = vmatpush.bf16.msra.mxu0 %v3847
    %3950 = vmatpush.bf16.msra.mxu0 %v3843
    %3951 = vmatmul.bf16.gmra.mxu0 %v3742
    %v3952 = vpop.f32.mrf.mxu0
    %v3953 = vadd.f32 0.0, %v3952
    %v3954 = vpop.f32.mrf.mxu0
    %3955 = vdwg.mxu0
    %v3956 = vadd.f32 %v3702, %v3914
    %v3957 = vadd.f32 %v3703, %v3927
    %v3958 = vadd.f32 %v3704, %v3940
    %v3959 = vadd.f32 %v3705, %v3953
    %s3960 = scalar_lea.vmem %s5, 3072
    %v3961 = vld [vmem:[%s3960] sm:$0xff]
    %v3962 = vld [vmem:[%s3960 + $0x8] sm:$0xff]
    %v3963 = vld [vmem:[%s3960 + $0x10] sm:$0xff]
    %v3964 = vld [vmem:[%s3960 + $0x18] sm:$0xff]
    %v3965 = vld [vmem:[%s3960 + $0x20] sm:$0xff]
    %v3966 = vld [vmem:[%s3960 + $0x28] sm:$0xff]
    %v3967 = vld [vmem:[%s3960 + $0x30] sm:$0xff]
    %v3968 = vld [vmem:[%s3960 + $0x38] sm:$0xff]
    %v3969 = vld [vmem:[%s3960 + $0x40] sm:$0xff]
    %v3970 = vld [vmem:[%s3960 + $0x48] sm:$0xff]
    %v3971 = vld [vmem:[%s3960 + $0x50] sm:$0xff]
    %v3972 = vld [vmem:[%s3960 + $0x58] sm:$0xff]
    %v3973 = vld [vmem:[%s3960 + $0x60] sm:$0xff]
    %v3974 = vld [vmem:[%s3960 + $0x68] sm:$0xff]
    %v3975 = vld [vmem:[%s3960 + $0x70] sm:$0xff]
    %v3976 = vld [vmem:[%s3960 + $0x78] sm:$0xff]
    %v3977 = vld [vmem:[%s3960 + $0x80] sm:$0xff]
    %v3978 = vld [vmem:[%s3960 + $0x88] sm:$0xff]
    %v3979 = vld [vmem:[%s3960 + $0x90] sm:$0xff]
    %v3980 = vld [vmem:[%s3960 + $0x98] sm:$0xff]
    %v3981 = vld [vmem:[%s3960 + $0xa0] sm:$0xff]
    %v3982 = vld [vmem:[%s3960 + $0xa8] sm:$0xff]
    %v3983 = vld [vmem:[%s3960 + $0xb0] sm:$0xff]
    %v3984 = vld [vmem:[%s3960 + $0xb8] sm:$0xff]
    %v3985 = vld [vmem:[%s3960 + $0xc0] sm:$0xff]
    %v3986 = vld [vmem:[%s3960 + $0xc8] sm:$0xff]
    %v3987 = vld [vmem:[%s3960 + $0xd0] sm:$0xff]
    %v3988 = vld [vmem:[%s3960 + $0xd8] sm:$0xff]
    %v3989 = vld [vmem:[%s3960 + $0xe0] sm:$0xff]
    %v3990 = vld [vmem:[%s3960 + $0xe8] sm:$0xff]
    %v3991 = vld [vmem:[%s3960 + $0xf0] sm:$0xff]
    %v3992 = vld [vmem:[%s3960 + $0xf8] sm:$0xff]
    %v3993 = vrot.slane %v2977, 4
    %v3994 = vrot.slane %v2978, 3
    %v3995 = vsel %vm984, %v3994, %v3993
    %v3996 = vpack.c.b16 %v3995, %v3995
    %v4030 = vunpack.c.l.b16 %v3961
    %v4031 = vunpack.c.h.b16 %v3961
    %v4032 = vunpack.c.l.b16 %v3962
    %v4033 = vunpack.c.h.b16 %v3962
    %v4034 = vunpack.c.l.b16 %v3963
    %v4035 = vunpack.c.h.b16 %v3963
    %v4036 = vunpack.c.l.b16 %v3964
    %v4037 = vunpack.c.h.b16 %v3964
    %v4038 = vunpack.c.l.b16 %v3965
    %v4039 = vunpack.c.h.b16 %v3965
    %v4040 = vunpack.c.l.b16 %v3966
    %v4041 = vunpack.c.h.b16 %v3966
    %v4042 = vunpack.c.l.b16 %v3967
    %v4043 = vunpack.c.h.b16 %v3967
    %v4044 = vunpack.c.l.b16 %v3968
    %v4045 = vunpack.c.h.b16 %v3968
    %v4046 = vunpack.c.l.b16 %v3969
    %v4047 = vunpack.c.h.b16 %v3969
    %v4048 = vunpack.c.l.b16 %v3970
    %v4049 = vunpack.c.h.b16 %v3970
    %v4050 = vunpack.c.l.b16 %v3971
    %v4051 = vunpack.c.h.b16 %v3971
    %v4052 = vunpack.c.l.b16 %v3972
    %v4053 = vunpack.c.h.b16 %v3972
    %v4054 = vunpack.c.l.b16 %v3973
    %v4055 = vunpack.c.h.b16 %v3973
    %v4056 = vunpack.c.l.b16 %v3974
    %v4057 = vunpack.c.h.b16 %v3974
    %v4058 = vunpack.c.l.b16 %v3975
    %v4059 = vunpack.c.h.b16 %v3975
    %v4060 = vunpack.c.l.b16 %v3976
    %v4061 = vunpack.c.h.b16 %v3976
    %v4062 = vunpack.c.l.b16 %v3977
    %v4063 = vunpack.c.h.b16 %v3977
    %v4064 = vunpack.c.l.b16 %v3978
    %v4065 = vunpack.c.h.b16 %v3978
    %v4066 = vunpack.c.l.b16 %v3979
    %v4067 = vunpack.c.h.b16 %v3979
    %v4068 = vunpack.c.l.b16 %v3980
    %v4069 = vunpack.c.h.b16 %v3980
    %v4070 = vunpack.c.l.b16 %v3981
    %v4071 = vunpack.c.h.b16 %v3981
    %v4072 = vunpack.c.l.b16 %v3982
    %v4073 = vunpack.c.h.b16 %v3982
    %v4074 = vunpack.c.l.b16 %v3983
    %v4075 = vunpack.c.h.b16 %v3983
    %v4076 = vunpack.c.l.b16 %v3984
    %v4077 = vunpack.c.h.b16 %v3984
    %v4078 = vunpack.c.l.b16 %v3985
    %v4079 = vunpack.c.h.b16 %v3985
    %v4080 = vunpack.c.l.b16 %v3986
    %v4081 = vunpack.c.h.b16 %v3986
    %v4082 = vunpack.c.l.b16 %v3987
    %v4083 = vunpack.c.h.b16 %v3987
    %v4084 = vunpack.c.l.b16 %v3988
    %v4085 = vunpack.c.h.b16 %v3988
    %v4086 = vunpack.c.l.b16 %v3989
    %v4087 = vunpack.c.h.b16 %v3989
    %v4088 = vunpack.c.l.b16 %v3990
    %v4089 = vunpack.c.h.b16 %v3990
    %v4090 = vunpack.c.l.b16 %v3991
    %v4091 = vunpack.c.h.b16 %v3991
    %v4092 = vunpack.c.l.b16 %v3992
    %v4093 = vunpack.c.h.b16 %v3992
    %v4094 = vpack.c.b16 %v4034, %v4030
    %v4095 = vpack.c.b16 %v4035, %v4031
    %v4096 = vpack.c.b16 %v4036, %v4032
    %v4097 = vpack.c.b16 %v4037, %v4033
    %v4098 = vpack.c.b16 %v4042, %v4038
    %v4099 = vpack.c.b16 %v4043, %v4039
    %v4100 = vpack.c.b16 %v4044, %v4040
    %v4101 = vpack.c.b16 %v4045, %v4041
    %v4102 = vpack.c.b16 %v4050, %v4046
    %v4103 = vpack.c.b16 %v4051, %v4047
    %v4104 = vpack.c.b16 %v4052, %v4048
    %v4105 = vpack.c.b16 %v4053, %v4049
    %v4106 = vpack.c.b16 %v4058, %v4054
    %v4107 = vpack.c.b16 %v4059, %v4055
    %v4108 = vpack.c.b16 %v4060, %v4056
    %v4109 = vpack.c.b16 %v4061, %v4057
    %v4110 = vpack.c.b16 %v4066, %v4062
    %v4111 = vpack.c.b16 %v4067, %v4063
    %v4112 = vpack.c.b16 %v4068, %v4064
    %v4113 = vpack.c.b16 %v4069, %v4065
    %v4114 = vpack.c.b16 %v4074, %v4070
    %v4115 = vpack.c.b16 %v4075, %v4071
    %v4116 = vpack.c.b16 %v4076, %v4072
    %v4117 = vpack.c.b16 %v4077, %v4073
    %v4118 = vpack.c.b16 %v4082, %v4078
    %v4119 = vpack.c.b16 %v4083, %v4079
    %v4120 = vpack.c.b16 %v4084, %v4080
    %v4121 = vpack.c.b16 %v4085, %v4081
    %v4122 = vpack.c.b16 %v4090, %v4086
    %v4123 = vpack.c.b16 %v4091, %v4087
    %v4124 = vpack.c.b16 %v4092, %v4088
    %v4125 = vpack.c.b16 %v4093, %v4089
    %4158 = vmatpush.bf16.msra.mxu0 %v4122
    %4159 = vmatpush.bf16.msra.mxu0 %v4118
    %4160 = vmatpush.bf16.msra.mxu0 %v4114
    %4161 = vmatpush.bf16.msra.mxu0 %v4110
    %4162 = vmatpush.bf16.msra.mxu0 %v4106
    %4163 = vmatpush.bf16.msra.mxu0 %v4102
    %4164 = vmatpush.bf16.msra.mxu0 %v4098
    %4165 = vmatpush.bf16.msra.mxu0 %v4094
    %4166 = vmatmul.bf16.gmra.mxu0 %v3996
    %v4167 = vpop.f32.mrf.mxu0
    %v4168 = vadd.f32 0.0, %v4167
    %v4169 = vpop.f32.mrf.mxu0
    %4170 = vdwg.mxu0
    %4171 = vmatpush.bf16.msra.mxu0 %v4123
    %4172 = vmatpush.bf16.msra.mxu0 %v4119
    %4173 = vmatpush.bf16.msra.mxu0 %v4115
    %4174 = vmatpush.bf16.msra.mxu0 %v4111
    %4175 = vmatpush.bf16.msra.mxu0 %v4107
    %4176 = vmatpush.bf16.msra.mxu0 %v4103
    %4177 = vmatpush.bf16.msra.mxu0 %v4099
    %4178 = vmatpush.bf16.msra.mxu0 %v4095
    %4179 = vmatmul.bf16.gmra.mxu0 %v3996
    %v4180 = vpop.f32.mrf.mxu0
    %v4181 = vadd.f32 0.0, %v4180
    %v4182 = vpop.f32.mrf.mxu0
    %4183 = vdwg.mxu0
    %4184 = vmatpush.bf16.msra.mxu0 %v4124
    %4185 = vmatpush.bf16.msra.mxu0 %v4120
    %4186 = vmatpush.bf16.msra.mxu0 %v4116
    %4187 = vmatpush.bf16.msra.mxu0 %v4112
    %4188 = vmatpush.bf16.msra.mxu0 %v4108
    %4189 = vmatpush.bf16.msra.mxu0 %v4104
    %4190 = vmatpush.bf16.msra.mxu0 %v4100
    %4191 = vmatpush.bf16.msra.mxu0 %v4096
    %4192 = vmatmul.bf16.gmra.mxu0 %v3996
    %v4193 = vpop.f32.mrf.mxu0
    %v4194 = vadd.f32 0.0, %v4193
    %v4195 = vpop.f32.mrf.mxu0
    %4196 = vdwg.mxu0
    %4197 = vmatpush.bf16.msra.mxu0 %v4125
    %4198 = vmatpush.bf16.msra.mxu0 %v4121
    %4199 = vmatpush.bf16.msra.mxu0 %v4117
    %4200 = vmatpush.bf16.msra.mxu0 %v4113
    %4201 = vmatpush.bf16.msra.mxu0 %v4109
    %4202 = vmatpush.bf16.msra.mxu0 %v4105
    %4203 = vmatpush.bf16.msra.mxu0 %v4101
    %4204 = vmatpush.bf16.msra.mxu0 %v4097
    %4205 = vmatmul.bf16.gmra.mxu0 %v3996
    %v4206 = vpop.f32.mrf.mxu0
    %v4207 = vadd.f32 0.0, %v4206
    %v4208 = vpop.f32.mrf.mxu0
    %4209 = vdwg.mxu0
    %v4210 = vadd.f32 %v3956, %v4168
    %v4211 = vadd.f32 %v3957, %v4181
    %v4212 = vadd.f32 %v3958, %v4194
    %v4213 = vadd.f32 %v3959, %v4207
    %s4214 = scalar_lea.vmem %s5, 3328
    %v4215 = vld [vmem:[%s4214] sm:$0xff]
    %v4216 = vld [vmem:[%s4214 + $0x8] sm:$0xff]
    %v4217 = vld [vmem:[%s4214 + $0x10] sm:$0xff]
    %v4218 = vld [vmem:[%s4214 + $0x18] sm:$0xff]
    %v4219 = vld [vmem:[%s4214 + $0x20] sm:$0xff]
    %v4220 = vld [vmem:[%s4214 + $0x28] sm:$0xff]
    %v4221 = vld [vmem:[%s4214 + $0x30] sm:$0xff]
    %v4222 = vld [vmem:[%s4214 + $0x38] sm:$0xff]
    %v4223 = vld [vmem:[%s4214 + $0x40] sm:$0xff]
    %v4224 = vld [vmem:[%s4214 + $0x48] sm:$0xff]
    %v4225 = vld [vmem:[%s4214 + $0x50] sm:$0xff]
    %v4226 = vld [vmem:[%s4214 + $0x58] sm:$0xff]
    %v4227 = vld [vmem:[%s4214 + $0x60] sm:$0xff]
    %v4228 = vld [vmem:[%s4214 + $0x68] sm:$0xff]
    %v4229 = vld [vmem:[%s4214 + $0x70] sm:$0xff]
    %v4230 = vld [vmem:[%s4214 + $0x78] sm:$0xff]
    %v4231 = vld [vmem:[%s4214 + $0x80] sm:$0xff]
    %v4232 = vld [vmem:[%s4214 + $0x88] sm:$0xff]
    %v4233 = vld [vmem:[%s4214 + $0x90] sm:$0xff]
    %v4234 = vld [vmem:[%s4214 + $0x98] sm:$0xff]
    %v4235 = vld [vmem:[%s4214 + $0xa0] sm:$0xff]
    %v4236 = vld [vmem:[%s4214 + $0xa8] sm:$0xff]
    %v4237 = vld [vmem:[%s4214 + $0xb0] sm:$0xff]
    %v4238 = vld [vmem:[%s4214 + $0xb8] sm:$0xff]
    %v4239 = vld [vmem:[%s4214 + $0xc0] sm:$0xff]
    %v4240 = vld [vmem:[%s4214 + $0xc8] sm:$0xff]
    %v4241 = vld [vmem:[%s4214 + $0xd0] sm:$0xff]
    %v4242 = vld [vmem:[%s4214 + $0xd8] sm:$0xff]
    %v4243 = vld [vmem:[%s4214 + $0xe0] sm:$0xff]
    %v4244 = vld [vmem:[%s4214 + $0xe8] sm:$0xff]
    %v4245 = vld [vmem:[%s4214 + $0xf0] sm:$0xff]
    %v4246 = vld [vmem:[%s4214 + $0xf8] sm:$0xff]
    %v4247 = vrot.slane %v2977, 5
    %v4248 = vrot.slane %v2978, 4
    %v4249 = vsel %vm984, %v4248, %v4247
    %v4250 = vpack.c.b16 %v4249, %v4249
    %v4284 = vunpack.c.l.b16 %v4215
    %v4285 = vunpack.c.h.b16 %v4215
    %v4286 = vunpack.c.l.b16 %v4216
    %v4287 = vunpack.c.h.b16 %v4216
    %v4288 = vunpack.c.l.b16 %v4217
    %v4289 = vunpack.c.h.b16 %v4217
    %v4290 = vunpack.c.l.b16 %v4218
    %v4291 = vunpack.c.h.b16 %v4218
    %v4292 = vunpack.c.l.b16 %v4219
    %v4293 = vunpack.c.h.b16 %v4219
    %v4294 = vunpack.c.l.b16 %v4220
    %v4295 = vunpack.c.h.b16 %v4220
    %v4296 = vunpack.c.l.b16 %v4221
    %v4297 = vunpack.c.h.b16 %v4221
    %v4298 = vunpack.c.l.b16 %v4222
    %v4299 = vunpack.c.h.b16 %v4222
    %v4300 = vunpack.c.l.b16 %v4223
    %v4301 = vunpack.c.h.b16 %v4223
    %v4302 = vunpack.c.l.b16 %v4224
    %v4303 = vunpack.c.h.b16 %v4224
    %v4304 = vunpack.c.l.b16 %v4225
    %v4305 = vunpack.c.h.b16 %v4225
    %v4306 = vunpack.c.l.b16 %v4226
    %v4307 = vunpack.c.h.b16 %v4226
    %v4308 = vunpack.c.l.b16 %v4227
    %v4309 = vunpack.c.h.b16 %v4227
    %v4310 = vunpack.c.l.b16 %v4228
    %v4311 = vunpack.c.h.b16 %v4228
    %v4312 = vunpack.c.l.b16 %v4229
    %v4313 = vunpack.c.h.b16 %v4229
    %v4314 = vunpack.c.l.b16 %v4230
    %v4315 = vunpack.c.h.b16 %v4230
    %v4316 = vunpack.c.l.b16 %v4231
    %v4317 = vunpack.c.h.b16 %v4231
    %v4318 = vunpack.c.l.b16 %v4232
    %v4319 = vunpack.c.h.b16 %v4232
    %v4320 = vunpack.c.l.b16 %v4233
    %v4321 = vunpack.c.h.b16 %v4233
    %v4322 = vunpack.c.l.b16 %v4234
    %v4323 = vunpack.c.h.b16 %v4234
    %v4324 = vunpack.c.l.b16 %v4235
    %v4325 = vunpack.c.h.b16 %v4235
    %v4326 = vunpack.c.l.b16 %v4236
    %v4327 = vunpack.c.h.b16 %v4236
    %v4328 = vunpack.c.l.b16 %v4237
    %v4329 = vunpack.c.h.b16 %v4237
    %v4330 = vunpack.c.l.b16 %v4238
    %v4331 = vunpack.c.h.b16 %v4238
    %v4332 = vunpack.c.l.b16 %v4239
    %v4333 = vunpack.c.h.b16 %v4239
    %v4334 = vunpack.c.l.b16 %v4240
    %v4335 = vunpack.c.h.b16 %v4240
    %v4336 = vunpack.c.l.b16 %v4241
    %v4337 = vunpack.c.h.b16 %v4241
    %v4338 = vunpack.c.l.b16 %v4242
    %v4339 = vunpack.c.h.b16 %v4242
    %v4340 = vunpack.c.l.b16 %v4243
    %v4341 = vunpack.c.h.b16 %v4243
    %v4342 = vunpack.c.l.b16 %v4244
    %v4343 = vunpack.c.h.b16 %v4244
    %v4344 = vunpack.c.l.b16 %v4245
    %v4345 = vunpack.c.h.b16 %v4245
    %v4346 = vunpack.c.l.b16 %v4246
    %v4347 = vunpack.c.h.b16 %v4246
    %v4348 = vpack.c.b16 %v4288, %v4284
    %v4349 = vpack.c.b16 %v4289, %v4285
    %v4350 = vpack.c.b16 %v4290, %v4286
    %v4351 = vpack.c.b16 %v4291, %v4287
    %v4352 = vpack.c.b16 %v4296, %v4292
    %v4353 = vpack.c.b16 %v4297, %v4293
    %v4354 = vpack.c.b16 %v4298, %v4294
    %v4355 = vpack.c.b16 %v4299, %v4295
    %v4356 = vpack.c.b16 %v4304, %v4300
    %v4357 = vpack.c.b16 %v4305, %v4301
    %v4358 = vpack.c.b16 %v4306, %v4302
    %v4359 = vpack.c.b16 %v4307, %v4303
    %v4360 = vpack.c.b16 %v4312, %v4308
    %v4361 = vpack.c.b16 %v4313, %v4309
    %v4362 = vpack.c.b16 %v4314, %v4310
    %v4363 = vpack.c.b16 %v4315, %v4311
    %v4364 = vpack.c.b16 %v4320, %v4316
    %v4365 = vpack.c.b16 %v4321, %v4317
    %v4366 = vpack.c.b16 %v4322, %v4318
    %v4367 = vpack.c.b16 %v4323, %v4319
    %v4368 = vpack.c.b16 %v4328, %v4324
    %v4369 = vpack.c.b16 %v4329, %v4325
    %v4370 = vpack.c.b16 %v4330, %v4326
    %v4371 = vpack.c.b16 %v4331, %v4327
    %v4372 = vpack.c.b16 %v4336, %v4332
    %v4373 = vpack.c.b16 %v4337, %v4333
    %v4374 = vpack.c.b16 %v4338, %v4334
    %v4375 = vpack.c.b16 %v4339, %v4335
    %v4376 = vpack.c.b16 %v4344, %v4340
    %v4377 = vpack.c.b16 %v4345, %v4341
    %v4378 = vpack.c.b16 %v4346, %v4342
    %v4379 = vpack.c.b16 %v4347, %v4343
    %4412 = vmatpush.bf16.msra.mxu0 %v4376
    %4413 = vmatpush.bf16.msra.mxu0 %v4372
    %4414 = vmatpush.bf16.msra.mxu0 %v4368
    %4415 = vmatpush.bf16.msra.mxu0 %v4364
    %4416 = vmatpush.bf16.msra.mxu0 %v4360
    %4417 = vmatpush.bf16.msra.mxu0 %v4356
    %4418 = vmatpush.bf16.msra.mxu0 %v4352
    %4419 = vmatpush.bf16.msra.mxu0 %v4348
    %4420 = vmatmul.bf16.gmra.mxu0 %v4250
    %v4421 = vpop.f32.mrf.mxu0
    %v4422 = vadd.f32 0.0, %v4421
    %v4423 = vpop.f32.mrf.mxu0
    %4424 = vdwg.mxu0
    %4425 = vmatpush.bf16.msra.mxu0 %v4377
    %4426 = vmatpush.bf16.msra.mxu0 %v4373
    %4427 = vmatpush.bf16.msra.mxu0 %v4369
    %4428 = vmatpush.bf16.msra.mxu0 %v4365
    %4429 = vmatpush.bf16.msra.mxu0 %v4361
    %4430 = vmatpush.bf16.msra.mxu0 %v4357
    %4431 = vmatpush.bf16.msra.mxu0 %v4353
    %4432 = vmatpush.bf16.msra.mxu0 %v4349
    %4433 = vmatmul.bf16.gmra.mxu0 %v4250
    %v4434 = vpop.f32.mrf.mxu0
    %v4435 = vadd.f32 0.0, %v4434
    %v4436 = vpop.f32.mrf.mxu0
    %4437 = vdwg.mxu0
    %4438 = vmatpush.bf16.msra.mxu0 %v4378
    %4439 = vmatpush.bf16.msra.mxu0 %v4374
    %4440 = vmatpush.bf16.msra.mxu0 %v4370
    %4441 = vmatpush.bf16.msra.mxu0 %v4366
    %4442 = vmatpush.bf16.msra.mxu0 %v4362
    %4443 = vmatpush.bf16.msra.mxu0 %v4358
    %4444 = vmatpush.bf16.msra.mxu0 %v4354
    %4445 = vmatpush.bf16.msra.mxu0 %v4350
    %4446 = vmatmul.bf16.gmra.mxu0 %v4250
    %v4447 = vpop.f32.mrf.mxu0
    %v4448 = vadd.f32 0.0, %v4447
    %v4449 = vpop.f32.mrf.mxu0
    %4450 = vdwg.mxu0
    %4451 = vmatpush.bf16.msra.mxu0 %v4379
    %4452 = vmatpush.bf16.msra.mxu0 %v4375
    %4453 = vmatpush.bf16.msra.mxu0 %v4371
    %4454 = vmatpush.bf16.msra.mxu0 %v4367
    %4455 = vmatpush.bf16.msra.mxu0 %v4363
    %4456 = vmatpush.bf16.msra.mxu0 %v4359
    %4457 = vmatpush.bf16.msra.mxu0 %v4355
    %4458 = vmatpush.bf16.msra.mxu0 %v4351
    %4459 = vmatmul.bf16.gmra.mxu0 %v4250
    %v4460 = vpop.f32.mrf.mxu0
    %v4461 = vadd.f32 0.0, %v4460
    %v4462 = vpop.f32.mrf.mxu0
    %4463 = vdwg.mxu0
    %v4464 = vadd.f32 %v4210, %v4422
    %v4465 = vadd.f32 %v4211, %v4435
    %v4466 = vadd.f32 %v4212, %v4448
    %v4467 = vadd.f32 %v4213, %v4461
    %s4468 = scalar_lea.vmem %s5, 3584
    %v4469 = vld [vmem:[%s4468] sm:$0xff]
    %v4470 = vld [vmem:[%s4468 + $0x8] sm:$0xff]
    %v4471 = vld [vmem:[%s4468 + $0x10] sm:$0xff]
    %v4472 = vld [vmem:[%s4468 + $0x18] sm:$0xff]
    %v4473 = vld [vmem:[%s4468 + $0x20] sm:$0xff]
    %v4474 = vld [vmem:[%s4468 + $0x28] sm:$0xff]
    %v4475 = vld [vmem:[%s4468 + $0x30] sm:$0xff]
    %v4476 = vld [vmem:[%s4468 + $0x38] sm:$0xff]
    %v4477 = vld [vmem:[%s4468 + $0x40] sm:$0xff]
    %v4478 = vld [vmem:[%s4468 + $0x48] sm:$0xff]
    %v4479 = vld [vmem:[%s4468 + $0x50] sm:$0xff]
    %v4480 = vld [vmem:[%s4468 + $0x58] sm:$0xff]
    %v4481 = vld [vmem:[%s4468 + $0x60] sm:$0xff]
    %v4482 = vld [vmem:[%s4468 + $0x68] sm:$0xff]
    %v4483 = vld [vmem:[%s4468 + $0x70] sm:$0xff]
    %v4484 = vld [vmem:[%s4468 + $0x78] sm:$0xff]
    %v4485 = vld [vmem:[%s4468 + $0x80] sm:$0xff]
    %v4486 = vld [vmem:[%s4468 + $0x88] sm:$0xff]
    %v4487 = vld [vmem:[%s4468 + $0x90] sm:$0xff]
    %v4488 = vld [vmem:[%s4468 + $0x98] sm:$0xff]
    %v4489 = vld [vmem:[%s4468 + $0xa0] sm:$0xff]
    %v4490 = vld [vmem:[%s4468 + $0xa8] sm:$0xff]
    %v4491 = vld [vmem:[%s4468 + $0xb0] sm:$0xff]
    %v4492 = vld [vmem:[%s4468 + $0xb8] sm:$0xff]
    %v4493 = vld [vmem:[%s4468 + $0xc0] sm:$0xff]
    %v4494 = vld [vmem:[%s4468 + $0xc8] sm:$0xff]
    %v4495 = vld [vmem:[%s4468 + $0xd0] sm:$0xff]
    %v4496 = vld [vmem:[%s4468 + $0xd8] sm:$0xff]
    %v4497 = vld [vmem:[%s4468 + $0xe0] sm:$0xff]
    %v4498 = vld [vmem:[%s4468 + $0xe8] sm:$0xff]
    %v4499 = vld [vmem:[%s4468 + $0xf0] sm:$0xff]
    %v4500 = vld [vmem:[%s4468 + $0xf8] sm:$0xff]
    %v4501 = vrot.slane %v2977, 6
    %v4502 = vrot.slane %v2978, 5
    %v4503 = vsel %vm984, %v4502, %v4501
    %v4504 = vpack.c.b16 %v4503, %v4503
    %v4538 = vunpack.c.l.b16 %v4469
    %v4539 = vunpack.c.h.b16 %v4469
    %v4540 = vunpack.c.l.b16 %v4470
    %v4541 = vunpack.c.h.b16 %v4470
    %v4542 = vunpack.c.l.b16 %v4471
    %v4543 = vunpack.c.h.b16 %v4471
    %v4544 = vunpack.c.l.b16 %v4472
    %v4545 = vunpack.c.h.b16 %v4472
    %v4546 = vunpack.c.l.b16 %v4473
    %v4547 = vunpack.c.h.b16 %v4473
    %v4548 = vunpack.c.l.b16 %v4474
    %v4549 = vunpack.c.h.b16 %v4474
    %v4550 = vunpack.c.l.b16 %v4475
    %v4551 = vunpack.c.h.b16 %v4475
    %v4552 = vunpack.c.l.b16 %v4476
    %v4553 = vunpack.c.h.b16 %v4476
    %v4554 = vunpack.c.l.b16 %v4477
    %v4555 = vunpack.c.h.b16 %v4477
    %v4556 = vunpack.c.l.b16 %v4478
    %v4557 = vunpack.c.h.b16 %v4478
    %v4558 = vunpack.c.l.b16 %v4479
    %v4559 = vunpack.c.h.b16 %v4479
    %v4560 = vunpack.c.l.b16 %v4480
    %v4561 = vunpack.c.h.b16 %v4480
    %v4562 = vunpack.c.l.b16 %v4481
    %v4563 = vunpack.c.h.b16 %v4481
    %v4564 = vunpack.c.l.b16 %v4482
    %v4565 = vunpack.c.h.b16 %v4482
    %v4566 = vunpack.c.l.b16 %v4483
    %v4567 = vunpack.c.h.b16 %v4483
    %v4568 = vunpack.c.l.b16 %v4484
    %v4569 = vunpack.c.h.b16 %v4484
    %v4570 = vunpack.c.l.b16 %v4485
    %v4571 = vunpack.c.h.b16 %v4485
    %v4572 = vunpack.c.l.b16 %v4486
    %v4573 = vunpack.c.h.b16 %v4486
    %v4574 = vunpack.c.l.b16 %v4487
    %v4575 = vunpack.c.h.b16 %v4487
    %v4576 = vunpack.c.l.b16 %v4488
    %v4577 = vunpack.c.h.b16 %v4488
    %v4578 = vunpack.c.l.b16 %v4489
    %v4579 = vunpack.c.h.b16 %v4489
    %v4580 = vunpack.c.l.b16 %v4490
    %v4581 = vunpack.c.h.b16 %v4490
    %v4582 = vunpack.c.l.b16 %v4491
    %v4583 = vunpack.c.h.b16 %v4491
    %v4584 = vunpack.c.l.b16 %v4492
    %v4585 = vunpack.c.h.b16 %v4492
    %v4586 = vunpack.c.l.b16 %v4493
    %v4587 = vunpack.c.h.b16 %v4493
    %v4588 = vunpack.c.l.b16 %v4494
    %v4589 = vunpack.c.h.b16 %v4494
    %v4590 = vunpack.c.l.b16 %v4495
    %v4591 = vunpack.c.h.b16 %v4495
    %v4592 = vunpack.c.l.b16 %v4496
    %v4593 = vunpack.c.h.b16 %v4496
    %v4594 = vunpack.c.l.b16 %v4497
    %v4595 = vunpack.c.h.b16 %v4497
    %v4596 = vunpack.c.l.b16 %v4498
    %v4597 = vunpack.c.h.b16 %v4498
    %v4598 = vunpack.c.l.b16 %v4499
    %v4599 = vunpack.c.h.b16 %v4499
    %v4600 = vunpack.c.l.b16 %v4500
    %v4601 = vunpack.c.h.b16 %v4500
    %v4602 = vpack.c.b16 %v4542, %v4538
    %v4603 = vpack.c.b16 %v4543, %v4539
    %v4604 = vpack.c.b16 %v4544, %v4540
    %v4605 = vpack.c.b16 %v4545, %v4541
    %v4606 = vpack.c.b16 %v4550, %v4546
    %v4607 = vpack.c.b16 %v4551, %v4547
    %v4608 = vpack.c.b16 %v4552, %v4548
    %v4609 = vpack.c.b16 %v4553, %v4549
    %v4610 = vpack.c.b16 %v4558, %v4554
    %v4611 = vpack.c.b16 %v4559, %v4555
    %v4612 = vpack.c.b16 %v4560, %v4556
    %v4613 = vpack.c.b16 %v4561, %v4557
    %v4614 = vpack.c.b16 %v4566, %v4562
    %v4615 = vpack.c.b16 %v4567, %v4563
    %v4616 = vpack.c.b16 %v4568, %v4564
    %v4617 = vpack.c.b16 %v4569, %v4565
    %v4618 = vpack.c.b16 %v4574, %v4570
    %v4619 = vpack.c.b16 %v4575, %v4571
    %v4620 = vpack.c.b16 %v4576, %v4572
    %v4621 = vpack.c.b16 %v4577, %v4573
    %v4622 = vpack.c.b16 %v4582, %v4578
    %v4623 = vpack.c.b16 %v4583, %v4579
    %v4624 = vpack.c.b16 %v4584, %v4580
    %v4625 = vpack.c.b16 %v4585, %v4581
    %v4626 = vpack.c.b16 %v4590, %v4586
    %v4627 = vpack.c.b16 %v4591, %v4587
    %v4628 = vpack.c.b16 %v4592, %v4588
    %v4629 = vpack.c.b16 %v4593, %v4589
    %v4630 = vpack.c.b16 %v4598, %v4594
    %v4631 = vpack.c.b16 %v4599, %v4595
    %v4632 = vpack.c.b16 %v4600, %v4596
    %v4633 = vpack.c.b16 %v4601, %v4597
    %4666 = vmatpush.bf16.msra.mxu0 %v4630
    %4667 = vmatpush.bf16.msra.mxu0 %v4626
    %4668 = vmatpush.bf16.msra.mxu0 %v4622
    %4669 = vmatpush.bf16.msra.mxu0 %v4618
    %4670 = vmatpush.bf16.msra.mxu0 %v4614
    %4671 = vmatpush.bf16.msra.mxu0 %v4610
    %4672 = vmatpush.bf16.msra.mxu0 %v4606
    %4673 = vmatpush.bf16.msra.mxu0 %v4602
    %4674 = vmatmul.bf16.gmra.mxu0 %v4504
    %v4675 = vpop.f32.mrf.mxu0
    %v4676 = vadd.f32 0.0, %v4675
    %v4677 = vpop.f32.mrf.mxu0
    %4678 = vdwg.mxu0
    %4679 = vmatpush.bf16.msra.mxu0 %v4631
    %4680 = vmatpush.bf16.msra.mxu0 %v4627
    %4681 = vmatpush.bf16.msra.mxu0 %v4623
    %4682 = vmatpush.bf16.msra.mxu0 %v4619
    %4683 = vmatpush.bf16.msra.mxu0 %v4615
    %4684 = vmatpush.bf16.msra.mxu0 %v4611
    %4685 = vmatpush.bf16.msra.mxu0 %v4607
    %4686 = vmatpush.bf16.msra.mxu0 %v4603
    %4687 = vmatmul.bf16.gmra.mxu0 %v4504
    %v4688 = vpop.f32.mrf.mxu0
    %v4689 = vadd.f32 0.0, %v4688
    %v4690 = vpop.f32.mrf.mxu0
    %4691 = vdwg.mxu0
    %4692 = vmatpush.bf16.msra.mxu0 %v4632
    %4693 = vmatpush.bf16.msra.mxu0 %v4628
    %4694 = vmatpush.bf16.msra.mxu0 %v4624
    %4695 = vmatpush.bf16.msra.mxu0 %v4620
    %4696 = vmatpush.bf16.msra.mxu0 %v4616
    %4697 = vmatpush.bf16.msra.mxu0 %v4612
    %4698 = vmatpush.bf16.msra.mxu0 %v4608
    %4699 = vmatpush.bf16.msra.mxu0 %v4604
    %4700 = vmatmul.bf16.gmra.mxu0 %v4504
    %v4701 = vpop.f32.mrf.mxu0
    %v4702 = vadd.f32 0.0, %v4701
    %v4703 = vpop.f32.mrf.mxu0
    %4704 = vdwg.mxu0
    %4705 = vmatpush.bf16.msra.mxu0 %v4633
    %4706 = vmatpush.bf16.msra.mxu0 %v4629
    %4707 = vmatpush.bf16.msra.mxu0 %v4625
    %4708 = vmatpush.bf16.msra.mxu0 %v4621
    %4709 = vmatpush.bf16.msra.mxu0 %v4617
    %4710 = vmatpush.bf16.msra.mxu0 %v4613
    %4711 = vmatpush.bf16.msra.mxu0 %v4609
    %4712 = vmatpush.bf16.msra.mxu0 %v4605
    %4713 = vmatmul.bf16.gmra.mxu0 %v4504
    %v4714 = vpop.f32.mrf.mxu0
    %v4715 = vadd.f32 0.0, %v4714
    %v4716 = vpop.f32.mrf.mxu0
    %4717 = vdwg.mxu0
    %v4718 = vadd.f32 %v4464, %v4676
    %v4719 = vadd.f32 %v4465, %v4689
    %v4720 = vadd.f32 %v4466, %v4702
    %v4721 = vadd.f32 %v4467, %v4715
    %s4722 = scalar_lea.vmem %s5, 3840
    %v4723 = vld [vmem:[%s4722] sm:$0xff]
    %v4724 = vld [vmem:[%s4722 + $0x8] sm:$0xff]
    %v4725 = vld [vmem:[%s4722 + $0x10] sm:$0xff]
    %v4726 = vld [vmem:[%s4722 + $0x18] sm:$0xff]
    %v4727 = vld [vmem:[%s4722 + $0x20] sm:$0xff]
    %v4728 = vld [vmem:[%s4722 + $0x28] sm:$0xff]
    %v4729 = vld [vmem:[%s4722 + $0x30] sm:$0xff]
    %v4730 = vld [vmem:[%s4722 + $0x38] sm:$0xff]
    %v4731 = vld [vmem:[%s4722 + $0x40] sm:$0xff]
    %v4732 = vld [vmem:[%s4722 + $0x48] sm:$0xff]
    %v4733 = vld [vmem:[%s4722 + $0x50] sm:$0xff]
    %v4734 = vld [vmem:[%s4722 + $0x58] sm:$0xff]
    %v4735 = vld [vmem:[%s4722 + $0x60] sm:$0xff]
    %v4736 = vld [vmem:[%s4722 + $0x68] sm:$0xff]
    %v4737 = vld [vmem:[%s4722 + $0x70] sm:$0xff]
    %v4738 = vld [vmem:[%s4722 + $0x78] sm:$0xff]
    %v4739 = vld [vmem:[%s4722 + $0x80] sm:$0xff]
    %v4740 = vld [vmem:[%s4722 + $0x88] sm:$0xff]
    %v4741 = vld [vmem:[%s4722 + $0x90] sm:$0xff]
    %v4742 = vld [vmem:[%s4722 + $0x98] sm:$0xff]
    %v4743 = vld [vmem:[%s4722 + $0xa0] sm:$0xff]
    %v4744 = vld [vmem:[%s4722 + $0xa8] sm:$0xff]
    %v4745 = vld [vmem:[%s4722 + $0xb0] sm:$0xff]
    %v4746 = vld [vmem:[%s4722 + $0xb8] sm:$0xff]
    %v4747 = vld [vmem:[%s4722 + $0xc0] sm:$0xff]
    %v4748 = vld [vmem:[%s4722 + $0xc8] sm:$0xff]
    %v4749 = vld [vmem:[%s4722 + $0xd0] sm:$0xff]
    %v4750 = vld [vmem:[%s4722 + $0xd8] sm:$0xff]
    %v4751 = vld [vmem:[%s4722 + $0xe0] sm:$0xff]
    %v4752 = vld [vmem:[%s4722 + $0xe8] sm:$0xff]
    %v4753 = vld [vmem:[%s4722 + $0xf0] sm:$0xff]
    %v4754 = vld [vmem:[%s4722 + $0xf8] sm:$0xff]
    %v4755 = vrot.slane %v2977, 7
    %v4756 = vrot.slane %v2978, 6
    %v4757 = vsel %vm984, %v4756, %v4755
    %v4758 = vpack.c.b16 %v4757, %v4757
    %v4792 = vunpack.c.l.b16 %v4723
    %v4793 = vunpack.c.h.b16 %v4723
    %v4794 = vunpack.c.l.b16 %v4724
    %v4795 = vunpack.c.h.b16 %v4724
    %v4796 = vunpack.c.l.b16 %v4725
    %v4797 = vunpack.c.h.b16 %v4725
    %v4798 = vunpack.c.l.b16 %v4726
    %v4799 = vunpack.c.h.b16 %v4726
    %v4800 = vunpack.c.l.b16 %v4727
    %v4801 = vunpack.c.h.b16 %v4727
    %v4802 = vunpack.c.l.b16 %v4728
    %v4803 = vunpack.c.h.b16 %v4728
    %v4804 = vunpack.c.l.b16 %v4729
    %v4805 = vunpack.c.h.b16 %v4729
    %v4806 = vunpack.c.l.b16 %v4730
    %v4807 = vunpack.c.h.b16 %v4730
    %v4808 = vunpack.c.l.b16 %v4731
    %v4809 = vunpack.c.h.b16 %v4731
    %v4810 = vunpack.c.l.b16 %v4732
    %v4811 = vunpack.c.h.b16 %v4732
    %v4812 = vunpack.c.l.b16 %v4733
    %v4813 = vunpack.c.h.b16 %v4733
    %v4814 = vunpack.c.l.b16 %v4734
    %v4815 = vunpack.c.h.b16 %v4734
    %v4816 = vunpack.c.l.b16 %v4735
    %v4817 = vunpack.c.h.b16 %v4735
    %v4818 = vunpack.c.l.b16 %v4736
    %v4819 = vunpack.c.h.b16 %v4736
    %v4820 = vunpack.c.l.b16 %v4737
    %v4821 = vunpack.c.h.b16 %v4737
    %v4822 = vunpack.c.l.b16 %v4738
    %v4823 = vunpack.c.h.b16 %v4738
    %v4824 = vunpack.c.l.b16 %v4739
    %v4825 = vunpack.c.h.b16 %v4739
    %v4826 = vunpack.c.l.b16 %v4740
    %v4827 = vunpack.c.h.b16 %v4740
    %v4828 = vunpack.c.l.b16 %v4741
    %v4829 = vunpack.c.h.b16 %v4741
    %v4830 = vunpack.c.l.b16 %v4742
    %v4831 = vunpack.c.h.b16 %v4742
    %v4832 = vunpack.c.l.b16 %v4743
    %v4833 = vunpack.c.h.b16 %v4743
    %v4834 = vunpack.c.l.b16 %v4744
    %v4835 = vunpack.c.h.b16 %v4744
    %v4836 = vunpack.c.l.b16 %v4745
    %v4837 = vunpack.c.h.b16 %v4745
    %v4838 = vunpack.c.l.b16 %v4746
    %v4839 = vunpack.c.h.b16 %v4746
    %v4840 = vunpack.c.l.b16 %v4747
    %v4841 = vunpack.c.h.b16 %v4747
    %v4842 = vunpack.c.l.b16 %v4748
    %v4843 = vunpack.c.h.b16 %v4748
    %v4844 = vunpack.c.l.b16 %v4749
    %v4845 = vunpack.c.h.b16 %v4749
    %v4846 = vunpack.c.l.b16 %v4750
    %v4847 = vunpack.c.h.b16 %v4750
    %v4848 = vunpack.c.l.b16 %v4751
    %v4849 = vunpack.c.h.b16 %v4751
    %v4850 = vunpack.c.l.b16 %v4752
    %v4851 = vunpack.c.h.b16 %v4752
    %v4852 = vunpack.c.l.b16 %v4753
    %v4853 = vunpack.c.h.b16 %v4753
    %v4854 = vunpack.c.l.b16 %v4754
    %v4855 = vunpack.c.h.b16 %v4754
    %v4856 = vpack.c.b16 %v4796, %v4792
    %v4857 = vpack.c.b16 %v4797, %v4793
    %v4858 = vpack.c.b16 %v4798, %v4794
    %v4859 = vpack.c.b16 %v4799, %v4795
    %v4860 = vpack.c.b16 %v4804, %v4800
    %v4861 = vpack.c.b16 %v4805, %v4801
    %v4862 = vpack.c.b16 %v4806, %v4802
    %v4863 = vpack.c.b16 %v4807, %v4803
    %v4864 = vpack.c.b16 %v4812, %v4808
    %v4865 = vpack.c.b16 %v4813, %v4809
    %v4866 = vpack.c.b16 %v4814, %v4810
    %v4867 = vpack.c.b16 %v4815, %v4811
    %v4868 = vpack.c.b16 %v4820, %v4816
    %v4869 = vpack.c.b16 %v4821, %v4817
    %v4870 = vpack.c.b16 %v4822, %v4818
    %v4871 = vpack.c.b16 %v4823, %v4819
    %v4872 = vpack.c.b16 %v4828, %v4824
    %v4873 = vpack.c.b16 %v4829, %v4825
    %v4874 = vpack.c.b16 %v4830, %v4826
    %v4875 = vpack.c.b16 %v4831, %v4827
    %v4876 = vpack.c.b16 %v4836, %v4832
    %v4877 = vpack.c.b16 %v4837, %v4833
    %v4878 = vpack.c.b16 %v4838, %v4834
    %v4879 = vpack.c.b16 %v4839, %v4835
    %v4880 = vpack.c.b16 %v4844, %v4840
    %v4881 = vpack.c.b16 %v4845, %v4841
    %v4882 = vpack.c.b16 %v4846, %v4842
    %v4883 = vpack.c.b16 %v4847, %v4843
    %v4884 = vpack.c.b16 %v4852, %v4848
    %v4885 = vpack.c.b16 %v4853, %v4849
    %v4886 = vpack.c.b16 %v4854, %v4850
    %v4887 = vpack.c.b16 %v4855, %v4851
    %4920 = vmatpush.bf16.msra.mxu0 %v4884
    %4921 = vmatpush.bf16.msra.mxu0 %v4880
    %4922 = vmatpush.bf16.msra.mxu0 %v4876
    %4923 = vmatpush.bf16.msra.mxu0 %v4872
    %4924 = vmatpush.bf16.msra.mxu0 %v4868
    %4925 = vmatpush.bf16.msra.mxu0 %v4864
    %4926 = vmatpush.bf16.msra.mxu0 %v4860
    %4927 = vmatpush.bf16.msra.mxu0 %v4856
    %4928 = vmatmul.bf16.gmra.mxu0 %v4758
    %v4929 = vpop.f32.mrf.mxu0
    %v4930 = vadd.f32 0.0, %v4929
    %v4931 = vpop.f32.mrf.mxu0
    %4932 = vdwg.mxu0
    %4933 = vmatpush.bf16.msra.mxu0 %v4885
    %4934 = vmatpush.bf16.msra.mxu0 %v4881
    %4935 = vmatpush.bf16.msra.mxu0 %v4877
    %4936 = vmatpush.bf16.msra.mxu0 %v4873
    %4937 = vmatpush.bf16.msra.mxu0 %v4869
    %4938 = vmatpush.bf16.msra.mxu0 %v4865
    %4939 = vmatpush.bf16.msra.mxu0 %v4861
    %4940 = vmatpush.bf16.msra.mxu0 %v4857
    %4941 = vmatmul.bf16.gmra.mxu0 %v4758
    %v4942 = vpop.f32.mrf.mxu0
    %v4943 = vadd.f32 0.0, %v4942
    %v4944 = vpop.f32.mrf.mxu0
    %4945 = vdwg.mxu0
    %4946 = vmatpush.bf16.msra.mxu0 %v4886
    %4947 = vmatpush.bf16.msra.mxu0 %v4882
    %4948 = vmatpush.bf16.msra.mxu0 %v4878
    %4949 = vmatpush.bf16.msra.mxu0 %v4874
    %4950 = vmatpush.bf16.msra.mxu0 %v4870
    %4951 = vmatpush.bf16.msra.mxu0 %v4866
    %4952 = vmatpush.bf16.msra.mxu0 %v4862
    %4953 = vmatpush.bf16.msra.mxu0 %v4858
    %4954 = vmatmul.bf16.gmra.mxu0 %v4758
    %v4955 = vpop.f32.mrf.mxu0
    %v4956 = vadd.f32 0.0, %v4955
    %v4957 = vpop.f32.mrf.mxu0
    %4958 = vdwg.mxu0
    %4959 = vmatpush.bf16.msra.mxu0 %v4887
    %4960 = vmatpush.bf16.msra.mxu0 %v4883
    %4961 = vmatpush.bf16.msra.mxu0 %v4879
    %4962 = vmatpush.bf16.msra.mxu0 %v4875
    %4963 = vmatpush.bf16.msra.mxu0 %v4871
    %4964 = vmatpush.bf16.msra.mxu0 %v4867
    %4965 = vmatpush.bf16.msra.mxu0 %v4863
    %4966 = vmatpush.bf16.msra.mxu0 %v4859
    %4967 = vmatmul.bf16.gmra.mxu0 %v4758
    %v4968 = vpop.f32.mrf.mxu0
    %v4969 = vadd.f32 0.0, %v4968
    %v4970 = vpop.f32.mrf.mxu0
    %4971 = vdwg.mxu0
    %v4972 = vadd.f32 %v4718, %v4930
    %v4973 = vadd.f32 %v4719, %v4943
    %v4974 = vadd.f32 %v4720, %v4956
    %v4975 = vadd.f32 %v4721, %v4969
    %v4976 = vld [vmem:[%s6] sm:$0xf]
    %v4978 = vperm.slane %v4976, 0
    %v4979 = vperm.slane %v4976, 1
    %v4980 = vperm.slane %v4976, 2
    %v4981 = vperm.slane %v4976, 3
    %v4986 = vadd.f32 %v4972, %v4978
    %v4987 = vadd.f32 %v4973, %v4979
    %v4988 = vadd.f32 %v4974, %v4980
    %v4989 = vadd.f32 %v4975, %v4981
    %v4990 = vmax.f32 %v4986, 0.0
    %v4991 = vmax.f32 %v4987, 0.0
    %v4992 = vmax.f32 %v4988, 0.0
    %v4993 = vmax.f32 %v4989, 0.0
    %v4994 = vpack.c.bf16 %v4990, %v4990
    %v4995 = vpack.c.bf16 %v4991, %v4991
    %v4996 = vpack.c.bf16 %v4992, %v4992
    %v4997 = vpack.c.bf16 %v4993, %v4993
    %v4998 = vld [vmem:[%s7] sm:$0xf]
    %v4999 = vld [vmem:[%s7 + $0x4] sm:$0xf]
    %v5000 = vld [vmem:[%s7 + $0x8] sm:$0xf]
    %v5001 = vld [vmem:[%s7 + $0xc] sm:$0xf]
    %v5002 = vld [vmem:[%s7 + $0x10] sm:$0xf]
    %v5003 = vld [vmem:[%s7 + $0x14] sm:$0xf]
    %v5004 = vld [vmem:[%s7 + $0x18] sm:$0xf]
    %v5005 = vld [vmem:[%s7 + $0x1c] sm:$0xf]
    %v5006 = vld [vmem:[%s7 + $0x20] sm:$0xf]
    %v5007 = vld [vmem:[%s7 + $0x24] sm:$0xf]
    %v5008 = vld [vmem:[%s7 + $0x28] sm:$0xf]
    %v5009 = vld [vmem:[%s7 + $0x2c] sm:$0xf]
    %v5010 = vld [vmem:[%s7 + $0x30] sm:$0xf]
    %v5011 = vld [vmem:[%s7 + $0x34] sm:$0xf]
    %v5012 = vld [vmem:[%s7 + $0x38] sm:$0xf]
    %v5013 = vld [vmem:[%s7 + $0x3c] sm:$0xf]
    %v5014 = vld [vmem:[%s7 + $0x40] sm:$0xf]
    %v5015 = vld [vmem:[%s7 + $0x44] sm:$0xf]
    %v5016 = vld [vmem:[%s7 + $0x48] sm:$0xf]
    %v5017 = vld [vmem:[%s7 + $0x4c] sm:$0xf]
    %v5018 = vld [vmem:[%s7 + $0x50] sm:$0xf]
    %v5019 = vld [vmem:[%s7 + $0x54] sm:$0xf]
    %v5020 = vld [vmem:[%s7 + $0x58] sm:$0xf]
    %v5021 = vld [vmem:[%s7 + $0x5c] sm:$0xf]
    %v5022 = vld [vmem:[%s7 + $0x60] sm:$0xf]
    %v5023 = vld [vmem:[%s7 + $0x64] sm:$0xf]
    %v5024 = vld [vmem:[%s7 + $0x68] sm:$0xf]
    %v5025 = vld [vmem:[%s7 + $0x6c] sm:$0xf]
    %v5026 = vld [vmem:[%s7 + $0x70] sm:$0xf]
    %v5027 = vld [vmem:[%s7 + $0x74] sm:$0xf]
    %v5028 = vld [vmem:[%s7 + $0x78] sm:$0xf]
    %v5029 = vld [vmem:[%s7 + $0x7c] sm:$0xf]
    %v5030 = vld [vmem:[%s7 + $0x80] sm:$0xf]
    %v5031 = vld [vmem:[%s7 + $0x84] sm:$0xf]
    %v5032 = vld [vmem:[%s7 + $0x88] sm:$0xf]
    %v5033 = vld [vmem:[%s7 + $0x8c] sm:$0xf]
    %v5034 = vld [vmem:[%s7 + $0x90] sm:$0xf]
    %v5035 = vld [vmem:[%s7 + $0x94] sm:$0xf]
    %v5036 = vld [vmem:[%s7 + $0x98] sm:$0xf]
    %v5037 = vld [vmem:[%s7 + $0x9c] sm:$0xf]
    %v5038 = vld [vmem:[%s7 + $0xa0] sm:$0xf]
    %v5039 = vld [vmem:[%s7 + $0xa4] sm:$0xf]
    %v5040 = vld [vmem:[%s7 + $0xa8] sm:$0xf]
    %v5041 = vld [vmem:[%s7 + $0xac] sm:$0xf]
    %v5042 = vld [vmem:[%s7 + $0xb0] sm:$0xf]
    %v5043 = vld [vmem:[%s7 + $0xb4] sm:$0xf]
    %v5044 = vld [vmem:[%s7 + $0xb8] sm:$0xf]
    %v5045 = vld [vmem:[%s7 + $0xbc] sm:$0xf]
    %v5046 = vld [vmem:[%s7 + $0xc0] sm:$0xf]
    %v5047 = vld [vmem:[%s7 + $0xc4] sm:$0xf]
    %v5048 = vld [vmem:[%s7 + $0xc8] sm:$0xf]
    %v5049 = vld [vmem:[%s7 + $0xcc] sm:$0xf]
    %v5050 = vld [vmem:[%s7 + $0xd0] sm:$0xf]
    %v5051 = vld [vmem:[%s7 + $0xd4] sm:$0xf]
    %v5052 = vld [vmem:[%s7 + $0xd8] sm:$0xf]
    %v5053 = vld [vmem:[%s7 + $0xdc] sm:$0xf]
    %v5054 = vld [vmem:[%s7 + $0xe0] sm:$0xf]
    %v5055 = vld [vmem:[%s7 + $0xe4] sm:$0xf]
    %v5056 = vld [vmem:[%s7 + $0xe8] sm:$0xf]
    %v5057 = vld [vmem:[%s7 + $0xec] sm:$0xf]
    %v5058 = vld [vmem:[%s7 + $0xf0] sm:$0xf]
    %v5059 = vld [vmem:[%s7 + $0xf4] sm:$0xf]
    %v5060 = vld [vmem:[%s7 + $0xf8] sm:$0xf]
    %v5061 = vld [vmem:[%s7 + $0xfc] sm:$0xf]
    %v5062 = vld [vmem:[%s8] sm:$0x1]
    %v5064 = vperm.slane %v5062, 0
    %v5130 = vunpack.c.l.b16 %v4998
    %v5131 = vunpack.c.l.b16 %v4999
    %v5132 = vunpack.c.l.b16 %v5000
    %v5133 = vunpack.c.l.b16 %v5001
    %v5134 = vunpack.c.l.b16 %v5002
    %v5135 = vunpack.c.l.b16 %v5003
    %v5136 = vunpack.c.l.b16 %v5004
    %v5137 = vunpack.c.l.b16 %v5005
    %v5138 = vunpack.c.l.b16 %v5006
    %v5139 = vunpack.c.l.b16 %v5007
    %v5140 = vunpack.c.l.b16 %v5008
    %v5141 = vunpack.c.l.b16 %v5009
    %v5142 = vunpack.c.l.b16 %v5010
    %v5143 = vunpack.c.l.b16 %v5011
    %v5144 = vunpack.c.l.b16 %v5012
    %v5145 = vunpack.c.l.b16 %v5013
    %v5146 = vunpack.c.l.b16 %v5014
    %v5147 = vunpack.c.l.b16 %v5015
    %v5148 = vunpack.c.l.b16 %v5016
    %v5149 = vunpack.c.l.b16 %v5017
    %v5150 = vunpack.c.l.b16 %v5018
    %v5151 = vunpack.c.l.b16 %v5019
    %v5152 = vunpack.c.l.b16 %v5020
    %v5153 = vunpack.c.l.b16 %v5021
    %v5154 = vunpack.c.l.b16 %v5022
    %v5155 = vunpack.c.l.b16 %v5023
    %v5156 = vunpack.c.l.b16 %v5024
    %v5157 = vunpack.c.l.b16 %v5025
    %v5158 = vunpack.c.l.b16 %v5026
    %v5159 = vunpack.c.l.b16 %v5027
    %v5160 = vunpack.c.l.b16 %v5028
    %v5161 = vunpack.c.l.b16 %v5029
    %v5162 = vunpack.c.l.b16 %v5030
    %v5163 = vunpack.c.l.b16 %v5031
    %v5164 = vunpack.c.l.b16 %v5032
    %v5165 = vunpack.c.l.b16 %v5033
    %v5166 = vunpack.c.l.b16 %v5034
    %v5167 = vunpack.c.l.b16 %v5035
    %v5168 = vunpack.c.l.b16 %v5036
    %v5169 = vunpack.c.l.b16 %v5037
    %v5170 = vunpack.c.l.b16 %v5038
    %v5171 = vunpack.c.l.b16 %v5039
    %v5172 = vunpack.c.l.b16 %v5040
    %v5173 = vunpack.c.l.b16 %v5041
    %v5174 = vunpack.c.l.b16 %v5042
    %v5175 = vunpack.c.l.b16 %v5043
    %v5176 = vunpack.c.l.b16 %v5044
    %v5177 = vunpack.c.l.b16 %v5045
    %v5178 = vunpack.c.l.b16 %v5046
    %v5179 = vunpack.c.l.b16 %v5047
    %v5180 = vunpack.c.l.b16 %v5048
    %v5181 = vunpack.c.l.b16 %v5049
    %v5182 = vunpack.c.l.b16 %v5050
    %v5183 = vunpack.c.l.b16 %v5051
    %v5184 = vunpack.c.l.b16 %v5052
    %v5185 = vunpack.c.l.b16 %v5053
    %v5186 = vunpack.c.l.b16 %v5054
    %v5187 = vunpack.c.l.b16 %v5055
    %v5188 = vunpack.c.l.b16 %v5056
    %v5189 = vunpack.c.l.b16 %v5057
    %v5190 = vunpack.c.l.b16 %v5058
    %v5191 = vunpack.c.l.b16 %v5059
    %v5192 = vunpack.c.l.b16 %v5060
    %v5193 = vunpack.c.l.b16 %v5061
    %v5194 = vpack.c.b16 %v5131, %v5130
    %v5195 = vpack.c.b16 %v5133, %v5132
    %v5196 = vpack.c.b16 %v5135, %v5134
    %v5197 = vpack.c.b16 %v5137, %v5136
    %v5198 = vpack.c.b16 %v5139, %v5138
    %v5199 = vpack.c.b16 %v5141, %v5140
    %v5200 = vpack.c.b16 %v5143, %v5142
    %v5201 = vpack.c.b16 %v5145, %v5144
    %v5202 = vpack.c.b16 %v5147, %v5146
    %v5203 = vpack.c.b16 %v5149, %v5148
    %v5204 = vpack.c.b16 %v5151, %v5150
    %v5205 = vpack.c.b16 %v5153, %v5152
    %v5206 = vpack.c.b16 %v5155, %v5154
    %v5207 = vpack.c.b16 %v5157, %v5156
    %v5208 = vpack.c.b16 %v5159, %v5158
    %v5209 = vpack.c.b16 %v5161, %v5160
    %v5210 = vpack.c.b16 %v5163, %v5162
    %v5211 = vpack.c.b16 %v5165, %v5164
    %v5212 = vpack.c.b16 %v5167, %v5166
    %v5213 = vpack.c.b16 %v5169, %v5168
    %v5214 = vpack.c.b16 %v5171, %v5170
    %v5215 = vpack.c.b16 %v5173, %v5172
    %v5216 = vpack.c.b16 %v5175, %v5174
    %v5217 = vpack.c.b16 %v5177, %v5176
    %v5218 = vpack.c.b16 %v5179, %v5178
    %v5219 = vpack.c.b16 %v5181, %v5180
    %v5220 = vpack.c.b16 %v5183, %v5182
    %v5221 = vpack.c.b16 %v5185, %v5184
    %v5222 = vpack.c.b16 %v5187, %v5186
    %v5223 = vpack.c.b16 %v5189, %v5188
    %v5224 = vpack.c.b16 %v5191, %v5190
    %v5225 = vpack.c.b16 %v5193, %v5192
    %5258 = vmatpush.bf16.msra.mxu0 %v5201
    %5259 = vmatpush.bf16.msra.mxu0 %v5200
    %5260 = vmatpush.bf16.msra.mxu0 %v5199
    %5261 = vmatpush.bf16.msra.mxu0 %v5198
    %5262 = vmatpush.bf16.msra.mxu0 %v5197
    %5263 = vmatpush.bf16.msra.mxu0 %v5196
    %5264 = vmatpush.bf16.msra.mxu0 %v5195
    %5265 = vmatpush.bf16.msra.mxu0 %v5194
    %5266 = vmatmul.bf16.gmra.mxu0 %v4994
    %v5267 = vpop.f32.mrf.mxu0
    %v5268 = vadd.f32 %v5064, %v5267
    %v5269 = vpop.f32.mrf.mxu0
    %5270 = vdwg.mxu0
    %5271 = vmatpush.bf16.msra.mxu0 %v5209
    %5272 = vmatpush.bf16.msra.mxu0 %v5208
    %5273 = vmatpush.bf16.msra.mxu0 %v5207
    %5274 = vmatpush.bf16.msra.mxu0 %v5206
    %5275 = vmatpush.bf16.msra.mxu0 %v5205
    %5276 = vmatpush.bf16.msra.mxu0 %v5204
    %5277 = vmatpush.bf16.msra.mxu0 %v5203
    %5278 = vmatpush.bf16.msra.mxu0 %v5202
    %5279 = vmatmul.bf16.gmra.mxu0 %v4995
    %v5280 = vpop.f32.mrf.mxu0
    %v5281 = vadd.f32 %v5268, %v5280
    %v5282 = vpop.f32.mrf.mxu0
    %5283 = vdwg.mxu0
    %5284 = vmatpush.bf16.msra.mxu0 %v5217
    %5285 = vmatpush.bf16.msra.mxu0 %v5216
    %5286 = vmatpush.bf16.msra.mxu0 %v5215
    %5287 = vmatpush.bf16.msra.mxu0 %v5214
    %5288 = vmatpush.bf16.msra.mxu0 %v5213
    %5289 = vmatpush.bf16.msra.mxu0 %v5212
    %5290 = vmatpush.bf16.msra.mxu0 %v5211
    %5291 = vmatpush.bf16.msra.mxu0 %v5210
    %5292 = vmatmul.bf16.gmra.mxu0 %v4996
    %v5293 = vpop.f32.mrf.mxu0
    %v5294 = vadd.f32 %v5281, %v5293
    %v5295 = vpop.f32.mrf.mxu0
    %5296 = vdwg.mxu0
    %5297 = vmatpush.bf16.msra.mxu0 %v5225
    %5298 = vmatpush.bf16.msra.mxu0 %v5224
    %5299 = vmatpush.bf16.msra.mxu0 %v5223
    %5300 = vmatpush.bf16.msra.mxu0 %v5222
    %5301 = vmatpush.bf16.msra.mxu0 %v5221
    %5302 = vmatpush.bf16.msra.mxu0 %v5220
    %5303 = vmatpush.bf16.msra.mxu0 %v5219
    %5304 = vmatpush.bf16.msra.mxu0 %v5218
    %5305 = vmatmul.bf16.gmra.mxu0 %v4997
    %v5306 = vpop.f32.mrf.mxu0
    %v5307 = vadd.f32 %v5294, %v5306
    %v5308 = vpop.f32.mrf.mxu0
    %5309 = vdwg.mxu0
    %vm5310 = vcmask 517120
    %5311 = vst.msk [vmem:[#allocation2] sm:$0x3] %vm5310, %v5307
    // Predicated region
    $region38: #{encoder_cifar_forward.5} parent=1 // pred_check
      _
    $region39: #{encoder_cifar_forward.5} parent=1 // pred_check_branch
      %5313 = sbr.rel (0) target = $region41
    $region40: #{encoder_cifar_forward.5} parent=1 // pred_region
      %5315 = vsyncadd [#allocation3], 0
      %s5317 = sshll.u32 [#allocation2], 4
      %s5318 = int_to_ptr.vmem [resolvable:$true] %s5317
      %s5319 = sshll.u32 %s9, 4
      %s5320 = int_to_ptr.hbm [resolvable:$true] %s5319
      %5322 = dma.vmem_to_hbm [thread:$0]  %s5318, 32, %s5320, [#allocation3]
    $region41: #{encoder_cifar_forward.5} parent=1 // pred_fallthru
      _
    // Predicated region
    $region42: #{encoder_cifar_forward.5} parent=1 // pred_check
      _
    $region43: #{encoder_cifar_forward.5} parent=1 // pred_check_branch
      %5324 = sbr.rel (0) target = $region45
    $region44: #{encoder_cifar_forward.5} parent=1 // pred_region
      %5326 = dma.done [#allocation3], 32
    $region45: #{encoder_cifar_forward.5} parent=1 // pred_fallthru
      _
    %5327 = vsyncpa [#allocation3], 1

</llo_original>
